<compile_context>
chip_gen: v5e
topology: v5e:2x2
jax: 0.10.0
libtpu: 0.0.40
codegen_flags: <defaults>
</compile_context>

<pallas_src>
import math

import jax
import jax.numpy as jnp
from jax.experimental import pallas as pl
from jax.experimental.pallas import tpu as pltpu

KSIZE = 5

# bf16 MXU operands (f32 accumulation).  False -> pure f32 (strict validation).
MXU_BF16 = True
_MXU_DTYPE = jnp.bfloat16 if MXU_BF16 else jnp.float32

_VMEM_LIMIT = 48 * 1024 * 1024     # headroom on v7x's 64 MiB / TensorCore
_VMEM_BUDGET = 24 * 1024 * 1024    # target per-step working set when picking TR
_TR_CAP = 32                       # max input rows per block


# -----------------------------------------------------------------------------
# Fused (ConvTranspose2d k=5 s=2 p=2 op=1) [+ optional inverse-GDN] kernel.
#
# With x_pad = x padded by 1 pixel on each border, the transposed conv is
#   out[2R+py, 2c+px, co] = sum_{dy,dx,ci} x_pad[R+py+dy, c+px+dx, ci] * Wp[py,px][dy,dx,ci,co]
# with (ty, tx) = (3-py, 3-px) and Wp[py,px][dy,dx] = wt[:,:,(4-py)-2dy,(4-px)-2dx].
# The px=0/px=1 weights are fused along the output dim (odd-col kernel zero-padded
# to 3 column taps), so one dot per (py, dy) yields both column phases.
# -----------------------------------------------------------------------------
def _make_deconv_kernel(TR, W, Cin, Cout, fuse_igdn):
    K = 3 * Cin
    N2 = 2 * Cout

    def kernel(*refs):
        if fuse_igdn:
            xa_ref, xb_ref, w0_ref, w1_ref, b_ref, g_ref, beta_ref, o_ref = refs
        else:
            xa_ref, xb_ref, w0_ref, w1_ref, b_ref, o_ref = refs
            g_ref = beta_ref = None

        # (TR+2, W+2, Cin): this block's TR input rows + 2-row halo (leading-dim concat).
        xall = jnp.concatenate([xa_ref[...], xb_ref[...]], axis=0)

        # Single im2col slab shared by all 5 dots: the three column shifts are
        # folded onto the lane (contraction) dim exactly once per block.
        im_full = jnp.concatenate(
            [xall[:, dx:dx + W, :] for dx in range(3)], axis=-1)      # (TR+2, W, 3*Cin)

        def conv_rows(py, w_ref, ty):
            acc = None
            for dy in range(ty):
                im = im_full[py + dy: py + dy + TR].reshape(TR * W, K)
                d = jnp.dot(im, w_ref[dy], preferred_element_type=jnp.float32)
                acc = d if acc is None else acc + d
            z = acc + b_ref[...]                                      # (TR*W, 2*Cout) f32
            if fuse_igdn:
                # inverse GDN for both column phases at once (gamma = blockdiag(g, g)).
                zz = (z * z).astype(g_ref.dtype)
                norm = jnp.dot(zz, g_ref[...], preferred_element_type=jnp.float32)
                z = z * jnp.sqrt(norm + beta_ref[...])
            return z.reshape(TR, W, N2)

        out_even = conv_rows(0, w0_ref, 3)      # output rows 2R
        out_odd = conv_rows(1, w1_ref, 2)       # output rows 2R+1
        # Row interleave touches leading dims only (no cross-lane/sublane shuffle);
        # column interleave is deferred to a free row-major reshape in the wrapper.
        out = jnp.stack([out_even, out_odd], axis=1).reshape(2 * TR, W, N2)
        o_ref[...] = out.astype(o_ref.dtype)

    return kernel


def _choose_tr(H, W, Cin, Cout, act_bytes, out_bytes):
    """Largest even row-block that keeps the per-step working set under budget."""
    best = 2
    for tr in range(2, max(2, min(_TR_CAP, H)) + 1, 2):
        blk_in = tr * (W + 2) * Cin * act_bytes * 2                   # double-buffered
        halo = 2 * (W + 2) * Cin * act_bytes * 2
        blk_out = 2 * tr * W * 2 * Cout * out_bytes * 2
        weights = (5 * 3 * Cin * 2 * Cout + (2 * Cout) ** 2 + 4 * Cout) * act_bytes * 2
        tmp = ((tr + 2) * (W + 2) * Cin + (tr + 2) * W * 3 * Cin
               + tr * W * 3 * Cin) * act_bytes + 4 * tr * W * 2 * Cout * 4
        if blk_in + halo + blk_out + weights + tmp <= _VMEM_BUDGET:
            best = tr
    return best


def deconv_igdn_pallas(x_nhwc, layer, fuse_igdn, out_dtype):
    """x_nhwc: (N, H, W, Cin).  Returns (N, 2H, 2W, Cout)."""
    N, H, W, Cin = x_nhwc.shape
    two_cout = layer["bias"].shape[-1]
    Cout = two_cout // 2

    act_bytes = jnp.dtype(x_nhwc.dtype).itemsize
    out_bytes = jnp.dtype(out_dtype).itemsize
    TR = _choose_tr(H, W, Cin, Cout, act_bytes, out_bytes)
    nb = -(-H // TR)                  # ceil
    H_pad = nb * TR
    rows_total = H_pad + TR           # divisible by TR and 2; >= H_pad + 2

    # 1-pixel zero border (+ extra zero rows at the bottom for divisibility).
    xp = jnp.pad(x_nhwc, ((0, 0), (1, rows_total - H - 1), (1, 1), (0, 0)))

    kernel = _make_deconv_kernel(TR, W, Cin, Cout, fuse_igdn)
    half_tr = TR // 2

    in_specs = [
        # TR-row main block of padded input rows.
        pl.BlockSpec((None, TR, W + 2, Cin), lambda n, t: (n, t, 0, 0)),
        # 2-row halo block (padded rows [(t+1)*TR, (t+1)*TR + 2)).
        pl.BlockSpec((None, 2, W + 2, Cin),
                     lambda n, t: (n, (t + 1) * half_tr, 0, 0)),
        pl.BlockSpec((3, 3 * Cin, two_cout), lambda n, t: (0, 0, 0)),
        pl.BlockSpec((2, 3 * Cin, two_cout), lambda n, t: (0, 0, 0)),
        pl.BlockSpec((1, two_cout), lambda n, t: (0, 0)),
    ]
    args = [xp, xp, layer["w0"], layer["w1"], layer["bias"]]
    if fuse_igdn:
        in_specs += [
            pl.BlockSpec((two_cout, two_cout), lambda n, t: (0, 0)),
            pl.BlockSpec((1, two_cout), lambda n, t: (0, 0)),
        ]
        args += [layer["gamma"], layer["beta"]]

    out = pl.pallas_call(
        kernel,
        out_shape=jax.ShapeDtypeStruct((N, 2 * H_pad, W, two_cout), out_dtype),
        grid=(N, nb),
        in_specs=in_specs,
        out_specs=pl.BlockSpec((None, 2 * TR, W, two_cout),
                               lambda n, t: (n, t, 0, 0)),
        compiler_params=pltpu.CompilerParams(
            dimension_semantics=("parallel", "parallel"),
            vmem_limit_bytes=_VMEM_LIMIT),
    )(*args)

    # (N, 2H, W, 2*Cout) -> (N, 2H, 2W, Cout): identical row-major layout => free reshape.
    out = out.reshape(N, 2 * H_pad, 2 * W, Cout)
    if H_pad != H:
        out = out[:, : 2 * H]
    return out


# -----------------------------------------------------------------------------
# Parameter construction (mirrors the PyTorch __init__) and one-time preparation
# into kernel-ready fused-polyphase form (hoisted out of the forward path).
# -----------------------------------------------------------------------------
def _xavier_normal_convT(key, cin, cout, k, gain):
    # PyTorch ConvTranspose2d weight shape (Cin, Cout, k, k): fan_in = Cout*k*k.
    fan_in = cout * k * k
    fan_out = cin * k * k
    std = gain * math.sqrt(2.0 / (fan_in + fan_out))
    return std * jax.random.normal(key, (cin, cout, k, k), dtype=jnp.float32)


def _gdn_effective_params(ch, beta_min=1e-6, gamma_init=0.1, reparam_offset=2.0 ** (-18)):
    # GDN reparameterization (low_bound, square, subtract pedestal) with default init.
    pedestal = reparam_offset ** 2
    beta_bound = (beta_min + pedestal) ** 0.5
    gamma_bound = reparam_offset
    beta_p = jnp.sqrt(jnp.ones((ch,), jnp.float32) + pedestal)
    gamma_p = jnp.sqrt(gamma_init * jnp.eye(ch, dtype=jnp.float32) + pedestal)
    beta = jnp.maximum(beta_p, beta_bound) ** 2 - pedestal
    gamma = jnp.maximum(gamma_p, gamma_bound) ** 2 - pedestal
    gamma_mat = gamma.T                 # (ci, co): kernel computes x^2 @ gamma
    return gamma_mat, beta.reshape(1, ch)


def _prepare_deconv_weights(wt, bias, mxu_dtype):
    """(Cin, Cout, 5, 5) ConvTranspose2d weight -> fused polyphase matmul weights."""
    cin, cout = int(wt.shape[0]), int(wt.shape[1])
    wt_t = jnp.transpose(wt, (2, 3, 0, 1)).astype(jnp.float32)    # (ky, kx, Cin, Cout)
    zeros = jnp.zeros((cin, cout), jnp.float32)

    def row_weight(ys, xs):
        per_dy = []
        for ky in ys:
            blocks = [zeros if kx is None else wt_t[ky, kx] for kx in xs]
            per_dy.append(jnp.concatenate(blocks, axis=0))         # (3*Cin, Cout)
        return jnp.stack(per_dy, axis=0)                           # (ty, 3*Cin, Cout)

    even_cols = [4, 2, 0]        # kx for im taps dx = 0, 1, 2 (even output columns)
    odd_cols = [None, 3, 1]      # odd output columns: im tap dx=0 unused (zero pad)
    w0 = jnp.concatenate([row_weight([4, 2, 0], even_cols),
                          row_weight([4, 2, 0], odd_cols)], axis=-1)   # (3, 3Cin, 2Cout)
    w1 = jnp.concatenate([row_weight([3, 1], even_cols),
                          row_weight([3, 1], odd_cols)], axis=-1)      # (2, 3Cin, 2Cout)
    return {
        "w0": w0.astype(mxu_dtype),
        "w1": w1.astype(mxu_dtype),
        "bias": jnp.tile(bias.reshape(1, cout).astype(jnp.float32), (1, 2)),
    }


def init_synthesis_params(key, out_channel_N, out_channel_M):
    keys = jax.random.split(key, 4)
    g1 = math.sqrt(2 * 1 * (out_channel_M + out_channel_N) / (out_channel_M + out_channel_M))
    g2 = math.sqrt(2 * 1)
    g3 = math.sqrt(2 * 1)
    g4 = math.sqrt(2 * 1 * (out_channel_N + 3) / (out_channel_N + out_channel_N))
    return {
        "w1": _xavier_normal_convT(keys[0], out_channel_M, out_channel_N, KSIZE, g1),
        "b1": jnp.full((out_channel_N,), 0.01, jnp.float32),
        "w2": _xavier_normal_convT(keys[1], out_channel_N, out_channel_N, KSIZE, g2),
        "b2": jnp.full((out_channel_N,), 0.01, jnp.float32),
        "w3": _xavier_normal_convT(keys[2], out_channel_N, out_channel_N, KSIZE, g3),
        "b3": jnp.full((out_channel_N,), 0.01, jnp.float32),
        "w4": _xavier_normal_convT(keys[3], out_channel_N, 3, KSIZE, g4),
        "b4": jnp.full((3,), 0.01, jnp.float32),
    }


def prepare_synthesis_params(raw, out_channel_N, mxu_dtype=_MXU_DTYPE):
    gamma_mat, beta = _gdn_effective_params(out_channel_N)
    zg = jnp.zeros_like(gamma_mat)
    # Block-diagonal gamma (off-diagonal blocks exactly zero) for the fused 2*Cout layout.
    gamma2 = jnp.concatenate(
        [jnp.concatenate([gamma_mat, zg], axis=1),
         jnp.concatenate([zg, gamma_mat], axis=1)], axis=0).astype(mxu_dtype)
    beta2 = jnp.tile(beta, (1, 2))
    layers = []
    for i in range(1, 5):
        layer = _prepare_deconv_weights(raw[f"w{i}"], raw[f"b{i}"], mxu_dtype)
        if i < 4:
            layer["gamma"] = gamma2
            layer["beta"] = beta2
        layers.append(layer)
    return layers


def synthesis_net_forward(x_nchw, layers):
    """Forward pass of Synthesis_net.  Input/output in NCHW (PyTorch convention)."""
    x = jnp.transpose(x_nchw, (0, 2, 3, 1)).astype(_MXU_DTYPE)       # NCHW -> NHWC
    x = deconv_igdn_pallas(x, layers[0], fuse_igdn=True, out_dtype=_MXU_DTYPE)
    x = deconv_igdn_pallas(x, layers[1], fuse_igdn=True, out_dtype=_MXU_DTYPE)
    x = deconv_igdn_pallas(x, layers[2], fuse_igdn=True, out_dtype=_MXU_DTYPE)
    x = deconv_igdn_pallas(x, layers[3], fuse_igdn=False, out_dtype=jnp.float32)
    return jnp.transpose(x, (0, 3, 1, 2))                            # NHWC -> NCHW


# -----------------------------------------------------------------------------
# Pure-JAX reference (numerical validation of the Pallas kernels).
# -----------------------------------------------------------------------------
def _reference_forward(x_nchw, raw, out_channel_N):
    gamma_mat, beta = _gdn_effective_params(out_channel_N)
    hp = jax.lax.Precision.HIGHEST

    def deconv(x, wt, b):
        w = jnp.transpose(wt[:, :, ::-1, ::-1], (2, 3, 0, 1))        # HWIO, flipped
        y = jax.lax.conv_general_dilated(
            x, w, window_strides=(1, 1), padding=((2, 3), (2, 3)),
            lhs_dilation=(2, 2), rhs_dilation=(1, 1),
            dimension_numbers=("NHWC", "HWIO", "NHWC"), precision=hp)
        return y + b.reshape(1, 1, 1, -1)

    def igdn(x):
        norm = jnp.sqrt(jnp.einsum("nhwc,cd->nhwd", x * x, gamma_mat, precision=hp)
                        + beta.reshape(1, 1, 1, -1))
        return x * norm

    x = jnp.transpose(x_nchw, (0, 2, 3, 1))
    x = igdn(deconv(x, raw["w1"], raw["b1"]))
    x = igdn(deconv(x, raw["w2"], raw["b2"]))
    x = igdn(deconv(x, raw["w3"], raw["b3"]))
    x = deconv(x, raw["w4"], raw["b4"])
    return jnp.transpose(x, (0, 3, 1, 2))


if __name__ == "__main__":
    # Small shapes consistent with the module (4 stride-2 upsamples: 4 -> 64).
    out_channel_N = 8
    out_channel_M = 16
    batch, spatial = 2, 4

    key = jax.random.PRNGKey(0)
    raw = init_synthesis_params(key, out_channel_N, out_channel_M)
    layers = prepare_synthesis_params(raw, out_channel_N)
    x = jax.random.normal(jax.random.fold_in(key, 123),
                          (batch, out_channel_M, spatial, spatial), jnp.float32)

    y = jax.jit(synthesis_net_forward)(x, layers)
    y = jax.block_until_ready(y)

    assert y.shape == (batch, 3, spatial * 16, spatial * 16), y.shape
    assert bool(jnp.all(jnp.isfinite(y)))

    # f32 accumulation on bf16 MXU operands compounds over the 4-layer GDN chain;
    # use a looser elementwise tolerance for the bf16 build (f32 build holds 5e-3).
    y_ref = _reference_forward(x, raw, out_channel_N)
    tol = 3e-2 if MXU_BF16 else 5e-3
    assert bool(jnp.allclose(y, y_ref, rtol=tol, atol=tol)), (
        float(jnp.max(jnp.abs(y - y_ref))))

    print("KERNEL_OK")
</pallas_src>

<mosaic_0001>
module attributes {stable_mosaic.version = 11 : i64} {
  func.func @kernel(%arg0: i32, %arg1: i32, %arg2: memref<1x4x6x16xbf16, #tpu.memory_space<vmem>>, %arg3: memref<1x2x6x16xbf16, #tpu.memory_space<vmem>>, %arg4: memref<3x48x16xbf16, #tpu.memory_space<vmem>>, %arg5: memref<2x48x16xbf16, #tpu.memory_space<vmem>>, %arg6: memref<1x16xf32, #tpu.memory_space<vmem>>, %arg7: memref<16x16xbf16, #tpu.memory_space<vmem>>, %arg8: memref<1x16xf32, #tpu.memory_space<vmem>>, %arg9: memref<1x8x4x16xbf16, #tpu.memory_space<vmem>>) attributes {dimension_semantics = [#tpu.dimension_semantics<parallel>, #tpu.dimension_semantics<parallel>], iteration_bounds = array<i64: 2, 1>, scalar_prefetch = 0 : i64, scratch_operands = 0 : i64, tpu.core_type = #tpu.core_type<tc>, window_params = [{transform_indices = @transform_0, window_bounds = array<i64: 1, 4, 6, 16>}, {transform_indices = @transform_1, window_bounds = array<i64: 1, 2, 6, 16>}, {pipeline_mode = #tpu.pipeline_mode<synchronous>, transform_indices = @transform_2, window_bounds = array<i64: 3, 48, 16>}, {pipeline_mode = #tpu.pipeline_mode<synchronous>, transform_indices = @transform_3, window_bounds = array<i64: 2, 48, 16>}, {pipeline_mode = #tpu.pipeline_mode<synchronous>, transform_indices = @transform_4, window_bounds = array<i64: 1, 16>}, {pipeline_mode = #tpu.pipeline_mode<synchronous>, transform_indices = @transform_5, window_bounds = array<i64: 16, 16>}, {pipeline_mode = #tpu.pipeline_mode<synchronous>, transform_indices = @transform_6, window_bounds = array<i64: 1, 16>}, {transform_indices = @transform_7, window_bounds = array<i64: 1, 8, 4, 16>}]} {
    %c0 = arith.constant 0 : index
    %c0_0 = arith.constant 0 : index
    %c0_1 = arith.constant 0 : index
    %c0_2 = arith.constant 0 : index
    %0 = vector.load %arg2[%c0, %c0_0, %c0_1, %c0_2] : memref<1x4x6x16xbf16, #tpu.memory_space<vmem>>, vector<1x4x6x16xbf16>
    %1 = vector.shape_cast %0 : vector<1x4x6x16xbf16> to vector<4x6x16xbf16>
    %c0_3 = arith.constant 0 : index
    %c0_4 = arith.constant 0 : index
    %c0_5 = arith.constant 0 : index
    %c0_6 = arith.constant 0 : index
    %2 = vector.load %arg3[%c0_3, %c0_4, %c0_5, %c0_6] : memref<1x2x6x16xbf16, #tpu.memory_space<vmem>>, vector<1x2x6x16xbf16>
    %3 = vector.shape_cast %2 : vector<1x2x6x16xbf16> to vector<2x6x16xbf16>
    %4 = tpu.concatenate %1, %3 in 0 : vector<4x6x16xbf16>, vector<2x6x16xbf16> -> vector<6x6x16xbf16>
    %5 = vector.extract_strided_slice %4 {offsets = [0, 0, 0], sizes = [6, 4, 16], strides = [1, 1, 1]} : vector<6x6x16xbf16> to vector<6x4x16xbf16>
    %6 = vector.extract_strided_slice %4 {offsets = [0, 1, 0], sizes = [6, 4, 16], strides = [1, 1, 1]} : vector<6x6x16xbf16> to vector<6x4x16xbf16>
    %7 = vector.extract_strided_slice %4 {offsets = [0, 2, 0], sizes = [6, 4, 16], strides = [1, 1, 1]} : vector<6x6x16xbf16> to vector<6x4x16xbf16>
    %8 = tpu.concatenate %5, %6, %7 in 2 : vector<6x4x16xbf16>, vector<6x4x16xbf16>, vector<6x4x16xbf16> -> vector<6x4x48xbf16>
    %9 = vector.extract_strided_slice %8 {offsets = [0, 0, 0], sizes = [4, 4, 48], strides = [1, 1, 1]} : vector<6x4x48xbf16> to vector<4x4x48xbf16>
    %10 = vector.shape_cast %9 : vector<4x4x48xbf16> to vector<16x48xbf16>
    %c0_7 = arith.constant 0 : index
    %c0_8 = arith.constant 0 : index
    %c0_9 = arith.constant 0 : index
    %11 = vector.load %arg4[%c0_7, %c0_8, %c0_9] : memref<3x48x16xbf16, #tpu.memory_space<vmem>>, vector<1x48x16xbf16>
    %12 = vector.shape_cast %11 : vector<1x48x16xbf16> to vector<48x16xbf16>
    %cst = arith.constant dense<0.000000e+00> : vector<16x16xf32>
    %13 = tpu.matmul %10, %12, %cst {dimension_numbers = #tpu.dot_dimension_numbers<[1], [0], [0], [1], [0, 0, 1, 1], [], []>} : vector<16x48xbf16>, vector<48x16xbf16>, vector<16x16xf32> -> vector<16x16xf32>
    %14 = vector.extract_strided_slice %8 {offsets = [1, 0, 0], sizes = [4, 4, 48], strides = [1, 1, 1]} : vector<6x4x48xbf16> to vector<4x4x48xbf16>
    %15 = vector.shape_cast %14 : vector<4x4x48xbf16> to vector<16x48xbf16>
    %c1 = arith.constant 1 : index
    %c0_10 = arith.constant 0 : index
    %c0_11 = arith.constant 0 : index
    %16 = vector.load %arg4[%c1, %c0_10, %c0_11] : memref<3x48x16xbf16, #tpu.memory_space<vmem>>, vector<1x48x16xbf16>
    %17 = vector.shape_cast %16 : vector<1x48x16xbf16> to vector<48x16xbf16>
    %cst_12 = arith.constant dense<0.000000e+00> : vector<16x16xf32>
    %18 = tpu.matmul %15, %17, %cst_12 {dimension_numbers = #tpu.dot_dimension_numbers<[1], [0], [0], [1], [0, 0, 1, 1], [], []>} : vector<16x48xbf16>, vector<48x16xbf16>, vector<16x16xf32> -> vector<16x16xf32>
    %19 = arith.addf %13, %18 : vector<16x16xf32>
    %20 = vector.extract_strided_slice %8 {offsets = [2, 0, 0], sizes = [4, 4, 48], strides = [1, 1, 1]} : vector<6x4x48xbf16> to vector<4x4x48xbf16>
    %21 = vector.shape_cast %20 : vector<4x4x48xbf16> to vector<16x48xbf16>
    %c2 = arith.constant 2 : index
    %c0_13 = arith.constant 0 : index
    %c0_14 = arith.constant 0 : index
    %22 = vector.load %arg4[%c2, %c0_13, %c0_14] : memref<3x48x16xbf16, #tpu.memory_space<vmem>>, vector<1x48x16xbf16>
    %23 = vector.shape_cast %22 : vector<1x48x16xbf16> to vector<48x16xbf16>
    %cst_15 = arith.constant dense<0.000000e+00> : vector<16x16xf32>
    %24 = tpu.matmul %21, %23, %cst_15 {dimension_numbers = #tpu.dot_dimension_numbers<[1], [0], [0], [1], [0, 0, 1, 1], [], []>} : vector<16x48xbf16>, vector<48x16xbf16>, vector<16x16xf32> -> vector<16x16xf32>
    %25 = arith.addf %19, %24 : vector<16x16xf32>
    %c0_16 = arith.constant 0 : index
    %c0_17 = arith.constant 0 : index
    %26 = vector.load %arg6[%c0_16, %c0_17] : memref<1x16xf32, #tpu.memory_space<vmem>>, vector<1x16xf32>
    %27 = vector.broadcast %26 : vector<1x16xf32> to vector<16x16xf32>
    %28 = arith.addf %25, %27 : vector<16x16xf32>
    %29 = arith.mulf %28, %28 : vector<16x16xf32>
    %30 = arith.truncf %29 : vector<16x16xf32> to vector<16x16xbf16>
    %c0_18 = arith.constant 0 : index
    %c0_19 = arith.constant 0 : index
    %31 = vector.load %arg7[%c0_18, %c0_19] : memref<16x16xbf16, #tpu.memory_space<vmem>>, vector<16x16xbf16>
    %cst_20 = arith.constant dense<0.000000e+00> : vector<16x16xf32>
    %32 = tpu.matmul %30, %31, %cst_20 {dimension_numbers = #tpu.dot_dimension_numbers<[1], [0], [0], [1], [0, 0, 1, 1], [], []>} : vector<16x16xbf16>, vector<16x16xbf16>, vector<16x16xf32> -> vector<16x16xf32>
    %c0_21 = arith.constant 0 : index
    %c0_22 = arith.constant 0 : index
    %33 = vector.load %arg8[%c0_21, %c0_22] : memref<1x16xf32, #tpu.memory_space<vmem>>, vector<1x16xf32>
    %34 = vector.broadcast %33 : vector<1x16xf32> to vector<16x16xf32>
    %35 = arith.addf %32, %34 : vector<16x16xf32>
    %36 = math.sqrt %35 : vector<16x16xf32>
    %37 = arith.mulf %28, %36 : vector<16x16xf32>
    %38 = vector.shape_cast %37 : vector<16x16xf32> to vector<4x4x16xf32>
    %39 = vector.extract_strided_slice %8 {offsets = [1, 0, 0], sizes = [4, 4, 48], strides = [1, 1, 1]} : vector<6x4x48xbf16> to vector<4x4x48xbf16>
    %40 = vector.shape_cast %39 : vector<4x4x48xbf16> to vector<16x48xbf16>
    %c0_23 = arith.constant 0 : index
    %c0_24 = arith.constant 0 : index
    %c0_25 = arith.constant 0 : index
    %41 = vector.load %arg5[%c0_23, %c0_24, %c0_25] : memref<2x48x16xbf16, #tpu.memory_space<vmem>>, vector<1x48x16xbf16>
    %42 = vector.shape_cast %41 : vector<1x48x16xbf16> to vector<48x16xbf16>
    %cst_26 = arith.constant dense<0.000000e+00> : vector<16x16xf32>
    %43 = tpu.matmul %40, %42, %cst_26 {dimension_numbers = #tpu.dot_dimension_numbers<[1], [0], [0], [1], [0, 0, 1, 1], [], []>} : vector<16x48xbf16>, vector<48x16xbf16>, vector<16x16xf32> -> vector<16x16xf32>
    %44 = vector.extract_strided_slice %8 {offsets = [2, 0, 0], sizes = [4, 4, 48], strides = [1, 1, 1]} : vector<6x4x48xbf16> to vector<4x4x48xbf16>
    %45 = vector.shape_cast %44 : vector<4x4x48xbf16> to vector<16x48xbf16>
    %c1_27 = arith.constant 1 : index
    %c0_28 = arith.constant 0 : index
    %c0_29 = arith.constant 0 : index
    %46 = vector.load %arg5[%c1_27, %c0_28, %c0_29] : memref<2x48x16xbf16, #tpu.memory_space<vmem>>, vector<1x48x16xbf16>
    %47 = vector.shape_cast %46 : vector<1x48x16xbf16> to vector<48x16xbf16>
    %cst_30 = arith.constant dense<0.000000e+00> : vector<16x16xf32>
    %48 = tpu.matmul %45, %47, %cst_30 {dimension_numbers = #tpu.dot_dimension_numbers<[1], [0], [0], [1], [0, 0, 1, 1], [], []>} : vector<16x48xbf16>, vector<48x16xbf16>, vector<16x16xf32> -> vector<16x16xf32>
    %49 = arith.addf %43, %48 : vector<16x16xf32>
    %c0_31 = arith.constant 0 : index
    %c0_32 = arith.constant 0 : index
    %50 = vector.load %arg6[%c0_31, %c0_32] : memref<1x16xf32, #tpu.memory_space<vmem>>, vector<1x16xf32>
    %51 = vector.broadcast %50 : vector<1x16xf32> to vector<16x16xf32>
    %52 = arith.addf %49, %51 : vector<16x16xf32>
    %53 = arith.mulf %52, %52 : vector<16x16xf32>
    %54 = arith.truncf %53 : vector<16x16xf32> to vector<16x16xbf16>
    %c0_33 = arith.constant 0 : index
    %c0_34 = arith.constant 0 : index
    %55 = vector.load %arg7[%c0_33, %c0_34] : memref<16x16xbf16, #tpu.memory_space<vmem>>, vector<16x16xbf16>
    %cst_35 = arith.constant dense<0.000000e+00> : vector<16x16xf32>
    %56 = tpu.matmul %54, %55, %cst_35 {dimension_numbers = #tpu.dot_dimension_numbers<[1], [0], [0], [1], [0, 0, 1, 1], [], []>} : vector<16x16xbf16>, vector<16x16xbf16>, vector<16x16xf32> -> vector<16x16xf32>
    %c0_36 = arith.constant 0 : index
    %c0_37 = arith.constant 0 : index
    %57 = vector.load %arg8[%c0_36, %c0_37] : memref<1x16xf32, #tpu.memory_space<vmem>>, vector<1x16xf32>
    %58 = vector.broadcast %57 : vector<1x16xf32> to vector<16x16xf32>
    %59 = arith.addf %56, %58 : vector<16x16xf32>
    %60 = math.sqrt %59 : vector<16x16xf32>
    %61 = arith.mulf %52, %60 : vector<16x16xf32>
    %62 = vector.shape_cast %61 : vector<16x16xf32> to vector<4x4x16xf32>
    %63 = vector.shape_cast %38 : vector<4x4x16xf32> to vector<4x1x4x16xf32>
    %64 = vector.shape_cast %62 : vector<4x4x16xf32> to vector<4x1x4x16xf32>
    %65 = tpu.concatenate %63, %64 in 1 : vector<4x1x4x16xf32>, vector<4x1x4x16xf32> -> vector<4x2x4x16xf32>
    %66 = vector.shape_cast %65 : vector<4x2x4x16xf32> to vector<8x4x16xf32>
    %67 = arith.truncf %66 : vector<8x4x16xf32> to vector<8x4x16xbf16>
    %c0_38 = arith.constant 0 : index
    %c0_39 = arith.constant 0 : index
    %c0_40 = arith.constant 0 : index
    %c0_41 = arith.constant 0 : index
    %68 = vector.load %arg9[%c0_38, %c0_39, %c0_40, %c0_41] : memref<1x8x4x16xbf16, #tpu.memory_space<vmem>>, vector<1x8x4x16xbf16>
    %69 = vector.shape_cast %68 : vector<1x8x4x16xbf16> to vector<8x4x16xbf16>
    %70 = vector.shape_cast %67 : vector<8x4x16xbf16> to vector<1x8x4x16xbf16>
    tpu.vector_store %arg9[%c0_38, %c0_39, %c0_40, %c0_41], %70 {strides = array<i32>} : memref<1x8x4x16xbf16, #tpu.memory_space<vmem>>, vector<1x8x4x16xbf16>,
    return
  }
  func.func @transform_0(%arg0: i32, %arg1: i32) -> (i32, i32, i32, i32) {
    %c0_i32 = arith.constant 0 : i32
    %c0_i32_0 = arith.constant 0 : i32
    %c0_i32_1 = arith.constant 0 : i32
    return %arg0, %arg1, %c0_i32, %c0_i32_0 : i32, i32, i32, i32
  }
  func.func @transform_1(%arg0: i32, %arg1: i32) -> (i32, i32, i32, i32) {
    %c1_i32 = arith.constant 1 : i32
    %0 = arith.addi %arg1, %c1_i32 : i32
    %c2_i32 = arith.constant 2 : i32
    %1 = arith.muli %0, %c2_i32 : i32
    %c0_i32 = arith.constant 0 : i32
    %c0_i32_0 = arith.constant 0 : i32
    %c0_i32_1 = arith.constant 0 : i32
    return %arg0, %1, %c0_i32, %c0_i32_0 : i32, i32, i32, i32
  }
  func.func @transform_2(%arg0: i32, %arg1: i32) -> (i32, i32, i32) {
    %c0_i32 = arith.constant 0 : i32
    %c0_i32_0 = arith.constant 0 : i32
    %c0_i32_1 = arith.constant 0 : i32
    %c0_i32_2 = arith.constant 0 : i32
    return %c0_i32, %c0_i32_0, %c0_i32_1 : i32, i32, i32
  }
  func.func @transform_3(%arg0: i32, %arg1: i32) -> (i32, i32, i32) {
    %c0_i32 = arith.constant 0 : i32
    %c0_i32_0 = arith.constant 0 : i32
    %c0_i32_1 = arith.constant 0 : i32
    %c0_i32_2 = arith.constant 0 : i32
    return %c0_i32, %c0_i32_0, %c0_i32_1 : i32, i32, i32
  }
  func.func @transform_4(%arg0: i32, %arg1: i32) -> (i32, i32) {
    %c0_i32 = arith.constant 0 : i32
    %c0_i32_0 = arith.constant 0 : i32
    %c0_i32_1 = arith.constant 0 : i32
    return %c0_i32, %c0_i32_0 : i32, i32
  }
  func.func @transform_5(%arg0: i32, %arg1: i32) -> (i32, i32) {
    %c0_i32 = arith.constant 0 : i32
    %c0_i32_0 = arith.constant 0 : i32
    %c0_i32_1 = arith.constant 0 : i32
    return %c0_i32, %c0_i32_0 : i32, i32
  }
  func.func @transform_6(%arg0: i32, %arg1: i32) -> (i32, i32) {
    %c0_i32 = arith.constant 0 : i32
    %c0_i32_0 = arith.constant 0 : i32
    %c0_i32_1 = arith.constant 0 : i32
    return %c0_i32, %c0_i32_0 : i32, i32
  }
  func.func @transform_7(%arg0: i32, %arg1: i32) -> (i32, i32, i32, i32) {
    %c0_i32 = arith.constant 0 : i32
    %c0_i32_0 = arith.constant 0 : i32
    %c0_i32_1 = arith.constant 0 : i32
    return %arg0, %arg1, %c0_i32, %c0_i32_0 : i32, i32, i32, i32
  }
}

module attributes {stable_mosaic.version = 11 : i64} {
  func.func @kernel(%arg0: i32, %arg1: i32, %arg2: memref<1x8x10x8xbf16, #tpu.memory_space<vmem>>, %arg3: memref<1x2x10x8xbf16, #tpu.memory_space<vmem>>, %arg4: memref<3x24x16xbf16, #tpu.memory_space<vmem>>, %arg5: memref<2x24x16xbf16, #tpu.memory_space<vmem>>, %arg6: memref<1x16xf32, #tpu.memory_space<vmem>>, %arg7: memref<16x16xbf16, #tpu.memory_space<vmem>>, %arg8: memref<1x16xf32, #tpu.memory_space<vmem>>, %arg9: memref<1x16x8x16xbf16, #tpu.memory_space<vmem>>) attributes {dimension_semantics = [#tpu.dimension_semantics<parallel>, #tpu.dimension_semantics<parallel>], iteration_bounds = array<i64: 2, 1>, scalar_prefetch = 0 : i64, scratch_operands = 0 : i64, tpu.core_type = #tpu.core_type<tc>, window_params = [{transform_indices = @transform_0, window_bounds = array<i64: 1, 8, 10, 8>}, {transform_indices = @transform_1, window_bounds = array<i64: 1, 2, 10, 8>}, {pipeline_mode = #tpu.pipeline_mode<synchronous>, transform_indices = @transform_2, window_bounds = array<i64: 3, 24, 16>}, {pipeline_mode = #tpu.pipeline_mode<synchronous>, transform_indices = @transform_3, window_bounds = array<i64: 2, 24, 16>}, {pipeline_mode = #tpu.pipeline_mode<synchronous>, transform_indices = @transform_4, window_bounds = array<i64: 1, 16>}, {pipeline_mode = #tpu.pipeline_mode<synchronous>, transform_indices = @transform_5, window_bounds = array<i64: 16, 16>}, {pipeline_mode = #tpu.pipeline_mode<synchronous>, transform_indices = @transform_6, window_bounds = array<i64: 1, 16>}, {transform_indices = @transform_7, window_bounds = array<i64: 1, 16, 8, 16>}]} {
    %c0 = arith.constant 0 : index
    %c0_0 = arith.constant 0 : index
    %c0_1 = arith.constant 0 : index
    %c0_2 = arith.constant 0 : index
    %0 = vector.load %arg2[%c0, %c0_0, %c0_1, %c0_2] : memref<1x8x10x8xbf16, #tpu.memory_space<vmem>>, vector<1x8x10x8xbf16>
    %1 = vector.shape_cast %0 : vector<1x8x10x8xbf16> to vector<8x10x8xbf16>
    %c0_3 = arith.constant 0 : index
    %c0_4 = arith.constant 0 : index
    %c0_5 = arith.constant 0 : index
    %c0_6 = arith.constant 0 : index
    %2 = vector.load %arg3[%c0_3, %c0_4, %c0_5, %c0_6] : memref<1x2x10x8xbf16, #tpu.memory_space<vmem>>, vector<1x2x10x8xbf16>
    %3 = vector.shape_cast %2 : vector<1x2x10x8xbf16> to vector<2x10x8xbf16>
    %4 = tpu.concatenate %1, %3 in 0 : vector<8x10x8xbf16>, vector<2x10x8xbf16> -> vector<10x10x8xbf16>
    %5 = vector.extract_strided_slice %4 {offsets = [0, 0, 0], sizes = [10, 8, 8], strides = [1, 1, 1]} : vector<10x10x8xbf16> to vector<10x8x8xbf16>
    %6 = vector.extract_strided_slice %4 {offsets = [0, 1, 0], sizes = [10, 8, 8], strides = [1, 1, 1]} : vector<10x10x8xbf16> to vector<10x8x8xbf16>
    %7 = vector.extract_strided_slice %4 {offsets = [0, 2, 0], sizes = [10, 8, 8], strides = [1, 1, 1]} : vector<10x10x8xbf16> to vector<10x8x8xbf16>
    %8 = tpu.concatenate %5, %6, %7 in 2 : vector<10x8x8xbf16>, vector<10x8x8xbf16>, vector<10x8x8xbf16> -> vector<10x8x24xbf16>
    %9 = vector.extract_strided_slice %8 {offsets = [0, 0, 0], sizes = [8, 8, 24], strides = [1, 1, 1]} : vector<10x8x24xbf16> to vector<8x8x24xbf16>
    %10 = vector.shape_cast %9 : vector<8x8x24xbf16> to vector<64x24xbf16>
    %c0_7 = arith.constant 0 : index
    %c0_8 = arith.constant 0 : index
    %c0_9 = arith.constant 0 : index
    %11 = vector.load %arg4[%c0_7, %c0_8, %c0_9] : memref<3x24x16xbf16, #tpu.memory_space<vmem>>, vector<1x24x16xbf16>
    %12 = vector.shape_cast %11 : vector<1x24x16xbf16> to vector<24x16xbf16>
    %cst = arith.constant dense<0.000000e+00> : vector<64x16xf32>
    %13 = tpu.matmul %10, %12, %cst {dimension_numbers = #tpu.dot_dimension_numbers<[1], [0], [0], [1], [0, 0, 1, 1], [], []>} : vector<64x24xbf16>, vector<24x16xbf16>, vector<64x16xf32> -> vector<64x16xf32>
    %14 = vector.extract_strided_slice %8 {offsets = [1, 0, 0], sizes = [8, 8, 24], strides = [1, 1, 1]} : vector<10x8x24xbf16> to vector<8x8x24xbf16>
    %15 = vector.shape_cast %14 : vector<8x8x24xbf16> to vector<64x24xbf16>
    %c1 = arith.constant 1 : index
    %c0_10 = arith.constant 0 : index
    %c0_11 = arith.constant 0 : index
    %16 = vector.load %arg4[%c1, %c0_10, %c0_11] : memref<3x24x16xbf16, #tpu.memory_space<vmem>>, vector<1x24x16xbf16>
    %17 = vector.shape_cast %16 : vector<1x24x16xbf16> to vector<24x16xbf16>
    %cst_12 = arith.constant dense<0.000000e+00> : vector<64x16xf32>
    %18 = tpu.matmul %15, %17, %cst_12 {dimension_numbers = #tpu.dot_dimension_numbers<[1], [0], [0], [1], [0, 0, 1, 1], [], []>} : vector<64x24xbf16>, vector<24x16xbf16>, vector<64x16xf32> -> vector<64x16xf32>
    %19 = arith.addf %13, %18 : vector<64x16xf32>
    %20 = vector.extract_strided_slice %8 {offsets = [2, 0, 0], sizes = [8, 8, 24], strides = [1, 1, 1]} : vector<10x8x24xbf16> to vector<8x8x24xbf16>
    %21 = vector.shape_cast %20 : vector<8x8x24xbf16> to vector<64x24xbf16>
    %c2 = arith.constant 2 : index
    %c0_13 = arith.constant 0 : index
    %c0_14 = arith.constant 0 : index
    %22 = vector.load %arg4[%c2, %c0_13, %c0_14] : memref<3x24x16xbf16, #tpu.memory_space<vmem>>, vector<1x24x16xbf16>
    %23 = vector.shape_cast %22 : vector<1x24x16xbf16> to vector<24x16xbf16>
    %cst_15 = arith.constant dense<0.000000e+00> : vector<64x16xf32>
    %24 = tpu.matmul %21, %23, %cst_15 {dimension_numbers = #tpu.dot_dimension_numbers<[1], [0], [0], [1], [0, 0, 1, 1], [], []>} : vector<64x24xbf16>, vector<24x16xbf16>, vector<64x16xf32> -> vector<64x16xf32>
    %25 = arith.addf %19, %24 : vector<64x16xf32>
    %c0_16 = arith.constant 0 : index
    %c0_17 = arith.constant 0 : index
    %26 = vector.load %arg6[%c0_16, %c0_17] : memref<1x16xf32, #tpu.memory_space<vmem>>, vector<1x16xf32>
    %27 = vector.broadcast %26 : vector<1x16xf32> to vector<64x16xf32>
    %28 = arith.addf %25, %27 : vector<64x16xf32>
    %29 = arith.mulf %28, %28 : vector<64x16xf32>
    %30 = arith.truncf %29 : vector<64x16xf32> to vector<64x16xbf16>
    %c0_18 = arith.constant 0 : index
    %c0_19 = arith.constant 0 : index
    %31 = vector.load %arg7[%c0_18, %c0_19] : memref<16x16xbf16, #tpu.memory_space<vmem>>, vector<16x16xbf16>
    %cst_20 = arith.constant dense<0.000000e+00> : vector<64x16xf32>
    %32 = tpu.matmul %30, %31, %cst_20 {dimension_numbers = #tpu.dot_dimension_numbers<[1], [0], [0], [1], [0, 0, 1, 1], [], []>} : vector<64x16xbf16>, vector<16x16xbf16>, vector<64x16xf32> -> vector<64x16xf32>
    %c0_21 = arith.constant 0 : index
    %c0_22 = arith.constant 0 : index
    %33 = vector.load %arg8[%c0_21, %c0_22] : memref<1x16xf32, #tpu.memory_space<vmem>>, vector<1x16xf32>
    %34 = vector.broadcast %33 : vector<1x16xf32> to vector<64x16xf32>
    %35 = arith.addf %32, %34 : vector<64x16xf32>
    %36 = math.sqrt %35 : vector<64x16xf32>
    %37 = arith.mulf %28, %36 : vector<64x16xf32>
    %38 = vector.shape_cast %37 : vector<64x16xf32> to vector<8x8x16xf32>
    %39 = vector.extract_strided_slice %8 {offsets = [1, 0, 0], sizes = [8, 8, 24], strides = [1, 1, 1]} : vector<10x8x24xbf16> to vector<8x8x24xbf16>
    %40 = vector.shape_cast %39 : vector<8x8x24xbf16> to vector<64x24xbf16>
    %c0_23 = arith.constant 0 : index
    %c0_24 = arith.constant 0 : index
    %c0_25 = arith.constant 0 : index
    %41 = vector.load %arg5[%c0_23, %c0_24, %c0_25] : memref<2x24x16xbf16, #tpu.memory_space<vmem>>, vector<1x24x16xbf16>
    %42 = vector.shape_cast %41 : vector<1x24x16xbf16> to vector<24x16xbf16>
    %cst_26 = arith.constant dense<0.000000e+00> : vector<64x16xf32>
    %43 = tpu.matmul %40, %42, %cst_26 {dimension_numbers = #tpu.dot_dimension_numbers<[1], [0], [0], [1], [0, 0, 1, 1], [], []>} : vector<64x24xbf16>, vector<24x16xbf16>, vector<64x16xf32> -> vector<64x16xf32>
    %44 = vector.extract_strided_slice %8 {offsets = [2, 0, 0], sizes = [8, 8, 24], strides = [1, 1, 1]} : vector<10x8x24xbf16> to vector<8x8x24xbf16>
    %45 = vector.shape_cast %44 : vector<8x8x24xbf16> to vector<64x24xbf16>
    %c1_27 = arith.constant 1 : index
    %c0_28 = arith.constant 0 : index
    %c0_29 = arith.constant 0 : index
    %46 = vector.load %arg5[%c1_27, %c0_28, %c0_29] : memref<2x24x16xbf16, #tpu.memory_space<vmem>>, vector<1x24x16xbf16>
    %47 = vector.shape_cast %46 : vector<1x24x16xbf16> to vector<24x16xbf16>
    %cst_30 = arith.constant dense<0.000000e+00> : vector<64x16xf32>
    %48 = tpu.matmul %45, %47, %cst_30 {dimension_numbers = #tpu.dot_dimension_numbers<[1], [0], [0], [1], [0, 0, 1, 1], [], []>} : vector<64x24xbf16>, vector<24x16xbf16>, vector<64x16xf32> -> vector<64x16xf32>
    %49 = arith.addf %43, %48 : vector<64x16xf32>
    %c0_31 = arith.constant 0 : index
    %c0_32 = arith.constant 0 : index
    %50 = vector.load %arg6[%c0_31, %c0_32] : memref<1x16xf32, #tpu.memory_space<vmem>>, vector<1x16xf32>
    %51 = vector.broadcast %50 : vector<1x16xf32> to vector<64x16xf32>
    %52 = arith.addf %49, %51 : vector<64x16xf32>
    %53 = arith.mulf %52, %52 : vector<64x16xf32>
    %54 = arith.truncf %53 : vector<64x16xf32> to vector<64x16xbf16>
    %c0_33 = arith.constant 0 : index
    %c0_34 = arith.constant 0 : index
    %55 = vector.load %arg7[%c0_33, %c0_34] : memref<16x16xbf16, #tpu.memory_space<vmem>>, vector<16x16xbf16>
    %cst_35 = arith.constant dense<0.000000e+00> : vector<64x16xf32>
    %56 = tpu.matmul %54, %55, %cst_35 {dimension_numbers = #tpu.dot_dimension_numbers<[1], [0], [0], [1], [0, 0, 1, 1], [], []>} : vector<64x16xbf16>, vector<16x16xbf16>, vector<64x16xf32> -> vector<64x16xf32>
    %c0_36 = arith.constant 0 : index
    %c0_37 = arith.constant 0 : index
    %57 = vector.load %arg8[%c0_36, %c0_37] : memref<1x16xf32, #tpu.memory_space<vmem>>, vector<1x16xf32>
    %58 = vector.broadcast %57 : vector<1x16xf32> to vector<64x16xf32>
    %59 = arith.addf %56, %58 : vector<64x16xf32>
    %60 = math.sqrt %59 : vector<64x16xf32>
    %61 = arith.mulf %52, %60 : vector<64x16xf32>
    %62 = vector.shape_cast %61 : vector<64x16xf32> to vector<8x8x16xf32>
    %63 = vector.shape_cast %38 : vector<8x8x16xf32> to vector<8x1x8x16xf32>
    %64 = vector.shape_cast %62 : vector<8x8x16xf32> to vector<8x1x8x16xf32>
    %65 = tpu.concatenate %63, %64 in 1 : vector<8x1x8x16xf32>, vector<8x1x8x16xf32> -> vector<8x2x8x16xf32>
    %66 = vector.shape_cast %65 : vector<8x2x8x16xf32> to vector<16x8x16xf32>
    %67 = arith.truncf %66 : vector<16x8x16xf32> to vector<16x8x16xbf16>
    %c0_38 = arith.constant 0 : index
    %c0_39 = arith.constant 0 : index
    %c0_40 = arith.constant 0 : index
    %c0_41 = arith.constant 0 : index
    %68 = vector.load %arg9[%c0_38, %c0_39, %c0_40, %c0_41] : memref<1x16x8x16xbf16, #tpu.memory_space<vmem>>, vector<1x16x8x16xbf16>
    %69 = vector.shape_cast %68 : vector<1x16x8x16xbf16> to vector<16x8x16xbf16>
    %70 = vector.shape_cast %67 : vector<16x8x16xbf16> to vector<1x16x8x16xbf16>
    tpu.vector_store %arg9[%c0_38, %c0_39, %c0_40, %c0_41], %70 {strides = array<i32>} : memref<1x16x8x16xbf16, #tpu.memory_space<vmem>>, vector<1x16x8x16xbf16>,
    return
  }
  func.func @transform_0(%arg0: i32, %arg1: i32) -> (i32, i32, i32, i32) {
    %c0_i32 = arith.constant 0 : i32
    %c0_i32_0 = arith.constant 0 : i32
    %c0_i32_1 = arith.constant 0 : i32
    return %arg0, %arg1, %c0_i32, %c0_i32_0 : i32, i32, i32, i32
  }
  func.func @transform_1(%arg0: i32, %arg1: i32) -> (i32, i32, i32, i32) {
    %c1_i32 = arith.constant 1 : i32
    %0 = arith.addi %arg1, %c1_i32 : i32
    %c4_i32 = arith.constant 4 : i32
    %1 = arith.muli %0, %c4_i32 : i32
    %c0_i32 = arith.constant 0 : i32
    %c0_i32_0 = arith.constant 0 : i32
    %c0_i32_1 = arith.constant 0 : i32
    return %arg0, %1, %c0_i32, %c0_i32_0 : i32, i32, i32, i32
  }
  func.func @transform_2(%arg0: i32, %arg1: i32) -> (i32, i32, i32) {
    %c0_i32 = arith.constant 0 : i32
    %c0_i32_0 = arith.constant 0 : i32
    %c0_i32_1 = arith.constant 0 : i32
    %c0_i32_2 = arith.constant 0 : i32
    return %c0_i32, %c0_i32_0, %c0_i32_1 : i32, i32, i32
  }
  func.func @transform_3(%arg0: i32, %arg1: i32) -> (i32, i32, i32) {
    %c0_i32 = arith.constant 0 : i32
    %c0_i32_0 = arith.constant 0 : i32
    %c0_i32_1 = arith.constant 0 : i32
    %c0_i32_2 = arith.constant 0 : i32
    return %c0_i32, %c0_i32_0, %c0_i32_1 : i32, i32, i32
  }
  func.func @transform_4(%arg0: i32, %arg1: i32) -> (i32, i32) {
    %c0_i32 = arith.constant 0 : i32
    %c0_i32_0 = arith.constant 0 : i32
    %c0_i32_1 = arith.constant 0 : i32
    return %c0_i32, %c0_i32_0 : i32, i32
  }
  func.func @transform_5(%arg0: i32, %arg1: i32) -> (i32, i32) {
    %c0_i32 = arith.constant 0 : i32
    %c0_i32_0 = arith.constant 0 : i32
    %c0_i32_1 = arith.constant 0 : i32
    return %c0_i32, %c0_i32_0 : i32, i32
  }
  func.func @transform_6(%arg0: i32, %arg1: i32) -> (i32, i32) {
    %c0_i32 = arith.constant 0 : i32
    %c0_i32_0 = arith.constant 0 : i32
    %c0_i32_1 = arith.constant 0 : i32
    return %c0_i32, %c0_i32_0 : i32, i32
  }
  func.func @transform_7(%arg0: i32, %arg1: i32) -> (i32, i32, i32, i32) {
    %c0_i32 = arith.constant 0 : i32
    %c0_i32_0 = arith.constant 0 : i32
    %c0_i32_1 = arith.constant 0 : i32
    return %arg0, %arg1, %c0_i32, %c0_i32_0 : i32, i32, i32, i32
  }
}

module attributes {stable_mosaic.version = 11 : i64} {
  func.func @kernel(%arg0: i32, %arg1: i32, %arg2: memref<1x16x18x8xbf16, #tpu.memory_space<vmem>>, %arg3: memref<1x2x18x8xbf16, #tpu.memory_space<vmem>>, %arg4: memref<3x24x16xbf16, #tpu.memory_space<vmem>>, %arg5: memref<2x24x16xbf16, #tpu.memory_space<vmem>>, %arg6: memref<1x16xf32, #tpu.memory_space<vmem>>, %arg7: memref<16x16xbf16, #tpu.memory_space<vmem>>, %arg8: memref<1x16xf32, #tpu.memory_space<vmem>>, %arg9: memref<1x32x16x16xbf16, #tpu.memory_space<vmem>>) attributes {dimension_semantics = [#tpu.dimension_semantics<parallel>, #tpu.dimension_semantics<parallel>], iteration_bounds = array<i64: 2, 1>, scalar_prefetch = 0 : i64, scratch_operands = 0 : i64, tpu.core_type = #tpu.core_type<tc>, window_params = [{transform_indices = @transform_0, window_bounds = array<i64: 1, 16, 18, 8>}, {transform_indices = @transform_1, window_bounds = array<i64: 1, 2, 18, 8>}, {pipeline_mode = #tpu.pipeline_mode<synchronous>, transform_indices = @transform_2, window_bounds = array<i64: 3, 24, 16>}, {pipeline_mode = #tpu.pipeline_mode<synchronous>, transform_indices = @transform_3, window_bounds = array<i64: 2, 24, 16>}, {pipeline_mode = #tpu.pipeline_mode<synchronous>, transform_indices = @transform_4, window_bounds = array<i64: 1, 16>}, {pipeline_mode = #tpu.pipeline_mode<synchronous>, transform_indices = @transform_5, window_bounds = array<i64: 16, 16>}, {pipeline_mode = #tpu.pipeline_mode<synchronous>, transform_indices = @transform_6, window_bounds = array<i64: 1, 16>}, {transform_indices = @transform_7, window_bounds = array<i64: 1, 32, 16, 16>}]} {
    %c0 = arith.constant 0 : index
    %c0_0 = arith.constant 0 : index
    %c0_1 = arith.constant 0 : index
    %c0_2 = arith.constant 0 : index
    %0 = vector.load %arg2[%c0, %c0_0, %c0_1, %c0_2] : memref<1x16x18x8xbf16, #tpu.memory_space<vmem>>, vector<1x16x18x8xbf16>
    %1 = vector.shape_cast %0 : vector<1x16x18x8xbf16> to vector<16x18x8xbf16>
    %c0_3 = arith.constant 0 : index
    %c0_4 = arith.constant 0 : index
    %c0_5 = arith.constant 0 : index
    %c0_6 = arith.constant 0 : index
    %2 = vector.load %arg3[%c0_3, %c0_4, %c0_5, %c0_6] : memref<1x2x18x8xbf16, #tpu.memory_space<vmem>>, vector<1x2x18x8xbf16>
    %3 = vector.shape_cast %2 : vector<1x2x18x8xbf16> to vector<2x18x8xbf16>
    %4 = tpu.concatenate %1, %3 in 0 : vector<16x18x8xbf16>, vector<2x18x8xbf16> -> vector<18x18x8xbf16>
    %5 = vector.extract_strided_slice %4 {offsets = [0, 0, 0], sizes = [18, 16, 8], strides = [1, 1, 1]} : vector<18x18x8xbf16> to vector<18x16x8xbf16>
    %6 = vector.extract_strided_slice %4 {offsets = [0, 1, 0], sizes = [18, 16, 8], strides = [1, 1, 1]} : vector<18x18x8xbf16> to vector<18x16x8xbf16>
    %7 = vector.extract_strided_slice %4 {offsets = [0, 2, 0], sizes = [18, 16, 8], strides = [1, 1, 1]} : vector<18x18x8xbf16> to vector<18x16x8xbf16>
    %8 = tpu.concatenate %5, %6, %7 in 2 : vector<18x16x8xbf16>, vector<18x16x8xbf16>, vector<18x16x8xbf16> -> vector<18x16x24xbf16>
    %9 = vector.extract_strided_slice %8 {offsets = [0, 0, 0], sizes = [16, 16, 24], strides = [1, 1, 1]} : vector<18x16x24xbf16> to vector<16x16x24xbf16>
    %10 = vector.shape_cast %9 : vector<16x16x24xbf16> to vector<256x24xbf16>
    %c0_7 = arith.constant 0 : index
    %c0_8 = arith.constant 0 : index
    %c0_9 = arith.constant 0 : index
    %11 = vector.load %arg4[%c0_7, %c0_8, %c0_9] : memref<3x24x16xbf16, #tpu.memory_space<vmem>>, vector<1x24x16xbf16>
    %12 = vector.shape_cast %11 : vector<1x24x16xbf16> to vector<24x16xbf16>
    %cst = arith.constant dense<0.000000e+00> : vector<256x16xf32>
    %13 = tpu.matmul %10, %12, %cst {dimension_numbers = #tpu.dot_dimension_numbers<[1], [0], [0], [1], [0, 0, 1, 1], [], []>} : vector<256x24xbf16>, vector<24x16xbf16>, vector<256x16xf32> -> vector<256x16xf32>
    %14 = vector.extract_strided_slice %8 {offsets = [1, 0, 0], sizes = [16, 16, 24], strides = [1, 1, 1]} : vector<18x16x24xbf16> to vector<16x16x24xbf16>
    %15 = vector.shape_cast %14 : vector<16x16x24xbf16> to vector<256x24xbf16>
    %c1 = arith.constant 1 : index
    %c0_10 = arith.constant 0 : index
    %c0_11 = arith.constant 0 : index
    %16 = vector.load %arg4[%c1, %c0_10, %c0_11] : memref<3x24x16xbf16, #tpu.memory_space<vmem>>, vector<1x24x16xbf16>
    %17 = vector.shape_cast %16 : vector<1x24x16xbf16> to vector<24x16xbf16>
    %cst_12 = arith.constant dense<0.000000e+00> : vector<256x16xf32>
    %18 = tpu.matmul %15, %17, %cst_12 {dimension_numbers = #tpu.dot_dimension_numbers<[1], [0], [0], [1], [0, 0, 1, 1], [], []>} : vector<256x24xbf16>, vector<24x16xbf16>, vector<256x16xf32> -> vector<256x16xf32>
    %19 = arith.addf %13, %18 : vector<256x16xf32>
    %20 = vector.extract_strided_slice %8 {offsets = [2, 0, 0], sizes = [16, 16, 24], strides = [1, 1, 1]} : vector<18x16x24xbf16> to vector<16x16x24xbf16>
    %21 = vector.shape_cast %20 : vector<16x16x24xbf16> to vector<256x24xbf16>
    %c2 = arith.constant 2 : index
    %c0_13 = arith.constant 0 : index
    %c0_14 = arith.constant 0 : index
    %22 = vector.load %arg4[%c2, %c0_13, %c0_14] : memref<3x24x16xbf16, #tpu.memory_space<vmem>>, vector<1x24x16xbf16>
    %23 = vector.shape_cast %22 : vector<1x24x16xbf16> to vector<24x16xbf16>
    %cst_15 = arith.constant dense<0.000000e+00> : vector<256x16xf32>
    %24 = tpu.matmul %21, %23, %cst_15 {dimension_numbers = #tpu.dot_dimension_numbers<[1], [0], [0], [1], [0, 0, 1, 1], [], []>} : vector<256x24xbf16>, vector<24x16xbf16>, vector<256x16xf32> -> vector<256x16xf32>
    %25 = arith.addf %19, %24 : vector<256x16xf32>
    %c0_16 = arith.constant 0 : index
    %c0_17 = arith.constant 0 : index
    %26 = vector.load %arg6[%c0_16, %c0_17] : memref<1x16xf32, #tpu.memory_space<vmem>>, vector<1x16xf32>
    %27 = vector.broadcast %26 : vector<1x16xf32> to vector<256x16xf32>
    %28 = arith.addf %25, %27 : vector<256x16xf32>
    %29 = arith.mulf %28, %28 : vector<256x16xf32>
    %30 = arith.truncf %29 : vector<256x16xf32> to vector<256x16xbf16>
    %c0_18 = arith.constant 0 : index
    %c0_19 = arith.constant 0 : index
    %31 = vector.load %arg7[%c0_18, %c0_19] : memref<16x16xbf16, #tpu.memory_space<vmem>>, vector<16x16xbf16>
    %cst_20 = arith.constant dense<0.000000e+00> : vector<256x16xf32>
    %32 = tpu.matmul %30, %31, %cst_20 {dimension_numbers = #tpu.dot_dimension_numbers<[1], [0], [0], [1], [0, 0, 1, 1], [], []>} : vector<256x16xbf16>, vector<16x16xbf16>, vector<256x16xf32> -> vector<256x16xf32>
    %c0_21 = arith.constant 0 : index
    %c0_22 = arith.constant 0 : index
    %33 = vector.load %arg8[%c0_21, %c0_22] : memref<1x16xf32, #tpu.memory_space<vmem>>, vector<1x16xf32>
    %34 = vector.broadcast %33 : vector<1x16xf32> to vector<256x16xf32>
    %35 = arith.addf %32, %34 : vector<256x16xf32>
    %36 = math.sqrt %35 : vector<256x16xf32>
    %37 = arith.mulf %28, %36 : vector<256x16xf32>
    %38 = vector.shape_cast %37 : vector<256x16xf32> to vector<16x16x16xf32>
    %39 = vector.extract_strided_slice %8 {offsets = [1, 0, 0], sizes = [16, 16, 24], strides = [1, 1, 1]} : vector<18x16x24xbf16> to vector<16x16x24xbf16>
    %40 = vector.shape_cast %39 : vector<16x16x24xbf16> to vector<256x24xbf16>
    %c0_23 = arith.constant 0 : index
    %c0_24 = arith.constant 0 : index
    %c0_25 = arith.constant 0 : index
    %41 = vector.load %arg5[%c0_23, %c0_24, %c0_25] : memref<2x24x16xbf16, #tpu.memory_space<vmem>>, vector<1x24x16xbf16>
    %42 = vector.shape_cast %41 : vector<1x24x16xbf16> to vector<24x16xbf16>
    %cst_26 = arith.constant dense<0.000000e+00> : vector<256x16xf32>
    %43 = tpu.matmul %40, %42, %cst_26 {dimension_numbers = #tpu.dot_dimension_numbers<[1], [0], [0], [1], [0, 0, 1, 1], [], []>} : vector<256x24xbf16>, vector<24x16xbf16>, vector<256x16xf32> -> vector<256x16xf32>
    %44 = vector.extract_strided_slice %8 {offsets = [2, 0, 0], sizes = [16, 16, 24], strides = [1, 1, 1]} : vector<18x16x24xbf16> to vector<16x16x24xbf16>
    %45 = vector.shape_cast %44 : vector<16x16x24xbf16> to vector<256x24xbf16>
    %c1_27 = arith.constant 1 : index
    %c0_28 = arith.constant 0 : index
    %c0_29 = arith.constant 0 : index
    %46 = vector.load %arg5[%c1_27, %c0_28, %c0_29] : memref<2x24x16xbf16, #tpu.memory_space<vmem>>, vector<1x24x16xbf16>
    %47 = vector.shape_cast %46 : vector<1x24x16xbf16> to vector<24x16xbf16>
    %cst_30 = arith.constant dense<0.000000e+00> : vector<256x16xf32>
    %48 = tpu.matmul %45, %47, %cst_30 {dimension_numbers = #tpu.dot_dimension_numbers<[1], [0], [0], [1], [0, 0, 1, 1], [], []>} : vector<256x24xbf16>, vector<24x16xbf16>, vector<256x16xf32> -> vector<256x16xf32>
    %49 = arith.addf %43, %48 : vector<256x16xf32>
    %c0_31 = arith.constant 0 : index
    %c0_32 = arith.constant 0 : index
    %50 = vector.load %arg6[%c0_31, %c0_32] : memref<1x16xf32, #tpu.memory_space<vmem>>, vector<1x16xf32>
    %51 = vector.broadcast %50 : vector<1x16xf32> to vector<256x16xf32>
    %52 = arith.addf %49, %51 : vector<256x16xf32>
    %53 = arith.mulf %52, %52 : vector<256x16xf32>
    %54 = arith.truncf %53 : vector<256x16xf32> to vector<256x16xbf16>
    %c0_33 = arith.constant 0 : index
    %c0_34 = arith.constant 0 : index
    %55 = vector.load %arg7[%c0_33, %c0_34] : memref<16x16xbf16, #tpu.memory_space<vmem>>, vector<16x16xbf16>
    %cst_35 = arith.constant dense<0.000000e+00> : vector<256x16xf32>
    %56 = tpu.matmul %54, %55, %cst_35 {dimension_numbers = #tpu.dot_dimension_numbers<[1], [0], [0], [1], [0, 0, 1, 1], [], []>} : vector<256x16xbf16>, vector<16x16xbf16>, vector<256x16xf32> -> vector<256x16xf32>
    %c0_36 = arith.constant 0 : index
    %c0_37 = arith.constant 0 : index
    %57 = vector.load %arg8[%c0_36, %c0_37] : memref<1x16xf32, #tpu.memory_space<vmem>>, vector<1x16xf32>
    %58 = vector.broadcast %57 : vector<1x16xf32> to vector<256x16xf32>
    %59 = arith.addf %56, %58 : vector<256x16xf32>
    %60 = math.sqrt %59 : vector<256x16xf32>
    %61 = arith.mulf %52, %60 : vector<256x16xf32>
    %62 = vector.shape_cast %61 : vector<256x16xf32> to vector<16x16x16xf32>
    %63 = vector.shape_cast %38 : vector<16x16x16xf32> to vector<16x1x16x16xf32>
    %64 = vector.shape_cast %62 : vector<16x16x16xf32> to vector<16x1x16x16xf32>
    %65 = tpu.concatenate %63, %64 in 1 : vector<16x1x16x16xf32>, vector<16x1x16x16xf32> -> vector<16x2x16x16xf32>
    %66 = vector.shape_cast %65 : vector<16x2x16x16xf32> to vector<32x16x16xf32>
    %67 = arith.truncf %66 : vector<32x16x16xf32> to vector<32x16x16xbf16>
    %c0_38 = arith.constant 0 : index
    %c0_39 = arith.constant 0 : index
    %c0_40 = arith.constant 0 : index
    %c0_41 = arith.constant 0 : index
    %68 = vector.load %arg9[%c0_38, %c0_39, %c0_40, %c0_41] : memref<1x32x16x16xbf16, #tpu.memory_space<vmem>>, vector<1x32x16x16xbf16>
    %69 = vector.shape_cast %68 : vector<1x32x16x16xbf16> to vector<32x16x16xbf16>
    %70 = vector.shape_cast %67 : vector<32x16x16xbf16> to vector<1x32x16x16xbf16>
    tpu.vector_store %arg9[%c0_38, %c0_39, %c0_40, %c0_41], %70 {strides = array<i32>} : memref<1x32x16x16xbf16, #tpu.memory_space<vmem>>, vector<1x32x16x16xbf16>,
    return
  }
  func.func @transform_0(%arg0: i32, %arg1: i32) -> (i32, i32, i32, i32) {
    %c0_i32 = arith.constant 0 : i32
    %c0_i32_0 = arith.constant 0 : i32
    %c0_i32_1 = arith.constant 0 : i32
    return %arg0, %arg1, %c0_i32, %c0_i32_0 : i32, i32, i32, i32
  }
  func.func @transform_1(%arg0: i32, %arg1: i32) -> (i32, i32, i32, i32) {
    %c1_i32 = arith.constant 1 : i32
    %0 = arith.addi %arg1, %c1_i32 : i32
    %c8_i32 = arith.constant 8 : i32
    %1 = arith.muli %0, %c8_i32 : i32
    %c0_i32 = arith.constant 0 : i32
    %c0_i32_0 = arith.constant 0 : i32
    %c0_i32_1 = arith.constant 0 : i32
    return %arg0, %1, %c0_i32, %c0_i32_0 : i32, i32, i32, i32
  }
  func.func @transform_2(%arg0: i32, %arg1: i32) -> (i32, i32, i32) {
    %c0_i32 = arith.constant 0 : i32
    %c0_i32_0 = arith.constant 0 : i32
    %c0_i32_1 = arith.constant 0 : i32
    %c0_i32_2 = arith.constant 0 : i32
    return %c0_i32, %c0_i32_0, %c0_i32_1 : i32, i32, i32
  }
  func.func @transform_3(%arg0: i32, %arg1: i32) -> (i32, i32, i32) {
    %c0_i32 = arith.constant 0 : i32
    %c0_i32_0 = arith.constant 0 : i32
    %c0_i32_1 = arith.constant 0 : i32
    %c0_i32_2 = arith.constant 0 : i32
    return %c0_i32, %c0_i32_0, %c0_i32_1 : i32, i32, i32
  }
  func.func @transform_4(%arg0: i32, %arg1: i32) -> (i32, i32) {
    %c0_i32 = arith.constant 0 : i32
    %c0_i32_0 = arith.constant 0 : i32
    %c0_i32_1 = arith.constant 0 : i32
    return %c0_i32, %c0_i32_0 : i32, i32
  }
  func.func @transform_5(%arg0: i32, %arg1: i32) -> (i32, i32) {
    %c0_i32 = arith.constant 0 : i32
    %c0_i32_0 = arith.constant 0 : i32
    %c0_i32_1 = arith.constant 0 : i32
    return %c0_i32, %c0_i32_0 : i32, i32
  }
  func.func @transform_6(%arg0: i32, %arg1: i32) -> (i32, i32) {
    %c0_i32 = arith.constant 0 : i32
    %c0_i32_0 = arith.constant 0 : i32
    %c0_i32_1 = arith.constant 0 : i32
    return %c0_i32, %c0_i32_0 : i32, i32
  }
  func.func @transform_7(%arg0: i32, %arg1: i32) -> (i32, i32, i32, i32) {
    %c0_i32 = arith.constant 0 : i32
    %c0_i32_0 = arith.constant 0 : i32
    %c0_i32_1 = arith.constant 0 : i32
    return %arg0, %arg1, %c0_i32, %c0_i32_0 : i32, i32, i32, i32
  }
}

module attributes {stable_mosaic.version = 11 : i64} {
  func.func @kernel(%arg0: i32, %arg1: i32, %arg2: memref<1x32x34x8xbf16, #tpu.memory_space<vmem>>, %arg3: memref<1x2x34x8xbf16, #tpu.memory_space<vmem>>, %arg4: memref<3x24x6xbf16, #tpu.memory_space<vmem>>, %arg5: memref<2x24x6xbf16, #tpu.memory_space<vmem>>, %arg6: memref<1x6xf32, #tpu.memory_space<vmem>>, %arg7: memref<1x64x32x6xf32, #tpu.memory_space<vmem>>) attributes {dimension_semantics = [#tpu.dimension_semantics<parallel>, #tpu.dimension_semantics<parallel>], iteration_bounds = array<i64: 2, 1>, scalar_prefetch = 0 : i64, scratch_operands = 0 : i64, tpu.core_type = #tpu.core_type<tc>, window_params = [{transform_indices = @transform_0, window_bounds = array<i64: 1, 32, 34, 8>}, {transform_indices = @transform_1, window_bounds = array<i64: 1, 2, 34, 8>}, {pipeline_mode = #tpu.pipeline_mode<synchronous>, transform_indices = @transform_2, window_bounds = array<i64: 3, 24, 6>}, {pipeline_mode = #tpu.pipeline_mode<synchronous>, transform_indices = @transform_3, window_bounds = array<i64: 2, 24, 6>}, {pipeline_mode = #tpu.pipeline_mode<synchronous>, transform_indices = @transform_4, window_bounds = array<i64: 1, 6>}, {transform_indices = @transform_5, window_bounds = array<i64: 1, 64, 32, 6>}]} {
    %c0 = arith.constant 0 : index
    %c0_0 = arith.constant 0 : index
    %c0_1 = arith.constant 0 : index
    %c0_2 = arith.constant 0 : index
    %0 = vector.load %arg2[%c0, %c0_0, %c0_1, %c0_2] : memref<1x32x34x8xbf16, #tpu.memory_space<vmem>>, vector<1x32x34x8xbf16>
    %1 = vector.shape_cast %0 : vector<1x32x34x8xbf16> to vector<32x34x8xbf16>
    %c0_3 = arith.constant 0 : index
    %c0_4 = arith.constant 0 : index
    %c0_5 = arith.constant 0 : index
    %c0_6 = arith.constant 0 : index
    %2 = vector.load %arg3[%c0_3, %c0_4, %c0_5, %c0_6] : memref<1x2x34x8xbf16, #tpu.memory_space<vmem>>, vector<1x2x34x8xbf16>
    %3 = vector.shape_cast %2 : vector<1x2x34x8xbf16> to vector<2x34x8xbf16>
    %4 = tpu.concatenate %1, %3 in 0 : vector<32x34x8xbf16>, vector<2x34x8xbf16> -> vector<34x34x8xbf16>
    %5 = vector.extract_strided_slice %4 {offsets = [0, 0, 0], sizes = [34, 32, 8], strides = [1, 1, 1]} : vector<34x34x8xbf16> to vector<34x32x8xbf16>
    %6 = vector.extract_strided_slice %4 {offsets = [0, 1, 0], sizes = [34, 32, 8], strides = [1, 1, 1]} : vector<34x34x8xbf16> to vector<34x32x8xbf16>
    %7 = vector.extract_strided_slice %4 {offsets = [0, 2, 0], sizes = [34, 32, 8], strides = [1, 1, 1]} : vector<34x34x8xbf16> to vector<34x32x8xbf16>
    %8 = tpu.concatenate %5, %6, %7 in 2 : vector<34x32x8xbf16>, vector<34x32x8xbf16>, vector<34x32x8xbf16> -> vector<34x32x24xbf16>
    %9 = vector.extract_strided_slice %8 {offsets = [0, 0, 0], sizes = [32, 32, 24], strides = [1, 1, 1]} : vector<34x32x24xbf16> to vector<32x32x24xbf16>
    %10 = vector.shape_cast %9 : vector<32x32x24xbf16> to vector<1024x24xbf16>
    %c0_7 = arith.constant 0 : index
    %c0_8 = arith.constant 0 : index
    %c0_9 = arith.constant 0 : index
    %11 = vector.load %arg4[%c0_7, %c0_8, %c0_9] : memref<3x24x6xbf16, #tpu.memory_space<vmem>>, vector<1x24x6xbf16>
    %12 = vector.shape_cast %11 : vector<1x24x6xbf16> to vector<24x6xbf16>
    %cst = arith.constant dense<0.000000e+00> : vector<1024x6xf32>
    %13 = tpu.matmul %10, %12, %cst {dimension_numbers = #tpu.dot_dimension_numbers<[1], [0], [0], [1], [0, 0, 1, 1], [], []>} : vector<1024x24xbf16>, vector<24x6xbf16>, vector<1024x6xf32> -> vector<1024x6xf32>
    %14 = vector.extract_strided_slice %8 {offsets = [1, 0, 0], sizes = [32, 32, 24], strides = [1, 1, 1]} : vector<34x32x24xbf16> to vector<32x32x24xbf16>
    %15 = vector.shape_cast %14 : vector<32x32x24xbf16> to vector<1024x24xbf16>
    %c1 = arith.constant 1 : index
    %c0_10 = arith.constant 0 : index
    %c0_11 = arith.constant 0 : index
    %16 = vector.load %arg4[%c1, %c0_10, %c0_11] : memref<3x24x6xbf16, #tpu.memory_space<vmem>>, vector<1x24x6xbf16>
    %17 = vector.shape_cast %16 : vector<1x24x6xbf16> to vector<24x6xbf16>
    %cst_12 = arith.constant dense<0.000000e+00> : vector<1024x6xf32>
    %18 = tpu.matmul %15, %17, %cst_12 {dimension_numbers = #tpu.dot_dimension_numbers<[1], [0], [0], [1], [0, 0, 1, 1], [], []>} : vector<1024x24xbf16>, vector<24x6xbf16>, vector<1024x6xf32> -> vector<1024x6xf32>
    %19 = arith.addf %13, %18 : vector<1024x6xf32>
    %20 = vector.extract_strided_slice %8 {offsets = [2, 0, 0], sizes = [32, 32, 24], strides = [1, 1, 1]} : vector<34x32x24xbf16> to vector<32x32x24xbf16>
    %21 = vector.shape_cast %20 : vector<32x32x24xbf16> to vector<1024x24xbf16>
    %c2 = arith.constant 2 : index
    %c0_13 = arith.constant 0 : index
    %c0_14 = arith.constant 0 : index
    %22 = vector.load %arg4[%c2, %c0_13, %c0_14] : memref<3x24x6xbf16, #tpu.memory_space<vmem>>, vector<1x24x6xbf16>
    %23 = vector.shape_cast %22 : vector<1x24x6xbf16> to vector<24x6xbf16>
    %cst_15 = arith.constant dense<0.000000e+00> : vector<1024x6xf32>
    %24 = tpu.matmul %21, %23, %cst_15 {dimension_numbers = #tpu.dot_dimension_numbers<[1], [0], [0], [1], [0, 0, 1, 1], [], []>} : vector<1024x24xbf16>, vector<24x6xbf16>, vector<1024x6xf32> -> vector<1024x6xf32>
    %25 = arith.addf %19, %24 : vector<1024x6xf32>
    %c0_16 = arith.constant 0 : index
    %c0_17 = arith.constant 0 : index
    %26 = vector.load %arg6[%c0_16, %c0_17] : memref<1x6xf32, #tpu.memory_space<vmem>>, vector<1x6xf32>
    %27 = vector.broadcast %26 : vector<1x6xf32> to vector<1024x6xf32>
    %28 = arith.addf %25, %27 : vector<1024x6xf32>
    %29 = vector.shape_cast %28 : vector<1024x6xf32> to vector<32x32x6xf32>
    %30 = vector.extract_strided_slice %8 {offsets = [1, 0, 0], sizes = [32, 32, 24], strides = [1, 1, 1]} : vector<34x32x24xbf16> to vector<32x32x24xbf16>
    %31 = vector.shape_cast %30 : vector<32x32x24xbf16> to vector<1024x24xbf16>
    %c0_18 = arith.constant 0 : index
    %c0_19 = arith.constant 0 : index
    %c0_20 = arith.constant 0 : index
    %32 = vector.load %arg5[%c0_18, %c0_19, %c0_20] : memref<2x24x6xbf16, #tpu.memory_space<vmem>>, vector<1x24x6xbf16>
    %33 = vector.shape_cast %32 : vector<1x24x6xbf16> to vector<24x6xbf16>
    %cst_21 = arith.constant dense<0.000000e+00> : vector<1024x6xf32>
    %34 = tpu.matmul %31, %33, %cst_21 {dimension_numbers = #tpu.dot_dimension_numbers<[1], [0], [0], [1], [0, 0, 1, 1], [], []>} : vector<1024x24xbf16>, vector<24x6xbf16>, vector<1024x6xf32> -> vector<1024x6xf32>
    %35 = vector.extract_strided_slice %8 {offsets = [2, 0, 0], sizes = [32, 32, 24], strides = [1, 1, 1]} : vector<34x32x24xbf16> to vector<32x32x24xbf16>
    %36 = vector.shape_cast %35 : vector<32x32x24xbf16> to vector<1024x24xbf16>
    %c1_22 = arith.constant 1 : index
    %c0_23 = arith.constant 0 : index
    %c0_24 = arith.constant 0 : index
    %37 = vector.load %arg5[%c1_22, %c0_23, %c0_24] : memref<2x24x6xbf16, #tpu.memory_space<vmem>>, vector<1x24x6xbf16>
    %38 = vector.shape_cast %37 : vector<1x24x6xbf16> to vector<24x6xbf16>
    %cst_25 = arith.constant dense<0.000000e+00> : vector<1024x6xf32>
    %39 = tpu.matmul %36, %38, %cst_25 {dimension_numbers = #tpu.dot_dimension_numbers<[1], [0], [0], [1], [0, 0, 1, 1], [], []>} : vector<1024x24xbf16>, vector<24x6xbf16>, vector<1024x6xf32> -> vector<1024x6xf32>
    %40 = arith.addf %34, %39 : vector<1024x6xf32>
    %c0_26 = arith.constant 0 : index
    %c0_27 = arith.constant 0 : index
    %41 = vector.load %arg6[%c0_26, %c0_27] : memref<1x6xf32, #tpu.memory_space<vmem>>, vector<1x6xf32>
    %42 = vector.broadcast %41 : vector<1x6xf32> to vector<1024x6xf32>
    %43 = arith.addf %40, %42 : vector<1024x6xf32>
    %44 = vector.shape_cast %43 : vector<1024x6xf32> to vector<32x32x6xf32>
    %45 = vector.shape_cast %29 : vector<32x32x6xf32> to vector<32x1x32x6xf32>
    %46 = vector.shape_cast %44 : vector<32x32x6xf32> to vector<32x1x32x6xf32>
    %47 = tpu.concatenate %45, %46 in 1 : vector<32x1x32x6xf32>, vector<32x1x32x6xf32> -> vector<32x2x32x6xf32>
    %48 = vector.shape_cast %47 : vector<32x2x32x6xf32> to vector<64x32x6xf32>
    %c0_28 = arith.constant 0 : index
    %c0_29 = arith.constant 0 : index
    %c0_30 = arith.constant 0 : index
    %c0_31 = arith.constant 0 : index
    %49 = vector.load %arg7[%c0_28, %c0_29, %c0_30, %c0_31] : memref<1x64x32x6xf32, #tpu.memory_space<vmem>>, vector<1x64x32x6xf32>
    %50 = vector.shape_cast %49 : vector<1x64x32x6xf32> to vector<64x32x6xf32>
    %51 = vector.shape_cast %48 : vector<64x32x6xf32> to vector<1x64x32x6xf32>
    tpu.vector_store %arg7[%c0_28, %c0_29, %c0_30, %c0_31], %51 {strides = array<i32>} : memref<1x64x32x6xf32, #tpu.memory_space<vmem>>, vector<1x64x32x6xf32>,
    return
  }
  func.func @transform_0(%arg0: i32, %arg1: i32) -> (i32, i32, i32, i32) {
    %c0_i32 = arith.constant 0 : i32
    %c0_i32_0 = arith.constant 0 : i32
    %c0_i32_1 = arith.constant 0 : i32
    return %arg0, %arg1, %c0_i32, %c0_i32_0 : i32, i32, i32, i32
  }
  func.func @transform_1(%arg0: i32, %arg1: i32) -> (i32, i32, i32, i32) {
    %c1_i32 = arith.constant 1 : i32
    %0 = arith.addi %arg1, %c1_i32 : i32
    %c16_i32 = arith.constant 16 : i32
    %1 = arith.muli %0, %c16_i32 : i32
    %c0_i32 = arith.constant 0 : i32
    %c0_i32_0 = arith.constant 0 : i32
    %c0_i32_1 = arith.constant 0 : i32
    return %arg0, %1, %c0_i32, %c0_i32_0 : i32, i32, i32, i32
  }
  func.func @transform_2(%arg0: i32, %arg1: i32) -> (i32, i32, i32) {
    %c0_i32 = arith.constant 0 : i32
    %c0_i32_0 = arith.constant 0 : i32
    %c0_i32_1 = arith.constant 0 : i32
    %c0_i32_2 = arith.constant 0 : i32
    return %c0_i32, %c0_i32_0, %c0_i32_1 : i32, i32, i32
  }
  func.func @transform_3(%arg0: i32, %arg1: i32) -> (i32, i32, i32) {
    %c0_i32 = arith.constant 0 : i32
    %c0_i32_0 = arith.constant 0 : i32
    %c0_i32_1 = arith.constant 0 : i32
    %c0_i32_2 = arith.constant 0 : i32
    return %c0_i32, %c0_i32_0, %c0_i32_1 : i32, i32, i32
  }
  func.func @transform_4(%arg0: i32, %arg1: i32) -> (i32, i32) {
    %c0_i32 = arith.constant 0 : i32
    %c0_i32_0 = arith.constant 0 : i32
    %c0_i32_1 = arith.constant 0 : i32
    return %c0_i32, %c0_i32_0 : i32, i32
  }
  func.func @transform_5(%arg0: i32, %arg1: i32) -> (i32, i32, i32, i32) {
    %c0_i32 = arith.constant 0 : i32
    %c0_i32_0 = arith.constant 0 : i32
    %c0_i32_1 = arith.constant 0 : i32
    return %arg0, %arg1, %c0_i32, %c0_i32_0 : i32, i32, i32, i32
  }
}

</mosaic_0001>

<llo_original>
// kernel: synthesis_net_forward.4
$region0: #{synthesis_net_forward.4}
  #allocation0 [shape = 'u32[]', space=smem, size = 0x4, offset = 0x4, fixed_abs, tag = 'smem constant byte address 0x4 - core index']
  #allocation1 [shape = 'u32[72,128]{1,0:T(1,128)}', space=vmem, size = 0x9000, scoped, tag = 'internal scratch']
  %s0 = inlined_call_operand.vmem [shape: bf16[2,8,6,16], index: 0, kind: input, shape index: {}, may-alias: {0,1}]
  %s1 = inlined_call_operand.vmem [shape: bf16[2,8,6,16], index: 1, kind: input, shape index: {}, may-alias: {0,1}]
  %s2 = inlined_call_operand.vmem [shape: bf16[3,48,16], index: 2, kind: input, shape index: {}]
  %s3 = inlined_call_operand.vmem [shape: bf16[2,48,16], index: 3, kind: input, shape index: {}]
  %s4 = inlined_call_operand.hbm [shape: f32[1,16], index: 4, kind: input, shape index: {}]
  %s5 = inlined_call_operand.hbm [shape: bf16[16,16], index: 5, kind: input, shape index: {}]
  %s6 = inlined_call_operand.hbm [shape: f32[1,16], index: 6, kind: input, shape index: {}]
  %s7 = inlined_call_operand.vmem [shape: bf16[2,8,4,16], index: 7, kind: output, shape index: {}]
  %s8 = sld [smem:[#allocation0]]
  $region73: #{synthesis_net_forward.4} parent=0
    _
  %s10 = ssub.s32 1, %s8
  %s11 = scalar_select 0, %s10, %s8
  $region1: #{synthesis_net_forward.4} parent=0
    #allocation2 [shape = 'u8[512]{0}', space=vmem, size = 0x400, scoped, tag = 'input window, operand 4, single buffered']
    #allocation3 [shape = 's32[2]{0}', space=sflag, size = 0x8, scoped, tag = 'scoped memory for synthesis_net_forward.4']
    #allocation4 [shape = 'u8[4096]{0}', space=vmem, size = 0x1000, scoped, tag = 'input window, operand 5, single buffered']
    #allocation5 [shape = 's32[1]{0}', space=sflag, size = 0x4, scoped, tag = 'scoped memory for synthesis_net_forward.4']
    #allocation6 [shape = 'u8[512]{0}', space=vmem, size = 0x400, scoped, tag = 'input window, operand 6, single buffered']
    %12 = vsyncpa [#allocation3], 0
    %13 = vsyncpa [#allocation5], 0
    loop: start=0, step=1, limit=4
    $region2: #{synthesis_net_forward.4} parent=1 // loop_pre_header
      _
    $region3: #{synthesis_net_forward.4} parent=1 // loop_header
      %s15 = sphi 0, %s19
      %p16 = scmp.ge.s32.totalorder %s15, 4
      %s22 = sphi 0, %s34
      %s23 = sphi 0, %s30
      %s24 = sphi 0, %s22
      %s25 = sphi 0, %s23
      %s26 = sphi 0, %s24
      %s27 = sphi 0, %s25
      %s39 = sphi 0, %s41
      %s42 = sphi 0, %s39
      %s43 = sphi 0, %s42
      %s59 = sphi 0, %s43
      %s71 = sphi 0, %s73
      %s74 = sphi 0, %s71
      %s75 = sphi 0, %s74
      %s91 = sphi 0, %s75
      %s95 = sphi 0, %s95
      %s97 = sphi 0, %s95
      %s98 = sphi 0, %s97
      %s112 = sphi 0, %s98
      %s116 = sphi 0, %s116
      %s118 = sphi 0, %s116
      %s119 = sphi 0, %s118
      %s133 = sphi 0, %s119
      %s137 = sphi 0, %s137
      %s139 = sphi 0, %s137
      %s140 = sphi 0, %s139
      %s154 = sphi 0, %s140
      %s158 = sphi 0, %s158
      %s160 = sphi 0, %s158
      %s161 = sphi 0, %s160
      %s175 = sphi 0, %s161
      %s179 = sphi 0, %s179
      %s181 = sphi 0, %s179
      %s182 = sphi 0, %s181
      %s196 = sphi 0, %s182
      %s204 = sphi 0, %s206
      %s207 = sphi 0, %s204
      %s208 = sphi 0, %s207
      %s224 = sphi 0, %s208
    $region4: #{synthesis_net_forward.4} parent=1 // loop_header_branch
      %18 = sbr.rel (%p16) target = $region8
    $region5: #{synthesis_net_forward.4} parent=1 // loop_body
      %s20 = ssub.s32 %s15, 1
      %s21 = ssub.s32 %s15, 2
      %s28 = sadd.s32 1, %s23
      %p29 = scmp.ge.s32.totalorder %s28, 1
      %s30 = scalar_select %p29, 0, %s28
      %s31 = sadd.s32 1, %s22
      %s32 = scalar_select %p29, %s31, %s22
      %p33 = scmp.ge.s32.totalorder %s32, 2
      %s34 = scalar_select %p33, 0, %s32
      %s35 = ssub.s32 %s22, %s34
      %s36 = ssub.s32 %s23, %s30
      %s37 = sor.u32 %s35, %s36
      %p38 = scmp.eq.s32.totalorder %s37, 0
      %s40 = sadd.s32 %s39, 1
      %s41 = scalar_select %p38, %s39, %s40
      %p44 = pneg %p38
      %p45 = scmp.eq.s32.totalorder %s15, 1
      %p46 = por %p44, %p45
      %p47 = scmp.ne.s32.totalorder %s39, %s42
      %p48 = scmp.eq.s32.totalorder %s15, 0
      %p49 = por %p47, %p48
      %p50 = scmp.ne.s32.totalorder %s39, %s42
      %p51 = scmp.eq.s32.totalorder %s20, 1
      %p52 = por %p50, %p51
      %p53 = scmp.ne.s32.totalorder %s42, %s43
      %p54 = scmp.eq.s32.totalorder %s20, 0
      %p55 = por %p53, %p54
      %p56 = scmp.ne.s32.totalorder %s42, %s43
      %p57 = scmp.eq.s32.totalorder %s21, 1
      %p58 = por %p56, %p57
      %p60 = scmp.ne.s32.totalorder %s43, %s59
      %p61 = scmp.eq.s32.totalorder %s21, 0
      %p62 = por %p60, %p61
      %s63 = sadd.s32 %s23, 1
      %s64 = smul.u32 %s63, 2
      %s65 = sadd.s32 %s30, 1
      %s66 = smul.u32 %s65, 2
      %s67 = ssub.s32 %s22, %s34
      %s68 = ssub.s32 %s64, %s66
      %s69 = sor.u32 %s67, %s68
      %p70 = scmp.eq.s32.totalorder %s69, 0
      %s72 = sadd.s32 %s71, 1
      %s73 = scalar_select %p70, %s71, %s72
      %p76 = pneg %p70
      %p77 = scmp.eq.s32.totalorder %s15, 1
      %p78 = por %p76, %p77
      %p79 = scmp.ne.s32.totalorder %s71, %s74
      %p80 = scmp.eq.s32.totalorder %s15, 0
      %p81 = por %p79, %p80
      %p82 = scmp.ne.s32.totalorder %s71, %s74
      %p83 = scmp.eq.s32.totalorder %s20, 1
      %p84 = por %p82, %p83
      %p85 = scmp.ne.s32.totalorder %s74, %s75
      %p86 = scmp.eq.s32.totalorder %s20, 0
      %p87 = por %p85, %p86
      %p88 = scmp.ne.s32.totalorder %s74, %s75
      %p89 = scmp.eq.s32.totalorder %s21, 1
      %p90 = por %p88, %p89
      %p92 = scmp.ne.s32.totalorder %s75, %s91
      %p93 = scmp.eq.s32.totalorder %s21, 0
      %p94 = por %p92, %p93
      %s96 = sadd.s32 %s95, 1
      %p99 = scmp.eq.s32.totalorder %s15, 1
      %p100 = scmp.ne.s32.totalorder %s95, %s97
      %p101 = scmp.eq.s32.totalorder %s15, 0
      %p102 = por %p100, %p101
      %p103 = scmp.ne.s32.totalorder %s95, %s97
      %p104 = scmp.eq.s32.totalorder %s20, 1
      %p105 = por %p103, %p104
      %p106 = scmp.ne.s32.totalorder %s97, %s98
      %p107 = scmp.eq.s32.totalorder %s20, 0
      %p108 = por %p106, %p107
      %p109 = scmp.ne.s32.totalorder %s97, %s98
      %p110 = scmp.eq.s32.totalorder %s21, 1
      %p111 = por %p109, %p110
      %p113 = scmp.ne.s32.totalorder %s98, %s112
      %p114 = scmp.eq.s32.totalorder %s21, 0
      %p115 = por %p113, %p114
      %s117 = sadd.s32 %s116, 1
      %p120 = scmp.eq.s32.totalorder %s15, 1
      %p121 = scmp.ne.s32.totalorder %s116, %s118
      %p122 = scmp.eq.s32.totalorder %s15, 0
      %p123 = por %p121, %p122
      %p124 = scmp.ne.s32.totalorder %s116, %s118
      %p125 = scmp.eq.s32.totalorder %s20, 1
      %p126 = por %p124, %p125
      %p127 = scmp.ne.s32.totalorder %s118, %s119
      %p128 = scmp.eq.s32.totalorder %s20, 0
      %p129 = por %p127, %p128
      %p130 = scmp.ne.s32.totalorder %s118, %s119
      %p131 = scmp.eq.s32.totalorder %s21, 1
      %p132 = por %p130, %p131
      %p134 = scmp.ne.s32.totalorder %s119, %s133
      %p135 = scmp.eq.s32.totalorder %s21, 0
      %p136 = por %p134, %p135
      %s138 = sadd.s32 %s137, 1
      %p141 = scmp.eq.s32.totalorder %s15, 1
      %p142 = scmp.ne.s32.totalorder %s137, %s139
      %p143 = scmp.eq.s32.totalorder %s15, 0
      %p144 = por %p142, %p143
      %p145 = scmp.ne.s32.totalorder %s137, %s139
      %p146 = scmp.eq.s32.totalorder %s20, 1
      %p147 = por %p145, %p146
      %p148 = scmp.ne.s32.totalorder %s139, %s140
      %p149 = scmp.eq.s32.totalorder %s20, 0
      %p150 = por %p148, %p149
      %p151 = scmp.ne.s32.totalorder %s139, %s140
      %p152 = scmp.eq.s32.totalorder %s21, 1
      %p153 = por %p151, %p152
      %p155 = scmp.ne.s32.totalorder %s140, %s154
      %p156 = scmp.eq.s32.totalorder %s21, 0
      %p157 = por %p155, %p156
      %s159 = sadd.s32 %s158, 1
      %p162 = scmp.eq.s32.totalorder %s15, 1
      %p163 = scmp.ne.s32.totalorder %s158, %s160
      %p164 = scmp.eq.s32.totalorder %s15, 0
      %p165 = por %p163, %p164
      %p166 = scmp.ne.s32.totalorder %s158, %s160
      %p167 = scmp.eq.s32.totalorder %s20, 1
      %p168 = por %p166, %p167
      %p169 = scmp.ne.s32.totalorder %s160, %s161
      %p170 = scmp.eq.s32.totalorder %s20, 0
      %p171 = por %p169, %p170
      %p172 = scmp.ne.s32.totalorder %s160, %s161
      %p173 = scmp.eq.s32.totalorder %s21, 1
      %p174 = por %p172, %p173
      %p176 = scmp.ne.s32.totalorder %s161, %s175
      %p177 = scmp.eq.s32.totalorder %s21, 0
      %p178 = por %p176, %p177
      %s180 = sadd.s32 %s179, 1
      %p183 = scmp.eq.s32.totalorder %s15, 1
      %p184 = scmp.ne.s32.totalorder %s179, %s181
      %p185 = scmp.eq.s32.totalorder %s15, 0
      %p186 = por %p184, %p185
      %p187 = scmp.ne.s32.totalorder %s179, %s181
      %p188 = scmp.eq.s32.totalorder %s20, 1
      %p189 = por %p187, %p188
      %p190 = scmp.ne.s32.totalorder %s181, %s182
      %p191 = scmp.eq.s32.totalorder %s20, 0
      %p192 = por %p190, %p191
      %p193 = scmp.ne.s32.totalorder %s181, %s182
      %p194 = scmp.eq.s32.totalorder %s21, 1
      %p195 = por %p193, %p194
      %p197 = scmp.ne.s32.totalorder %s182, %s196
      %p198 = scmp.eq.s32.totalorder %s21, 0
      %p199 = por %p197, %p198
      %s200 = ssub.s32 %s22, %s34
      %s201 = ssub.s32 %s23, %s30
      %s202 = sor.u32 %s200, %s201
      %p203 = scmp.eq.s32.totalorder %s202, 0
      %s205 = sadd.s32 %s204, 1
      %s206 = scalar_select %p203, %s204, %s205
      %p209 = pneg %p203
      %p210 = scmp.eq.s32.totalorder %s15, 1
      %p211 = por %p209, %p210
      %p212 = scmp.ne.s32.totalorder %s204, %s207
      %p213 = scmp.eq.s32.totalorder %s15, 0
      %p214 = por %p212, %p213
      %p215 = scmp.ne.s32.totalorder %s204, %s207
      %p216 = scmp.eq.s32.totalorder %s20, 1
      %p217 = por %p215, %p216
      %p218 = scmp.ne.s32.totalorder %s207, %s208
      %p219 = scmp.eq.s32.totalorder %s20, 0
      %p220 = por %p218, %p219
      %p221 = scmp.ne.s32.totalorder %s207, %s208
      %p222 = scmp.eq.s32.totalorder %s21, 1
      %p223 = por %p221, %p222
      %p225 = scmp.ne.s32.totalorder %s208, %s224
      %p226 = scmp.eq.s32.totalorder %s21, 0
      %p227 = por %p225, %p226
      %p228 = scmp.le.s32.totalorder 1, %s15
      %p229 = scmp.lt.s32.totalorder %s15, 3
      %p230 = pnand %p228, %p229
      %p231 = pneg %p230
      // Predicated region
      $region9: #{synthesis_net_forward.4} parent=5 // pred_check
        _
      $region10: #{synthesis_net_forward.4} parent=5 // pred_check_branch
        %233 = sbr.rel (%p230) target = $region12
      $region11: #{synthesis_net_forward.4} parent=5 // pred_region
        %s234 = ssub.s32 %s15, 1
        // Predicated region
        $region13: #{synthesis_net_forward.4} parent=11 // pred_check
          %p235 = pneg %p108
        $region14: #{synthesis_net_forward.4} parent=11 // pred_check_branch
          %237 = sbr.rel (%p235) target = $region16
        $region15: #{synthesis_net_forward.4} parent=11 // pred_region
          _
        $region16: #{synthesis_net_forward.4} parent=11 // pred_fallthru
          _
        // Predicated region
        $region17: #{synthesis_net_forward.4} parent=11 // pred_check
          %p238 = pneg %p129
        $region18: #{synthesis_net_forward.4} parent=11 // pred_check_branch
          %240 = sbr.rel (%p238) target = $region20
        $region19: #{synthesis_net_forward.4} parent=11 // pred_region
          _
        $region20: #{synthesis_net_forward.4} parent=11 // pred_fallthru
          _
        // Predicated region
        $region21: #{synthesis_net_forward.4} parent=11 // pred_check
          %p241 = pneg %p150
        $region22: #{synthesis_net_forward.4} parent=11 // pred_check_branch
          %243 = sbr.rel (%p241) target = $region24
        $region23: #{synthesis_net_forward.4} parent=11 // pred_region
          %245 = vsyncadd [#allocation3], 0
          %s247 = sshll.u32 %s4, 4
          %s248 = int_to_ptr.hbm [resolvable:$true] %s247
          %s249 = sshll.u32 [#allocation2], 4
          %s250 = int_to_ptr.vmem [resolvable:$true] %s249
          %252 = dma.hbm_to_vmem [thread:$0]  %s248, 16, %s250, [#allocation3]
        $region24: #{synthesis_net_forward.4} parent=11 // pred_fallthru
          _
        // Predicated region
        $region25: #{synthesis_net_forward.4} parent=11 // pred_check
          %p253 = pneg %p171
        $region26: #{synthesis_net_forward.4} parent=11 // pred_check_branch
          %255 = sbr.rel (%p253) target = $region28
        $region27: #{synthesis_net_forward.4} parent=11 // pred_region
          %257 = vsyncadd [#allocation5], 0
          %s258 = sshll.u32 %s5, 4
          %s259 = int_to_ptr.hbm [resolvable:$true] %s258
          %s260 = sshll.u32 [#allocation4], 4
          %s261 = int_to_ptr.vmem [resolvable:$true] %s260
          %266 = dma.hbm_to_vmem [thread:$0]  %s259, 128, %s261, [#allocation5], 64, 64, 4
        $region28: #{synthesis_net_forward.4} parent=11 // pred_fallthru
          _
        // Predicated region
        $region29: #{synthesis_net_forward.4} parent=11 // pred_check
          %p267 = pneg %p192
        $region30: #{synthesis_net_forward.4} parent=11 // pred_check_branch
          %269 = sbr.rel (%p267) target = $region32
        $region31: #{synthesis_net_forward.4} parent=11 // pred_region
          %271 = vsyncadd [#allocation5], 0
          %s273 = sshll.u32 %s6, 4
          %s274 = int_to_ptr.hbm [resolvable:$true] %s273
          %s275 = sshll.u32 [#allocation6], 4
          %s276 = int_to_ptr.vmem [resolvable:$true] %s275
          %278 = dma.hbm_to_vmem [thread:$0]  %s274, 16, %s276, [#allocation5]
        $region32: #{synthesis_net_forward.4} parent=11 // pred_fallthru
          _
      $region12: #{synthesis_net_forward.4} parent=5 // pred_fallthru
        _
      %p279 = scmp.lt.s32.totalorder %s15, 2
      // Predicated region
      $region33: #{synthesis_net_forward.4} parent=5 // pred_check
        %p280 = pneg %p279
      $region34: #{synthesis_net_forward.4} parent=5 // pred_check_branch
        %282 = sbr.rel (%p280) target = $region36
      $region35: #{synthesis_net_forward.4} parent=5 // pred_region
        // Predicated region
        $region37: #{synthesis_net_forward.4} parent=35 // pred_check
          %p283 = pneg %p49
        $region38: #{synthesis_net_forward.4} parent=35 // pred_check_branch
          %285 = sbr.rel (%p283) target = $region40
        $region39: #{synthesis_net_forward.4} parent=35 // pred_region
          %s286 = smul.u32 4, %s23
          %p287 = scmp.lt.s32.totalorder %s22, 1
          %s288 = scalar_select %p287, %s22, 1
          %p289 = scmp.lt.s32.totalorder %s286, 7
          %s290 = scalar_select %p289, %s286, 7
          %s291 = smul.addr %s288, 8
          %s292 = sadd.s32 %s290, %s291
          %s293 = smul.addr %s292, 4
          %s294 = scalar_lea.vmem %s0, %s293
          %s295 = smul.u32 4, %s23
        $region40: #{synthesis_net_forward.4} parent=35 // pred_fallthru
          _
        // Predicated region
        $region41: #{synthesis_net_forward.4} parent=35 // pred_check
          %p296 = pneg %p81
        $region42: #{synthesis_net_forward.4} parent=35 // pred_check_branch
          %298 = sbr.rel (%p296) target = $region44
        $region43: #{synthesis_net_forward.4} parent=35 // pred_region
          %s299 = sadd.s32 %s23, 1
          %s300 = smul.u32 %s299, 2
          %s301 = smul.u32 2, %s300
          %p302 = scmp.lt.s32.totalorder %s22, 1
          %s303 = scalar_select %p302, %s22, 1
          %p304 = scmp.lt.s32.totalorder %s301, 7
          %s305 = scalar_select %p304, %s301, 7
          %s306 = smul.addr %s303, 8
          %s307 = sadd.s32 %s305, %s306
          %s308 = smul.addr %s307, 4
          %s309 = scalar_lea.vmem %s1, %s308
          %s310 = sadd.s32 %s23, 1
          %s311 = smul.u32 %s310, 2
          %s312 = smul.u32 2, %s311
        $region44: #{synthesis_net_forward.4} parent=35 // pred_fallthru
          _
      $region36: #{synthesis_net_forward.4} parent=5 // pred_fallthru
        _
      %p313 = scmp.le.s32.totalorder 1, %s15
      %p314 = scmp.lt.s32.totalorder %s15, 3
      %p315 = pnand %p313, %p314
      %p316 = pneg %p315
      // Predicated region
      $region45: #{synthesis_net_forward.4} parent=5 // pred_check
        _
      $region46: #{synthesis_net_forward.4} parent=5 // pred_check_branch
        %318 = sbr.rel (%p315) target = $region48
      $region47: #{synthesis_net_forward.4} parent=5 // pred_region
        %s319 = ssub.s32 %s15, 1
        // Predicated region
        $region49: #{synthesis_net_forward.4} parent=47 // pred_check
          %p320 = pneg %p150
        $region50: #{synthesis_net_forward.4} parent=47 // pred_check_branch
          %322 = sbr.rel (%p320) target = $region52
        $region51: #{synthesis_net_forward.4} parent=47 // pred_region
          %324 = dma.done [#allocation3], 16
        $region52: #{synthesis_net_forward.4} parent=47 // pred_fallthru
          _
        // Predicated region
        $region53: #{synthesis_net_forward.4} parent=47 // pred_check
          %p325 = pneg %p171
        $region54: #{synthesis_net_forward.4} parent=47 // pred_check_branch
          %327 = sbr.rel (%p325) target = $region56
        $region55: #{synthesis_net_forward.4} parent=47 // pred_region
          %329 = dma.done [#allocation5], 128
        $region56: #{synthesis_net_forward.4} parent=47 // pred_fallthru
          _
        // Predicated region
        $region57: #{synthesis_net_forward.4} parent=47 // pred_check
          %p330 = pneg %p192
        $region58: #{synthesis_net_forward.4} parent=47 // pred_check_branch
          %332 = sbr.rel (%p330) target = $region60
        $region59: #{synthesis_net_forward.4} parent=47 // pred_region
          %334 = dma.done [#allocation5], 16
        $region60: #{synthesis_net_forward.4} parent=47 // pred_fallthru
          _
        %s335 = smul.u32 4, %s25
        %p336 = scmp.lt.s32.totalorder %s24, 1
        %s337 = scalar_select %p336, %s24, 1
        %p338 = scmp.lt.s32.totalorder %s335, 7
        %s339 = scalar_select %p338, %s335, 7
        %s340 = smul.addr %s337, 8
        %s341 = sadd.s32 %s339, %s340
        %s342 = smul.addr %s341, 4
        %s343 = scalar_lea.vmem %s0, %s342
        %p344 = pneg %p55
        %p345 = pneg %p52
        %s346 = sadd.s32 %s25, 1
        %s347 = smul.u32 %s346, 2
        %s348 = smul.u32 2, %s347
        %p349 = scmp.lt.s32.totalorder %s24, 1
        %s350 = scalar_select %p349, %s24, 1
        %p351 = scmp.lt.s32.totalorder %s348, 7
        %s352 = scalar_select %p351, %s348, 7
        %s353 = smul.addr %s350, 8
        %s354 = sadd.s32 %s352, %s353
        %s355 = smul.addr %s354, 4
        %s356 = scalar_lea.vmem %s1, %s355
        %p357 = pneg %p87
        %p358 = pneg %p84
        %p359 = pneg %p108
        %p360 = pneg %p105
        %p361 = pneg %p129
        %p362 = pneg %p126
        %p363 = pneg %p150
        %p364 = pneg %p147
        %p365 = pneg %p171
        %p366 = pneg %p168
        %p367 = pneg %p192
        %p368 = pneg %p189
        %p369 = pneg %p220
        %p370 = pneg %p217
        %s371 = smul.u32 8, %s25
        %p372 = scmp.lt.s32.totalorder %s24, 1
        %s373 = scalar_select %p372, %s24, 1
        %p374 = scmp.lt.s32.totalorder %s371, 7
        %s375 = scalar_select %p374, %s371, 7
        %s376 = smul.addr %s373, 8
        %s377 = sadd.s32 %s375, %s376
        %s378 = smul.addr %s377, 2
        %s379 = scalar_lea.vmem %s7, %s378
        %s380 = smul.u32 4, %s25
        %p381 = scmp.lt.s32.totalorder %s24, 1
        %s382 = scalar_select %p381, %s24, 1
        %p383 = scmp.lt.s32.totalorder %s380, 7
        %s384 = scalar_select %p383, %s380, 7
        %s385 = smul.addr %s382, 8
        %s386 = sadd.s32 %s384, %s385
        %s387 = smul.addr %s386, 4
        %s388 = scalar_lea.vmem %s0, %s387
        %s389 = smul.u32 4, %s25
        %s390 = sadd.s32 %s25, 1
        %s391 = smul.u32 %s390, 2
        %s392 = smul.u32 2, %s391
        %p393 = scmp.lt.s32.totalorder %s24, 1
        %s394 = scalar_select %p393, %s24, 1
        %p395 = scmp.lt.s32.totalorder %s392, 7
        %s396 = scalar_select %p395, %s392, 7
        %s397 = smul.addr %s394, 8
        %s398 = sadd.s32 %s396, %s397
        %s399 = smul.addr %s398, 4
        %s400 = scalar_lea.vmem %s1, %s399
        %s401 = sadd.s32 %s25, 1
        %s402 = smul.u32 %s401, 2
        %s403 = smul.u32 2, %s402
        %s404 = smul.u32 8, %s25
        %p405 = scmp.lt.s32.totalorder %s24, 1
        %s406 = scalar_select %p405, %s24, 1
        %p407 = scmp.lt.s32.totalorder %s404, 7
        %s408 = scalar_select %p407, %s404, 7
        %s409 = smul.addr %s406, 8
        %s410 = sadd.s32 %s408, %s409
        %s411 = smul.addr %s410, 2
        %s412 = scalar_lea.vmem %s7, %s411
        %s413 = smul.u32 8, %s25
        %v415 = vld [vmem:[%s388] sm:$0x7]
        %v416 = vld [vmem:[%s388 + $0x4] sm:$0x7]
        %v417 = vld [vmem:[%s388 + $0x8] sm:$0x7]
        %v418 = vld [vmem:[%s388 + $0xc] sm:$0x7]
        %v419 = vld [vmem:[%s400] sm:$0x7]
        %v420 = vld [vmem:[%s400 + $0x4] sm:$0x7]
        %v427 = vunpack.c.l.b16 %v415
        %v428 = vunpack.c.l.b16 %v416
        %v429 = vunpack.c.l.b16 %v417
        %v430 = vunpack.c.l.b16 %v418
        %v431 = vunpack.c.l.b16 %v419
        %v432 = vunpack.c.l.b16 %v420
        %v433 = vpack.c.b16 %v427, %v427
        %v434 = vpack.c.b16 %v428, %v428
        %v435 = vpack.c.b16 %v429, %v429
        %v436 = vpack.c.b16 %v430, %v430
        %v437 = vpack.c.b16 %v431, %v431
        %v438 = vpack.c.b16 %v432, %v432
        %v440 = vshrl.u32 %v433, 16
        %v442 = vshll.u32 %v433, 16
        %v444 = vrot.slane %v442, 1
        %v445 = vor.u32 %v440, %v444
        %v447 = vshrl.u32 %v434, 16
        %v449 = vshll.u32 %v434, 16
        %v451 = vrot.slane %v449, 1
        %v452 = vor.u32 %v447, %v451
        %v454 = vshrl.u32 %v435, 16
        %v456 = vshll.u32 %v435, 16
        %v458 = vrot.slane %v456, 1
        %v459 = vor.u32 %v454, %v458
        %v461 = vshrl.u32 %v436, 16
        %v463 = vshll.u32 %v436, 16
        %v465 = vrot.slane %v463, 1
        %v466 = vor.u32 %v461, %v465
        %v468 = vshrl.u32 %v437, 16
        %v470 = vshll.u32 %v437, 16
        %v472 = vrot.slane %v470, 1
        %v473 = vor.u32 %v468, %v472
        %v475 = vshrl.u32 %v438, 16
        %v477 = vshll.u32 %v438, 16
        %v479 = vrot.slane %v477, 1
        %v480 = vor.u32 %v475, %v479
        %481 = vrot.lane.b32.xlu0 %v445, 16
        %v482 = vpop.permute.xlu0 %481
        %483 = vrot.lane.b32.xlu0 %v452, 16
        %v484 = vpop.permute.xlu0 %483
        %485 = vrot.lane.b32.xlu0 %v459, 16
        %v486 = vpop.permute.xlu0 %485
        %487 = vrot.lane.b32.xlu0 %v466, 16
        %v488 = vpop.permute.xlu0 %487
        %489 = vrot.lane.b32.xlu0 %v473, 16
        %v490 = vpop.permute.xlu0 %489
        %491 = vrot.lane.b32.xlu0 %v480, 16
        %v492 = vpop.permute.xlu0 %491
        %v493 = vrot.slane %v433, 1
        %v494 = vrot.slane %v434, 1
        %v495 = vrot.slane %v435, 1
        %v496 = vrot.slane %v436, 1
        %v497 = vrot.slane %v437, 1
        %v498 = vrot.slane %v438, 1
        %499 = vrot.lane.b32.xlu0 %v493, 32
        %v500 = vpop.permute.xlu0 %499
        %501 = vrot.lane.b32.xlu0 %v494, 32
        %v502 = vpop.permute.xlu0 %501
        %503 = vrot.lane.b32.xlu0 %v495, 32
        %v504 = vpop.permute.xlu0 %503
        %505 = vrot.lane.b32.xlu0 %v496, 32
        %v506 = vpop.permute.xlu0 %505
        %507 = vrot.lane.b32.xlu0 %v497, 32
        %v508 = vpop.permute.xlu0 %507
        %509 = vrot.lane.b32.xlu0 %v498, 32
        %v510 = vpop.permute.xlu0 %509
        %vm511 = vcmask 130048
        %v514 = vsel %vm511, %v415, %v482
        %v517 = vsel %vm511, %v416, %v484
        %v520 = vsel %vm511, %v417, %v486
        %v523 = vsel %vm511, %v418, %v488
        %v526 = vsel %vm511, %v419, %v490
        %v529 = vsel %vm511, %v420, %v492
        %vm530 = vcmask 261120
        %v532 = vsel %vm530, %v514, %v500
        %v534 = vsel %vm530, %v517, %v502
        %v536 = vsel %vm530, %v520, %v504
        %v538 = vsel %vm530, %v523, %v506
        %v540 = vsel %vm530, %v526, %v508
        %v542 = vsel %vm530, %v529, %v510
        %v543 = vld [vmem:[%s2] sm:$0xf]
        %v544 = vld [vmem:[%s2 + $0x4] sm:$0xf]
        %v545 = vld [vmem:[%s2 + $0x8] sm:$0xf]
        %v546 = vld [vmem:[%s2 + $0xc] sm:$0xf]
        %v547 = vld [vmem:[%s2 + $0x10] sm:$0xf]
        %v548 = vld [vmem:[%s2 + $0x14] sm:$0xf]
        %s549 = scalar_lea.vmem %s2, 24
        %v550 = vld [vmem:[%s549] sm:$0xf]
        %v551 = vld [vmem:[%s549 + $0x4] sm:$0xf]
        %v552 = vld [vmem:[%s549 + $0x8] sm:$0xf]
        %v553 = vld [vmem:[%s549 + $0xc] sm:$0xf]
        %v554 = vld [vmem:[%s549 + $0x10] sm:$0xf]
        %v555 = vld [vmem:[%s549 + $0x14] sm:$0xf]
        %556 = vst [vmem:[#allocation1] ss:$4 sm:$0xff] %v534
        %s557 = scalar_lea.vmem [#allocation1], 1
        %558 = vst [vmem:[%s557] ss:$4 sm:$0xff] %v536
        %s559 = scalar_lea.vmem [#allocation1], 2
        %560 = vst [vmem:[%s559] ss:$4 sm:$0xff] %v538
        %s561 = scalar_lea.vmem [#allocation1], 3
        %562 = vst [vmem:[%s561] ss:$4 sm:$0xff] %v540
        %v563 = vld.sshfl [vmem:[#allocation1] sm:$0xff pattern:$0x73625140]
        %v570 = vunpack.c.l.b16 %v550
        %v571 = vunpack.c.l.b16 %v551
        %v572 = vunpack.c.l.b16 %v552
        %v573 = vunpack.c.l.b16 %v553
        %v574 = vunpack.c.l.b16 %v554
        %v575 = vunpack.c.l.b16 %v555
        %v576 = vpack.c.b16 %v571, %v570
        %v577 = vpack.c.b16 %v573, %v572
        %v578 = vpack.c.b16 %v575, %v574
        %vm582 = vcmask 392192
        %v583 = vsel %vm582, %v563, 0
        %585 = vmatpush.bf16.msra.mxu0 0
        %586 = vmatpush.bf16.msra.mxu0 0
        %587 = vmatpush.bf16.msra.mxu0 0
        %588 = vmatpush.bf16.msra.mxu0 0
        %589 = vmatpush.bf16.msra.mxu0 0
        %590 = vmatpush.bf16.msra.mxu0 %v578
        %591 = vmatpush.bf16.msra.mxu0 %v577
        %592 = vmatpush.bf16.msra.mxu0 %v576
        %593 = vmatmul.bf16.gmra.mxu0 %v583
        %v594 = vpop.f32.mrf.mxu0
        %v595 = vadd.f32 0.0, %v594
        %v596 = vpop.f32.mrf.mxu0
        %v597 = vadd.f32 0.0, %v596
        %598 = vdwg.mxu0
        %599 = vst [vmem:[#allocation1] ss:$4 sm:$0xff] %v532
        %s600 = scalar_lea.vmem [#allocation1], 1
        %601 = vst [vmem:[%s600] ss:$4 sm:$0xff] %v534
        %s602 = scalar_lea.vmem [#allocation1], 2
        %603 = vst [vmem:[%s602] ss:$4 sm:$0xff] %v536
        %s604 = scalar_lea.vmem [#allocation1], 3
        %605 = vst [vmem:[%s604] ss:$4 sm:$0xff] %v538
        %v606 = vld.sshfl [vmem:[#allocation1] sm:$0xff pattern:$0x73625140]
        %v613 = vunpack.c.l.b16 %v543
        %v614 = vunpack.c.l.b16 %v544
        %v615 = vunpack.c.l.b16 %v545
        %v616 = vunpack.c.l.b16 %v546
        %v617 = vunpack.c.l.b16 %v547
        %v618 = vunpack.c.l.b16 %v548
        %v619 = vpack.c.b16 %v614, %v613
        %v620 = vpack.c.b16 %v616, %v615
        %v621 = vpack.c.b16 %v618, %v617
        %v625 = vsel %vm582, %v606, 0
        %627 = vmatpush.bf16.msra.mxu0 0
        %628 = vmatpush.bf16.msra.mxu0 0
        %629 = vmatpush.bf16.msra.mxu0 0
        %630 = vmatpush.bf16.msra.mxu0 0
        %631 = vmatpush.bf16.msra.mxu0 0
        %632 = vmatpush.bf16.msra.mxu0 %v621
        %633 = vmatpush.bf16.msra.mxu0 %v620
        %634 = vmatpush.bf16.msra.mxu0 %v619
        %635 = vmatmul.bf16.gmra.mxu0 %v625
        %v636 = vpop.f32.mrf.mxu0
        %v637 = vadd.f32 %v595, %v636
        %v638 = vpop.f32.mrf.mxu0
        %v639 = vadd.f32 %v597, %v638
        %640 = vdwg.mxu0
        %s641 = scalar_lea.vmem %s2, 48
        %v642 = vld [vmem:[%s641] sm:$0xf]
        %v643 = vld [vmem:[%s641 + $0x4] sm:$0xf]
        %v644 = vld [vmem:[%s641 + $0x8] sm:$0xf]
        %v645 = vld [vmem:[%s641 + $0xc] sm:$0xf]
        %v646 = vld [vmem:[%s641 + $0x10] sm:$0xf]
        %v647 = vld [vmem:[%s641 + $0x14] sm:$0xf]
        %648 = vst [vmem:[#allocation1] ss:$4 sm:$0xff] %v536
        %s649 = scalar_lea.vmem [#allocation1], 1
        %650 = vst [vmem:[%s649] ss:$4 sm:$0xff] %v538
        %s651 = scalar_lea.vmem [#allocation1], 2
        %652 = vst [vmem:[%s651] ss:$4 sm:$0xff] %v540
        %s653 = scalar_lea.vmem [#allocation1], 3
        %654 = vst [vmem:[%s653] ss:$4 sm:$0xff] %v542
        %v655 = vld.sshfl [vmem:[#allocation1] sm:$0xff pattern:$0x73625140]
        %v662 = vunpack.c.l.b16 %v642
        %v663 = vunpack.c.l.b16 %v643
        %v664 = vunpack.c.l.b16 %v644
        %v665 = vunpack.c.l.b16 %v645
        %v666 = vunpack.c.l.b16 %v646
        %v667 = vunpack.c.l.b16 %v647
        %v668 = vpack.c.b16 %v663, %v662
        %v669 = vpack.c.b16 %v665, %v664
        %v670 = vpack.c.b16 %v667, %v666
        %v674 = vsel %vm582, %v655, 0
        %676 = vmatpush.bf16.msra.mxu0 0
        %677 = vmatpush.bf16.msra.mxu0 0
        %678 = vmatpush.bf16.msra.mxu0 0
        %679 = vmatpush.bf16.msra.mxu0 0
        %680 = vmatpush.bf16.msra.mxu0 0
        %681 = vmatpush.bf16.msra.mxu0 %v670
        %682 = vmatpush.bf16.msra.mxu0 %v669
        %683 = vmatpush.bf16.msra.mxu0 %v668
        %684 = vmatmul.bf16.gmra.mxu0 %v674
        %v685 = vpop.f32.mrf.mxu0
        %v686 = vadd.f32 0.0, %v685
        %v687 = vpop.f32.mrf.mxu0
        %v688 = vadd.f32 0.0, %v687
        %689 = vdwg.mxu0
        %v690 = vadd.f32 %v637, %v686
        %v691 = vadd.f32 %v639, %v688
        %v692 = vld [vmem:[#allocation2] sm:$0x1]
        %v694 = vperm.slane %v692, 0
        %v696 = vadd.f32 %v690, %v694
        %v697 = vadd.f32 %v691, %v694
        %v698 = vmul.f32 %v696, %v696
        %v699 = vmul.f32 %v697, %v697
        %v700 = vpack.c.bf16 %v699, %v698
        %v701 = vld [vmem:[#allocation4] sm:$0xf]
        %v702 = vld [vmem:[#allocation4 + $0x4] sm:$0xf]
        %v703 = vld [vmem:[#allocation6] sm:$0x1]
        %v705 = vperm.slane %v703, 0
        %v709 = vunpack.c.l.b16 %v701
        %v710 = vunpack.c.l.b16 %v702
        %v711 = vpack.c.b16 %v710, %v709
        %v714 = vsel %vm511, %v700, 0
        %716 = vmatpush.bf16.msra.mxu0 0
        %717 = vmatpush.bf16.msra.mxu0 0
        %718 = vmatpush.bf16.msra.mxu0 0
        %719 = vmatpush.bf16.msra.mxu0 0
        %720 = vmatpush.bf16.msra.mxu0 0
        %721 = vmatpush.bf16.msra.mxu0 0
        %722 = vmatpush.bf16.msra.mxu0 0
        %723 = vmatpush.bf16.msra.mxu0 %v711
        %724 = vmatmul.bf16.gmra.mxu0 %v714
        %v725 = vpop.f32.mrf.mxu0
        %v726 = vadd.f32 %v705, %v725
        %v727 = vpop.f32.mrf.mxu0
        %v728 = vadd.f32 %v705, %v727
        %729 = vdwg.mxu0
        %v730 = vrsqrt.pop %v726
        %v731 = vmul.f32 %v730, %v726
        %v732 = vmul.f32 %v731, %v730
        %v733 = vmul.f32 0.5, %v732
        %v734 = vsub.f32 1.5, %v733
        %v735 = vmul.f32 %v730, %v734
        %v736 = vmul.f32 %v726, %v735
        %vm737 = vcmp.eq.f32.partialorder %v726, inf
        %v738 = vsel %vm737, %v726, %v736
        %vm739 = vcmp.eq.f32.partialorder %v726, 0.0
        %v740 = vand.u32 %v726, 2147483648
        %v741 = vsel %vm739, %v740, %v738
        %v742 = vrsqrt.pop %v728
        %v743 = vmul.f32 %v742, %v728
        %v744 = vmul.f32 %v743, %v742
        %v745 = vmul.f32 0.5, %v744
        %v746 = vsub.f32 1.5, %v745
        %v747 = vmul.f32 %v742, %v746
        %v748 = vmul.f32 %v728, %v747
        %vm749 = vcmp.eq.f32.partialorder %v728, inf
        %v750 = vsel %vm749, %v728, %v748
        %vm751 = vcmp.eq.f32.partialorder %v728, 0.0
        %v752 = vand.u32 %v728, 2147483648
        %v753 = vsel %vm751, %v752, %v750
        %v754 = vmul.f32 %v696, %v741
        %v755 = vmul.f32 %v697, %v753
        %v756 = vld [vmem:[%s3] sm:$0xf]
        %v757 = vld [vmem:[%s3 + $0x4] sm:$0xf]
        %v758 = vld [vmem:[%s3 + $0x8] sm:$0xf]
        %v759 = vld [vmem:[%s3 + $0xc] sm:$0xf]
        %v760 = vld [vmem:[%s3 + $0x10] sm:$0xf]
        %v761 = vld [vmem:[%s3 + $0x14] sm:$0xf]
        %s762 = scalar_lea.vmem %s3, 24
        %v763 = vld [vmem:[%s762] sm:$0xf]
        %v764 = vld [vmem:[%s762 + $0x4] sm:$0xf]
        %v765 = vld [vmem:[%s762 + $0x8] sm:$0xf]
        %v766 = vld [vmem:[%s762 + $0xc] sm:$0xf]
        %v767 = vld [vmem:[%s762 + $0x10] sm:$0xf]
        %v768 = vld [vmem:[%s762 + $0x14] sm:$0xf]
        %769 = vst [vmem:[#allocation1] ss:$4 sm:$0xff] %v536
        %s770 = scalar_lea.vmem [#allocation1], 1
        %771 = vst [vmem:[%s770] ss:$4 sm:$0xff] %v538
        %s772 = scalar_lea.vmem [#allocation1], 2
        %773 = vst [vmem:[%s772] ss:$4 sm:$0xff] %v540
        %s774 = scalar_lea.vmem [#allocation1], 3
        %775 = vst [vmem:[%s774] ss:$4 sm:$0xff] %v542
        %v776 = vld.sshfl [vmem:[#allocation1] sm:$0xff pattern:$0x73625140]
        %v783 = vunpack.c.l.b16 %v763
        %v784 = vunpack.c.l.b16 %v764
        %v785 = vunpack.c.l.b16 %v765
        %v786 = vunpack.c.l.b16 %v766
        %v787 = vunpack.c.l.b16 %v767
        %v788 = vunpack.c.l.b16 %v768
        %v789 = vpack.c.b16 %v784, %v783
        %v790 = vpack.c.b16 %v786, %v785
        %v791 = vpack.c.b16 %v788, %v787
        %v795 = vsel %vm582, %v776, 0
        %797 = vmatpush.bf16.msra.mxu0 0
        %798 = vmatpush.bf16.msra.mxu0 0
        %799 = vmatpush.bf16.msra.mxu0 0
        %800 = vmatpush.bf16.msra.mxu0 0
        %801 = vmatpush.bf16.msra.mxu0 0
        %802 = vmatpush.bf16.msra.mxu0 %v791
        %803 = vmatpush.bf16.msra.mxu0 %v790
        %804 = vmatpush.bf16.msra.mxu0 %v789
        %805 = vmatmul.bf16.gmra.mxu0 %v795
        %v806 = vpop.f32.mrf.mxu0
        %v807 = vadd.f32 0.0, %v806
        %v808 = vpop.f32.mrf.mxu0
        %v809 = vadd.f32 0.0, %v808
        %810 = vdwg.mxu0
        %811 = vst [vmem:[#allocation1] ss:$4 sm:$0xff] %v534
        %s812 = scalar_lea.vmem [#allocation1], 1
        %813 = vst [vmem:[%s812] ss:$4 sm:$0xff] %v536
        %s814 = scalar_lea.vmem [#allocation1], 2
        %815 = vst [vmem:[%s814] ss:$4 sm:$0xff] %v538
        %s816 = scalar_lea.vmem [#allocation1], 3
        %817 = vst [vmem:[%s816] ss:$4 sm:$0xff] %v540
        %v818 = vld.sshfl [vmem:[#allocation1] sm:$0xff pattern:$0x73625140]
        %v825 = vunpack.c.l.b16 %v756
        %v826 = vunpack.c.l.b16 %v757
        %v827 = vunpack.c.l.b16 %v758
        %v828 = vunpack.c.l.b16 %v759
        %v829 = vunpack.c.l.b16 %v760
        %v830 = vunpack.c.l.b16 %v761
        %v831 = vpack.c.b16 %v826, %v825
        %v832 = vpack.c.b16 %v828, %v827
        %v833 = vpack.c.b16 %v830, %v829
        %v837 = vsel %vm582, %v818, 0
        %839 = vmatpush.bf16.msra.mxu0 0
        %840 = vmatpush.bf16.msra.mxu0 0
        %841 = vmatpush.bf16.msra.mxu0 0
        %842 = vmatpush.bf16.msra.mxu0 0
        %843 = vmatpush.bf16.msra.mxu0 0
        %844 = vmatpush.bf16.msra.mxu0 %v833
        %845 = vmatpush.bf16.msra.mxu0 %v832
        %846 = vmatpush.bf16.msra.mxu0 %v831
        %847 = vmatmul.bf16.gmra.mxu0 %v837
        %v848 = vpop.f32.mrf.mxu0
        %v849 = vadd.f32 %v807, %v848
        %v850 = vpop.f32.mrf.mxu0
        %v851 = vadd.f32 %v809, %v850
        %852 = vdwg.mxu0
        %v853 = vadd.f32 %v849, %v694
        %v854 = vadd.f32 %v851, %v694
        %v855 = vmul.f32 %v853, %v853
        %v856 = vmul.f32 %v854, %v854
        %v857 = vpack.c.bf16 %v856, %v855
        %v859 = vsel %vm511, %v857, 0
        %861 = vmatpush.bf16.msra.mxu0 0
        %862 = vmatpush.bf16.msra.mxu0 0
        %863 = vmatpush.bf16.msra.mxu0 0
        %864 = vmatpush.bf16.msra.mxu0 0
        %865 = vmatpush.bf16.msra.mxu0 0
        %866 = vmatpush.bf16.msra.mxu0 0
        %867 = vmatpush.bf16.msra.mxu0 0
        %868 = vmatpush.bf16.msra.mxu0 %v711
        %869 = vmatmul.bf16.gmra.mxu0 %v859
        %v870 = vpop.f32.mrf.mxu0
        %v871 = vadd.f32 %v705, %v870
        %v872 = vpop.f32.mrf.mxu0
        %v873 = vadd.f32 %v705, %v872
        %874 = vdwg.mxu0
        %v875 = vrsqrt.pop %v871
        %v876 = vmul.f32 %v875, %v871
        %v877 = vmul.f32 %v876, %v875
        %v878 = vmul.f32 0.5, %v877
        %v879 = vsub.f32 1.5, %v878
        %v880 = vmul.f32 %v875, %v879
        %v881 = vmul.f32 %v871, %v880
        %vm882 = vcmp.eq.f32.partialorder %v871, inf
        %v883 = vsel %vm882, %v871, %v881
        %vm884 = vcmp.eq.f32.partialorder %v871, 0.0
        %v885 = vand.u32 %v871, 2147483648
        %v886 = vsel %vm884, %v885, %v883
        %v887 = vrsqrt.pop %v873
        %v888 = vmul.f32 %v887, %v873
        %v889 = vmul.f32 %v888, %v887
        %v890 = vmul.f32 0.5, %v889
        %v891 = vsub.f32 1.5, %v890
        %v892 = vmul.f32 %v887, %v891
        %v893 = vmul.f32 %v873, %v892
        %vm894 = vcmp.eq.f32.partialorder %v873, inf
        %v895 = vsel %vm894, %v873, %v893
        %vm896 = vcmp.eq.f32.partialorder %v873, 0.0
        %v897 = vand.u32 %v873, 2147483648
        %v898 = vsel %vm896, %v897, %v895
        %v899 = vmul.f32 %v853, %v886
        %v900 = vmul.f32 %v854, %v898
        %v903 = vrot.slane %v754, 4
        %v904 = vrot.slane %v755, 4
        %v909 = vrot.slane %v899, 4
        %v910 = vrot.slane %v900, 4
        %v913 = vpack.c.bf16 %v754, %v754
        %v914 = vpack.c.bf16 %v899, %v899
        %v915 = vpack.c.bf16 %v903, %v903
        %v916 = vpack.c.bf16 %v909, %v909
        %v917 = vpack.c.bf16 %v755, %v755
        %v918 = vpack.c.bf16 %v900, %v900
        %v919 = vpack.c.bf16 %v904, %v904
        %v920 = vpack.c.bf16 %v910, %v910
        %vm921 = vcmask 123904
        %922 = vst.msk [vmem:[%s412] sm:$0x3] %vm921, %v913
        %923 = vst.msk [vmem:[%s412 + $0x2] sm:$0x3] %vm921, %v914
        %924 = vst.msk [vmem:[%s412 + $0x4] sm:$0x3] %vm921, %v915
        %925 = vst.msk [vmem:[%s412 + $0x6] sm:$0x3] %vm921, %v916
        %926 = vst.msk [vmem:[%s412 + $0x8] sm:$0x3] %vm921, %v917
        %927 = vst.msk [vmem:[%s412 + $0xa] sm:$0x3] %vm921, %v918
        %928 = vst.msk [vmem:[%s412 + $0xc] sm:$0x3] %vm921, %v919
        %929 = vst.msk [vmem:[%s412 + $0xe] sm:$0x3] %vm921, %v920
        %s930 = smul.u32 8, %s25
        %p931 = scmp.lt.s32.totalorder %s24, 1
        %s932 = scalar_select %p931, %s24, 1
        %p933 = scmp.lt.s32.totalorder %s930, 7
        %s934 = scalar_select %p933, %s930, 7
        %s935 = smul.addr %s932, 8
        %s936 = sadd.s32 %s934, %s935
        %s937 = smul.addr %s936, 2
        %s938 = scalar_lea.vmem %s7, %s937
        // Predicated region
        $region61: #{synthesis_net_forward.4} parent=47 // pred_check
          %p939 = pneg %p217
        $region62: #{synthesis_net_forward.4} parent=47 // pred_check_branch
          %941 = sbr.rel (%p939) target = $region64
        $region63: #{synthesis_net_forward.4} parent=47 // pred_region
          %s942 = smul.u32 8, %s25
        $region64: #{synthesis_net_forward.4} parent=47 // pred_fallthru
          _
      $region48: #{synthesis_net_forward.4} parent=5 // pred_fallthru
        _
      %p943 = scmp.le.s32.totalorder 2, %s15
      // Predicated region
      $region65: #{synthesis_net_forward.4} parent=5 // pred_check
        %p944 = pneg %p943
      $region66: #{synthesis_net_forward.4} parent=5 // pred_check_branch
        %946 = sbr.rel (%p944) target = $region68
      $region67: #{synthesis_net_forward.4} parent=5 // pred_region
        %s947 = ssub.s32 %s15, 2
        // Predicated region
        $region69: #{synthesis_net_forward.4} parent=67 // pred_check
          %p948 = pneg %p223
        $region70: #{synthesis_net_forward.4} parent=67 // pred_check_branch
          %950 = sbr.rel (%p948) target = $region72
        $region71: #{synthesis_net_forward.4} parent=67 // pred_region
          %s951 = smul.u32 8, %s27
          %p952 = scmp.lt.s32.totalorder %s26, 1
          %s953 = scalar_select %p952, %s26, 1
          %p954 = scmp.lt.s32.totalorder %s951, 7
          %s955 = scalar_select %p954, %s951, 7
          %s956 = smul.addr %s953, 8
          %s957 = sadd.s32 %s955, %s956
          %s958 = smul.addr %s957, 2
          %s959 = scalar_lea.vmem %s7, %s958
        $region72: #{synthesis_net_forward.4} parent=67 // pred_fallthru
          _
      $region68: #{synthesis_net_forward.4} parent=5 // pred_fallthru
        _
    $region6: #{synthesis_net_forward.4} parent=1 // loop_footer
      %s19 = sadd.s32 1, %s15
    $region7: #{synthesis_net_forward.4} parent=1 // loop_footer_branch
      %14 = sbr.rel target = $region3
    $region8: #{synthesis_net_forward.4} parent=1 // loop_exit
      _
    %960 = vsyncpa [#allocation3], 1
    %s961 = scalar_lea.sflag [#allocation3], 1
    %962 = vsyncpa %s961, 1
    %963 = vsyncpa [#allocation5], 1

// kernel: synthesis_net_forward.5
$region0: #{synthesis_net_forward.5}
  #allocation0 [shape = 'u32[]', space=smem, size = 0x4, offset = 0x4, fixed_abs, tag = 'smem constant byte address 0x4 - core index']
  #allocation1 [shape = 'u32[72,128]{1,0:T(1,128)}', space=vmem, size = 0x9000, scoped, tag = 'internal scratch']
  %s0 = inlined_call_operand.vmem [shape: bf16[2,16,10,8], index: 0, kind: input, shape index: {}, may-alias: {0,1}]
  %s1 = inlined_call_operand.vmem [shape: bf16[2,16,10,8], index: 1, kind: input, shape index: {}, may-alias: {0,1}]
  %s2 = inlined_call_operand.vmem [shape: bf16[3,24,16], index: 2, kind: input, shape index: {}]
  %s3 = inlined_call_operand.vmem [shape: bf16[2,24,16], index: 3, kind: input, shape index: {}]
  %s4 = inlined_call_operand.hbm [shape: f32[1,16], index: 4, kind: input, shape index: {}]
  %s5 = inlined_call_operand.hbm [shape: bf16[16,16], index: 5, kind: input, shape index: {}]
  %s6 = inlined_call_operand.hbm [shape: f32[1,16], index: 6, kind: input, shape index: {}]
  %s7 = inlined_call_operand.vmem [shape: bf16[2,16,8,16], index: 7, kind: output, shape index: {}]
  %s8 = sld [smem:[#allocation0]]
  $region73: #{synthesis_net_forward.5} parent=0
    _
  %s10 = ssub.s32 1, %s8
  %s11 = scalar_select 0, %s10, %s8
  $region1: #{synthesis_net_forward.5} parent=0
    #allocation2 [shape = 'u8[512]{0}', space=vmem, size = 0x400, scoped, tag = 'input window, operand 4, single buffered']
    #allocation3 [shape = 's32[2]{0}', space=sflag, size = 0x8, scoped, tag = 'scoped memory for synthesis_net_forward.5']
    #allocation4 [shape = 'u8[4096]{0}', space=vmem, size = 0x1000, scoped, tag = 'input window, operand 5, single buffered']
    #allocation5 [shape = 's32[1]{0}', space=sflag, size = 0x4, scoped, tag = 'scoped memory for synthesis_net_forward.5']
    #allocation6 [shape = 'u8[512]{0}', space=vmem, size = 0x400, scoped, tag = 'input window, operand 6, single buffered']
    %12 = vsyncpa [#allocation3], 0
    %13 = vsyncpa [#allocation5], 0
    loop: start=0, step=1, limit=4
    $region2: #{synthesis_net_forward.5} parent=1 // loop_pre_header
      _
    $region3: #{synthesis_net_forward.5} parent=1 // loop_header
      %s15 = sphi 0, %s19
      %p16 = scmp.ge.s32.totalorder %s15, 4
      %s22 = sphi 0, %s34
      %s23 = sphi 0, %s30
      %s24 = sphi 0, %s22
      %s25 = sphi 0, %s23
      %s26 = sphi 0, %s24
      %s27 = sphi 0, %s25
      %s39 = sphi 0, %s41
      %s42 = sphi 0, %s39
      %s43 = sphi 0, %s42
      %s59 = sphi 0, %s43
      %s71 = sphi 0, %s73
      %s74 = sphi 0, %s71
      %s75 = sphi 0, %s74
      %s91 = sphi 0, %s75
      %s95 = sphi 0, %s95
      %s97 = sphi 0, %s95
      %s98 = sphi 0, %s97
      %s112 = sphi 0, %s98
      %s116 = sphi 0, %s116
      %s118 = sphi 0, %s116
      %s119 = sphi 0, %s118
      %s133 = sphi 0, %s119
      %s137 = sphi 0, %s137
      %s139 = sphi 0, %s137
      %s140 = sphi 0, %s139
      %s154 = sphi 0, %s140
      %s158 = sphi 0, %s158
      %s160 = sphi 0, %s158
      %s161 = sphi 0, %s160
      %s175 = sphi 0, %s161
      %s179 = sphi 0, %s179
      %s181 = sphi 0, %s179
      %s182 = sphi 0, %s181
      %s196 = sphi 0, %s182
      %s204 = sphi 0, %s206
      %s207 = sphi 0, %s204
      %s208 = sphi 0, %s207
      %s224 = sphi 0, %s208
    $region4: #{synthesis_net_forward.5} parent=1 // loop_header_branch
      %18 = sbr.rel (%p16) target = $region8
    $region5: #{synthesis_net_forward.5} parent=1 // loop_body
      %s20 = ssub.s32 %s15, 1
      %s21 = ssub.s32 %s15, 2
      %s28 = sadd.s32 1, %s23
      %p29 = scmp.ge.s32.totalorder %s28, 1
      %s30 = scalar_select %p29, 0, %s28
      %s31 = sadd.s32 1, %s22
      %s32 = scalar_select %p29, %s31, %s22
      %p33 = scmp.ge.s32.totalorder %s32, 2
      %s34 = scalar_select %p33, 0, %s32
      %s35 = ssub.s32 %s22, %s34
      %s36 = ssub.s32 %s23, %s30
      %s37 = sor.u32 %s35, %s36
      %p38 = scmp.eq.s32.totalorder %s37, 0
      %s40 = sadd.s32 %s39, 1
      %s41 = scalar_select %p38, %s39, %s40
      %p44 = pneg %p38
      %p45 = scmp.eq.s32.totalorder %s15, 1
      %p46 = por %p44, %p45
      %p47 = scmp.ne.s32.totalorder %s39, %s42
      %p48 = scmp.eq.s32.totalorder %s15, 0
      %p49 = por %p47, %p48
      %p50 = scmp.ne.s32.totalorder %s39, %s42
      %p51 = scmp.eq.s32.totalorder %s20, 1
      %p52 = por %p50, %p51
      %p53 = scmp.ne.s32.totalorder %s42, %s43
      %p54 = scmp.eq.s32.totalorder %s20, 0
      %p55 = por %p53, %p54
      %p56 = scmp.ne.s32.totalorder %s42, %s43
      %p57 = scmp.eq.s32.totalorder %s21, 1
      %p58 = por %p56, %p57
      %p60 = scmp.ne.s32.totalorder %s43, %s59
      %p61 = scmp.eq.s32.totalorder %s21, 0
      %p62 = por %p60, %p61
      %s63 = sadd.s32 %s23, 1
      %s64 = smul.u32 %s63, 4
      %s65 = sadd.s32 %s30, 1
      %s66 = smul.u32 %s65, 4
      %s67 = ssub.s32 %s22, %s34
      %s68 = ssub.s32 %s64, %s66
      %s69 = sor.u32 %s67, %s68
      %p70 = scmp.eq.s32.totalorder %s69, 0
      %s72 = sadd.s32 %s71, 1
      %s73 = scalar_select %p70, %s71, %s72
      %p76 = pneg %p70
      %p77 = scmp.eq.s32.totalorder %s15, 1
      %p78 = por %p76, %p77
      %p79 = scmp.ne.s32.totalorder %s71, %s74
      %p80 = scmp.eq.s32.totalorder %s15, 0
      %p81 = por %p79, %p80
      %p82 = scmp.ne.s32.totalorder %s71, %s74
      %p83 = scmp.eq.s32.totalorder %s20, 1
      %p84 = por %p82, %p83
      %p85 = scmp.ne.s32.totalorder %s74, %s75
      %p86 = scmp.eq.s32.totalorder %s20, 0
      %p87 = por %p85, %p86
      %p88 = scmp.ne.s32.totalorder %s74, %s75
      %p89 = scmp.eq.s32.totalorder %s21, 1
      %p90 = por %p88, %p89
      %p92 = scmp.ne.s32.totalorder %s75, %s91
      %p93 = scmp.eq.s32.totalorder %s21, 0
      %p94 = por %p92, %p93
      %s96 = sadd.s32 %s95, 1
      %p99 = scmp.eq.s32.totalorder %s15, 1
      %p100 = scmp.ne.s32.totalorder %s95, %s97
      %p101 = scmp.eq.s32.totalorder %s15, 0
      %p102 = por %p100, %p101
      %p103 = scmp.ne.s32.totalorder %s95, %s97
      %p104 = scmp.eq.s32.totalorder %s20, 1
      %p105 = por %p103, %p104
      %p106 = scmp.ne.s32.totalorder %s97, %s98
      %p107 = scmp.eq.s32.totalorder %s20, 0
      %p108 = por %p106, %p107
      %p109 = scmp.ne.s32.totalorder %s97, %s98
      %p110 = scmp.eq.s32.totalorder %s21, 1
      %p111 = por %p109, %p110
      %p113 = scmp.ne.s32.totalorder %s98, %s112
      %p114 = scmp.eq.s32.totalorder %s21, 0
      %p115 = por %p113, %p114
      %s117 = sadd.s32 %s116, 1
      %p120 = scmp.eq.s32.totalorder %s15, 1
      %p121 = scmp.ne.s32.totalorder %s116, %s118
      %p122 = scmp.eq.s32.totalorder %s15, 0
      %p123 = por %p121, %p122
      %p124 = scmp.ne.s32.totalorder %s116, %s118
      %p125 = scmp.eq.s32.totalorder %s20, 1
      %p126 = por %p124, %p125
      %p127 = scmp.ne.s32.totalorder %s118, %s119
      %p128 = scmp.eq.s32.totalorder %s20, 0
      %p129 = por %p127, %p128
      %p130 = scmp.ne.s32.totalorder %s118, %s119
      %p131 = scmp.eq.s32.totalorder %s21, 1
      %p132 = por %p130, %p131
      %p134 = scmp.ne.s32.totalorder %s119, %s133
      %p135 = scmp.eq.s32.totalorder %s21, 0
      %p136 = por %p134, %p135
      %s138 = sadd.s32 %s137, 1
      %p141 = scmp.eq.s32.totalorder %s15, 1
      %p142 = scmp.ne.s32.totalorder %s137, %s139
      %p143 = scmp.eq.s32.totalorder %s15, 0
      %p144 = por %p142, %p143
      %p145 = scmp.ne.s32.totalorder %s137, %s139
      %p146 = scmp.eq.s32.totalorder %s20, 1
      %p147 = por %p145, %p146
      %p148 = scmp.ne.s32.totalorder %s139, %s140
      %p149 = scmp.eq.s32.totalorder %s20, 0
      %p150 = por %p148, %p149
      %p151 = scmp.ne.s32.totalorder %s139, %s140
      %p152 = scmp.eq.s32.totalorder %s21, 1
      %p153 = por %p151, %p152
      %p155 = scmp.ne.s32.totalorder %s140, %s154
      %p156 = scmp.eq.s32.totalorder %s21, 0
      %p157 = por %p155, %p156
      %s159 = sadd.s32 %s158, 1
      %p162 = scmp.eq.s32.totalorder %s15, 1
      %p163 = scmp.ne.s32.totalorder %s158, %s160
      %p164 = scmp.eq.s32.totalorder %s15, 0
      %p165 = por %p163, %p164
      %p166 = scmp.ne.s32.totalorder %s158, %s160
      %p167 = scmp.eq.s32.totalorder %s20, 1
      %p168 = por %p166, %p167
      %p169 = scmp.ne.s32.totalorder %s160, %s161
      %p170 = scmp.eq.s32.totalorder %s20, 0
      %p171 = por %p169, %p170
      %p172 = scmp.ne.s32.totalorder %s160, %s161
      %p173 = scmp.eq.s32.totalorder %s21, 1
      %p174 = por %p172, %p173
      %p176 = scmp.ne.s32.totalorder %s161, %s175
      %p177 = scmp.eq.s32.totalorder %s21, 0
      %p178 = por %p176, %p177
      %s180 = sadd.s32 %s179, 1
      %p183 = scmp.eq.s32.totalorder %s15, 1
      %p184 = scmp.ne.s32.totalorder %s179, %s181
      %p185 = scmp.eq.s32.totalorder %s15, 0
      %p186 = por %p184, %p185
      %p187 = scmp.ne.s32.totalorder %s179, %s181
      %p188 = scmp.eq.s32.totalorder %s20, 1
      %p189 = por %p187, %p188
      %p190 = scmp.ne.s32.totalorder %s181, %s182
      %p191 = scmp.eq.s32.totalorder %s20, 0
      %p192 = por %p190, %p191
      %p193 = scmp.ne.s32.totalorder %s181, %s182
      %p194 = scmp.eq.s32.totalorder %s21, 1
      %p195 = por %p193, %p194
      %p197 = scmp.ne.s32.totalorder %s182, %s196
      %p198 = scmp.eq.s32.totalorder %s21, 0
      %p199 = por %p197, %p198
      %s200 = ssub.s32 %s22, %s34
      %s201 = ssub.s32 %s23, %s30
      %s202 = sor.u32 %s200, %s201
      %p203 = scmp.eq.s32.totalorder %s202, 0
      %s205 = sadd.s32 %s204, 1
      %s206 = scalar_select %p203, %s204, %s205
      %p209 = pneg %p203
      %p210 = scmp.eq.s32.totalorder %s15, 1
      %p211 = por %p209, %p210
      %p212 = scmp.ne.s32.totalorder %s204, %s207
      %p213 = scmp.eq.s32.totalorder %s15, 0
      %p214 = por %p212, %p213
      %p215 = scmp.ne.s32.totalorder %s204, %s207
      %p216 = scmp.eq.s32.totalorder %s20, 1
      %p217 = por %p215, %p216
      %p218 = scmp.ne.s32.totalorder %s207, %s208
      %p219 = scmp.eq.s32.totalorder %s20, 0
      %p220 = por %p218, %p219
      %p221 = scmp.ne.s32.totalorder %s207, %s208
      %p222 = scmp.eq.s32.totalorder %s21, 1
      %p223 = por %p221, %p222
      %p225 = scmp.ne.s32.totalorder %s208, %s224
      %p226 = scmp.eq.s32.totalorder %s21, 0
      %p227 = por %p225, %p226
      %p228 = scmp.le.s32.totalorder 1, %s15
      %p229 = scmp.lt.s32.totalorder %s15, 3
      %p230 = pnand %p228, %p229
      %p231 = pneg %p230
      // Predicated region
      $region9: #{synthesis_net_forward.5} parent=5 // pred_check
        _
      $region10: #{synthesis_net_forward.5} parent=5 // pred_check_branch
        %233 = sbr.rel (%p230) target = $region12
      $region11: #{synthesis_net_forward.5} parent=5 // pred_region
        %s234 = ssub.s32 %s15, 1
        // Predicated region
        $region13: #{synthesis_net_forward.5} parent=11 // pred_check
          %p235 = pneg %p108
        $region14: #{synthesis_net_forward.5} parent=11 // pred_check_branch
          %237 = sbr.rel (%p235) target = $region16
        $region15: #{synthesis_net_forward.5} parent=11 // pred_region
          _
        $region16: #{synthesis_net_forward.5} parent=11 // pred_fallthru
          _
        // Predicated region
        $region17: #{synthesis_net_forward.5} parent=11 // pred_check
          %p238 = pneg %p129
        $region18: #{synthesis_net_forward.5} parent=11 // pred_check_branch
          %240 = sbr.rel (%p238) target = $region20
        $region19: #{synthesis_net_forward.5} parent=11 // pred_region
          _
        $region20: #{synthesis_net_forward.5} parent=11 // pred_fallthru
          _
        // Predicated region
        $region21: #{synthesis_net_forward.5} parent=11 // pred_check
          %p241 = pneg %p150
        $region22: #{synthesis_net_forward.5} parent=11 // pred_check_branch
          %243 = sbr.rel (%p241) target = $region24
        $region23: #{synthesis_net_forward.5} parent=11 // pred_region
          %245 = vsyncadd [#allocation3], 0
          %s247 = sshll.u32 %s4, 4
          %s248 = int_to_ptr.hbm [resolvable:$true] %s247
          %s249 = sshll.u32 [#allocation2], 4
          %s250 = int_to_ptr.vmem [resolvable:$true] %s249
          %252 = dma.hbm_to_vmem [thread:$0]  %s248, 16, %s250, [#allocation3]
        $region24: #{synthesis_net_forward.5} parent=11 // pred_fallthru
          _
        // Predicated region
        $region25: #{synthesis_net_forward.5} parent=11 // pred_check
          %p253 = pneg %p171
        $region26: #{synthesis_net_forward.5} parent=11 // pred_check_branch
          %255 = sbr.rel (%p253) target = $region28
        $region27: #{synthesis_net_forward.5} parent=11 // pred_region
          %257 = vsyncadd [#allocation5], 0
          %s258 = sshll.u32 %s5, 4
          %s259 = int_to_ptr.hbm [resolvable:$true] %s258
          %s260 = sshll.u32 [#allocation4], 4
          %s261 = int_to_ptr.vmem [resolvable:$true] %s260
          %266 = dma.hbm_to_vmem [thread:$0]  %s259, 128, %s261, [#allocation5], 64, 64, 4
        $region28: #{synthesis_net_forward.5} parent=11 // pred_fallthru
          _
        // Predicated region
        $region29: #{synthesis_net_forward.5} parent=11 // pred_check
          %p267 = pneg %p192
        $region30: #{synthesis_net_forward.5} parent=11 // pred_check_branch
          %269 = sbr.rel (%p267) target = $region32
        $region31: #{synthesis_net_forward.5} parent=11 // pred_region
          %271 = vsyncadd [#allocation5], 0
          %s273 = sshll.u32 %s6, 4
          %s274 = int_to_ptr.hbm [resolvable:$true] %s273
          %s275 = sshll.u32 [#allocation6], 4
          %s276 = int_to_ptr.vmem [resolvable:$true] %s275
          %278 = dma.hbm_to_vmem [thread:$0]  %s274, 16, %s276, [#allocation5]
        $region32: #{synthesis_net_forward.5} parent=11 // pred_fallthru
          _
      $region12: #{synthesis_net_forward.5} parent=5 // pred_fallthru
        _
      %p279 = scmp.lt.s32.totalorder %s15, 2
      // Predicated region
      $region33: #{synthesis_net_forward.5} parent=5 // pred_check
        %p280 = pneg %p279
      $region34: #{synthesis_net_forward.5} parent=5 // pred_check_branch
        %282 = sbr.rel (%p280) target = $region36
      $region35: #{synthesis_net_forward.5} parent=5 // pred_region
        // Predicated region
        $region37: #{synthesis_net_forward.5} parent=35 // pred_check
          %p283 = pneg %p49
        $region38: #{synthesis_net_forward.5} parent=35 // pred_check_branch
          %285 = sbr.rel (%p283) target = $region40
        $region39: #{synthesis_net_forward.5} parent=35 // pred_region
          %s286 = smul.u32 8, %s23
          %p287 = scmp.lt.s32.totalorder %s22, 1
          %s288 = scalar_select %p287, %s22, 1
          %p289 = scmp.lt.s32.totalorder %s286, 15
          %s290 = scalar_select %p289, %s286, 15
          %s291 = smul.addr %s290, 2
          %s292 = smul.addr %s288, 32
          %s293 = sadd.s32 %s291, %s292
          %s294 = smul.addr %s293, 4
          %s295 = scalar_lea.vmem %s0, %s294
          %s296 = smul.u32 8, %s23
        $region40: #{synthesis_net_forward.5} parent=35 // pred_fallthru
          _
        // Predicated region
        $region41: #{synthesis_net_forward.5} parent=35 // pred_check
          %p297 = pneg %p81
        $region42: #{synthesis_net_forward.5} parent=35 // pred_check_branch
          %299 = sbr.rel (%p297) target = $region44
        $region43: #{synthesis_net_forward.5} parent=35 // pred_region
          %s300 = sadd.s32 %s23, 1
          %s301 = smul.u32 %s300, 4
          %s302 = smul.u32 2, %s301
          %p303 = scmp.lt.s32.totalorder %s22, 1
          %s304 = scalar_select %p303, %s22, 1
          %p305 = scmp.lt.s32.totalorder %s302, 15
          %s306 = scalar_select %p305, %s302, 15
          %s307 = smul.addr %s306, 2
          %s308 = smul.addr %s304, 32
          %s309 = sadd.s32 %s307, %s308
          %s310 = smul.addr %s309, 4
          %s311 = scalar_lea.vmem %s1, %s310
          %s312 = sadd.s32 %s23, 1
          %s313 = smul.u32 %s312, 4
          %s314 = smul.u32 2, %s313
        $region44: #{synthesis_net_forward.5} parent=35 // pred_fallthru
          _
      $region36: #{synthesis_net_forward.5} parent=5 // pred_fallthru
        _
      %p315 = scmp.le.s32.totalorder 1, %s15
      %p316 = scmp.lt.s32.totalorder %s15, 3
      %p317 = pnand %p315, %p316
      %p318 = pneg %p317
      // Predicated region
      $region45: #{synthesis_net_forward.5} parent=5 // pred_check
        _
      $region46: #{synthesis_net_forward.5} parent=5 // pred_check_branch
        %320 = sbr.rel (%p317) target = $region48
      $region47: #{synthesis_net_forward.5} parent=5 // pred_region
        %s321 = ssub.s32 %s15, 1
        // Predicated region
        $region49: #{synthesis_net_forward.5} parent=47 // pred_check
          %p322 = pneg %p150
        $region50: #{synthesis_net_forward.5} parent=47 // pred_check_branch
          %324 = sbr.rel (%p322) target = $region52
        $region51: #{synthesis_net_forward.5} parent=47 // pred_region
          %326 = dma.done [#allocation3], 16
        $region52: #{synthesis_net_forward.5} parent=47 // pred_fallthru
          _
        // Predicated region
        $region53: #{synthesis_net_forward.5} parent=47 // pred_check
          %p327 = pneg %p171
        $region54: #{synthesis_net_forward.5} parent=47 // pred_check_branch
          %329 = sbr.rel (%p327) target = $region56
        $region55: #{synthesis_net_forward.5} parent=47 // pred_region
          %331 = dma.done [#allocation5], 128
        $region56: #{synthesis_net_forward.5} parent=47 // pred_fallthru
          _
        // Predicated region
        $region57: #{synthesis_net_forward.5} parent=47 // pred_check
          %p332 = pneg %p192
        $region58: #{synthesis_net_forward.5} parent=47 // pred_check_branch
          %334 = sbr.rel (%p332) target = $region60
        $region59: #{synthesis_net_forward.5} parent=47 // pred_region
          %336 = dma.done [#allocation5], 16
        $region60: #{synthesis_net_forward.5} parent=47 // pred_fallthru
          _
        %s337 = smul.u32 8, %s25
        %p338 = scmp.lt.s32.totalorder %s24, 1
        %s339 = scalar_select %p338, %s24, 1
        %p340 = scmp.lt.s32.totalorder %s337, 15
        %s341 = scalar_select %p340, %s337, 15
        %s342 = smul.addr %s341, 2
        %s343 = smul.addr %s339, 32
        %s344 = sadd.s32 %s342, %s343
        %s345 = smul.addr %s344, 4
        %s346 = scalar_lea.vmem %s0, %s345
        %p347 = pneg %p55
        %p348 = pneg %p52
        %s349 = sadd.s32 %s25, 1
        %s350 = smul.u32 %s349, 4
        %s351 = smul.u32 2, %s350
        %p352 = scmp.lt.s32.totalorder %s24, 1
        %s353 = scalar_select %p352, %s24, 1
        %p354 = scmp.lt.s32.totalorder %s351, 15
        %s355 = scalar_select %p354, %s351, 15
        %s356 = smul.addr %s355, 2
        %s357 = smul.addr %s353, 32
        %s358 = sadd.s32 %s356, %s357
        %s359 = smul.addr %s358, 4
        %s360 = scalar_lea.vmem %s1, %s359
        %p361 = pneg %p87
        %p362 = pneg %p84
        %p363 = pneg %p108
        %p364 = pneg %p105
        %p365 = pneg %p129
        %p366 = pneg %p126
        %p367 = pneg %p150
        %p368 = pneg %p147
        %p369 = pneg %p171
        %p370 = pneg %p168
        %p371 = pneg %p192
        %p372 = pneg %p189
        %p373 = pneg %p220
        %p374 = pneg %p217
        %s375 = smul.u32 16, %s25
        %p376 = scmp.lt.s32.totalorder %s24, 1
        %s377 = scalar_select %p376, %s24, 1
        %p378 = scmp.lt.s32.totalorder %s375, 15
        %s379 = scalar_select %p378, %s375, 15
        %s380 = smul.addr %s377, 16
        %s381 = sadd.s32 %s379, %s380
        %s382 = smul.addr %s381, 4
        %s383 = scalar_lea.vmem %s7, %s382
        %s384 = smul.u32 8, %s25
        %p385 = scmp.lt.s32.totalorder %s24, 1
        %s386 = scalar_select %p385, %s24, 1
        %p387 = scmp.lt.s32.totalorder %s384, 15
        %s388 = scalar_select %p387, %s384, 15
        %s389 = smul.addr %s388, 2
        %s390 = smul.addr %s386, 32
        %s391 = sadd.s32 %s389, %s390
        %s392 = smul.addr %s391, 4
        %s393 = scalar_lea.vmem %s0, %s392
        %s394 = smul.u32 8, %s25
        %s395 = sadd.s32 %s25, 1
        %s396 = smul.u32 %s395, 4
        %s397 = smul.u32 2, %s396
        %p398 = scmp.lt.s32.totalorder %s24, 1
        %s399 = scalar_select %p398, %s24, 1
        %p400 = scmp.lt.s32.totalorder %s397, 15
        %s401 = scalar_select %p400, %s397, 15
        %s402 = smul.addr %s401, 2
        %s403 = smul.addr %s399, 32
        %s404 = sadd.s32 %s402, %s403
        %s405 = smul.addr %s404, 4
        %s406 = scalar_lea.vmem %s1, %s405
        %s407 = sadd.s32 %s25, 1
        %s408 = smul.u32 %s407, 4
        %s409 = smul.u32 2, %s408
        %s410 = smul.u32 16, %s25
        %p411 = scmp.lt.s32.totalorder %s24, 1
        %s412 = scalar_select %p411, %s24, 1
        %p413 = scmp.lt.s32.totalorder %s410, 15
        %s414 = scalar_select %p413, %s410, 15
        %s415 = smul.addr %s412, 16
        %s416 = sadd.s32 %s414, %s415
        %s417 = smul.addr %s416, 4
        %s418 = scalar_lea.vmem %s7, %s417
        %s419 = smul.u32 16, %s25
        %v421 = vld [vmem:[%s393] sm:$0xf]
        %v422 = vld [vmem:[%s393 + $0x4] sm:$0x1]
        %v423 = vld [vmem:[%s393 + $0x8] sm:$0xf]
        %v424 = vld [vmem:[%s393 + $0xc] sm:$0x1]
        %v425 = vld [vmem:[%s393 + $0x10] sm:$0xf]
        %v426 = vld [vmem:[%s393 + $0x14] sm:$0x1]
        %v427 = vld [vmem:[%s393 + $0x18] sm:$0xf]
        %v428 = vld [vmem:[%s393 + $0x1c] sm:$0x1]
        %v429 = vld [vmem:[%s393 + $0x20] sm:$0xf]
        %v430 = vld [vmem:[%s393 + $0x24] sm:$0x1]
        %v431 = vld [vmem:[%s393 + $0x28] sm:$0xf]
        %v432 = vld [vmem:[%s393 + $0x2c] sm:$0x1]
        %v433 = vld [vmem:[%s393 + $0x30] sm:$0xf]
        %v434 = vld [vmem:[%s393 + $0x34] sm:$0x1]
        %v435 = vld [vmem:[%s393 + $0x38] sm:$0xf]
        %v436 = vld [vmem:[%s393 + $0x3c] sm:$0x1]
        %v437 = vld [vmem:[%s406] sm:$0xf]
        %v438 = vld [vmem:[%s406 + $0x4] sm:$0x1]
        %v439 = vld [vmem:[%s406 + $0x8] sm:$0xf]
        %v440 = vld [vmem:[%s406 + $0xc] sm:$0x1]
        %v461 = vunpack.c.l.b16 %v421
        %v462 = vunpack.c.l.b16 %v422
        %v463 = vunpack.c.l.b16 %v423
        %v464 = vunpack.c.l.b16 %v424
        %v465 = vunpack.c.l.b16 %v425
        %v466 = vunpack.c.l.b16 %v426
        %v467 = vunpack.c.l.b16 %v427
        %v468 = vunpack.c.l.b16 %v428
        %v469 = vunpack.c.l.b16 %v429
        %v470 = vunpack.c.l.b16 %v430
        %v471 = vunpack.c.l.b16 %v431
        %v472 = vunpack.c.l.b16 %v432
        %v473 = vunpack.c.l.b16 %v433
        %v474 = vunpack.c.l.b16 %v434
        %v475 = vunpack.c.l.b16 %v435
        %v476 = vunpack.c.l.b16 %v436
        %v477 = vunpack.c.l.b16 %v437
        %v478 = vunpack.c.l.b16 %v438
        %v479 = vunpack.c.l.b16 %v439
        %v480 = vunpack.c.l.b16 %v440
        %v481 = vpack.c.b16 %v462, %v461
        %v482 = vpack.c.b16 %v464, %v463
        %v483 = vpack.c.b16 %v466, %v465
        %v484 = vpack.c.b16 %v468, %v467
        %v485 = vpack.c.b16 %v470, %v469
        %v486 = vpack.c.b16 %v472, %v471
        %v487 = vpack.c.b16 %v474, %v473
        %v488 = vpack.c.b16 %v476, %v475
        %v489 = vpack.c.b16 %v478, %v477
        %v490 = vpack.c.b16 %v480, %v479
        %v492 = vshrl.u32 %v481, 16
        %v494 = vshll.u32 %v481, 16
        %v496 = vrot.slane %v494, 1
        %v497 = vor.u32 %v492, %v496
        %v499 = vshrl.u32 %v482, 16
        %v501 = vshll.u32 %v482, 16
        %v503 = vrot.slane %v501, 1
        %v504 = vor.u32 %v499, %v503
        %v506 = vshrl.u32 %v483, 16
        %v508 = vshll.u32 %v483, 16
        %v510 = vrot.slane %v508, 1
        %v511 = vor.u32 %v506, %v510
        %v513 = vshrl.u32 %v484, 16
        %v515 = vshll.u32 %v484, 16
        %v517 = vrot.slane %v515, 1
        %v518 = vor.u32 %v513, %v517
        %v520 = vshrl.u32 %v485, 16
        %v522 = vshll.u32 %v485, 16
        %v524 = vrot.slane %v522, 1
        %v525 = vor.u32 %v520, %v524
        %v527 = vshrl.u32 %v486, 16
        %v529 = vshll.u32 %v486, 16
        %v531 = vrot.slane %v529, 1
        %v532 = vor.u32 %v527, %v531
        %v534 = vshrl.u32 %v487, 16
        %v536 = vshll.u32 %v487, 16
        %v538 = vrot.slane %v536, 1
        %v539 = vor.u32 %v534, %v538
        %v541 = vshrl.u32 %v488, 16
        %v543 = vshll.u32 %v488, 16
        %v545 = vrot.slane %v543, 1
        %v546 = vor.u32 %v541, %v545
        %v548 = vshrl.u32 %v489, 16
        %v550 = vshll.u32 %v489, 16
        %v552 = vrot.slane %v550, 1
        %v553 = vor.u32 %v548, %v552
        %v555 = vshrl.u32 %v490, 16
        %v557 = vshll.u32 %v490, 16
        %v559 = vrot.slane %v557, 1
        %v560 = vor.u32 %v555, %v559
        %561 = vrot.lane.b32.xlu0 %v497, 8
        %v562 = vpop.permute.xlu0 %561
        %563 = vrot.lane.b32.xlu0 %v504, 8
        %v564 = vpop.permute.xlu0 %563
        %565 = vrot.lane.b32.xlu0 %v511, 8
        %v566 = vpop.permute.xlu0 %565
        %567 = vrot.lane.b32.xlu0 %v518, 8
        %v568 = vpop.permute.xlu0 %567
        %569 = vrot.lane.b32.xlu0 %v525, 8
        %v570 = vpop.permute.xlu0 %569
        %571 = vrot.lane.b32.xlu0 %v532, 8
        %v572 = vpop.permute.xlu0 %571
        %573 = vrot.lane.b32.xlu0 %v539, 8
        %v574 = vpop.permute.xlu0 %573
        %575 = vrot.lane.b32.xlu0 %v546, 8
        %v576 = vpop.permute.xlu0 %575
        %577 = vrot.lane.b32.xlu0 %v553, 8
        %v578 = vpop.permute.xlu0 %577
        %579 = vrot.lane.b32.xlu0 %v560, 8
        %v580 = vpop.permute.xlu0 %579
        %v581 = vrot.slane %v481, 1
        %v582 = vrot.slane %v482, 1
        %v583 = vrot.slane %v483, 1
        %v584 = vrot.slane %v484, 1
        %v585 = vrot.slane %v485, 1
        %v586 = vrot.slane %v486, 1
        %v587 = vrot.slane %v487, 1
        %v588 = vrot.slane %v488, 1
        %v589 = vrot.slane %v489, 1
        %v590 = vrot.slane %v490, 1
        %591 = vrot.lane.b32.xlu0 %v581, 16
        %v592 = vpop.permute.xlu0 %591
        %593 = vrot.lane.b32.xlu0 %v582, 16
        %v594 = vpop.permute.xlu0 %593
        %595 = vrot.lane.b32.xlu0 %v583, 16
        %v596 = vpop.permute.xlu0 %595
        %597 = vrot.lane.b32.xlu0 %v584, 16
        %v598 = vpop.permute.xlu0 %597
        %599 = vrot.lane.b32.xlu0 %v585, 16
        %v600 = vpop.permute.xlu0 %599
        %601 = vrot.lane.b32.xlu0 %v586, 16
        %v602 = vpop.permute.xlu0 %601
        %603 = vrot.lane.b32.xlu0 %v587, 16
        %v604 = vpop.permute.xlu0 %603
        %605 = vrot.lane.b32.xlu0 %v588, 16
        %v606 = vpop.permute.xlu0 %605
        %607 = vrot.lane.b32.xlu0 %v589, 16
        %v608 = vpop.permute.xlu0 %607
        %609 = vrot.lane.b32.xlu0 %v590, 16
        %v610 = vpop.permute.xlu0 %609
        %vm611 = vcmask 64512
        %v614 = vsel %vm611, %v421, %v562
        %v617 = vsel %vm611, %v423, %v564
        %v620 = vsel %vm611, %v425, %v566
        %v623 = vsel %vm611, %v427, %v568
        %v626 = vsel %vm611, %v429, %v570
        %v629 = vsel %vm611, %v431, %v572
        %v632 = vsel %vm611, %v433, %v574
        %v635 = vsel %vm611, %v435, %v576
        %v638 = vsel %vm611, %v437, %v578
        %v641 = vsel %vm611, %v439, %v580
        %vm642 = vcmask 130048
        %v644 = vsel %vm642, %v614, %v592
        %v646 = vsel %vm642, %v617, %v594
        %v648 = vsel %vm642, %v620, %v596
        %v650 = vsel %vm642, %v623, %v598
        %v652 = vsel %vm642, %v626, %v600
        %v654 = vsel %vm642, %v629, %v602
        %v656 = vsel %vm642, %v632, %v604
        %v658 = vsel %vm642, %v635, %v606
        %v660 = vsel %vm642, %v638, %v608
        %v662 = vsel %vm642, %v641, %v610
        %v663 = vld [vmem:[%s2] sm:$0xf]
        %v664 = vld [vmem:[%s2 + $0x4] sm:$0xf]
        %v665 = vld [vmem:[%s2 + $0x8] sm:$0xf]
        %s666 = scalar_lea.vmem %s2, 12
        %v667 = vld [vmem:[%s666] sm:$0xf]
        %v668 = vld [vmem:[%s666 + $0x4] sm:$0xf]
        %v669 = vld [vmem:[%s666 + $0x8] sm:$0xf]
        %v678 = vunpack.c.l.b16 %v646
        %v679 = vunpack.c.l.b16 %v648
        %v680 = vunpack.c.l.b16 %v650
        %v681 = vunpack.c.l.b16 %v652
        %v682 = vunpack.c.l.b16 %v654
        %v683 = vunpack.c.l.b16 %v656
        %v684 = vunpack.c.l.b16 %v658
        %v685 = vunpack.c.l.b16 %v660
        %v686 = vpack.c.b16 %v679, %v678
        %v687 = vpack.c.b16 %v681, %v680
        %v688 = vpack.c.b16 %v683, %v682
        %v689 = vpack.c.b16 %v685, %v684
        %v693 = vunpack.c.l.b16 %v667
        %v694 = vunpack.c.l.b16 %v668
        %v695 = vunpack.c.l.b16 %v669
        %v696 = vpack.c.b16 %v694, %v693
        %v697 = vpack.c.b16 %v695, %v695
        %vm699 = vcmask 195584
        %v701 = vsel %vm699, %v686, 0
        %v704 = vsel %vm699, %v687, 0
        %v707 = vsel %vm699, %v688, 0
        %v710 = vsel %vm699, %v689, 0
        %vm712 = vcmask 1043456
        %v714 = vsel %vm712, %v697, 0
        %716 = vmatpush.bf16.msra.mxu0 0
        %717 = vmatpush.bf16.msra.mxu0 0
        %718 = vmatpush.bf16.msra.mxu0 0
        %719 = vmatpush.bf16.msra.mxu0 0
        %720 = vmatpush.bf16.msra.mxu0 0
        %721 = vmatpush.bf16.msra.mxu0 0
        %722 = vmatpush.bf16.msra.mxu0 %v714
        %723 = vmatpush.bf16.msra.mxu0 %v696
        %724 = vmatmul.bf16.gmra.mxu0 %v701
        %v725 = vpop.f32.mrf.mxu0
        %v726 = vadd.f32 0.0, %v725
        %v727 = vpop.f32.mrf.mxu0
        %v728 = vadd.f32 0.0, %v727
        %729 = vmatmul.bf16.gmra.mxu0 %v704
        %v730 = vpop.f32.mrf.mxu0
        %v731 = vadd.f32 0.0, %v730
        %v732 = vpop.f32.mrf.mxu0
        %v733 = vadd.f32 0.0, %v732
        %734 = vmatmul.bf16.gmra.mxu0 %v707
        %v735 = vpop.f32.mrf.mxu0
        %v736 = vadd.f32 0.0, %v735
        %v737 = vpop.f32.mrf.mxu0
        %v738 = vadd.f32 0.0, %v737
        %739 = vmatmul.bf16.gmra.mxu0 %v710
        %v740 = vpop.f32.mrf.mxu0
        %v741 = vadd.f32 0.0, %v740
        %v742 = vpop.f32.mrf.mxu0
        %v743 = vadd.f32 0.0, %v742
        %744 = vdwg.mxu0
        %v746 = vunpack.c.l.b16 %v644
        %v747 = vpack.c.b16 %v678, %v746
        %v748 = vpack.c.b16 %v680, %v679
        %v749 = vpack.c.b16 %v682, %v681
        %v750 = vpack.c.b16 %v684, %v683
        %v754 = vunpack.c.l.b16 %v663
        %v755 = vunpack.c.l.b16 %v664
        %v756 = vunpack.c.l.b16 %v665
        %v757 = vpack.c.b16 %v755, %v754
        %v758 = vpack.c.b16 %v756, %v756
        %v761 = vsel %vm699, %v747, 0
        %v764 = vsel %vm699, %v748, 0
        %v767 = vsel %vm699, %v749, 0
        %v770 = vsel %vm699, %v750, 0
        %v773 = vsel %vm712, %v758, 0
        %775 = vmatpush.bf16.msra.mxu0 0
        %776 = vmatpush.bf16.msra.mxu0 0
        %777 = vmatpush.bf16.msra.mxu0 0
        %778 = vmatpush.bf16.msra.mxu0 0
        %779 = vmatpush.bf16.msra.mxu0 0
        %780 = vmatpush.bf16.msra.mxu0 0
        %781 = vmatpush.bf16.msra.mxu0 %v773
        %782 = vmatpush.bf16.msra.mxu0 %v757
        %783 = vmatmul.bf16.gmra.mxu0 %v761
        %v784 = vpop.f32.mrf.mxu0
        %v785 = vadd.f32 %v726, %v784
        %v786 = vpop.f32.mrf.mxu0
        %v787 = vadd.f32 %v728, %v786
        %788 = vmatmul.bf16.gmra.mxu0 %v764
        %v789 = vpop.f32.mrf.mxu0
        %v790 = vadd.f32 %v731, %v789
        %v791 = vpop.f32.mrf.mxu0
        %v792 = vadd.f32 %v733, %v791
        %793 = vmatmul.bf16.gmra.mxu0 %v767
        %v794 = vpop.f32.mrf.mxu0
        %v795 = vadd.f32 %v736, %v794
        %v796 = vpop.f32.mrf.mxu0
        %v797 = vadd.f32 %v738, %v796
        %798 = vmatmul.bf16.gmra.mxu0 %v770
        %v799 = vpop.f32.mrf.mxu0
        %v800 = vadd.f32 %v741, %v799
        %v801 = vpop.f32.mrf.mxu0
        %v802 = vadd.f32 %v743, %v801
        %803 = vdwg.mxu0
        %s804 = scalar_lea.vmem %s2, 24
        %v805 = vld [vmem:[%s804] sm:$0xf]
        %v806 = vld [vmem:[%s804 + $0x4] sm:$0xf]
        %v807 = vld [vmem:[%s804 + $0x8] sm:$0xf]
        %v809 = vunpack.c.l.b16 %v662
        %v810 = vpack.c.b16 %v809, %v685
        %v814 = vunpack.c.l.b16 %v805
        %v815 = vunpack.c.l.b16 %v806
        %v816 = vunpack.c.l.b16 %v807
        %v817 = vpack.c.b16 %v815, %v814
        %v818 = vpack.c.b16 %v816, %v816
        %v821 = vsel %vm699, %v810, 0
        %v824 = vsel %vm712, %v818, 0
        %826 = vmatpush.bf16.msra.mxu0 0
        %827 = vmatpush.bf16.msra.mxu0 0
        %828 = vmatpush.bf16.msra.mxu0 0
        %829 = vmatpush.bf16.msra.mxu0 0
        %830 = vmatpush.bf16.msra.mxu0 0
        %831 = vmatpush.bf16.msra.mxu0 0
        %832 = vmatpush.bf16.msra.mxu0 %v824
        %833 = vmatpush.bf16.msra.mxu0 %v817
        %834 = vmatmul.bf16.gmra.mxu0 %v764
        %v835 = vpop.f32.mrf.mxu0
        %v836 = vadd.f32 0.0, %v835
        %v837 = vpop.f32.mrf.mxu0
        %v838 = vadd.f32 0.0, %v837
        %839 = vmatmul.bf16.gmra.mxu0 %v767
        %v840 = vpop.f32.mrf.mxu0
        %v841 = vadd.f32 0.0, %v840
        %v842 = vpop.f32.mrf.mxu0
        %v843 = vadd.f32 0.0, %v842
        %844 = vmatmul.bf16.gmra.mxu0 %v770
        %v845 = vpop.f32.mrf.mxu0
        %v846 = vadd.f32 0.0, %v845
        %v847 = vpop.f32.mrf.mxu0
        %v848 = vadd.f32 0.0, %v847
        %849 = vmatmul.bf16.gmra.mxu0 %v821
        %v850 = vpop.f32.mrf.mxu0
        %v851 = vadd.f32 0.0, %v850
        %v852 = vpop.f32.mrf.mxu0
        %v853 = vadd.f32 0.0, %v852
        %854 = vdwg.mxu0
        %v855 = vadd.f32 %v785, %v836
        %v856 = vadd.f32 %v787, %v838
        %v857 = vadd.f32 %v790, %v841
        %v858 = vadd.f32 %v792, %v843
        %v859 = vadd.f32 %v795, %v846
        %v860 = vadd.f32 %v797, %v848
        %v861 = vadd.f32 %v800, %v851
        %v862 = vadd.f32 %v802, %v853
        %v863 = vld [vmem:[#allocation2] sm:$0x1]
        %v865 = vperm.slane %v863, 0
        %v867 = vadd.f32 %v855, %v865
        %v868 = vadd.f32 %v856, %v865
        %v869 = vadd.f32 %v857, %v865
        %v870 = vadd.f32 %v858, %v865
        %v871 = vadd.f32 %v859, %v865
        %v872 = vadd.f32 %v860, %v865
        %v873 = vadd.f32 %v861, %v865
        %v874 = vadd.f32 %v862, %v865
        %v875 = vmul.f32 %v867, %v867
        %v876 = vmul.f32 %v868, %v868
        %v877 = vmul.f32 %v869, %v869
        %v878 = vmul.f32 %v870, %v870
        %v879 = vmul.f32 %v871, %v871
        %v880 = vmul.f32 %v872, %v872
        %v881 = vmul.f32 %v873, %v873
        %v882 = vmul.f32 %v874, %v874
        %v883 = vpack.c.bf16 %v876, %v875
        %v884 = vpack.c.bf16 %v878, %v877
        %v885 = vpack.c.bf16 %v880, %v879
        %v886 = vpack.c.bf16 %v882, %v881
        %v887 = vld [vmem:[#allocation4] sm:$0xf]
        %v888 = vld [vmem:[#allocation4 + $0x4] sm:$0xf]
        %v889 = vld [vmem:[#allocation6] sm:$0x1]
        %v891 = vperm.slane %v889, 0
        %v895 = vunpack.c.l.b16 %v887
        %v896 = vunpack.c.l.b16 %v888
        %v897 = vpack.c.b16 %v896, %v895
        %v900 = vsel %vm642, %v883, 0
        %v903 = vsel %vm642, %v884, 0
        %v906 = vsel %vm642, %v885, 0
        %v909 = vsel %vm642, %v886, 0
        %911 = vmatpush.bf16.msra.mxu0 0
        %912 = vmatpush.bf16.msra.mxu0 0
        %913 = vmatpush.bf16.msra.mxu0 0
        %914 = vmatpush.bf16.msra.mxu0 0
        %915 = vmatpush.bf16.msra.mxu0 0
        %916 = vmatpush.bf16.msra.mxu0 0
        %917 = vmatpush.bf16.msra.mxu0 0
        %918 = vmatpush.bf16.msra.mxu0 %v897
        %919 = vmatmul.bf16.gmra.mxu0 %v900
        %v920 = vpop.f32.mrf.mxu0
        %v921 = vadd.f32 %v891, %v920
        %v922 = vpop.f32.mrf.mxu0
        %v923 = vadd.f32 %v891, %v922
        %924 = vmatmul.bf16.gmra.mxu0 %v903
        %v925 = vpop.f32.mrf.mxu0
        %v926 = vadd.f32 %v891, %v925
        %v927 = vpop.f32.mrf.mxu0
        %v928 = vadd.f32 %v891, %v927
        %929 = vmatmul.bf16.gmra.mxu0 %v906
        %v930 = vpop.f32.mrf.mxu0
        %v931 = vadd.f32 %v891, %v930
        %v932 = vpop.f32.mrf.mxu0
        %v933 = vadd.f32 %v891, %v932
        %934 = vmatmul.bf16.gmra.mxu0 %v909
        %v935 = vpop.f32.mrf.mxu0
        %v936 = vadd.f32 %v891, %v935
        %v937 = vpop.f32.mrf.mxu0
        %v938 = vadd.f32 %v891, %v937
        %939 = vdwg.mxu0
        %v940 = vrsqrt.pop %v921
        %v941 = vmul.f32 %v940, %v921
        %v942 = vmul.f32 %v941, %v940
        %v943 = vmul.f32 0.5, %v942
        %v944 = vsub.f32 1.5, %v943
        %v945 = vmul.f32 %v940, %v944
        %v946 = vmul.f32 %v921, %v945
        %vm947 = vcmp.eq.f32.partialorder %v921, inf
        %v948 = vsel %vm947, %v921, %v946
        %vm949 = vcmp.eq.f32.partialorder %v921, 0.0
        %v950 = vand.u32 %v921, 2147483648
        %v951 = vsel %vm949, %v950, %v948
        %v952 = vrsqrt.pop %v923
        %v953 = vmul.f32 %v952, %v923
        %v954 = vmul.f32 %v953, %v952
        %v955 = vmul.f32 0.5, %v954
        %v956 = vsub.f32 1.5, %v955
        %v957 = vmul.f32 %v952, %v956
        %v958 = vmul.f32 %v923, %v957
        %vm959 = vcmp.eq.f32.partialorder %v923, inf
        %v960 = vsel %vm959, %v923, %v958
        %vm961 = vcmp.eq.f32.partialorder %v923, 0.0
        %v962 = vand.u32 %v923, 2147483648
        %v963 = vsel %vm961, %v962, %v960
        %v964 = vrsqrt.pop %v926
        %v965 = vmul.f32 %v964, %v926
        %v966 = vmul.f32 %v965, %v964
        %v967 = vmul.f32 0.5, %v966
        %v968 = vsub.f32 1.5, %v967
        %v969 = vmul.f32 %v964, %v968
        %v970 = vmul.f32 %v926, %v969
        %vm971 = vcmp.eq.f32.partialorder %v926, inf
        %v972 = vsel %vm971, %v926, %v970
        %vm973 = vcmp.eq.f32.partialorder %v926, 0.0
        %v974 = vand.u32 %v926, 2147483648
        %v975 = vsel %vm973, %v974, %v972
        %v976 = vrsqrt.pop %v928
        %v977 = vmul.f32 %v976, %v928
        %v978 = vmul.f32 %v977, %v976
        %v979 = vmul.f32 0.5, %v978
        %v980 = vsub.f32 1.5, %v979
        %v981 = vmul.f32 %v976, %v980
        %v982 = vmul.f32 %v928, %v981
        %vm983 = vcmp.eq.f32.partialorder %v928, inf
        %v984 = vsel %vm983, %v928, %v982
        %vm985 = vcmp.eq.f32.partialorder %v928, 0.0
        %v986 = vand.u32 %v928, 2147483648
        %v987 = vsel %vm985, %v986, %v984
        %v988 = vrsqrt.pop %v931
        %v989 = vmul.f32 %v988, %v931
        %v990 = vmul.f32 %v989, %v988
        %v991 = vmul.f32 0.5, %v990
        %v992 = vsub.f32 1.5, %v991
        %v993 = vmul.f32 %v988, %v992
        %v994 = vmul.f32 %v931, %v993
        %vm995 = vcmp.eq.f32.partialorder %v931, inf
        %v996 = vsel %vm995, %v931, %v994
        %vm997 = vcmp.eq.f32.partialorder %v931, 0.0
        %v998 = vand.u32 %v931, 2147483648
        %v999 = vsel %vm997, %v998, %v996
        %v1000 = vrsqrt.pop %v933
        %v1001 = vmul.f32 %v1000, %v933
        %v1002 = vmul.f32 %v1001, %v1000
        %v1003 = vmul.f32 0.5, %v1002
        %v1004 = vsub.f32 1.5, %v1003
        %v1005 = vmul.f32 %v1000, %v1004
        %v1006 = vmul.f32 %v933, %v1005
        %vm1007 = vcmp.eq.f32.partialorder %v933, inf
        %v1008 = vsel %vm1007, %v933, %v1006
        %vm1009 = vcmp.eq.f32.partialorder %v933, 0.0
        %v1010 = vand.u32 %v933, 2147483648
        %v1011 = vsel %vm1009, %v1010, %v1008
        %v1012 = vrsqrt.pop %v936
        %v1013 = vmul.f32 %v1012, %v936
        %v1014 = vmul.f32 %v1013, %v1012
        %v1015 = vmul.f32 0.5, %v1014
        %v1016 = vsub.f32 1.5, %v1015
        %v1017 = vmul.f32 %v1012, %v1016
        %v1018 = vmul.f32 %v936, %v1017
        %vm1019 = vcmp.eq.f32.partialorder %v936, inf
        %v1020 = vsel %vm1019, %v936, %v1018
        %vm1021 = vcmp.eq.f32.partialorder %v936, 0.0
        %v1022 = vand.u32 %v936, 2147483648
        %v1023 = vsel %vm1021, %v1022, %v1020
        %v1024 = vrsqrt.pop %v938
        %v1025 = vmul.f32 %v1024, %v938
        %v1026 = vmul.f32 %v1025, %v1024
        %v1027 = vmul.f32 0.5, %v1026
        %v1028 = vsub.f32 1.5, %v1027
        %v1029 = vmul.f32 %v1024, %v1028
        %v1030 = vmul.f32 %v938, %v1029
        %vm1031 = vcmp.eq.f32.partialorder %v938, inf
        %v1032 = vsel %vm1031, %v938, %v1030
        %vm1033 = vcmp.eq.f32.partialorder %v938, 0.0
        %v1034 = vand.u32 %v938, 2147483648
        %v1035 = vsel %vm1033, %v1034, %v1032
        %v1036 = vmul.f32 %v867, %v951
        %v1037 = vmul.f32 %v868, %v963
        %v1038 = vmul.f32 %v869, %v975
        %v1039 = vmul.f32 %v870, %v987
        %v1040 = vmul.f32 %v871, %v999
        %v1041 = vmul.f32 %v872, %v1011
        %v1042 = vmul.f32 %v873, %v1023
        %v1043 = vmul.f32 %v874, %v1035
        %v1044 = vld [vmem:[%s3] sm:$0xf]
        %v1045 = vld [vmem:[%s3 + $0x4] sm:$0xf]
        %v1046 = vld [vmem:[%s3 + $0x8] sm:$0xf]
        %s1047 = scalar_lea.vmem %s3, 12
        %v1048 = vld [vmem:[%s1047] sm:$0xf]
        %v1049 = vld [vmem:[%s1047 + $0x4] sm:$0xf]
        %v1050 = vld [vmem:[%s1047 + $0x8] sm:$0xf]
        %v1054 = vunpack.c.l.b16 %v1048
        %v1055 = vunpack.c.l.b16 %v1049
        %v1056 = vunpack.c.l.b16 %v1050
        %v1057 = vpack.c.b16 %v1055, %v1054
        %v1058 = vpack.c.b16 %v1056, %v1056
        %v1061 = vsel %vm712, %v1058, 0
        %1063 = vmatpush.bf16.msra.mxu0 0
        %1064 = vmatpush.bf16.msra.mxu0 0
        %1065 = vmatpush.bf16.msra.mxu0 0
        %1066 = vmatpush.bf16.msra.mxu0 0
        %1067 = vmatpush.bf16.msra.mxu0 0
        %1068 = vmatpush.bf16.msra.mxu0 0
        %1069 = vmatpush.bf16.msra.mxu0 %v1061
        %1070 = vmatpush.bf16.msra.mxu0 %v1057
        %1071 = vmatmul.bf16.gmra.mxu0 %v764
        %v1072 = vpop.f32.mrf.mxu0
        %v1073 = vadd.f32 0.0, %v1072
        %v1074 = vpop.f32.mrf.mxu0
        %v1075 = vadd.f32 0.0, %v1074
        %1076 = vmatmul.bf16.gmra.mxu0 %v767
        %v1077 = vpop.f32.mrf.mxu0
        %v1078 = vadd.f32 0.0, %v1077
        %v1079 = vpop.f32.mrf.mxu0
        %v1080 = vadd.f32 0.0, %v1079
        %1081 = vmatmul.bf16.gmra.mxu0 %v770
        %v1082 = vpop.f32.mrf.mxu0
        %v1083 = vadd.f32 0.0, %v1082
        %v1084 = vpop.f32.mrf.mxu0
        %v1085 = vadd.f32 0.0, %v1084
        %1086 = vmatmul.bf16.gmra.mxu0 %v821
        %v1087 = vpop.f32.mrf.mxu0
        %v1088 = vadd.f32 0.0, %v1087
        %v1089 = vpop.f32.mrf.mxu0
        %v1090 = vadd.f32 0.0, %v1089
        %1091 = vdwg.mxu0
        %v1095 = vunpack.c.l.b16 %v1044
        %v1096 = vunpack.c.l.b16 %v1045
        %v1097 = vunpack.c.l.b16 %v1046
        %v1098 = vpack.c.b16 %v1096, %v1095
        %v1099 = vpack.c.b16 %v1097, %v1097
        %v1102 = vsel %vm712, %v1099, 0
        %1104 = vmatpush.bf16.msra.mxu0 0
        %1105 = vmatpush.bf16.msra.mxu0 0
        %1106 = vmatpush.bf16.msra.mxu0 0
        %1107 = vmatpush.bf16.msra.mxu0 0
        %1108 = vmatpush.bf16.msra.mxu0 0
        %1109 = vmatpush.bf16.msra.mxu0 0
        %1110 = vmatpush.bf16.msra.mxu0 %v1102
        %1111 = vmatpush.bf16.msra.mxu0 %v1098
        %1112 = vmatmul.bf16.gmra.mxu0 %v701
        %v1113 = vpop.f32.mrf.mxu0
        %v1114 = vadd.f32 %v1073, %v1113
        %v1115 = vpop.f32.mrf.mxu0
        %v1116 = vadd.f32 %v1075, %v1115
        %1117 = vmatmul.bf16.gmra.mxu0 %v704
        %v1118 = vpop.f32.mrf.mxu0
        %v1119 = vadd.f32 %v1078, %v1118
        %v1120 = vpop.f32.mrf.mxu0
        %v1121 = vadd.f32 %v1080, %v1120
        %1122 = vmatmul.bf16.gmra.mxu0 %v707
        %v1123 = vpop.f32.mrf.mxu0
        %v1124 = vadd.f32 %v1083, %v1123
        %v1125 = vpop.f32.mrf.mxu0
        %v1126 = vadd.f32 %v1085, %v1125
        %1127 = vmatmul.bf16.gmra.mxu0 %v710
        %v1128 = vpop.f32.mrf.mxu0
        %v1129 = vadd.f32 %v1088, %v1128
        %v1130 = vpop.f32.mrf.mxu0
        %v1131 = vadd.f32 %v1090, %v1130
        %1132 = vdwg.mxu0
        %v1133 = vadd.f32 %v1114, %v865
        %v1134 = vadd.f32 %v1116, %v865
        %v1135 = vadd.f32 %v1119, %v865
        %v1136 = vadd.f32 %v1121, %v865
        %v1137 = vadd.f32 %v1124, %v865
        %v1138 = vadd.f32 %v1126, %v865
        %v1139 = vadd.f32 %v1129, %v865
        %v1140 = vadd.f32 %v1131, %v865
        %v1141 = vmul.f32 %v1133, %v1133
        %v1142 = vmul.f32 %v1134, %v1134
        %v1143 = vmul.f32 %v1135, %v1135
        %v1144 = vmul.f32 %v1136, %v1136
        %v1145 = vmul.f32 %v1137, %v1137
        %v1146 = vmul.f32 %v1138, %v1138
        %v1147 = vmul.f32 %v1139, %v1139
        %v1148 = vmul.f32 %v1140, %v1140
        %v1149 = vpack.c.bf16 %v1142, %v1141
        %v1150 = vpack.c.bf16 %v1144, %v1143
        %v1151 = vpack.c.bf16 %v1146, %v1145
        %v1152 = vpack.c.bf16 %v1148, %v1147
        %v1154 = vsel %vm642, %v1149, 0
        %v1157 = vsel %vm642, %v1150, 0
        %v1160 = vsel %vm642, %v1151, 0
        %v1163 = vsel %vm642, %v1152, 0
        %1165 = vmatpush.bf16.msra.mxu0 0
        %1166 = vmatpush.bf16.msra.mxu0 0
        %1167 = vmatpush.bf16.msra.mxu0 0
        %1168 = vmatpush.bf16.msra.mxu0 0
        %1169 = vmatpush.bf16.msra.mxu0 0
        %1170 = vmatpush.bf16.msra.mxu0 0
        %1171 = vmatpush.bf16.msra.mxu0 0
        %1172 = vmatpush.bf16.msra.mxu0 %v897
        %1173 = vmatmul.bf16.gmra.mxu0 %v1154
        %v1174 = vpop.f32.mrf.mxu0
        %v1175 = vadd.f32 %v891, %v1174
        %v1176 = vpop.f32.mrf.mxu0
        %v1177 = vadd.f32 %v891, %v1176
        %1178 = vmatmul.bf16.gmra.mxu0 %v1157
        %v1179 = vpop.f32.mrf.mxu0
        %v1180 = vadd.f32 %v891, %v1179
        %v1181 = vpop.f32.mrf.mxu0
        %v1182 = vadd.f32 %v891, %v1181
        %1183 = vmatmul.bf16.gmra.mxu0 %v1160
        %v1184 = vpop.f32.mrf.mxu0
        %v1185 = vadd.f32 %v891, %v1184
        %v1186 = vpop.f32.mrf.mxu0
        %v1187 = vadd.f32 %v891, %v1186
        %1188 = vmatmul.bf16.gmra.mxu0 %v1163
        %v1189 = vpop.f32.mrf.mxu0
        %v1190 = vadd.f32 %v891, %v1189
        %v1191 = vpop.f32.mrf.mxu0
        %v1192 = vadd.f32 %v891, %v1191
        %1193 = vdwg.mxu0
        %v1194 = vrsqrt.pop %v1175
        %v1195 = vmul.f32 %v1194, %v1175
        %v1196 = vmul.f32 %v1195, %v1194
        %v1197 = vmul.f32 0.5, %v1196
        %v1198 = vsub.f32 1.5, %v1197
        %v1199 = vmul.f32 %v1194, %v1198
        %v1200 = vmul.f32 %v1175, %v1199
        %vm1201 = vcmp.eq.f32.partialorder %v1175, inf
        %v1202 = vsel %vm1201, %v1175, %v1200
        %vm1203 = vcmp.eq.f32.partialorder %v1175, 0.0
        %v1204 = vand.u32 %v1175, 2147483648
        %v1205 = vsel %vm1203, %v1204, %v1202
        %v1206 = vrsqrt.pop %v1177
        %v1207 = vmul.f32 %v1206, %v1177
        %v1208 = vmul.f32 %v1207, %v1206
        %v1209 = vmul.f32 0.5, %v1208
        %v1210 = vsub.f32 1.5, %v1209
        %v1211 = vmul.f32 %v1206, %v1210
        %v1212 = vmul.f32 %v1177, %v1211
        %vm1213 = vcmp.eq.f32.partialorder %v1177, inf
        %v1214 = vsel %vm1213, %v1177, %v1212
        %vm1215 = vcmp.eq.f32.partialorder %v1177, 0.0
        %v1216 = vand.u32 %v1177, 2147483648
        %v1217 = vsel %vm1215, %v1216, %v1214
        %v1218 = vrsqrt.pop %v1180
        %v1219 = vmul.f32 %v1218, %v1180
        %v1220 = vmul.f32 %v1219, %v1218
        %v1221 = vmul.f32 0.5, %v1220
        %v1222 = vsub.f32 1.5, %v1221
        %v1223 = vmul.f32 %v1218, %v1222
        %v1224 = vmul.f32 %v1180, %v1223
        %vm1225 = vcmp.eq.f32.partialorder %v1180, inf
        %v1226 = vsel %vm1225, %v1180, %v1224
        %vm1227 = vcmp.eq.f32.partialorder %v1180, 0.0
        %v1228 = vand.u32 %v1180, 2147483648
        %v1229 = vsel %vm1227, %v1228, %v1226
        %v1230 = vrsqrt.pop %v1182
        %v1231 = vmul.f32 %v1230, %v1182
        %v1232 = vmul.f32 %v1231, %v1230
        %v1233 = vmul.f32 0.5, %v1232
        %v1234 = vsub.f32 1.5, %v1233
        %v1235 = vmul.f32 %v1230, %v1234
        %v1236 = vmul.f32 %v1182, %v1235
        %vm1237 = vcmp.eq.f32.partialorder %v1182, inf
        %v1238 = vsel %vm1237, %v1182, %v1236
        %vm1239 = vcmp.eq.f32.partialorder %v1182, 0.0
        %v1240 = vand.u32 %v1182, 2147483648
        %v1241 = vsel %vm1239, %v1240, %v1238
        %v1242 = vrsqrt.pop %v1185
        %v1243 = vmul.f32 %v1242, %v1185
        %v1244 = vmul.f32 %v1243, %v1242
        %v1245 = vmul.f32 0.5, %v1244
        %v1246 = vsub.f32 1.5, %v1245
        %v1247 = vmul.f32 %v1242, %v1246
        %v1248 = vmul.f32 %v1185, %v1247
        %vm1249 = vcmp.eq.f32.partialorder %v1185, inf
        %v1250 = vsel %vm1249, %v1185, %v1248
        %vm1251 = vcmp.eq.f32.partialorder %v1185, 0.0
        %v1252 = vand.u32 %v1185, 2147483648
        %v1253 = vsel %vm1251, %v1252, %v1250
        %v1254 = vrsqrt.pop %v1187
        %v1255 = vmul.f32 %v1254, %v1187
        %v1256 = vmul.f32 %v1255, %v1254
        %v1257 = vmul.f32 0.5, %v1256
        %v1258 = vsub.f32 1.5, %v1257
        %v1259 = vmul.f32 %v1254, %v1258
        %v1260 = vmul.f32 %v1187, %v1259
        %vm1261 = vcmp.eq.f32.partialorder %v1187, inf
        %v1262 = vsel %vm1261, %v1187, %v1260
        %vm1263 = vcmp.eq.f32.partialorder %v1187, 0.0
        %v1264 = vand.u32 %v1187, 2147483648
        %v1265 = vsel %vm1263, %v1264, %v1262
        %v1266 = vrsqrt.pop %v1190
        %v1267 = vmul.f32 %v1266, %v1190
        %v1268 = vmul.f32 %v1267, %v1266
        %v1269 = vmul.f32 0.5, %v1268
        %v1270 = vsub.f32 1.5, %v1269
        %v1271 = vmul.f32 %v1266, %v1270
        %v1272 = vmul.f32 %v1190, %v1271
        %vm1273 = vcmp.eq.f32.partialorder %v1190, inf
        %v1274 = vsel %vm1273, %v1190, %v1272
        %vm1275 = vcmp.eq.f32.partialorder %v1190, 0.0
        %v1276 = vand.u32 %v1190, 2147483648
        %v1277 = vsel %vm1275, %v1276, %v1274
        %v1278 = vrsqrt.pop %v1192
        %v1279 = vmul.f32 %v1278, %v1192
        %v1280 = vmul.f32 %v1279, %v1278
        %v1281 = vmul.f32 0.5, %v1280
        %v1282 = vsub.f32 1.5, %v1281
        %v1283 = vmul.f32 %v1278, %v1282
        %v1284 = vmul.f32 %v1192, %v1283
        %vm1285 = vcmp.eq.f32.partialorder %v1192, inf
        %v1286 = vsel %vm1285, %v1192, %v1284
        %vm1287 = vcmp.eq.f32.partialorder %v1192, 0.0
        %v1288 = vand.u32 %v1192, 2147483648
        %v1289 = vsel %vm1287, %v1288, %v1286
        %v1290 = vmul.f32 %v1133, %v1205
        %v1291 = vmul.f32 %v1134, %v1217
        %v1292 = vmul.f32 %v1135, %v1229
        %v1293 = vmul.f32 %v1136, %v1241
        %v1294 = vmul.f32 %v1137, %v1253
        %v1295 = vmul.f32 %v1138, %v1265
        %v1296 = vmul.f32 %v1139, %v1277
        %v1297 = vmul.f32 %v1140, %v1289
        %v1298 = vpack.c.bf16 %v1036, %v1036
        %v1299 = vpack.c.bf16 %v1290, %v1290
        %v1300 = vpack.c.bf16 %v1037, %v1037
        %v1301 = vpack.c.bf16 %v1291, %v1291
        %v1302 = vpack.c.bf16 %v1038, %v1038
        %v1303 = vpack.c.bf16 %v1292, %v1292
        %v1304 = vpack.c.bf16 %v1039, %v1039
        %v1305 = vpack.c.bf16 %v1293, %v1293
        %v1306 = vpack.c.bf16 %v1040, %v1040
        %v1307 = vpack.c.bf16 %v1294, %v1294
        %v1308 = vpack.c.bf16 %v1041, %v1041
        %v1309 = vpack.c.bf16 %v1295, %v1295
        %v1310 = vpack.c.bf16 %v1042, %v1042
        %v1311 = vpack.c.bf16 %v1296, %v1296
        %v1312 = vpack.c.bf16 %v1043, %v1043
        %v1313 = vpack.c.bf16 %v1297, %v1297
        %vm1314 = vcmask 125952
        %1315 = vst.msk [vmem:[%s418] sm:$0xf] %vm1314, %v1298
        %1316 = vst.msk [vmem:[%s418 + $0x4] sm:$0xf] %vm1314, %v1299
        %1317 = vst.msk [vmem:[%s418 + $0x8] sm:$0xf] %vm1314, %v1300
        %1318 = vst.msk [vmem:[%s418 + $0xc] sm:$0xf] %vm1314, %v1301
        %1319 = vst.msk [vmem:[%s418 + $0x10] sm:$0xf] %vm1314, %v1302
        %1320 = vst.msk [vmem:[%s418 + $0x14] sm:$0xf] %vm1314, %v1303
        %1321 = vst.msk [vmem:[%s418 + $0x18] sm:$0xf] %vm1314, %v1304
        %1322 = vst.msk [vmem:[%s418 + $0x1c] sm:$0xf] %vm1314, %v1305
        %1323 = vst.msk [vmem:[%s418 + $0x20] sm:$0xf] %vm1314, %v1306
        %1324 = vst.msk [vmem:[%s418 + $0x24] sm:$0xf] %vm1314, %v1307
        %1325 = vst.msk [vmem:[%s418 + $0x28] sm:$0xf] %vm1314, %v1308
        %1326 = vst.msk [vmem:[%s418 + $0x2c] sm:$0xf] %vm1314, %v1309
        %1327 = vst.msk [vmem:[%s418 + $0x30] sm:$0xf] %vm1314, %v1310
        %1328 = vst.msk [vmem:[%s418 + $0x34] sm:$0xf] %vm1314, %v1311
        %1329 = vst.msk [vmem:[%s418 + $0x38] sm:$0xf] %vm1314, %v1312
        %1330 = vst.msk [vmem:[%s418 + $0x3c] sm:$0xf] %vm1314, %v1313
        %s1331 = smul.u32 16, %s25
        %p1332 = scmp.lt.s32.totalorder %s24, 1
        %s1333 = scalar_select %p1332, %s24, 1
        %p1334 = scmp.lt.s32.totalorder %s1331, 15
        %s1335 = scalar_select %p1334, %s1331, 15
        %s1336 = smul.addr %s1333, 16
        %s1337 = sadd.s32 %s1335, %s1336
        %s1338 = smul.addr %s1337, 4
        %s1339 = scalar_lea.vmem %s7, %s1338
        // Predicated region
        $region61: #{synthesis_net_forward.5} parent=47 // pred_check
          %p1340 = pneg %p217
        $region62: #{synthesis_net_forward.5} parent=47 // pred_check_branch
          %1342 = sbr.rel (%p1340) target = $region64
        $region63: #{synthesis_net_forward.5} parent=47 // pred_region
          %s1343 = smul.u32 16, %s25
        $region64: #{synthesis_net_forward.5} parent=47 // pred_fallthru
          _
      $region48: #{synthesis_net_forward.5} parent=5 // pred_fallthru
        _
      %p1344 = scmp.le.s32.totalorder 2, %s15
      // Predicated region
      $region65: #{synthesis_net_forward.5} parent=5 // pred_check
        %p1345 = pneg %p1344
      $region66: #{synthesis_net_forward.5} parent=5 // pred_check_branch
        %1347 = sbr.rel (%p1345) target = $region68
      $region67: #{synthesis_net_forward.5} parent=5 // pred_region
        %s1348 = ssub.s32 %s15, 2
        // Predicated region
        $region69: #{synthesis_net_forward.5} parent=67 // pred_check
          %p1349 = pneg %p223
        $region70: #{synthesis_net_forward.5} parent=67 // pred_check_branch
          %1351 = sbr.rel (%p1349) target = $region72
        $region71: #{synthesis_net_forward.5} parent=67 // pred_region
          %s1352 = smul.u32 16, %s27
          %p1353 = scmp.lt.s32.totalorder %s26, 1
          %s1354 = scalar_select %p1353, %s26, 1
          %p1355 = scmp.lt.s32.totalorder %s1352, 15
          %s1356 = scalar_select %p1355, %s1352, 15
          %s1357 = smul.addr %s1354, 16
          %s1358 = sadd.s32 %s1356, %s1357
          %s1359 = smul.addr %s1358, 4
          %s1360 = scalar_lea.vmem %s7, %s1359
        $region72: #{synthesis_net_forward.5} parent=67 // pred_fallthru
          _
      $region68: #{synthesis_net_forward.5} parent=5 // pred_fallthru
        _
    $region6: #{synthesis_net_forward.5} parent=1 // loop_footer
      %s19 = sadd.s32 1, %s15
    $region7: #{synthesis_net_forward.5} parent=1 // loop_footer_branch
      %14 = sbr.rel target = $region3
    $region8: #{synthesis_net_forward.5} parent=1 // loop_exit
      _
    %1361 = vsyncpa [#allocation3], 1
    %s1362 = scalar_lea.sflag [#allocation3], 1
    %1363 = vsyncpa %s1362, 1
    %1364 = vsyncpa [#allocation5], 1

// kernel: synthesis_net_forward.6
$region0: #{synthesis_net_forward.6}
  #allocation0 [shape = 'u32[]', space=smem, size = 0x4, offset = 0x4, fixed_abs, tag = 'smem constant byte address 0x4 - core index']
  #allocation1 [shape = 'u32[72,128]{1,0:T(1,128)}', space=vmem, size = 0x9000, scoped, tag = 'internal scratch']
  %s0 = inlined_call_operand.vmem [shape: bf16[2,32,18,8], index: 0, kind: input, shape index: {}, may-alias: {0,1}]
  %s1 = inlined_call_operand.vmem [shape: bf16[2,32,18,8], index: 1, kind: input, shape index: {}, may-alias: {0,1}]
  %s2 = inlined_call_operand.vmem [shape: bf16[3,24,16], index: 2, kind: input, shape index: {}]
  %s3 = inlined_call_operand.vmem [shape: bf16[2,24,16], index: 3, kind: input, shape index: {}]
  %s4 = inlined_call_operand.hbm [shape: f32[1,16], index: 4, kind: input, shape index: {}]
  %s5 = inlined_call_operand.hbm [shape: bf16[16,16], index: 5, kind: input, shape index: {}]
  %s6 = inlined_call_operand.hbm [shape: f32[1,16], index: 6, kind: input, shape index: {}]
  %s7 = inlined_call_operand.vmem [shape: bf16[2,32,16,16], index: 7, kind: output, shape index: {}]
  %s8 = sld [smem:[#allocation0]]
  $region73: #{synthesis_net_forward.6} parent=0
    _
  %s10 = ssub.s32 1, %s8
  %s11 = scalar_select 0, %s10, %s8
  $region1: #{synthesis_net_forward.6} parent=0
    #allocation2 [shape = 'u8[512]{0}', space=vmem, size = 0x400, scoped, tag = 'input window, operand 4, single buffered']
    #allocation3 [shape = 's32[2]{0}', space=sflag, size = 0x8, scoped, tag = 'scoped memory for synthesis_net_forward.6']
    #allocation4 [shape = 'u8[4096]{0}', space=vmem, size = 0x1000, scoped, tag = 'input window, operand 5, single buffered']
    #allocation5 [shape = 's32[1]{0}', space=sflag, size = 0x4, scoped, tag = 'scoped memory for synthesis_net_forward.6']
    #allocation6 [shape = 'u8[512]{0}', space=vmem, size = 0x400, scoped, tag = 'input window, operand 6, single buffered']
    %12 = vsyncpa [#allocation3], 0
    %13 = vsyncpa [#allocation5], 0
    loop: start=0, step=1, limit=4
    $region2: #{synthesis_net_forward.6} parent=1 // loop_pre_header
      _
    $region3: #{synthesis_net_forward.6} parent=1 // loop_header
      %s15 = sphi 0, %s19
      %p16 = scmp.ge.s32.totalorder %s15, 4
      %s22 = sphi 0, %s34
      %s23 = sphi 0, %s30
      %s24 = sphi 0, %s22
      %s25 = sphi 0, %s23
      %s26 = sphi 0, %s24
      %s27 = sphi 0, %s25
      %s39 = sphi 0, %s41
      %s42 = sphi 0, %s39
      %s43 = sphi 0, %s42
      %s59 = sphi 0, %s43
      %s71 = sphi 0, %s73
      %s74 = sphi 0, %s71
      %s75 = sphi 0, %s74
      %s91 = sphi 0, %s75
      %s95 = sphi 0, %s95
      %s97 = sphi 0, %s95
      %s98 = sphi 0, %s97
      %s112 = sphi 0, %s98
      %s116 = sphi 0, %s116
      %s118 = sphi 0, %s116
      %s119 = sphi 0, %s118
      %s133 = sphi 0, %s119
      %s137 = sphi 0, %s137
      %s139 = sphi 0, %s137
      %s140 = sphi 0, %s139
      %s154 = sphi 0, %s140
      %s158 = sphi 0, %s158
      %s160 = sphi 0, %s158
      %s161 = sphi 0, %s160
      %s175 = sphi 0, %s161
      %s179 = sphi 0, %s179
      %s181 = sphi 0, %s179
      %s182 = sphi 0, %s181
      %s196 = sphi 0, %s182
      %s204 = sphi 0, %s206
      %s207 = sphi 0, %s204
      %s208 = sphi 0, %s207
      %s224 = sphi 0, %s208
    $region4: #{synthesis_net_forward.6} parent=1 // loop_header_branch
      %18 = sbr.rel (%p16) target = $region8
    $region5: #{synthesis_net_forward.6} parent=1 // loop_body
      %s20 = ssub.s32 %s15, 1
      %s21 = ssub.s32 %s15, 2
      %s28 = sadd.s32 1, %s23
      %p29 = scmp.ge.s32.totalorder %s28, 1
      %s30 = scalar_select %p29, 0, %s28
      %s31 = sadd.s32 1, %s22
      %s32 = scalar_select %p29, %s31, %s22
      %p33 = scmp.ge.s32.totalorder %s32, 2
      %s34 = scalar_select %p33, 0, %s32
      %s35 = ssub.s32 %s22, %s34
      %s36 = ssub.s32 %s23, %s30
      %s37 = sor.u32 %s35, %s36
      %p38 = scmp.eq.s32.totalorder %s37, 0
      %s40 = sadd.s32 %s39, 1
      %s41 = scalar_select %p38, %s39, %s40
      %p44 = pneg %p38
      %p45 = scmp.eq.s32.totalorder %s15, 1
      %p46 = por %p44, %p45
      %p47 = scmp.ne.s32.totalorder %s39, %s42
      %p48 = scmp.eq.s32.totalorder %s15, 0
      %p49 = por %p47, %p48
      %p50 = scmp.ne.s32.totalorder %s39, %s42
      %p51 = scmp.eq.s32.totalorder %s20, 1
      %p52 = por %p50, %p51
      %p53 = scmp.ne.s32.totalorder %s42, %s43
      %p54 = scmp.eq.s32.totalorder %s20, 0
      %p55 = por %p53, %p54
      %p56 = scmp.ne.s32.totalorder %s42, %s43
      %p57 = scmp.eq.s32.totalorder %s21, 1
      %p58 = por %p56, %p57
      %p60 = scmp.ne.s32.totalorder %s43, %s59
      %p61 = scmp.eq.s32.totalorder %s21, 0
      %p62 = por %p60, %p61
      %s63 = sadd.s32 %s23, 1
      %s64 = smul.u32 %s63, 8
      %s65 = sadd.s32 %s30, 1
      %s66 = smul.u32 %s65, 8
      %s67 = ssub.s32 %s22, %s34
      %s68 = ssub.s32 %s64, %s66
      %s69 = sor.u32 %s67, %s68
      %p70 = scmp.eq.s32.totalorder %s69, 0
      %s72 = sadd.s32 %s71, 1
      %s73 = scalar_select %p70, %s71, %s72
      %p76 = pneg %p70
      %p77 = scmp.eq.s32.totalorder %s15, 1
      %p78 = por %p76, %p77
      %p79 = scmp.ne.s32.totalorder %s71, %s74
      %p80 = scmp.eq.s32.totalorder %s15, 0
      %p81 = por %p79, %p80
      %p82 = scmp.ne.s32.totalorder %s71, %s74
      %p83 = scmp.eq.s32.totalorder %s20, 1
      %p84 = por %p82, %p83
      %p85 = scmp.ne.s32.totalorder %s74, %s75
      %p86 = scmp.eq.s32.totalorder %s20, 0
      %p87 = por %p85, %p86
      %p88 = scmp.ne.s32.totalorder %s74, %s75
      %p89 = scmp.eq.s32.totalorder %s21, 1
      %p90 = por %p88, %p89
      %p92 = scmp.ne.s32.totalorder %s75, %s91
      %p93 = scmp.eq.s32.totalorder %s21, 0
      %p94 = por %p92, %p93
      %s96 = sadd.s32 %s95, 1
      %p99 = scmp.eq.s32.totalorder %s15, 1
      %p100 = scmp.ne.s32.totalorder %s95, %s97
      %p101 = scmp.eq.s32.totalorder %s15, 0
      %p102 = por %p100, %p101
      %p103 = scmp.ne.s32.totalorder %s95, %s97
      %p104 = scmp.eq.s32.totalorder %s20, 1
      %p105 = por %p103, %p104
      %p106 = scmp.ne.s32.totalorder %s97, %s98
      %p107 = scmp.eq.s32.totalorder %s20, 0
      %p108 = por %p106, %p107
      %p109 = scmp.ne.s32.totalorder %s97, %s98
      %p110 = scmp.eq.s32.totalorder %s21, 1
      %p111 = por %p109, %p110
      %p113 = scmp.ne.s32.totalorder %s98, %s112
      %p114 = scmp.eq.s32.totalorder %s21, 0
      %p115 = por %p113, %p114
      %s117 = sadd.s32 %s116, 1
      %p120 = scmp.eq.s32.totalorder %s15, 1
      %p121 = scmp.ne.s32.totalorder %s116, %s118
      %p122 = scmp.eq.s32.totalorder %s15, 0
      %p123 = por %p121, %p122
      %p124 = scmp.ne.s32.totalorder %s116, %s118
      %p125 = scmp.eq.s32.totalorder %s20, 1
      %p126 = por %p124, %p125
      %p127 = scmp.ne.s32.totalorder %s118, %s119
      %p128 = scmp.eq.s32.totalorder %s20, 0
      %p129 = por %p127, %p128
      %p130 = scmp.ne.s32.totalorder %s118, %s119
      %p131 = scmp.eq.s32.totalorder %s21, 1
      %p132 = por %p130, %p131
      %p134 = scmp.ne.s32.totalorder %s119, %s133
      %p135 = scmp.eq.s32.totalorder %s21, 0
      %p136 = por %p134, %p135
      %s138 = sadd.s32 %s137, 1
      %p141 = scmp.eq.s32.totalorder %s15, 1
      %p142 = scmp.ne.s32.totalorder %s137, %s139
      %p143 = scmp.eq.s32.totalorder %s15, 0
      %p144 = por %p142, %p143
      %p145 = scmp.ne.s32.totalorder %s137, %s139
      %p146 = scmp.eq.s32.totalorder %s20, 1
      %p147 = por %p145, %p146
      %p148 = scmp.ne.s32.totalorder %s139, %s140
      %p149 = scmp.eq.s32.totalorder %s20, 0
      %p150 = por %p148, %p149
      %p151 = scmp.ne.s32.totalorder %s139, %s140
      %p152 = scmp.eq.s32.totalorder %s21, 1
      %p153 = por %p151, %p152
      %p155 = scmp.ne.s32.totalorder %s140, %s154
      %p156 = scmp.eq.s32.totalorder %s21, 0
      %p157 = por %p155, %p156
      %s159 = sadd.s32 %s158, 1
      %p162 = scmp.eq.s32.totalorder %s15, 1
      %p163 = scmp.ne.s32.totalorder %s158, %s160
      %p164 = scmp.eq.s32.totalorder %s15, 0
      %p165 = por %p163, %p164
      %p166 = scmp.ne.s32.totalorder %s158, %s160
      %p167 = scmp.eq.s32.totalorder %s20, 1
      %p168 = por %p166, %p167
      %p169 = scmp.ne.s32.totalorder %s160, %s161
      %p170 = scmp.eq.s32.totalorder %s20, 0
      %p171 = por %p169, %p170
      %p172 = scmp.ne.s32.totalorder %s160, %s161
      %p173 = scmp.eq.s32.totalorder %s21, 1
      %p174 = por %p172, %p173
      %p176 = scmp.ne.s32.totalorder %s161, %s175
      %p177 = scmp.eq.s32.totalorder %s21, 0
      %p178 = por %p176, %p177
      %s180 = sadd.s32 %s179, 1
      %p183 = scmp.eq.s32.totalorder %s15, 1
      %p184 = scmp.ne.s32.totalorder %s179, %s181
      %p185 = scmp.eq.s32.totalorder %s15, 0
      %p186 = por %p184, %p185
      %p187 = scmp.ne.s32.totalorder %s179, %s181
      %p188 = scmp.eq.s32.totalorder %s20, 1
      %p189 = por %p187, %p188
      %p190 = scmp.ne.s32.totalorder %s181, %s182
      %p191 = scmp.eq.s32.totalorder %s20, 0
      %p192 = por %p190, %p191
      %p193 = scmp.ne.s32.totalorder %s181, %s182
      %p194 = scmp.eq.s32.totalorder %s21, 1
      %p195 = por %p193, %p194
      %p197 = scmp.ne.s32.totalorder %s182, %s196
      %p198 = scmp.eq.s32.totalorder %s21, 0
      %p199 = por %p197, %p198
      %s200 = ssub.s32 %s22, %s34
      %s201 = ssub.s32 %s23, %s30
      %s202 = sor.u32 %s200, %s201
      %p203 = scmp.eq.s32.totalorder %s202, 0
      %s205 = sadd.s32 %s204, 1
      %s206 = scalar_select %p203, %s204, %s205
      %p209 = pneg %p203
      %p210 = scmp.eq.s32.totalorder %s15, 1
      %p211 = por %p209, %p210
      %p212 = scmp.ne.s32.totalorder %s204, %s207
      %p213 = scmp.eq.s32.totalorder %s15, 0
      %p214 = por %p212, %p213
      %p215 = scmp.ne.s32.totalorder %s204, %s207
      %p216 = scmp.eq.s32.totalorder %s20, 1
      %p217 = por %p215, %p216
      %p218 = scmp.ne.s32.totalorder %s207, %s208
      %p219 = scmp.eq.s32.totalorder %s20, 0
      %p220 = por %p218, %p219
      %p221 = scmp.ne.s32.totalorder %s207, %s208
      %p222 = scmp.eq.s32.totalorder %s21, 1
      %p223 = por %p221, %p222
      %p225 = scmp.ne.s32.totalorder %s208, %s224
      %p226 = scmp.eq.s32.totalorder %s21, 0
      %p227 = por %p225, %p226
      %p228 = scmp.le.s32.totalorder 1, %s15
      %p229 = scmp.lt.s32.totalorder %s15, 3
      %p230 = pnand %p228, %p229
      %p231 = pneg %p230
      // Predicated region
      $region9: #{synthesis_net_forward.6} parent=5 // pred_check
        _
      $region10: #{synthesis_net_forward.6} parent=5 // pred_check_branch
        %233 = sbr.rel (%p230) target = $region12
      $region11: #{synthesis_net_forward.6} parent=5 // pred_region
        %s234 = ssub.s32 %s15, 1
        // Predicated region
        $region13: #{synthesis_net_forward.6} parent=11 // pred_check
          %p235 = pneg %p108
        $region14: #{synthesis_net_forward.6} parent=11 // pred_check_branch
          %237 = sbr.rel (%p235) target = $region16
        $region15: #{synthesis_net_forward.6} parent=11 // pred_region
          _
        $region16: #{synthesis_net_forward.6} parent=11 // pred_fallthru
          _
        // Predicated region
        $region17: #{synthesis_net_forward.6} parent=11 // pred_check
          %p238 = pneg %p129
        $region18: #{synthesis_net_forward.6} parent=11 // pred_check_branch
          %240 = sbr.rel (%p238) target = $region20
        $region19: #{synthesis_net_forward.6} parent=11 // pred_region
          _
        $region20: #{synthesis_net_forward.6} parent=11 // pred_fallthru
          _
        // Predicated region
        $region21: #{synthesis_net_forward.6} parent=11 // pred_check
          %p241 = pneg %p150
        $region22: #{synthesis_net_forward.6} parent=11 // pred_check_branch
          %243 = sbr.rel (%p241) target = $region24
        $region23: #{synthesis_net_forward.6} parent=11 // pred_region
          %245 = vsyncadd [#allocation3], 0
          %s247 = sshll.u32 %s4, 4
          %s248 = int_to_ptr.hbm [resolvable:$true] %s247
          %s249 = sshll.u32 [#allocation2], 4
          %s250 = int_to_ptr.vmem [resolvable:$true] %s249
          %252 = dma.hbm_to_vmem [thread:$0]  %s248, 16, %s250, [#allocation3]
        $region24: #{synthesis_net_forward.6} parent=11 // pred_fallthru
          _
        // Predicated region
        $region25: #{synthesis_net_forward.6} parent=11 // pred_check
          %p253 = pneg %p171
        $region26: #{synthesis_net_forward.6} parent=11 // pred_check_branch
          %255 = sbr.rel (%p253) target = $region28
        $region27: #{synthesis_net_forward.6} parent=11 // pred_region
          %257 = vsyncadd [#allocation5], 0
          %s258 = sshll.u32 %s5, 4
          %s259 = int_to_ptr.hbm [resolvable:$true] %s258
          %s260 = sshll.u32 [#allocation4], 4
          %s261 = int_to_ptr.vmem [resolvable:$true] %s260
          %266 = dma.hbm_to_vmem [thread:$0]  %s259, 128, %s261, [#allocation5], 64, 64, 4
        $region28: #{synthesis_net_forward.6} parent=11 // pred_fallthru
          _
        // Predicated region
        $region29: #{synthesis_net_forward.6} parent=11 // pred_check
          %p267 = pneg %p192
        $region30: #{synthesis_net_forward.6} parent=11 // pred_check_branch
          %269 = sbr.rel (%p267) target = $region32
        $region31: #{synthesis_net_forward.6} parent=11 // pred_region
          %271 = vsyncadd [#allocation5], 0
          %s273 = sshll.u32 %s6, 4
          %s274 = int_to_ptr.hbm [resolvable:$true] %s273
          %s275 = sshll.u32 [#allocation6], 4
          %s276 = int_to_ptr.vmem [resolvable:$true] %s275
          %278 = dma.hbm_to_vmem [thread:$0]  %s274, 16, %s276, [#allocation5]
        $region32: #{synthesis_net_forward.6} parent=11 // pred_fallthru
          _
      $region12: #{synthesis_net_forward.6} parent=5 // pred_fallthru
        _
      %p279 = scmp.lt.s32.totalorder %s15, 2
      // Predicated region
      $region33: #{synthesis_net_forward.6} parent=5 // pred_check
        %p280 = pneg %p279
      $region34: #{synthesis_net_forward.6} parent=5 // pred_check_branch
        %282 = sbr.rel (%p280) target = $region36
      $region35: #{synthesis_net_forward.6} parent=5 // pred_region
        // Predicated region
        $region37: #{synthesis_net_forward.6} parent=35 // pred_check
          %p283 = pneg %p49
        $region38: #{synthesis_net_forward.6} parent=35 // pred_check_branch
          %285 = sbr.rel (%p283) target = $region40
        $region39: #{synthesis_net_forward.6} parent=35 // pred_region
          %s286 = smul.u32 16, %s23
          %p287 = scmp.lt.s32.totalorder %s22, 1
          %s288 = scalar_select %p287, %s22, 1
          %p289 = scmp.lt.s32.totalorder %s286, 31
          %s290 = scalar_select %p289, %s286, 31
          %s291 = smul.addr %s290, 3
          %s292 = smul.addr %s288, 96
          %s293 = sadd.s32 %s291, %s292
          %s294 = smul.addr %s293, 4
          %s295 = scalar_lea.vmem %s0, %s294
          %s296 = smul.u32 16, %s23
        $region40: #{synthesis_net_forward.6} parent=35 // pred_fallthru
          _
        // Predicated region
        $region41: #{synthesis_net_forward.6} parent=35 // pred_check
          %p297 = pneg %p81
        $region42: #{synthesis_net_forward.6} parent=35 // pred_check_branch
          %299 = sbr.rel (%p297) target = $region44
        $region43: #{synthesis_net_forward.6} parent=35 // pred_region
          %s300 = sadd.s32 %s23, 1
          %s301 = smul.u32 %s300, 8
          %s302 = smul.u32 2, %s301
          %p303 = scmp.lt.s32.totalorder %s22, 1
          %s304 = scalar_select %p303, %s22, 1
          %p305 = scmp.lt.s32.totalorder %s302, 31
          %s306 = scalar_select %p305, %s302, 31
          %s307 = smul.addr %s306, 3
          %s308 = smul.addr %s304, 96
          %s309 = sadd.s32 %s307, %s308
          %s310 = smul.addr %s309, 4
          %s311 = scalar_lea.vmem %s1, %s310
          %s312 = sadd.s32 %s23, 1
          %s313 = smul.u32 %s312, 8
          %s314 = smul.u32 2, %s313
        $region44: #{synthesis_net_forward.6} parent=35 // pred_fallthru
          _
      $region36: #{synthesis_net_forward.6} parent=5 // pred_fallthru
        _
      %p315 = scmp.le.s32.totalorder 1, %s15
      %p316 = scmp.lt.s32.totalorder %s15, 3
      %p317 = pnand %p315, %p316
      %p318 = pneg %p317
      // Predicated region
      $region45: #{synthesis_net_forward.6} parent=5 // pred_check
        _
      $region46: #{synthesis_net_forward.6} parent=5 // pred_check_branch
        %320 = sbr.rel (%p317) target = $region48
      $region47: #{synthesis_net_forward.6} parent=5 // pred_region
        %s321 = ssub.s32 %s15, 1
        // Predicated region
        $region49: #{synthesis_net_forward.6} parent=47 // pred_check
          %p322 = pneg %p150
        $region50: #{synthesis_net_forward.6} parent=47 // pred_check_branch
          %324 = sbr.rel (%p322) target = $region52
        $region51: #{synthesis_net_forward.6} parent=47 // pred_region
          %326 = dma.done [#allocation3], 16
        $region52: #{synthesis_net_forward.6} parent=47 // pred_fallthru
          _
        // Predicated region
        $region53: #{synthesis_net_forward.6} parent=47 // pred_check
          %p327 = pneg %p171
        $region54: #{synthesis_net_forward.6} parent=47 // pred_check_branch
          %329 = sbr.rel (%p327) target = $region56
        $region55: #{synthesis_net_forward.6} parent=47 // pred_region
          %331 = dma.done [#allocation5], 128
        $region56: #{synthesis_net_forward.6} parent=47 // pred_fallthru
          _
        // Predicated region
        $region57: #{synthesis_net_forward.6} parent=47 // pred_check
          %p332 = pneg %p192
        $region58: #{synthesis_net_forward.6} parent=47 // pred_check_branch
          %334 = sbr.rel (%p332) target = $region60
        $region59: #{synthesis_net_forward.6} parent=47 // pred_region
          %336 = dma.done [#allocation5], 16
        $region60: #{synthesis_net_forward.6} parent=47 // pred_fallthru
          _
        %s337 = smul.u32 16, %s25
        %p338 = scmp.lt.s32.totalorder %s24, 1
        %s339 = scalar_select %p338, %s24, 1
        %p340 = scmp.lt.s32.totalorder %s337, 31
        %s341 = scalar_select %p340, %s337, 31
        %s342 = smul.addr %s341, 3
        %s343 = smul.addr %s339, 96
        %s344 = sadd.s32 %s342, %s343
        %s345 = smul.addr %s344, 4
        %s346 = scalar_lea.vmem %s0, %s345
        %p347 = pneg %p55
        %p348 = pneg %p52
        %s349 = sadd.s32 %s25, 1
        %s350 = smul.u32 %s349, 8
        %s351 = smul.u32 2, %s350
        %p352 = scmp.lt.s32.totalorder %s24, 1
        %s353 = scalar_select %p352, %s24, 1
        %p354 = scmp.lt.s32.totalorder %s351, 31
        %s355 = scalar_select %p354, %s351, 31
        %s356 = smul.addr %s355, 3
        %s357 = smul.addr %s353, 96
        %s358 = sadd.s32 %s356, %s357
        %s359 = smul.addr %s358, 4
        %s360 = scalar_lea.vmem %s1, %s359
        %p361 = pneg %p87
        %p362 = pneg %p84
        %p363 = pneg %p108
        %p364 = pneg %p105
        %p365 = pneg %p129
        %p366 = pneg %p126
        %p367 = pneg %p150
        %p368 = pneg %p147
        %p369 = pneg %p171
        %p370 = pneg %p168
        %p371 = pneg %p192
        %p372 = pneg %p189
        %p373 = pneg %p220
        %p374 = pneg %p217
        %s375 = smul.u32 32, %s25
        %p376 = scmp.lt.s32.totalorder %s24, 1
        %s377 = scalar_select %p376, %s24, 1
        %p378 = scmp.lt.s32.totalorder %s375, 31
        %s379 = scalar_select %p378, %s375, 31
        %s380 = smul.addr %s379, 2
        %s381 = smul.addr %s377, 64
        %s382 = sadd.s32 %s380, %s381
        %s383 = smul.addr %s382, 4
        %s384 = scalar_lea.vmem %s7, %s383
        %s385 = smul.u32 16, %s25
        %p386 = scmp.lt.s32.totalorder %s24, 1
        %s387 = scalar_select %p386, %s24, 1
        %p388 = scmp.lt.s32.totalorder %s385, 31
        %s389 = scalar_select %p388, %s385, 31
        %s390 = smul.addr %s389, 3
        %s391 = smul.addr %s387, 96
        %s392 = sadd.s32 %s390, %s391
        %s393 = smul.addr %s392, 4
        %s394 = scalar_lea.vmem %s0, %s393
        %s395 = smul.u32 16, %s25
        %s396 = sadd.s32 %s25, 1
        %s397 = smul.u32 %s396, 8
        %s398 = smul.u32 2, %s397
        %p399 = scmp.lt.s32.totalorder %s24, 1
        %s400 = scalar_select %p399, %s24, 1
        %p401 = scmp.lt.s32.totalorder %s398, 31
        %s402 = scalar_select %p401, %s398, 31
        %s403 = smul.addr %s402, 3
        %s404 = smul.addr %s400, 96
        %s405 = sadd.s32 %s403, %s404
        %s406 = smul.addr %s405, 4
        %s407 = scalar_lea.vmem %s1, %s406
        %s408 = sadd.s32 %s25, 1
        %s409 = smul.u32 %s408, 8
        %s410 = smul.u32 2, %s409
        %s411 = smul.u32 32, %s25
        %p412 = scmp.lt.s32.totalorder %s24, 1
        %s413 = scalar_select %p412, %s24, 1
        %p414 = scmp.lt.s32.totalorder %s411, 31
        %s415 = scalar_select %p414, %s411, 31
        %s416 = smul.addr %s415, 2
        %s417 = smul.addr %s413, 64
        %s418 = sadd.s32 %s416, %s417
        %s419 = smul.addr %s418, 4
        %s420 = scalar_lea.vmem %s7, %s419
        %s421 = smul.u32 32, %s25
        %v423 = vld [vmem:[%s394] sm:$0xf]
        %v424 = vld [vmem:[%s394 + $0x4] sm:$0xf]
        %v425 = vld [vmem:[%s394 + $0x8] sm:$0x1]
        %v426 = vld [vmem:[%s394 + $0xc] sm:$0xf]
        %v427 = vld [vmem:[%s394 + $0x10] sm:$0xf]
        %v428 = vld [vmem:[%s394 + $0x14] sm:$0x1]
        %v429 = vld [vmem:[%s394 + $0x18] sm:$0xf]
        %v430 = vld [vmem:[%s394 + $0x1c] sm:$0xf]
        %v431 = vld [vmem:[%s394 + $0x20] sm:$0x1]
        %v432 = vld [vmem:[%s394 + $0x24] sm:$0xf]
        %v433 = vld [vmem:[%s394 + $0x28] sm:$0xf]
        %v434 = vld [vmem:[%s394 + $0x2c] sm:$0x1]
        %v435 = vld [vmem:[%s394 + $0x30] sm:$0xf]
        %v436 = vld [vmem:[%s394 + $0x34] sm:$0xf]
        %v437 = vld [vmem:[%s394 + $0x38] sm:$0x1]
        %v438 = vld [vmem:[%s394 + $0x3c] sm:$0xf]
        %v439 = vld [vmem:[%s394 + $0x40] sm:$0xf]
        %v440 = vld [vmem:[%s394 + $0x44] sm:$0x1]
        %v441 = vld [vmem:[%s394 + $0x48] sm:$0xf]
        %v442 = vld [vmem:[%s394 + $0x4c] sm:$0xf]
        %v443 = vld [vmem:[%s394 + $0x50] sm:$0x1]
        %v444 = vld [vmem:[%s394 + $0x54] sm:$0xf]
        %v445 = vld [vmem:[%s394 + $0x58] sm:$0xf]
        %v446 = vld [vmem:[%s394 + $0x5c] sm:$0x1]
        %v447 = vld [vmem:[%s394 + $0x60] sm:$0xf]
        %v448 = vld [vmem:[%s394 + $0x64] sm:$0xf]
        %v449 = vld [vmem:[%s394 + $0x68] sm:$0x1]
        %v450 = vld [vmem:[%s394 + $0x6c] sm:$0xf]
        %v451 = vld [vmem:[%s394 + $0x70] sm:$0xf]
        %v452 = vld [vmem:[%s394 + $0x74] sm:$0x1]
        %v453 = vld [vmem:[%s394 + $0x78] sm:$0xf]
        %v454 = vld [vmem:[%s394 + $0x7c] sm:$0xf]
        %v455 = vld [vmem:[%s394 + $0x80] sm:$0x1]
        %v456 = vld [vmem:[%s394 + $0x84] sm:$0xf]
        %v457 = vld [vmem:[%s394 + $0x88] sm:$0xf]
        %v458 = vld [vmem:[%s394 + $0x8c] sm:$0x1]
        %v459 = vld [vmem:[%s394 + $0x90] sm:$0xf]
        %v460 = vld [vmem:[%s394 + $0x94] sm:$0xf]
        %v461 = vld [vmem:[%s394 + $0x98] sm:$0x1]
        %v462 = vld [vmem:[%s394 + $0x9c] sm:$0xf]
        %v463 = vld [vmem:[%s394 + $0xa0] sm:$0xf]
        %v464 = vld [vmem:[%s394 + $0xa4] sm:$0x1]
        %v465 = vld [vmem:[%s394 + $0xa8] sm:$0xf]
        %v466 = vld [vmem:[%s394 + $0xac] sm:$0xf]
        %v467 = vld [vmem:[%s394 + $0xb0] sm:$0x1]
        %v468 = vld [vmem:[%s394 + $0xb4] sm:$0xf]
        %v469 = vld [vmem:[%s394 + $0xb8] sm:$0xf]
        %v470 = vld [vmem:[%s394 + $0xbc] sm:$0x1]
        %v471 = vld [vmem:[%s407] sm:$0xf]
        %v472 = vld [vmem:[%s407 + $0x4] sm:$0xf]
        %v473 = vld [vmem:[%s407 + $0x8] sm:$0x1]
        %v474 = vld [vmem:[%s407 + $0xc] sm:$0xf]
        %v475 = vld [vmem:[%s407 + $0x10] sm:$0xf]
        %v476 = vld [vmem:[%s407 + $0x14] sm:$0x1]
        %v513 = vunpack.c.l.b16 %v423
        %v514 = vunpack.c.l.b16 %v424
        %v515 = vunpack.c.l.b16 %v426
        %v516 = vunpack.c.l.b16 %v427
        %v517 = vunpack.c.l.b16 %v429
        %v518 = vunpack.c.l.b16 %v430
        %v519 = vunpack.c.l.b16 %v432
        %v520 = vunpack.c.l.b16 %v433
        %v521 = vunpack.c.l.b16 %v435
        %v522 = vunpack.c.l.b16 %v436
        %v523 = vunpack.c.l.b16 %v438
        %v524 = vunpack.c.l.b16 %v439
        %v525 = vunpack.c.l.b16 %v441
        %v526 = vunpack.c.l.b16 %v442
        %v527 = vunpack.c.l.b16 %v444
        %v528 = vunpack.c.l.b16 %v445
        %v529 = vunpack.c.l.b16 %v447
        %v530 = vunpack.c.l.b16 %v448
        %v531 = vunpack.c.l.b16 %v450
        %v532 = vunpack.c.l.b16 %v451
        %v533 = vunpack.c.l.b16 %v453
        %v534 = vunpack.c.l.b16 %v454
        %v535 = vunpack.c.l.b16 %v456
        %v536 = vunpack.c.l.b16 %v457
        %v537 = vunpack.c.l.b16 %v459
        %v538 = vunpack.c.l.b16 %v460
        %v539 = vunpack.c.l.b16 %v462
        %v540 = vunpack.c.l.b16 %v463
        %v541 = vunpack.c.l.b16 %v465
        %v542 = vunpack.c.l.b16 %v466
        %v543 = vunpack.c.l.b16 %v468
        %v544 = vunpack.c.l.b16 %v469
        %v545 = vunpack.c.l.b16 %v471
        %v546 = vunpack.c.l.b16 %v472
        %v547 = vunpack.c.l.b16 %v474
        %v548 = vunpack.c.l.b16 %v475
        %v549 = vpack.c.b16 %v514, %v513
        %v550 = vpack.c.b16 %v516, %v515
        %v551 = vpack.c.b16 %v518, %v517
        %v552 = vpack.c.b16 %v520, %v519
        %v553 = vpack.c.b16 %v522, %v521
        %v554 = vpack.c.b16 %v524, %v523
        %v555 = vpack.c.b16 %v526, %v525
        %v556 = vpack.c.b16 %v528, %v527
        %v557 = vpack.c.b16 %v530, %v529
        %v558 = vpack.c.b16 %v532, %v531
        %v559 = vpack.c.b16 %v534, %v533
        %v560 = vpack.c.b16 %v536, %v535
        %v561 = vpack.c.b16 %v538, %v537
        %v562 = vpack.c.b16 %v540, %v539
        %v563 = vpack.c.b16 %v542, %v541
        %v564 = vpack.c.b16 %v544, %v543
        %v565 = vpack.c.b16 %v546, %v545
        %v566 = vpack.c.b16 %v548, %v547
        %v585 = vunpack.c.l.b16 %v425
        %v586 = vunpack.c.l.b16 %v428
        %v587 = vunpack.c.l.b16 %v431
        %v588 = vunpack.c.l.b16 %v434
        %v589 = vunpack.c.l.b16 %v437
        %v590 = vunpack.c.l.b16 %v440
        %v591 = vunpack.c.l.b16 %v443
        %v592 = vunpack.c.l.b16 %v446
        %v593 = vunpack.c.l.b16 %v449
        %v594 = vunpack.c.l.b16 %v452
        %v595 = vunpack.c.l.b16 %v455
        %v596 = vunpack.c.l.b16 %v458
        %v597 = vunpack.c.l.b16 %v461
        %v598 = vunpack.c.l.b16 %v464
        %v599 = vunpack.c.l.b16 %v467
        %v600 = vunpack.c.l.b16 %v470
        %v601 = vunpack.c.l.b16 %v473
        %v602 = vunpack.c.l.b16 %v476
        %v603 = vpack.c.b16 %v585, %v585
        %v604 = vpack.c.b16 %v586, %v586
        %v605 = vpack.c.b16 %v587, %v587
        %v606 = vpack.c.b16 %v588, %v588
        %v607 = vpack.c.b16 %v589, %v589
        %v608 = vpack.c.b16 %v590, %v590
        %v609 = vpack.c.b16 %v591, %v591
        %v610 = vpack.c.b16 %v592, %v592
        %v611 = vpack.c.b16 %v593, %v593
        %v612 = vpack.c.b16 %v594, %v594
        %v613 = vpack.c.b16 %v595, %v595
        %v614 = vpack.c.b16 %v596, %v596
        %v615 = vpack.c.b16 %v597, %v597
        %v616 = vpack.c.b16 %v598, %v598
        %v617 = vpack.c.b16 %v599, %v599
        %v618 = vpack.c.b16 %v600, %v600
        %v619 = vpack.c.b16 %v601, %v601
        %v620 = vpack.c.b16 %v602, %v602
        %vm621 = vsmask.f32 7424
        %v623 = vshrl.u32 %v549, 16
        %v625 = vshll.u32 %v549, 16
        %v627 = vrot.slane %v625, 1
        %v628 = vor.u32 %v623, %v627
        %v630 = vshll.u32 %v603, 16
        %v632 = vrot.slane %v630, 1
        %v633 = vsel %vm621, %v628, %v632
        %v635 = vshrl.u32 %v550, 16
        %v637 = vshll.u32 %v550, 16
        %v639 = vrot.slane %v637, 1
        %v640 = vor.u32 %v635, %v639
        %v642 = vshll.u32 %v604, 16
        %v644 = vrot.slane %v642, 1
        %v645 = vsel %vm621, %v640, %v644
        %v647 = vshrl.u32 %v551, 16
        %v649 = vshll.u32 %v551, 16
        %v651 = vrot.slane %v649, 1
        %v652 = vor.u32 %v647, %v651
        %v654 = vshll.u32 %v605, 16
        %v656 = vrot.slane %v654, 1
        %v657 = vsel %vm621, %v652, %v656
        %v659 = vshrl.u32 %v552, 16
        %v661 = vshll.u32 %v552, 16
        %v663 = vrot.slane %v661, 1
        %v664 = vor.u32 %v659, %v663
        %v666 = vshll.u32 %v606, 16
        %v668 = vrot.slane %v666, 1
        %v669 = vsel %vm621, %v664, %v668
        %v671 = vshrl.u32 %v553, 16
        %v673 = vshll.u32 %v553, 16
        %v675 = vrot.slane %v673, 1
        %v676 = vor.u32 %v671, %v675
        %v678 = vshll.u32 %v607, 16
        %v680 = vrot.slane %v678, 1
        %v681 = vsel %vm621, %v676, %v680
        %v683 = vshrl.u32 %v554, 16
        %v685 = vshll.u32 %v554, 16
        %v687 = vrot.slane %v685, 1
        %v688 = vor.u32 %v683, %v687
        %v690 = vshll.u32 %v608, 16
        %v692 = vrot.slane %v690, 1
        %v693 = vsel %vm621, %v688, %v692
        %v695 = vshrl.u32 %v555, 16
        %v697 = vshll.u32 %v555, 16
        %v699 = vrot.slane %v697, 1
        %v700 = vor.u32 %v695, %v699
        %v702 = vshll.u32 %v609, 16
        %v704 = vrot.slane %v702, 1
        %v705 = vsel %vm621, %v700, %v704
        %v707 = vshrl.u32 %v556, 16
        %v709 = vshll.u32 %v556, 16
        %v711 = vrot.slane %v709, 1
        %v712 = vor.u32 %v707, %v711
        %v714 = vshll.u32 %v610, 16
        %v716 = vrot.slane %v714, 1
        %v717 = vsel %vm621, %v712, %v716
        %v719 = vshrl.u32 %v557, 16
        %v721 = vshll.u32 %v557, 16
        %v723 = vrot.slane %v721, 1
        %v724 = vor.u32 %v719, %v723
        %v726 = vshll.u32 %v611, 16
        %v728 = vrot.slane %v726, 1
        %v729 = vsel %vm621, %v724, %v728
        %v731 = vshrl.u32 %v558, 16
        %v733 = vshll.u32 %v558, 16
        %v735 = vrot.slane %v733, 1
        %v736 = vor.u32 %v731, %v735
        %v738 = vshll.u32 %v612, 16
        %v740 = vrot.slane %v738, 1
        %v741 = vsel %vm621, %v736, %v740
        %v743 = vshrl.u32 %v559, 16
        %v745 = vshll.u32 %v559, 16
        %v747 = vrot.slane %v745, 1
        %v748 = vor.u32 %v743, %v747
        %v750 = vshll.u32 %v613, 16
        %v752 = vrot.slane %v750, 1
        %v753 = vsel %vm621, %v748, %v752
        %v755 = vshrl.u32 %v560, 16
        %v757 = vshll.u32 %v560, 16
        %v759 = vrot.slane %v757, 1
        %v760 = vor.u32 %v755, %v759
        %v762 = vshll.u32 %v614, 16
        %v764 = vrot.slane %v762, 1
        %v765 = vsel %vm621, %v760, %v764
        %v767 = vshrl.u32 %v561, 16
        %v769 = vshll.u32 %v561, 16
        %v771 = vrot.slane %v769, 1
        %v772 = vor.u32 %v767, %v771
        %v774 = vshll.u32 %v615, 16
        %v776 = vrot.slane %v774, 1
        %v777 = vsel %vm621, %v772, %v776
        %v779 = vshrl.u32 %v562, 16
        %v781 = vshll.u32 %v562, 16
        %v783 = vrot.slane %v781, 1
        %v784 = vor.u32 %v779, %v783
        %v786 = vshll.u32 %v616, 16
        %v788 = vrot.slane %v786, 1
        %v789 = vsel %vm621, %v784, %v788
        %v791 = vshrl.u32 %v563, 16
        %v793 = vshll.u32 %v563, 16
        %v795 = vrot.slane %v793, 1
        %v796 = vor.u32 %v791, %v795
        %v798 = vshll.u32 %v617, 16
        %v800 = vrot.slane %v798, 1
        %v801 = vsel %vm621, %v796, %v800
        %v803 = vshrl.u32 %v564, 16
        %v805 = vshll.u32 %v564, 16
        %v807 = vrot.slane %v805, 1
        %v808 = vor.u32 %v803, %v807
        %v810 = vshll.u32 %v618, 16
        %v812 = vrot.slane %v810, 1
        %v813 = vsel %vm621, %v808, %v812
        %v815 = vshrl.u32 %v565, 16
        %v817 = vshll.u32 %v565, 16
        %v819 = vrot.slane %v817, 1
        %v820 = vor.u32 %v815, %v819
        %v822 = vshll.u32 %v619, 16
        %v824 = vrot.slane %v822, 1
        %v825 = vsel %vm621, %v820, %v824
        %v827 = vshrl.u32 %v566, 16
        %v829 = vshll.u32 %v566, 16
        %v831 = vrot.slane %v829, 1
        %v832 = vor.u32 %v827, %v831
        %v834 = vshll.u32 %v620, 16
        %v836 = vrot.slane %v834, 1
        %v837 = vsel %vm621, %v832, %v836
        %838 = vrot.lane.b32.xlu0 %v633, 8
        %v839 = vpop.permute.xlu0 %838
        %840 = vrot.lane.b32.xlu0 %v645, 8
        %v841 = vpop.permute.xlu0 %840
        %842 = vrot.lane.b32.xlu0 %v657, 8
        %v843 = vpop.permute.xlu0 %842
        %844 = vrot.lane.b32.xlu0 %v669, 8
        %v845 = vpop.permute.xlu0 %844
        %846 = vrot.lane.b32.xlu0 %v681, 8
        %v847 = vpop.permute.xlu0 %846
        %848 = vrot.lane.b32.xlu0 %v693, 8
        %v849 = vpop.permute.xlu0 %848
        %850 = vrot.lane.b32.xlu0 %v705, 8
        %v851 = vpop.permute.xlu0 %850
        %852 = vrot.lane.b32.xlu0 %v717, 8
        %v853 = vpop.permute.xlu0 %852
        %854 = vrot.lane.b32.xlu0 %v729, 8
        %v855 = vpop.permute.xlu0 %854
        %856 = vrot.lane.b32.xlu0 %v741, 8
        %v857 = vpop.permute.xlu0 %856
        %858 = vrot.lane.b32.xlu0 %v753, 8
        %v859 = vpop.permute.xlu0 %858
        %860 = vrot.lane.b32.xlu0 %v765, 8
        %v861 = vpop.permute.xlu0 %860
        %862 = vrot.lane.b32.xlu0 %v777, 8
        %v863 = vpop.permute.xlu0 %862
        %864 = vrot.lane.b32.xlu0 %v789, 8
        %v865 = vpop.permute.xlu0 %864
        %866 = vrot.lane.b32.xlu0 %v801, 8
        %v867 = vpop.permute.xlu0 %866
        %868 = vrot.lane.b32.xlu0 %v813, 8
        %v869 = vpop.permute.xlu0 %868
        %870 = vrot.lane.b32.xlu0 %v825, 8
        %v871 = vpop.permute.xlu0 %870
        %872 = vrot.lane.b32.xlu0 %v837, 8
        %v873 = vpop.permute.xlu0 %872
        %vm874 = vcmask 1046528
        %v875 = vrot.slane %v549, 1
        %v876 = vrot.slane %v603, 1
        %v877 = vsel %vm874, %v875, %v876
        %v878 = vrot.slane %v550, 1
        %v879 = vrot.slane %v604, 1
        %v880 = vsel %vm874, %v878, %v879
        %v881 = vrot.slane %v551, 1
        %v882 = vrot.slane %v605, 1
        %v883 = vsel %vm874, %v881, %v882
        %v884 = vrot.slane %v552, 1
        %v885 = vrot.slane %v606, 1
        %v886 = vsel %vm874, %v884, %v885
        %v887 = vrot.slane %v553, 1
        %v888 = vrot.slane %v607, 1
        %v889 = vsel %vm874, %v887, %v888
        %v890 = vrot.slane %v554, 1
        %v891 = vrot.slane %v608, 1
        %v892 = vsel %vm874, %v890, %v891
        %v893 = vrot.slane %v555, 1
        %v894 = vrot.slane %v609, 1
        %v895 = vsel %vm874, %v893, %v894
        %v896 = vrot.slane %v556, 1
        %v897 = vrot.slane %v610, 1
        %v898 = vsel %vm874, %v896, %v897
        %v899 = vrot.slane %v557, 1
        %v900 = vrot.slane %v611, 1
        %v901 = vsel %vm874, %v899, %v900
        %v902 = vrot.slane %v558, 1
        %v903 = vrot.slane %v612, 1
        %v904 = vsel %vm874, %v902, %v903
        %v905 = vrot.slane %v559, 1
        %v906 = vrot.slane %v613, 1
        %v907 = vsel %vm874, %v905, %v906
        %v908 = vrot.slane %v560, 1
        %v909 = vrot.slane %v614, 1
        %v910 = vsel %vm874, %v908, %v909
        %v911 = vrot.slane %v561, 1
        %v912 = vrot.slane %v615, 1
        %v913 = vsel %vm874, %v911, %v912
        %v914 = vrot.slane %v562, 1
        %v915 = vrot.slane %v616, 1
        %v916 = vsel %vm874, %v914, %v915
        %v917 = vrot.slane %v563, 1
        %v918 = vrot.slane %v617, 1
        %v919 = vsel %vm874, %v917, %v918
        %v920 = vrot.slane %v564, 1
        %v921 = vrot.slane %v618, 1
        %v922 = vsel %vm874, %v920, %v921
        %v923 = vrot.slane %v565, 1
        %v924 = vrot.slane %v619, 1
        %v925 = vsel %vm874, %v923, %v924
        %v926 = vrot.slane %v566, 1
        %v927 = vrot.slane %v620, 1
        %v928 = vsel %vm874, %v926, %v927
        %929 = vrot.lane.b32.xlu0 %v877, 16
        %v930 = vpop.permute.xlu0 %929
        %931 = vrot.lane.b32.xlu0 %v880, 16
        %v932 = vpop.permute.xlu0 %931
        %933 = vrot.lane.b32.xlu0 %v883, 16
        %v934 = vpop.permute.xlu0 %933
        %935 = vrot.lane.b32.xlu0 %v886, 16
        %v936 = vpop.permute.xlu0 %935
        %937 = vrot.lane.b32.xlu0 %v889, 16
        %v938 = vpop.permute.xlu0 %937
        %939 = vrot.lane.b32.xlu0 %v892, 16
        %v940 = vpop.permute.xlu0 %939
        %941 = vrot.lane.b32.xlu0 %v895, 16
        %v942 = vpop.permute.xlu0 %941
        %943 = vrot.lane.b32.xlu0 %v898, 16
        %v944 = vpop.permute.xlu0 %943
        %945 = vrot.lane.b32.xlu0 %v901, 16
        %v946 = vpop.permute.xlu0 %945
        %947 = vrot.lane.b32.xlu0 %v904, 16
        %v948 = vpop.permute.xlu0 %947
        %949 = vrot.lane.b32.xlu0 %v907, 16
        %v950 = vpop.permute.xlu0 %949
        %951 = vrot.lane.b32.xlu0 %v910, 16
        %v952 = vpop.permute.xlu0 %951
        %953 = vrot.lane.b32.xlu0 %v913, 16
        %v954 = vpop.permute.xlu0 %953
        %955 = vrot.lane.b32.xlu0 %v916, 16
        %v956 = vpop.permute.xlu0 %955
        %957 = vrot.lane.b32.xlu0 %v919, 16
        %v958 = vpop.permute.xlu0 %957
        %959 = vrot.lane.b32.xlu0 %v922, 16
        %v960 = vpop.permute.xlu0 %959
        %961 = vrot.lane.b32.xlu0 %v925, 16
        %v962 = vpop.permute.xlu0 %961
        %963 = vrot.lane.b32.xlu0 %v928, 16
        %v964 = vpop.permute.xlu0 %963
        %vm965 = vcmask 64512
        %v967 = vsel %vm965, %v549, %v839
        %v969 = vsel %vm965, %v550, %v841
        %v971 = vsel %vm965, %v551, %v843
        %v973 = vsel %vm965, %v552, %v845
        %v975 = vsel %vm965, %v553, %v847
        %v977 = vsel %vm965, %v554, %v849
        %v979 = vsel %vm965, %v555, %v851
        %v981 = vsel %vm965, %v556, %v853
        %v983 = vsel %vm965, %v557, %v855
        %v985 = vsel %vm965, %v558, %v857
        %v987 = vsel %vm965, %v559, %v859
        %v989 = vsel %vm965, %v560, %v861
        %v991 = vsel %vm965, %v561, %v863
        %v993 = vsel %vm965, %v562, %v865
        %v995 = vsel %vm965, %v563, %v867
        %v997 = vsel %vm965, %v564, %v869
        %v999 = vsel %vm965, %v565, %v871
        %v1001 = vsel %vm965, %v566, %v873
        %vm1002 = vcmask 130048
        %v1004 = vsel %vm1002, %v967, %v930
        %v1006 = vsel %vm1002, %v969, %v932
        %v1008 = vsel %vm1002, %v971, %v934
        %v1010 = vsel %vm1002, %v973, %v936
        %v1012 = vsel %vm1002, %v975, %v938
        %v1014 = vsel %vm1002, %v977, %v940
        %v1016 = vsel %vm1002, %v979, %v942
        %v1018 = vsel %vm1002, %v981, %v944
        %v1020 = vsel %vm1002, %v983, %v946
        %v1022 = vsel %vm1002, %v985, %v948
        %v1024 = vsel %vm1002, %v987, %v950
        %v1026 = vsel %vm1002, %v989, %v952
        %v1028 = vsel %vm1002, %v991, %v954
        %v1030 = vsel %vm1002, %v993, %v956
        %v1032 = vsel %vm1002, %v995, %v958
        %v1034 = vsel %vm1002, %v997, %v960
        %v1036 = vsel %vm1002, %v999, %v962
        %v1038 = vsel %vm1002, %v1001, %v964
        %v1039 = vld [vmem:[%s2] sm:$0xf]
        %v1040 = vld [vmem:[%s2 + $0x4] sm:$0xf]
        %v1041 = vld [vmem:[%s2 + $0x8] sm:$0xf]
        %s1042 = scalar_lea.vmem %s2, 12
        %v1043 = vld [vmem:[%s1042] sm:$0xf]
        %v1044 = vld [vmem:[%s1042 + $0x4] sm:$0xf]
        %v1045 = vld [vmem:[%s1042 + $0x8] sm:$0xf]
        %v1049 = vunpack.c.l.b16 %v1043
        %v1050 = vunpack.c.l.b16 %v1044
        %v1051 = vunpack.c.l.b16 %v1045
        %v1052 = vpack.c.b16 %v1050, %v1049
        %v1053 = vpack.c.b16 %v1051, %v1051
        %vm1055 = vcmask 195584
        %v1056 = vsel %vm1055, %v1006, 0
        %v1058 = vsel %vm1055, %v1008, 0
        %v1060 = vsel %vm1055, %v1010, 0
        %v1062 = vsel %vm1055, %v1012, 0
        %v1064 = vsel %vm1055, %v1014, 0
        %v1066 = vsel %vm1055, %v1016, 0
        %v1068 = vsel %vm1055, %v1018, 0
        %v1070 = vsel %vm1055, %v1020, 0
        %v1072 = vsel %vm1055, %v1022, 0
        %v1074 = vsel %vm1055, %v1024, 0
        %v1076 = vsel %vm1055, %v1026, 0
        %v1078 = vsel %vm1055, %v1028, 0
        %v1080 = vsel %vm1055, %v1030, 0
        %v1082 = vsel %vm1055, %v1032, 0
        %v1084 = vsel %vm1055, %v1034, 0
        %v1086 = vsel %vm1055, %v1036, 0
        %vm1088 = vcmask 1043456
        %v1090 = vsel %vm1088, %v1053, 0
        %1092 = vmatpush.bf16.msra.mxu0 0
        %1093 = vmatpush.bf16.msra.mxu0 0
        %1094 = vmatpush.bf16.msra.mxu0 0
        %1095 = vmatpush.bf16.msra.mxu0 0
        %1096 = vmatpush.bf16.msra.mxu0 0
        %1097 = vmatpush.bf16.msra.mxu0 0
        %1098 = vmatpush.bf16.msra.mxu0 %v1090
        %1099 = vmatpush.bf16.msra.mxu0 %v1052
        %1100 = vmatmul.bf16.gmra.mxu0 %v1056
        %v1101 = vpop.f32.mrf.mxu0
        %v1102 = vadd.f32 0.0, %v1101
        %v1103 = vpop.f32.mrf.mxu0
        %v1104 = vadd.f32 0.0, %v1103
        %1105 = vmatmul.bf16.gmra.mxu0 %v1058
        %v1106 = vpop.f32.mrf.mxu0
        %v1107 = vadd.f32 0.0, %v1106
        %v1108 = vpop.f32.mrf.mxu0
        %v1109 = vadd.f32 0.0, %v1108
        %1110 = vmatmul.bf16.gmra.mxu0 %v1060
        %v1111 = vpop.f32.mrf.mxu0
        %v1112 = vadd.f32 0.0, %v1111
        %v1113 = vpop.f32.mrf.mxu0
        %v1114 = vadd.f32 0.0, %v1113
        %1115 = vmatmul.bf16.gmra.mxu0 %v1062
        %v1116 = vpop.f32.mrf.mxu0
        %v1117 = vadd.f32 0.0, %v1116
        %v1118 = vpop.f32.mrf.mxu0
        %v1119 = vadd.f32 0.0, %v1118
        %1120 = vmatmul.bf16.gmra.mxu0 %v1064
        %v1121 = vpop.f32.mrf.mxu0
        %v1122 = vadd.f32 0.0, %v1121
        %v1123 = vpop.f32.mrf.mxu0
        %v1124 = vadd.f32 0.0, %v1123
        %1125 = vmatmul.bf16.gmra.mxu0 %v1066
        %v1126 = vpop.f32.mrf.mxu0
        %v1127 = vadd.f32 0.0, %v1126
        %v1128 = vpop.f32.mrf.mxu0
        %v1129 = vadd.f32 0.0, %v1128
        %1130 = vmatmul.bf16.gmra.mxu0 %v1068
        %v1131 = vpop.f32.mrf.mxu0
        %v1132 = vadd.f32 0.0, %v1131
        %v1133 = vpop.f32.mrf.mxu0
        %v1134 = vadd.f32 0.0, %v1133
        %1135 = vmatmul.bf16.gmra.mxu0 %v1070
        %v1136 = vpop.f32.mrf.mxu0
        %v1137 = vadd.f32 0.0, %v1136
        %v1138 = vpop.f32.mrf.mxu0
        %v1139 = vadd.f32 0.0, %v1138
        %1140 = vmatmul.bf16.gmra.mxu0 %v1072
        %v1141 = vpop.f32.mrf.mxu0
        %v1142 = vadd.f32 0.0, %v1141
        %v1143 = vpop.f32.mrf.mxu0
        %v1144 = vadd.f32 0.0, %v1143
        %1145 = vmatmul.bf16.gmra.mxu0 %v1074
        %v1146 = vpop.f32.mrf.mxu0
        %v1147 = vadd.f32 0.0, %v1146
        %v1148 = vpop.f32.mrf.mxu0
        %v1149 = vadd.f32 0.0, %v1148
        %1150 = vmatmul.bf16.gmra.mxu0 %v1076
        %v1151 = vpop.f32.mrf.mxu0
        %v1152 = vadd.f32 0.0, %v1151
        %v1153 = vpop.f32.mrf.mxu0
        %v1154 = vadd.f32 0.0, %v1153
        %1155 = vmatmul.bf16.gmra.mxu0 %v1078
        %v1156 = vpop.f32.mrf.mxu0
        %v1157 = vadd.f32 0.0, %v1156
        %v1158 = vpop.f32.mrf.mxu0
        %v1159 = vadd.f32 0.0, %v1158
        %1160 = vmatmul.bf16.gmra.mxu0 %v1080
        %v1161 = vpop.f32.mrf.mxu0
        %v1162 = vadd.f32 0.0, %v1161
        %v1163 = vpop.f32.mrf.mxu0
        %v1164 = vadd.f32 0.0, %v1163
        %1165 = vmatmul.bf16.gmra.mxu0 %v1082
        %v1166 = vpop.f32.mrf.mxu0
        %v1167 = vadd.f32 0.0, %v1166
        %v1168 = vpop.f32.mrf.mxu0
        %v1169 = vadd.f32 0.0, %v1168
        %1170 = vmatmul.bf16.gmra.mxu0 %v1084
        %v1171 = vpop.f32.mrf.mxu0
        %v1172 = vadd.f32 0.0, %v1171
        %v1173 = vpop.f32.mrf.mxu0
        %v1174 = vadd.f32 0.0, %v1173
        %1175 = vmatmul.bf16.gmra.mxu0 %v1086
        %v1176 = vpop.f32.mrf.mxu0
        %v1177 = vadd.f32 0.0, %v1176
        %v1178 = vpop.f32.mrf.mxu0
        %v1179 = vadd.f32 0.0, %v1178
        %1180 = vdwg.mxu0
        %v1184 = vunpack.c.l.b16 %v1039
        %v1185 = vunpack.c.l.b16 %v1040
        %v1186 = vunpack.c.l.b16 %v1041
        %v1187 = vpack.c.b16 %v1185, %v1184
        %v1188 = vpack.c.b16 %v1186, %v1186
        %v1190 = vsel %vm1055, %v1004, 0
        %v1193 = vsel %vm1088, %v1188, 0
        %1195 = vmatpush.bf16.msra.mxu0 0
        %1196 = vmatpush.bf16.msra.mxu0 0
        %1197 = vmatpush.bf16.msra.mxu0 0
        %1198 = vmatpush.bf16.msra.mxu0 0
        %1199 = vmatpush.bf16.msra.mxu0 0
        %1200 = vmatpush.bf16.msra.mxu0 0
        %1201 = vmatpush.bf16.msra.mxu0 %v1193
        %1202 = vmatpush.bf16.msra.mxu0 %v1187
        %1203 = vmatmul.bf16.gmra.mxu0 %v1190
        %v1204 = vpop.f32.mrf.mxu0
        %v1205 = vadd.f32 %v1102, %v1204
        %v1206 = vpop.f32.mrf.mxu0
        %v1207 = vadd.f32 %v1104, %v1206
        %1208 = vmatmul.bf16.gmra.mxu0 %v1056
        %v1209 = vpop.f32.mrf.mxu0
        %v1210 = vadd.f32 %v1107, %v1209
        %v1211 = vpop.f32.mrf.mxu0
        %v1212 = vadd.f32 %v1109, %v1211
        %1213 = vmatmul.bf16.gmra.mxu0 %v1058
        %v1214 = vpop.f32.mrf.mxu0
        %v1215 = vadd.f32 %v1112, %v1214
        %v1216 = vpop.f32.mrf.mxu0
        %v1217 = vadd.f32 %v1114, %v1216
        %1218 = vmatmul.bf16.gmra.mxu0 %v1060
        %v1219 = vpop.f32.mrf.mxu0
        %v1220 = vadd.f32 %v1117, %v1219
        %v1221 = vpop.f32.mrf.mxu0
        %v1222 = vadd.f32 %v1119, %v1221
        %1223 = vmatmul.bf16.gmra.mxu0 %v1062
        %v1224 = vpop.f32.mrf.mxu0
        %v1225 = vadd.f32 %v1122, %v1224
        %v1226 = vpop.f32.mrf.mxu0
        %v1227 = vadd.f32 %v1124, %v1226
        %1228 = vmatmul.bf16.gmra.mxu0 %v1064
        %v1229 = vpop.f32.mrf.mxu0
        %v1230 = vadd.f32 %v1127, %v1229
        %v1231 = vpop.f32.mrf.mxu0
        %v1232 = vadd.f32 %v1129, %v1231
        %1233 = vmatmul.bf16.gmra.mxu0 %v1066
        %v1234 = vpop.f32.mrf.mxu0
        %v1235 = vadd.f32 %v1132, %v1234
        %v1236 = vpop.f32.mrf.mxu0
        %v1237 = vadd.f32 %v1134, %v1236
        %1238 = vmatmul.bf16.gmra.mxu0 %v1068
        %v1239 = vpop.f32.mrf.mxu0
        %v1240 = vadd.f32 %v1137, %v1239
        %v1241 = vpop.f32.mrf.mxu0
        %v1242 = vadd.f32 %v1139, %v1241
        %1243 = vmatmul.bf16.gmra.mxu0 %v1070
        %v1244 = vpop.f32.mrf.mxu0
        %v1245 = vadd.f32 %v1142, %v1244
        %v1246 = vpop.f32.mrf.mxu0
        %v1247 = vadd.f32 %v1144, %v1246
        %1248 = vmatmul.bf16.gmra.mxu0 %v1072
        %v1249 = vpop.f32.mrf.mxu0
        %v1250 = vadd.f32 %v1147, %v1249
        %v1251 = vpop.f32.mrf.mxu0
        %v1252 = vadd.f32 %v1149, %v1251
        %1253 = vmatmul.bf16.gmra.mxu0 %v1074
        %v1254 = vpop.f32.mrf.mxu0
        %v1255 = vadd.f32 %v1152, %v1254
        %v1256 = vpop.f32.mrf.mxu0
        %v1257 = vadd.f32 %v1154, %v1256
        %1258 = vmatmul.bf16.gmra.mxu0 %v1076
        %v1259 = vpop.f32.mrf.mxu0
        %v1260 = vadd.f32 %v1157, %v1259
        %v1261 = vpop.f32.mrf.mxu0
        %v1262 = vadd.f32 %v1159, %v1261
        %1263 = vmatmul.bf16.gmra.mxu0 %v1078
        %v1264 = vpop.f32.mrf.mxu0
        %v1265 = vadd.f32 %v1162, %v1264
        %v1266 = vpop.f32.mrf.mxu0
        %v1267 = vadd.f32 %v1164, %v1266
        %1268 = vmatmul.bf16.gmra.mxu0 %v1080
        %v1269 = vpop.f32.mrf.mxu0
        %v1270 = vadd.f32 %v1167, %v1269
        %v1271 = vpop.f32.mrf.mxu0
        %v1272 = vadd.f32 %v1169, %v1271
        %1273 = vmatmul.bf16.gmra.mxu0 %v1082
        %v1274 = vpop.f32.mrf.mxu0
        %v1275 = vadd.f32 %v1172, %v1274
        %v1276 = vpop.f32.mrf.mxu0
        %v1277 = vadd.f32 %v1174, %v1276
        %1278 = vmatmul.bf16.gmra.mxu0 %v1084
        %v1279 = vpop.f32.mrf.mxu0
        %v1280 = vadd.f32 %v1177, %v1279
        %v1281 = vpop.f32.mrf.mxu0
        %v1282 = vadd.f32 %v1179, %v1281
        %1283 = vdwg.mxu0
        %s1284 = scalar_lea.vmem %s2, 24
        %v1285 = vld [vmem:[%s1284] sm:$0xf]
        %v1286 = vld [vmem:[%s1284 + $0x4] sm:$0xf]
        %v1287 = vld [vmem:[%s1284 + $0x8] sm:$0xf]
        %v1291 = vunpack.c.l.b16 %v1285
        %v1292 = vunpack.c.l.b16 %v1286
        %v1293 = vunpack.c.l.b16 %v1287
        %v1294 = vpack.c.b16 %v1292, %v1291
        %v1295 = vpack.c.b16 %v1293, %v1293
        %v1297 = vsel %vm1055, %v1038, 0
        %v1300 = vsel %vm1088, %v1295, 0
        %1302 = vmatpush.bf16.msra.mxu0 0
        %1303 = vmatpush.bf16.msra.mxu0 0
        %1304 = vmatpush.bf16.msra.mxu0 0
        %1305 = vmatpush.bf16.msra.mxu0 0
        %1306 = vmatpush.bf16.msra.mxu0 0
        %1307 = vmatpush.bf16.msra.mxu0 0
        %1308 = vmatpush.bf16.msra.mxu0 %v1300
        %1309 = vmatpush.bf16.msra.mxu0 %v1294
        %1310 = vmatmul.bf16.gmra.mxu0 %v1058
        %v1311 = vpop.f32.mrf.mxu0
        %v1312 = vadd.f32 0.0, %v1311
        %v1313 = vpop.f32.mrf.mxu0
        %v1314 = vadd.f32 0.0, %v1313
        %1315 = vmatmul.bf16.gmra.mxu0 %v1060
        %v1316 = vpop.f32.mrf.mxu0
        %v1317 = vadd.f32 0.0, %v1316
        %v1318 = vpop.f32.mrf.mxu0
        %v1319 = vadd.f32 0.0, %v1318
        %1320 = vmatmul.bf16.gmra.mxu0 %v1062
        %v1321 = vpop.f32.mrf.mxu0
        %v1322 = vadd.f32 0.0, %v1321
        %v1323 = vpop.f32.mrf.mxu0
        %v1324 = vadd.f32 0.0, %v1323
        %1325 = vmatmul.bf16.gmra.mxu0 %v1064
        %v1326 = vpop.f32.mrf.mxu0
        %v1327 = vadd.f32 0.0, %v1326
        %v1328 = vpop.f32.mrf.mxu0
        %v1329 = vadd.f32 0.0, %v1328
        %1330 = vmatmul.bf16.gmra.mxu0 %v1066
        %v1331 = vpop.f32.mrf.mxu0
        %v1332 = vadd.f32 0.0, %v1331
        %v1333 = vpop.f32.mrf.mxu0
        %v1334 = vadd.f32 0.0, %v1333
        %1335 = vmatmul.bf16.gmra.mxu0 %v1068
        %v1336 = vpop.f32.mrf.mxu0
        %v1337 = vadd.f32 0.0, %v1336
        %v1338 = vpop.f32.mrf.mxu0
        %v1339 = vadd.f32 0.0, %v1338
        %1340 = vmatmul.bf16.gmra.mxu0 %v1070
        %v1341 = vpop.f32.mrf.mxu0
        %v1342 = vadd.f32 0.0, %v1341
        %v1343 = vpop.f32.mrf.mxu0
        %v1344 = vadd.f32 0.0, %v1343
        %1345 = vmatmul.bf16.gmra.mxu0 %v1072
        %v1346 = vpop.f32.mrf.mxu0
        %v1347 = vadd.f32 0.0, %v1346
        %v1348 = vpop.f32.mrf.mxu0
        %v1349 = vadd.f32 0.0, %v1348
        %1350 = vmatmul.bf16.gmra.mxu0 %v1074
        %v1351 = vpop.f32.mrf.mxu0
        %v1352 = vadd.f32 0.0, %v1351
        %v1353 = vpop.f32.mrf.mxu0
        %v1354 = vadd.f32 0.0, %v1353
        %1355 = vmatmul.bf16.gmra.mxu0 %v1076
        %v1356 = vpop.f32.mrf.mxu0
        %v1357 = vadd.f32 0.0, %v1356
        %v1358 = vpop.f32.mrf.mxu0
        %v1359 = vadd.f32 0.0, %v1358
        %1360 = vmatmul.bf16.gmra.mxu0 %v1078
        %v1361 = vpop.f32.mrf.mxu0
        %v1362 = vadd.f32 0.0, %v1361
        %v1363 = vpop.f32.mrf.mxu0
        %v1364 = vadd.f32 0.0, %v1363
        %1365 = vmatmul.bf16.gmra.mxu0 %v1080
        %v1366 = vpop.f32.mrf.mxu0
        %v1367 = vadd.f32 0.0, %v1366
        %v1368 = vpop.f32.mrf.mxu0
        %v1369 = vadd.f32 0.0, %v1368
        %1370 = vmatmul.bf16.gmra.mxu0 %v1082
        %v1371 = vpop.f32.mrf.mxu0
        %v1372 = vadd.f32 0.0, %v1371
        %v1373 = vpop.f32.mrf.mxu0
        %v1374 = vadd.f32 0.0, %v1373
        %1375 = vmatmul.bf16.gmra.mxu0 %v1084
        %v1376 = vpop.f32.mrf.mxu0
        %v1377 = vadd.f32 0.0, %v1376
        %v1378 = vpop.f32.mrf.mxu0
        %v1379 = vadd.f32 0.0, %v1378
        %1380 = vmatmul.bf16.gmra.mxu0 %v1086
        %v1381 = vpop.f32.mrf.mxu0
        %v1382 = vadd.f32 0.0, %v1381
        %v1383 = vpop.f32.mrf.mxu0
        %v1384 = vadd.f32 0.0, %v1383
        %1385 = vmatmul.bf16.gmra.mxu0 %v1297
        %v1386 = vpop.f32.mrf.mxu0
        %v1387 = vadd.f32 0.0, %v1386
        %v1388 = vpop.f32.mrf.mxu0
        %v1389 = vadd.f32 0.0, %v1388
        %1390 = vdwg.mxu0
        %v1391 = vadd.f32 %v1205, %v1312
        %v1392 = vadd.f32 %v1207, %v1314
        %v1393 = vadd.f32 %v1210, %v1317
        %v1394 = vadd.f32 %v1212, %v1319
        %v1395 = vadd.f32 %v1215, %v1322
        %v1396 = vadd.f32 %v1217, %v1324
        %v1397 = vadd.f32 %v1220, %v1327
        %v1398 = vadd.f32 %v1222, %v1329
        %v1399 = vadd.f32 %v1225, %v1332
        %v1400 = vadd.f32 %v1227, %v1334
        %v1401 = vadd.f32 %v1230, %v1337
        %v1402 = vadd.f32 %v1232, %v1339
        %v1403 = vadd.f32 %v1235, %v1342
        %v1404 = vadd.f32 %v1237, %v1344
        %v1405 = vadd.f32 %v1240, %v1347
        %v1406 = vadd.f32 %v1242, %v1349
        %v1407 = vadd.f32 %v1245, %v1352
        %v1408 = vadd.f32 %v1247, %v1354
        %v1409 = vadd.f32 %v1250, %v1357
        %v1410 = vadd.f32 %v1252, %v1359
        %v1411 = vadd.f32 %v1255, %v1362
        %v1412 = vadd.f32 %v1257, %v1364
        %v1413 = vadd.f32 %v1260, %v1367
        %v1414 = vadd.f32 %v1262, %v1369
        %v1415 = vadd.f32 %v1265, %v1372
        %v1416 = vadd.f32 %v1267, %v1374
        %v1417 = vadd.f32 %v1270, %v1377
        %v1418 = vadd.f32 %v1272, %v1379
        %v1419 = vadd.f32 %v1275, %v1382
        %v1420 = vadd.f32 %v1277, %v1384
        %v1421 = vadd.f32 %v1280, %v1387
        %v1422 = vadd.f32 %v1282, %v1389
        %v1423 = vld [vmem:[#allocation2] sm:$0x1]
        %v1425 = vperm.slane %v1423, 0
        %v1427 = vadd.f32 %v1391, %v1425
        %v1428 = vadd.f32 %v1392, %v1425
        %v1429 = vadd.f32 %v1393, %v1425
        %v1430 = vadd.f32 %v1394, %v1425
        %v1431 = vadd.f32 %v1395, %v1425
        %v1432 = vadd.f32 %v1396, %v1425
        %v1433 = vadd.f32 %v1397, %v1425
        %v1434 = vadd.f32 %v1398, %v1425
        %v1435 = vadd.f32 %v1399, %v1425
        %v1436 = vadd.f32 %v1400, %v1425
        %v1437 = vadd.f32 %v1401, %v1425
        %v1438 = vadd.f32 %v1402, %v1425
        %v1439 = vadd.f32 %v1403, %v1425
        %v1440 = vadd.f32 %v1404, %v1425
        %v1441 = vadd.f32 %v1405, %v1425
        %v1442 = vadd.f32 %v1406, %v1425
        %v1443 = vadd.f32 %v1407, %v1425
        %v1444 = vadd.f32 %v1408, %v1425
        %v1445 = vadd.f32 %v1409, %v1425
        %v1446 = vadd.f32 %v1410, %v1425
        %v1447 = vadd.f32 %v1411, %v1425
        %v1448 = vadd.f32 %v1412, %v1425
        %v1449 = vadd.f32 %v1413, %v1425
        %v1450 = vadd.f32 %v1414, %v1425
        %v1451 = vadd.f32 %v1415, %v1425
        %v1452 = vadd.f32 %v1416, %v1425
        %v1453 = vadd.f32 %v1417, %v1425
        %v1454 = vadd.f32 %v1418, %v1425
        %v1455 = vadd.f32 %v1419, %v1425
        %v1456 = vadd.f32 %v1420, %v1425
        %v1457 = vadd.f32 %v1421, %v1425
        %v1458 = vadd.f32 %v1422, %v1425
        %v1459 = vmul.f32 %v1427, %v1427
        %v1460 = vmul.f32 %v1428, %v1428
        %v1461 = vmul.f32 %v1429, %v1429
        %v1462 = vmul.f32 %v1430, %v1430
        %v1463 = vmul.f32 %v1431, %v1431
        %v1464 = vmul.f32 %v1432, %v1432
        %v1465 = vmul.f32 %v1433, %v1433
        %v1466 = vmul.f32 %v1434, %v1434
        %v1467 = vmul.f32 %v1435, %v1435
        %v1468 = vmul.f32 %v1436, %v1436
        %v1469 = vmul.f32 %v1437, %v1437
        %v1470 = vmul.f32 %v1438, %v1438
        %v1471 = vmul.f32 %v1439, %v1439
        %v1472 = vmul.f32 %v1440, %v1440
        %v1473 = vmul.f32 %v1441, %v1441
        %v1474 = vmul.f32 %v1442, %v1442
        %v1475 = vmul.f32 %v1443, %v1443
        %v1476 = vmul.f32 %v1444, %v1444
        %v1477 = vmul.f32 %v1445, %v1445
        %v1478 = vmul.f32 %v1446, %v1446
        %v1479 = vmul.f32 %v1447, %v1447
        %v1480 = vmul.f32 %v1448, %v1448
        %v1481 = vmul.f32 %v1449, %v1449
        %v1482 = vmul.f32 %v1450, %v1450
        %v1483 = vmul.f32 %v1451, %v1451
        %v1484 = vmul.f32 %v1452, %v1452
        %v1485 = vmul.f32 %v1453, %v1453
        %v1486 = vmul.f32 %v1454, %v1454
        %v1487 = vmul.f32 %v1455, %v1455
        %v1488 = vmul.f32 %v1456, %v1456
        %v1489 = vmul.f32 %v1457, %v1457
        %v1490 = vmul.f32 %v1458, %v1458
        %v1491 = vpack.c.bf16 %v1460, %v1459
        %v1492 = vpack.c.bf16 %v1462, %v1461
        %v1493 = vpack.c.bf16 %v1464, %v1463
        %v1494 = vpack.c.bf16 %v1466, %v1465
        %v1495 = vpack.c.bf16 %v1468, %v1467
        %v1496 = vpack.c.bf16 %v1470, %v1469
        %v1497 = vpack.c.bf16 %v1472, %v1471
        %v1498 = vpack.c.bf16 %v1474, %v1473
        %v1499 = vpack.c.bf16 %v1476, %v1475
        %v1500 = vpack.c.bf16 %v1478, %v1477
        %v1501 = vpack.c.bf16 %v1480, %v1479
        %v1502 = vpack.c.bf16 %v1482, %v1481
        %v1503 = vpack.c.bf16 %v1484, %v1483
        %v1504 = vpack.c.bf16 %v1486, %v1485
        %v1505 = vpack.c.bf16 %v1488, %v1487
        %v1506 = vpack.c.bf16 %v1490, %v1489
        %v1507 = vld [vmem:[#allocation4] sm:$0xf]
        %v1508 = vld [vmem:[#allocation4 + $0x4] sm:$0xf]
        %v1509 = vld [vmem:[#allocation6] sm:$0x1]
        %v1511 = vperm.slane %v1509, 0
        %v1515 = vunpack.c.l.b16 %v1507
        %v1516 = vunpack.c.l.b16 %v1508
        %v1517 = vpack.c.b16 %v1516, %v1515
        %v1520 = vsel %vm1002, %v1491, 0
        %v1523 = vsel %vm1002, %v1492, 0
        %v1526 = vsel %vm1002, %v1493, 0
        %v1529 = vsel %vm1002, %v1494, 0
        %v1532 = vsel %vm1002, %v1495, 0
        %v1535 = vsel %vm1002, %v1496, 0
        %v1538 = vsel %vm1002, %v1497, 0
        %v1541 = vsel %vm1002, %v1498, 0
        %v1544 = vsel %vm1002, %v1499, 0
        %v1547 = vsel %vm1002, %v1500, 0
        %v1550 = vsel %vm1002, %v1501, 0
        %v1553 = vsel %vm1002, %v1502, 0
        %v1556 = vsel %vm1002, %v1503, 0
        %v1559 = vsel %vm1002, %v1504, 0
        %v1562 = vsel %vm1002, %v1505, 0
        %v1565 = vsel %vm1002, %v1506, 0
        %1567 = vmatpush.bf16.msra.mxu0 0
        %1568 = vmatpush.bf16.msra.mxu0 0
        %1569 = vmatpush.bf16.msra.mxu0 0
        %1570 = vmatpush.bf16.msra.mxu0 0
        %1571 = vmatpush.bf16.msra.mxu0 0
        %1572 = vmatpush.bf16.msra.mxu0 0
        %1573 = vmatpush.bf16.msra.mxu0 0
        %1574 = vmatpush.bf16.msra.mxu0 %v1517
        %1575 = vmatmul.bf16.gmra.mxu0 %v1520
        %v1576 = vpop.f32.mrf.mxu0
        %v1577 = vadd.f32 %v1511, %v1576
        %v1578 = vpop.f32.mrf.mxu0
        %v1579 = vadd.f32 %v1511, %v1578
        %1580 = vmatmul.bf16.gmra.mxu0 %v1523
        %v1581 = vpop.f32.mrf.mxu0
        %v1582 = vadd.f32 %v1511, %v1581
        %v1583 = vpop.f32.mrf.mxu0
        %v1584 = vadd.f32 %v1511, %v1583
        %1585 = vmatmul.bf16.gmra.mxu0 %v1526
        %v1586 = vpop.f32.mrf.mxu0
        %v1587 = vadd.f32 %v1511, %v1586
        %v1588 = vpop.f32.mrf.mxu0
        %v1589 = vadd.f32 %v1511, %v1588
        %1590 = vmatmul.bf16.gmra.mxu0 %v1529
        %v1591 = vpop.f32.mrf.mxu0
        %v1592 = vadd.f32 %v1511, %v1591
        %v1593 = vpop.f32.mrf.mxu0
        %v1594 = vadd.f32 %v1511, %v1593
        %1595 = vmatmul.bf16.gmra.mxu0 %v1532
        %v1596 = vpop.f32.mrf.mxu0
        %v1597 = vadd.f32 %v1511, %v1596
        %v1598 = vpop.f32.mrf.mxu0
        %v1599 = vadd.f32 %v1511, %v1598
        %1600 = vmatmul.bf16.gmra.mxu0 %v1535
        %v1601 = vpop.f32.mrf.mxu0
        %v1602 = vadd.f32 %v1511, %v1601
        %v1603 = vpop.f32.mrf.mxu0
        %v1604 = vadd.f32 %v1511, %v1603
        %1605 = vmatmul.bf16.gmra.mxu0 %v1538
        %v1606 = vpop.f32.mrf.mxu0
        %v1607 = vadd.f32 %v1511, %v1606
        %v1608 = vpop.f32.mrf.mxu0
        %v1609 = vadd.f32 %v1511, %v1608
        %1610 = vmatmul.bf16.gmra.mxu0 %v1541
        %v1611 = vpop.f32.mrf.mxu0
        %v1612 = vadd.f32 %v1511, %v1611
        %v1613 = vpop.f32.mrf.mxu0
        %v1614 = vadd.f32 %v1511, %v1613
        %1615 = vmatmul.bf16.gmra.mxu0 %v1544
        %v1616 = vpop.f32.mrf.mxu0
        %v1617 = vadd.f32 %v1511, %v1616
        %v1618 = vpop.f32.mrf.mxu0
        %v1619 = vadd.f32 %v1511, %v1618
        %1620 = vmatmul.bf16.gmra.mxu0 %v1547
        %v1621 = vpop.f32.mrf.mxu0
        %v1622 = vadd.f32 %v1511, %v1621
        %v1623 = vpop.f32.mrf.mxu0
        %v1624 = vadd.f32 %v1511, %v1623
        %1625 = vmatmul.bf16.gmra.mxu0 %v1550
        %v1626 = vpop.f32.mrf.mxu0
        %v1627 = vadd.f32 %v1511, %v1626
        %v1628 = vpop.f32.mrf.mxu0
        %v1629 = vadd.f32 %v1511, %v1628
        %1630 = vmatmul.bf16.gmra.mxu0 %v1553
        %v1631 = vpop.f32.mrf.mxu0
        %v1632 = vadd.f32 %v1511, %v1631
        %v1633 = vpop.f32.mrf.mxu0
        %v1634 = vadd.f32 %v1511, %v1633
        %1635 = vmatmul.bf16.gmra.mxu0 %v1556
        %v1636 = vpop.f32.mrf.mxu0
        %v1637 = vadd.f32 %v1511, %v1636
        %v1638 = vpop.f32.mrf.mxu0
        %v1639 = vadd.f32 %v1511, %v1638
        %1640 = vmatmul.bf16.gmra.mxu0 %v1559
        %v1641 = vpop.f32.mrf.mxu0
        %v1642 = vadd.f32 %v1511, %v1641
        %v1643 = vpop.f32.mrf.mxu0
        %v1644 = vadd.f32 %v1511, %v1643
        %1645 = vmatmul.bf16.gmra.mxu0 %v1562
        %v1646 = vpop.f32.mrf.mxu0
        %v1647 = vadd.f32 %v1511, %v1646
        %v1648 = vpop.f32.mrf.mxu0
        %v1649 = vadd.f32 %v1511, %v1648
        %1650 = vmatmul.bf16.gmra.mxu0 %v1565
        %v1651 = vpop.f32.mrf.mxu0
        %v1652 = vadd.f32 %v1511, %v1651
        %v1653 = vpop.f32.mrf.mxu0
        %v1654 = vadd.f32 %v1511, %v1653
        %1655 = vdwg.mxu0
        %v1656 = vrsqrt.pop %v1577
        %v1657 = vmul.f32 %v1656, %v1577
        %v1658 = vmul.f32 %v1657, %v1656
        %v1659 = vmul.f32 0.5, %v1658
        %v1660 = vsub.f32 1.5, %v1659
        %v1661 = vmul.f32 %v1656, %v1660
        %v1662 = vmul.f32 %v1577, %v1661
        %vm1663 = vcmp.eq.f32.partialorder %v1577, inf
        %v1664 = vsel %vm1663, %v1577, %v1662
        %vm1665 = vcmp.eq.f32.partialorder %v1577, 0.0
        %v1666 = vand.u32 %v1577, 2147483648
        %v1667 = vsel %vm1665, %v1666, %v1664
        %v1668 = vrsqrt.pop %v1579
        %v1669 = vmul.f32 %v1668, %v1579
        %v1670 = vmul.f32 %v1669, %v1668
        %v1671 = vmul.f32 0.5, %v1670
        %v1672 = vsub.f32 1.5, %v1671
        %v1673 = vmul.f32 %v1668, %v1672
        %v1674 = vmul.f32 %v1579, %v1673
        %vm1675 = vcmp.eq.f32.partialorder %v1579, inf
        %v1676 = vsel %vm1675, %v1579, %v1674
        %vm1677 = vcmp.eq.f32.partialorder %v1579, 0.0
        %v1678 = vand.u32 %v1579, 2147483648
        %v1679 = vsel %vm1677, %v1678, %v1676
        %v1680 = vrsqrt.pop %v1582
        %v1681 = vmul.f32 %v1680, %v1582
        %v1682 = vmul.f32 %v1681, %v1680
        %v1683 = vmul.f32 0.5, %v1682
        %v1684 = vsub.f32 1.5, %v1683
        %v1685 = vmul.f32 %v1680, %v1684
        %v1686 = vmul.f32 %v1582, %v1685
        %vm1687 = vcmp.eq.f32.partialorder %v1582, inf
        %v1688 = vsel %vm1687, %v1582, %v1686
        %vm1689 = vcmp.eq.f32.partialorder %v1582, 0.0
        %v1690 = vand.u32 %v1582, 2147483648
        %v1691 = vsel %vm1689, %v1690, %v1688
        %v1692 = vrsqrt.pop %v1584
        %v1693 = vmul.f32 %v1692, %v1584
        %v1694 = vmul.f32 %v1693, %v1692
        %v1695 = vmul.f32 0.5, %v1694
        %v1696 = vsub.f32 1.5, %v1695
        %v1697 = vmul.f32 %v1692, %v1696
        %v1698 = vmul.f32 %v1584, %v1697
        %vm1699 = vcmp.eq.f32.partialorder %v1584, inf
        %v1700 = vsel %vm1699, %v1584, %v1698
        %vm1701 = vcmp.eq.f32.partialorder %v1584, 0.0
        %v1702 = vand.u32 %v1584, 2147483648
        %v1703 = vsel %vm1701, %v1702, %v1700
        %v1704 = vrsqrt.pop %v1587
        %v1705 = vmul.f32 %v1704, %v1587
        %v1706 = vmul.f32 %v1705, %v1704
        %v1707 = vmul.f32 0.5, %v1706
        %v1708 = vsub.f32 1.5, %v1707
        %v1709 = vmul.f32 %v1704, %v1708
        %v1710 = vmul.f32 %v1587, %v1709
        %vm1711 = vcmp.eq.f32.partialorder %v1587, inf
        %v1712 = vsel %vm1711, %v1587, %v1710
        %vm1713 = vcmp.eq.f32.partialorder %v1587, 0.0
        %v1714 = vand.u32 %v1587, 2147483648
        %v1715 = vsel %vm1713, %v1714, %v1712
        %v1716 = vrsqrt.pop %v1589
        %v1717 = vmul.f32 %v1716, %v1589
        %v1718 = vmul.f32 %v1717, %v1716
        %v1719 = vmul.f32 0.5, %v1718
        %v1720 = vsub.f32 1.5, %v1719
        %v1721 = vmul.f32 %v1716, %v1720
        %v1722 = vmul.f32 %v1589, %v1721
        %vm1723 = vcmp.eq.f32.partialorder %v1589, inf
        %v1724 = vsel %vm1723, %v1589, %v1722
        %vm1725 = vcmp.eq.f32.partialorder %v1589, 0.0
        %v1726 = vand.u32 %v1589, 2147483648
        %v1727 = vsel %vm1725, %v1726, %v1724
        %v1728 = vrsqrt.pop %v1592
        %v1729 = vmul.f32 %v1728, %v1592
        %v1730 = vmul.f32 %v1729, %v1728
        %v1731 = vmul.f32 0.5, %v1730
        %v1732 = vsub.f32 1.5, %v1731
        %v1733 = vmul.f32 %v1728, %v1732
        %v1734 = vmul.f32 %v1592, %v1733
        %vm1735 = vcmp.eq.f32.partialorder %v1592, inf
        %v1736 = vsel %vm1735, %v1592, %v1734
        %vm1737 = vcmp.eq.f32.partialorder %v1592, 0.0
        %v1738 = vand.u32 %v1592, 2147483648
        %v1739 = vsel %vm1737, %v1738, %v1736
        %v1740 = vrsqrt.pop %v1594
        %v1741 = vmul.f32 %v1740, %v1594
        %v1742 = vmul.f32 %v1741, %v1740
        %v1743 = vmul.f32 0.5, %v1742
        %v1744 = vsub.f32 1.5, %v1743
        %v1745 = vmul.f32 %v1740, %v1744
        %v1746 = vmul.f32 %v1594, %v1745
        %vm1747 = vcmp.eq.f32.partialorder %v1594, inf
        %v1748 = vsel %vm1747, %v1594, %v1746
        %vm1749 = vcmp.eq.f32.partialorder %v1594, 0.0
        %v1750 = vand.u32 %v1594, 2147483648
        %v1751 = vsel %vm1749, %v1750, %v1748
        %v1752 = vrsqrt.pop %v1597
        %v1753 = vmul.f32 %v1752, %v1597
        %v1754 = vmul.f32 %v1753, %v1752
        %v1755 = vmul.f32 0.5, %v1754
        %v1756 = vsub.f32 1.5, %v1755
        %v1757 = vmul.f32 %v1752, %v1756
        %v1758 = vmul.f32 %v1597, %v1757
        %vm1759 = vcmp.eq.f32.partialorder %v1597, inf
        %v1760 = vsel %vm1759, %v1597, %v1758
        %vm1761 = vcmp.eq.f32.partialorder %v1597, 0.0
        %v1762 = vand.u32 %v1597, 2147483648
        %v1763 = vsel %vm1761, %v1762, %v1760
        %v1764 = vrsqrt.pop %v1599
        %v1765 = vmul.f32 %v1764, %v1599
        %v1766 = vmul.f32 %v1765, %v1764
        %v1767 = vmul.f32 0.5, %v1766
        %v1768 = vsub.f32 1.5, %v1767
        %v1769 = vmul.f32 %v1764, %v1768
        %v1770 = vmul.f32 %v1599, %v1769
        %vm1771 = vcmp.eq.f32.partialorder %v1599, inf
        %v1772 = vsel %vm1771, %v1599, %v1770
        %vm1773 = vcmp.eq.f32.partialorder %v1599, 0.0
        %v1774 = vand.u32 %v1599, 2147483648
        %v1775 = vsel %vm1773, %v1774, %v1772
        %v1776 = vrsqrt.pop %v1602
        %v1777 = vmul.f32 %v1776, %v1602
        %v1778 = vmul.f32 %v1777, %v1776
        %v1779 = vmul.f32 0.5, %v1778
        %v1780 = vsub.f32 1.5, %v1779
        %v1781 = vmul.f32 %v1776, %v1780
        %v1782 = vmul.f32 %v1602, %v1781
        %vm1783 = vcmp.eq.f32.partialorder %v1602, inf
        %v1784 = vsel %vm1783, %v1602, %v1782
        %vm1785 = vcmp.eq.f32.partialorder %v1602, 0.0
        %v1786 = vand.u32 %v1602, 2147483648
        %v1787 = vsel %vm1785, %v1786, %v1784
        %v1788 = vrsqrt.pop %v1604
        %v1789 = vmul.f32 %v1788, %v1604
        %v1790 = vmul.f32 %v1789, %v1788
        %v1791 = vmul.f32 0.5, %v1790
        %v1792 = vsub.f32 1.5, %v1791
        %v1793 = vmul.f32 %v1788, %v1792
        %v1794 = vmul.f32 %v1604, %v1793
        %vm1795 = vcmp.eq.f32.partialorder %v1604, inf
        %v1796 = vsel %vm1795, %v1604, %v1794
        %vm1797 = vcmp.eq.f32.partialorder %v1604, 0.0
        %v1798 = vand.u32 %v1604, 2147483648
        %v1799 = vsel %vm1797, %v1798, %v1796
        %v1800 = vrsqrt.pop %v1607
        %v1801 = vmul.f32 %v1800, %v1607
        %v1802 = vmul.f32 %v1801, %v1800
        %v1803 = vmul.f32 0.5, %v1802
        %v1804 = vsub.f32 1.5, %v1803
        %v1805 = vmul.f32 %v1800, %v1804
        %v1806 = vmul.f32 %v1607, %v1805
        %vm1807 = vcmp.eq.f32.partialorder %v1607, inf
        %v1808 = vsel %vm1807, %v1607, %v1806
        %vm1809 = vcmp.eq.f32.partialorder %v1607, 0.0
        %v1810 = vand.u32 %v1607, 2147483648
        %v1811 = vsel %vm1809, %v1810, %v1808
        %v1812 = vrsqrt.pop %v1609
        %v1813 = vmul.f32 %v1812, %v1609
        %v1814 = vmul.f32 %v1813, %v1812
        %v1815 = vmul.f32 0.5, %v1814
        %v1816 = vsub.f32 1.5, %v1815
        %v1817 = vmul.f32 %v1812, %v1816
        %v1818 = vmul.f32 %v1609, %v1817
        %vm1819 = vcmp.eq.f32.partialorder %v1609, inf
        %v1820 = vsel %vm1819, %v1609, %v1818
        %vm1821 = vcmp.eq.f32.partialorder %v1609, 0.0
        %v1822 = vand.u32 %v1609, 2147483648
        %v1823 = vsel %vm1821, %v1822, %v1820
        %v1824 = vrsqrt.pop %v1612
        %v1825 = vmul.f32 %v1824, %v1612
        %v1826 = vmul.f32 %v1825, %v1824
        %v1827 = vmul.f32 0.5, %v1826
        %v1828 = vsub.f32 1.5, %v1827
        %v1829 = vmul.f32 %v1824, %v1828
        %v1830 = vmul.f32 %v1612, %v1829
        %vm1831 = vcmp.eq.f32.partialorder %v1612, inf
        %v1832 = vsel %vm1831, %v1612, %v1830
        %vm1833 = vcmp.eq.f32.partialorder %v1612, 0.0
        %v1834 = vand.u32 %v1612, 2147483648
        %v1835 = vsel %vm1833, %v1834, %v1832
        %v1836 = vrsqrt.pop %v1614
        %v1837 = vmul.f32 %v1836, %v1614
        %v1838 = vmul.f32 %v1837, %v1836
        %v1839 = vmul.f32 0.5, %v1838
        %v1840 = vsub.f32 1.5, %v1839
        %v1841 = vmul.f32 %v1836, %v1840
        %v1842 = vmul.f32 %v1614, %v1841
        %vm1843 = vcmp.eq.f32.partialorder %v1614, inf
        %v1844 = vsel %vm1843, %v1614, %v1842
        %vm1845 = vcmp.eq.f32.partialorder %v1614, 0.0
        %v1846 = vand.u32 %v1614, 2147483648
        %v1847 = vsel %vm1845, %v1846, %v1844
        %v1848 = vrsqrt.pop %v1617
        %v1849 = vmul.f32 %v1848, %v1617
        %v1850 = vmul.f32 %v1849, %v1848
        %v1851 = vmul.f32 0.5, %v1850
        %v1852 = vsub.f32 1.5, %v1851
        %v1853 = vmul.f32 %v1848, %v1852
        %v1854 = vmul.f32 %v1617, %v1853
        %vm1855 = vcmp.eq.f32.partialorder %v1617, inf
        %v1856 = vsel %vm1855, %v1617, %v1854
        %vm1857 = vcmp.eq.f32.partialorder %v1617, 0.0
        %v1858 = vand.u32 %v1617, 2147483648
        %v1859 = vsel %vm1857, %v1858, %v1856
        %v1860 = vrsqrt.pop %v1619
        %v1861 = vmul.f32 %v1860, %v1619
        %v1862 = vmul.f32 %v1861, %v1860
        %v1863 = vmul.f32 0.5, %v1862
        %v1864 = vsub.f32 1.5, %v1863
        %v1865 = vmul.f32 %v1860, %v1864
        %v1866 = vmul.f32 %v1619, %v1865
        %vm1867 = vcmp.eq.f32.partialorder %v1619, inf
        %v1868 = vsel %vm1867, %v1619, %v1866
        %vm1869 = vcmp.eq.f32.partialorder %v1619, 0.0
        %v1870 = vand.u32 %v1619, 2147483648
        %v1871 = vsel %vm1869, %v1870, %v1868
        %v1872 = vrsqrt.pop %v1622
        %v1873 = vmul.f32 %v1872, %v1622
        %v1874 = vmul.f32 %v1873, %v1872
        %v1875 = vmul.f32 0.5, %v1874
        %v1876 = vsub.f32 1.5, %v1875
        %v1877 = vmul.f32 %v1872, %v1876
        %v1878 = vmul.f32 %v1622, %v1877
        %vm1879 = vcmp.eq.f32.partialorder %v1622, inf
        %v1880 = vsel %vm1879, %v1622, %v1878
        %vm1881 = vcmp.eq.f32.partialorder %v1622, 0.0
        %v1882 = vand.u32 %v1622, 2147483648
        %v1883 = vsel %vm1881, %v1882, %v1880
        %v1884 = vrsqrt.pop %v1624
        %v1885 = vmul.f32 %v1884, %v1624
        %v1886 = vmul.f32 %v1885, %v1884
        %v1887 = vmul.f32 0.5, %v1886
        %v1888 = vsub.f32 1.5, %v1887
        %v1889 = vmul.f32 %v1884, %v1888
        %v1890 = vmul.f32 %v1624, %v1889
        %vm1891 = vcmp.eq.f32.partialorder %v1624, inf
        %v1892 = vsel %vm1891, %v1624, %v1890
        %vm1893 = vcmp.eq.f32.partialorder %v1624, 0.0
        %v1894 = vand.u32 %v1624, 2147483648
        %v1895 = vsel %vm1893, %v1894, %v1892
        %v1896 = vrsqrt.pop %v1627
        %v1897 = vmul.f32 %v1896, %v1627
        %v1898 = vmul.f32 %v1897, %v1896
        %v1899 = vmul.f32 0.5, %v1898
        %v1900 = vsub.f32 1.5, %v1899
        %v1901 = vmul.f32 %v1896, %v1900
        %v1902 = vmul.f32 %v1627, %v1901
        %vm1903 = vcmp.eq.f32.partialorder %v1627, inf
        %v1904 = vsel %vm1903, %v1627, %v1902
        %vm1905 = vcmp.eq.f32.partialorder %v1627, 0.0
        %v1906 = vand.u32 %v1627, 2147483648
        %v1907 = vsel %vm1905, %v1906, %v1904
        %v1908 = vrsqrt.pop %v1629
        %v1909 = vmul.f32 %v1908, %v1629
        %v1910 = vmul.f32 %v1909, %v1908
        %v1911 = vmul.f32 0.5, %v1910
        %v1912 = vsub.f32 1.5, %v1911
        %v1913 = vmul.f32 %v1908, %v1912
        %v1914 = vmul.f32 %v1629, %v1913
        %vm1915 = vcmp.eq.f32.partialorder %v1629, inf
        %v1916 = vsel %vm1915, %v1629, %v1914
        %vm1917 = vcmp.eq.f32.partialorder %v1629, 0.0
        %v1918 = vand.u32 %v1629, 2147483648
        %v1919 = vsel %vm1917, %v1918, %v1916
        %v1920 = vrsqrt.pop %v1632
        %v1921 = vmul.f32 %v1920, %v1632
        %v1922 = vmul.f32 %v1921, %v1920
        %v1923 = vmul.f32 0.5, %v1922
        %v1924 = vsub.f32 1.5, %v1923
        %v1925 = vmul.f32 %v1920, %v1924
        %v1926 = vmul.f32 %v1632, %v1925
        %vm1927 = vcmp.eq.f32.partialorder %v1632, inf
        %v1928 = vsel %vm1927, %v1632, %v1926
        %vm1929 = vcmp.eq.f32.partialorder %v1632, 0.0
        %v1930 = vand.u32 %v1632, 2147483648
        %v1931 = vsel %vm1929, %v1930, %v1928
        %v1932 = vrsqrt.pop %v1634
        %v1933 = vmul.f32 %v1932, %v1634
        %v1934 = vmul.f32 %v1933, %v1932
        %v1935 = vmul.f32 0.5, %v1934
        %v1936 = vsub.f32 1.5, %v1935
        %v1937 = vmul.f32 %v1932, %v1936
        %v1938 = vmul.f32 %v1634, %v1937
        %vm1939 = vcmp.eq.f32.partialorder %v1634, inf
        %v1940 = vsel %vm1939, %v1634, %v1938
        %vm1941 = vcmp.eq.f32.partialorder %v1634, 0.0
        %v1942 = vand.u32 %v1634, 2147483648
        %v1943 = vsel %vm1941, %v1942, %v1940
        %v1944 = vrsqrt.pop %v1637
        %v1945 = vmul.f32 %v1944, %v1637
        %v1946 = vmul.f32 %v1945, %v1944
        %v1947 = vmul.f32 0.5, %v1946
        %v1948 = vsub.f32 1.5, %v1947
        %v1949 = vmul.f32 %v1944, %v1948
        %v1950 = vmul.f32 %v1637, %v1949
        %vm1951 = vcmp.eq.f32.partialorder %v1637, inf
        %v1952 = vsel %vm1951, %v1637, %v1950
        %vm1953 = vcmp.eq.f32.partialorder %v1637, 0.0
        %v1954 = vand.u32 %v1637, 2147483648
        %v1955 = vsel %vm1953, %v1954, %v1952
        %v1956 = vrsqrt.pop %v1639
        %v1957 = vmul.f32 %v1956, %v1639
        %v1958 = vmul.f32 %v1957, %v1956
        %v1959 = vmul.f32 0.5, %v1958
        %v1960 = vsub.f32 1.5, %v1959
        %v1961 = vmul.f32 %v1956, %v1960
        %v1962 = vmul.f32 %v1639, %v1961
        %vm1963 = vcmp.eq.f32.partialorder %v1639, inf
        %v1964 = vsel %vm1963, %v1639, %v1962
        %vm1965 = vcmp.eq.f32.partialorder %v1639, 0.0
        %v1966 = vand.u32 %v1639, 2147483648
        %v1967 = vsel %vm1965, %v1966, %v1964
        %v1968 = vrsqrt.pop %v1642
        %v1969 = vmul.f32 %v1968, %v1642
        %v1970 = vmul.f32 %v1969, %v1968
        %v1971 = vmul.f32 0.5, %v1970
        %v1972 = vsub.f32 1.5, %v1971
        %v1973 = vmul.f32 %v1968, %v1972
        %v1974 = vmul.f32 %v1642, %v1973
        %vm1975 = vcmp.eq.f32.partialorder %v1642, inf
        %v1976 = vsel %vm1975, %v1642, %v1974
        %vm1977 = vcmp.eq.f32.partialorder %v1642, 0.0
        %v1978 = vand.u32 %v1642, 2147483648
        %v1979 = vsel %vm1977, %v1978, %v1976
        %v1980 = vrsqrt.pop %v1644
        %v1981 = vmul.f32 %v1980, %v1644
        %v1982 = vmul.f32 %v1981, %v1980
        %v1983 = vmul.f32 0.5, %v1982
        %v1984 = vsub.f32 1.5, %v1983
        %v1985 = vmul.f32 %v1980, %v1984
        %v1986 = vmul.f32 %v1644, %v1985
        %vm1987 = vcmp.eq.f32.partialorder %v1644, inf
        %v1988 = vsel %vm1987, %v1644, %v1986
        %vm1989 = vcmp.eq.f32.partialorder %v1644, 0.0
        %v1990 = vand.u32 %v1644, 2147483648
        %v1991 = vsel %vm1989, %v1990, %v1988
        %v1992 = vrsqrt.pop %v1647
        %v1993 = vmul.f32 %v1992, %v1647
        %v1994 = vmul.f32 %v1993, %v1992
        %v1995 = vmul.f32 0.5, %v1994
        %v1996 = vsub.f32 1.5, %v1995
        %v1997 = vmul.f32 %v1992, %v1996
        %v1998 = vmul.f32 %v1647, %v1997
        %vm1999 = vcmp.eq.f32.partialorder %v1647, inf
        %v2000 = vsel %vm1999, %v1647, %v1998
        %vm2001 = vcmp.eq.f32.partialorder %v1647, 0.0
        %v2002 = vand.u32 %v1647, 2147483648
        %v2003 = vsel %vm2001, %v2002, %v2000
        %v2004 = vrsqrt.pop %v1649
        %v2005 = vmul.f32 %v2004, %v1649
        %v2006 = vmul.f32 %v2005, %v2004
        %v2007 = vmul.f32 0.5, %v2006
        %v2008 = vsub.f32 1.5, %v2007
        %v2009 = vmul.f32 %v2004, %v2008
        %v2010 = vmul.f32 %v1649, %v2009
        %vm2011 = vcmp.eq.f32.partialorder %v1649, inf
        %v2012 = vsel %vm2011, %v1649, %v2010
        %vm2013 = vcmp.eq.f32.partialorder %v1649, 0.0
        %v2014 = vand.u32 %v1649, 2147483648
        %v2015 = vsel %vm2013, %v2014, %v2012
        %v2016 = vrsqrt.pop %v1652
        %v2017 = vmul.f32 %v2016, %v1652
        %v2018 = vmul.f32 %v2017, %v2016
        %v2019 = vmul.f32 0.5, %v2018
        %v2020 = vsub.f32 1.5, %v2019
        %v2021 = vmul.f32 %v2016, %v2020
        %v2022 = vmul.f32 %v1652, %v2021
        %vm2023 = vcmp.eq.f32.partialorder %v1652, inf
        %v2024 = vsel %vm2023, %v1652, %v2022
        %vm2025 = vcmp.eq.f32.partialorder %v1652, 0.0
        %v2026 = vand.u32 %v1652, 2147483648
        %v2027 = vsel %vm2025, %v2026, %v2024
        %v2028 = vrsqrt.pop %v1654
        %v2029 = vmul.f32 %v2028, %v1654
        %v2030 = vmul.f32 %v2029, %v2028
        %v2031 = vmul.f32 0.5, %v2030
        %v2032 = vsub.f32 1.5, %v2031
        %v2033 = vmul.f32 %v2028, %v2032
        %v2034 = vmul.f32 %v1654, %v2033
        %vm2035 = vcmp.eq.f32.partialorder %v1654, inf
        %v2036 = vsel %vm2035, %v1654, %v2034
        %vm2037 = vcmp.eq.f32.partialorder %v1654, 0.0
        %v2038 = vand.u32 %v1654, 2147483648
        %v2039 = vsel %vm2037, %v2038, %v2036
        %v2040 = vmul.f32 %v1427, %v1667
        %v2041 = vmul.f32 %v1428, %v1679
        %v2042 = vmul.f32 %v1429, %v1691
        %v2043 = vmul.f32 %v1430, %v1703
        %v2044 = vmul.f32 %v1431, %v1715
        %v2045 = vmul.f32 %v1432, %v1727
        %v2046 = vmul.f32 %v1433, %v1739
        %v2047 = vmul.f32 %v1434, %v1751
        %v2048 = vmul.f32 %v1435, %v1763
        %v2049 = vmul.f32 %v1436, %v1775
        %v2050 = vmul.f32 %v1437, %v1787
        %v2051 = vmul.f32 %v1438, %v1799
        %v2052 = vmul.f32 %v1439, %v1811
        %v2053 = vmul.f32 %v1440, %v1823
        %v2054 = vmul.f32 %v1441, %v1835
        %v2055 = vmul.f32 %v1442, %v1847
        %v2056 = vmul.f32 %v1443, %v1859
        %v2057 = vmul.f32 %v1444, %v1871
        %v2058 = vmul.f32 %v1445, %v1883
        %v2059 = vmul.f32 %v1446, %v1895
        %v2060 = vmul.f32 %v1447, %v1907
        %v2061 = vmul.f32 %v1448, %v1919
        %v2062 = vmul.f32 %v1449, %v1931
        %v2063 = vmul.f32 %v1450, %v1943
        %v2064 = vmul.f32 %v1451, %v1955
        %v2065 = vmul.f32 %v1452, %v1967
        %v2066 = vmul.f32 %v1453, %v1979
        %v2067 = vmul.f32 %v1454, %v1991
        %v2068 = vmul.f32 %v1455, %v2003
        %v2069 = vmul.f32 %v1456, %v2015
        %v2070 = vmul.f32 %v1457, %v2027
        %v2071 = vmul.f32 %v1458, %v2039
        %v2072 = vld [vmem:[%s3] sm:$0xf]
        %v2073 = vld [vmem:[%s3 + $0x4] sm:$0xf]
        %v2074 = vld [vmem:[%s3 + $0x8] sm:$0xf]
        %s2075 = scalar_lea.vmem %s3, 12
        %v2076 = vld [vmem:[%s2075] sm:$0xf]
        %v2077 = vld [vmem:[%s2075 + $0x4] sm:$0xf]
        %v2078 = vld [vmem:[%s2075 + $0x8] sm:$0xf]
        %v2082 = vunpack.c.l.b16 %v2076
        %v2083 = vunpack.c.l.b16 %v2077
        %v2084 = vunpack.c.l.b16 %v2078
        %v2085 = vpack.c.b16 %v2083, %v2082
        %v2086 = vpack.c.b16 %v2084, %v2084
        %v2089 = vsel %vm1088, %v2086, 0
        %2091 = vmatpush.bf16.msra.mxu0 0
        %2092 = vmatpush.bf16.msra.mxu0 0
        %2093 = vmatpush.bf16.msra.mxu0 0
        %2094 = vmatpush.bf16.msra.mxu0 0
        %2095 = vmatpush.bf16.msra.mxu0 0
        %2096 = vmatpush.bf16.msra.mxu0 0
        %2097 = vmatpush.bf16.msra.mxu0 %v2089
        %2098 = vmatpush.bf16.msra.mxu0 %v2085
        %2099 = vmatmul.bf16.gmra.mxu0 %v1058
        %v2100 = vpop.f32.mrf.mxu0
        %v2101 = vadd.f32 0.0, %v2100
        %v2102 = vpop.f32.mrf.mxu0
        %v2103 = vadd.f32 0.0, %v2102
        %2104 = vmatmul.bf16.gmra.mxu0 %v1060
        %v2105 = vpop.f32.mrf.mxu0
        %v2106 = vadd.f32 0.0, %v2105
        %v2107 = vpop.f32.mrf.mxu0
        %v2108 = vadd.f32 0.0, %v2107
        %2109 = vmatmul.bf16.gmra.mxu0 %v1062
        %v2110 = vpop.f32.mrf.mxu0
        %v2111 = vadd.f32 0.0, %v2110
        %v2112 = vpop.f32.mrf.mxu0
        %v2113 = vadd.f32 0.0, %v2112
        %2114 = vmatmul.bf16.gmra.mxu0 %v1064
        %v2115 = vpop.f32.mrf.mxu0
        %v2116 = vadd.f32 0.0, %v2115
        %v2117 = vpop.f32.mrf.mxu0
        %v2118 = vadd.f32 0.0, %v2117
        %2119 = vmatmul.bf16.gmra.mxu0 %v1066
        %v2120 = vpop.f32.mrf.mxu0
        %v2121 = vadd.f32 0.0, %v2120
        %v2122 = vpop.f32.mrf.mxu0
        %v2123 = vadd.f32 0.0, %v2122
        %2124 = vmatmul.bf16.gmra.mxu0 %v1068
        %v2125 = vpop.f32.mrf.mxu0
        %v2126 = vadd.f32 0.0, %v2125
        %v2127 = vpop.f32.mrf.mxu0
        %v2128 = vadd.f32 0.0, %v2127
        %2129 = vmatmul.bf16.gmra.mxu0 %v1070
        %v2130 = vpop.f32.mrf.mxu0
        %v2131 = vadd.f32 0.0, %v2130
        %v2132 = vpop.f32.mrf.mxu0
        %v2133 = vadd.f32 0.0, %v2132
        %2134 = vmatmul.bf16.gmra.mxu0 %v1072
        %v2135 = vpop.f32.mrf.mxu0
        %v2136 = vadd.f32 0.0, %v2135
        %v2137 = vpop.f32.mrf.mxu0
        %v2138 = vadd.f32 0.0, %v2137
        %2139 = vmatmul.bf16.gmra.mxu0 %v1074
        %v2140 = vpop.f32.mrf.mxu0
        %v2141 = vadd.f32 0.0, %v2140
        %v2142 = vpop.f32.mrf.mxu0
        %v2143 = vadd.f32 0.0, %v2142
        %2144 = vmatmul.bf16.gmra.mxu0 %v1076
        %v2145 = vpop.f32.mrf.mxu0
        %v2146 = vadd.f32 0.0, %v2145
        %v2147 = vpop.f32.mrf.mxu0
        %v2148 = vadd.f32 0.0, %v2147
        %2149 = vmatmul.bf16.gmra.mxu0 %v1078
        %v2150 = vpop.f32.mrf.mxu0
        %v2151 = vadd.f32 0.0, %v2150
        %v2152 = vpop.f32.mrf.mxu0
        %v2153 = vadd.f32 0.0, %v2152
        %2154 = vmatmul.bf16.gmra.mxu0 %v1080
        %v2155 = vpop.f32.mrf.mxu0
        %v2156 = vadd.f32 0.0, %v2155
        %v2157 = vpop.f32.mrf.mxu0
        %v2158 = vadd.f32 0.0, %v2157
        %2159 = vmatmul.bf16.gmra.mxu0 %v1082
        %v2160 = vpop.f32.mrf.mxu0
        %v2161 = vadd.f32 0.0, %v2160
        %v2162 = vpop.f32.mrf.mxu0
        %v2163 = vadd.f32 0.0, %v2162
        %2164 = vmatmul.bf16.gmra.mxu0 %v1084
        %v2165 = vpop.f32.mrf.mxu0
        %v2166 = vadd.f32 0.0, %v2165
        %v2167 = vpop.f32.mrf.mxu0
        %v2168 = vadd.f32 0.0, %v2167
        %2169 = vmatmul.bf16.gmra.mxu0 %v1086
        %v2170 = vpop.f32.mrf.mxu0
        %v2171 = vadd.f32 0.0, %v2170
        %v2172 = vpop.f32.mrf.mxu0
        %v2173 = vadd.f32 0.0, %v2172
        %2174 = vmatmul.bf16.gmra.mxu0 %v1297
        %v2175 = vpop.f32.mrf.mxu0
        %v2176 = vadd.f32 0.0, %v2175
        %v2177 = vpop.f32.mrf.mxu0
        %v2178 = vadd.f32 0.0, %v2177
        %2179 = vdwg.mxu0
        %v2183 = vunpack.c.l.b16 %v2072
        %v2184 = vunpack.c.l.b16 %v2073
        %v2185 = vunpack.c.l.b16 %v2074
        %v2186 = vpack.c.b16 %v2184, %v2183
        %v2187 = vpack.c.b16 %v2185, %v2185
        %v2190 = vsel %vm1088, %v2187, 0
        %2192 = vmatpush.bf16.msra.mxu0 0
        %2193 = vmatpush.bf16.msra.mxu0 0
        %2194 = vmatpush.bf16.msra.mxu0 0
        %2195 = vmatpush.bf16.msra.mxu0 0
        %2196 = vmatpush.bf16.msra.mxu0 0
        %2197 = vmatpush.bf16.msra.mxu0 0
        %2198 = vmatpush.bf16.msra.mxu0 %v2190
        %2199 = vmatpush.bf16.msra.mxu0 %v2186
        %2200 = vmatmul.bf16.gmra.mxu0 %v1056
        %v2201 = vpop.f32.mrf.mxu0
        %v2202 = vadd.f32 %v2101, %v2201
        %v2203 = vpop.f32.mrf.mxu0
        %v2204 = vadd.f32 %v2103, %v2203
        %2205 = vmatmul.bf16.gmra.mxu0 %v1058
        %v2206 = vpop.f32.mrf.mxu0
        %v2207 = vadd.f32 %v2106, %v2206
        %v2208 = vpop.f32.mrf.mxu0
        %v2209 = vadd.f32 %v2108, %v2208
        %2210 = vmatmul.bf16.gmra.mxu0 %v1060
        %v2211 = vpop.f32.mrf.mxu0
        %v2212 = vadd.f32 %v2111, %v2211
        %v2213 = vpop.f32.mrf.mxu0
        %v2214 = vadd.f32 %v2113, %v2213
        %2215 = vmatmul.bf16.gmra.mxu0 %v1062
        %v2216 = vpop.f32.mrf.mxu0
        %v2217 = vadd.f32 %v2116, %v2216
        %v2218 = vpop.f32.mrf.mxu0
        %v2219 = vadd.f32 %v2118, %v2218
        %2220 = vmatmul.bf16.gmra.mxu0 %v1064
        %v2221 = vpop.f32.mrf.mxu0
        %v2222 = vadd.f32 %v2121, %v2221
        %v2223 = vpop.f32.mrf.mxu0
        %v2224 = vadd.f32 %v2123, %v2223
        %2225 = vmatmul.bf16.gmra.mxu0 %v1066
        %v2226 = vpop.f32.mrf.mxu0
        %v2227 = vadd.f32 %v2126, %v2226
        %v2228 = vpop.f32.mrf.mxu0
        %v2229 = vadd.f32 %v2128, %v2228
        %2230 = vmatmul.bf16.gmra.mxu0 %v1068
        %v2231 = vpop.f32.mrf.mxu0
        %v2232 = vadd.f32 %v2131, %v2231
        %v2233 = vpop.f32.mrf.mxu0
        %v2234 = vadd.f32 %v2133, %v2233
        %2235 = vmatmul.bf16.gmra.mxu0 %v1070
        %v2236 = vpop.f32.mrf.mxu0
        %v2237 = vadd.f32 %v2136, %v2236
        %v2238 = vpop.f32.mrf.mxu0
        %v2239 = vadd.f32 %v2138, %v2238
        %2240 = vmatmul.bf16.gmra.mxu0 %v1072
        %v2241 = vpop.f32.mrf.mxu0
        %v2242 = vadd.f32 %v2141, %v2241
        %v2243 = vpop.f32.mrf.mxu0
        %v2244 = vadd.f32 %v2143, %v2243
        %2245 = vmatmul.bf16.gmra.mxu0 %v1074
        %v2246 = vpop.f32.mrf.mxu0
        %v2247 = vadd.f32 %v2146, %v2246
        %v2248 = vpop.f32.mrf.mxu0
        %v2249 = vadd.f32 %v2148, %v2248
        %2250 = vmatmul.bf16.gmra.mxu0 %v1076
        %v2251 = vpop.f32.mrf.mxu0
        %v2252 = vadd.f32 %v2151, %v2251
        %v2253 = vpop.f32.mrf.mxu0
        %v2254 = vadd.f32 %v2153, %v2253
        %2255 = vmatmul.bf16.gmra.mxu0 %v1078
        %v2256 = vpop.f32.mrf.mxu0
        %v2257 = vadd.f32 %v2156, %v2256
        %v2258 = vpop.f32.mrf.mxu0
        %v2259 = vadd.f32 %v2158, %v2258
        %2260 = vmatmul.bf16.gmra.mxu0 %v1080
        %v2261 = vpop.f32.mrf.mxu0
        %v2262 = vadd.f32 %v2161, %v2261
        %v2263 = vpop.f32.mrf.mxu0
        %v2264 = vadd.f32 %v2163, %v2263
        %2265 = vmatmul.bf16.gmra.mxu0 %v1082
        %v2266 = vpop.f32.mrf.mxu0
        %v2267 = vadd.f32 %v2166, %v2266
        %v2268 = vpop.f32.mrf.mxu0
        %v2269 = vadd.f32 %v2168, %v2268
        %2270 = vmatmul.bf16.gmra.mxu0 %v1084
        %v2271 = vpop.f32.mrf.mxu0
        %v2272 = vadd.f32 %v2171, %v2271
        %v2273 = vpop.f32.mrf.mxu0
        %v2274 = vadd.f32 %v2173, %v2273
        %2275 = vmatmul.bf16.gmra.mxu0 %v1086
        %v2276 = vpop.f32.mrf.mxu0
        %v2277 = vadd.f32 %v2176, %v2276
        %v2278 = vpop.f32.mrf.mxu0
        %v2279 = vadd.f32 %v2178, %v2278
        %2280 = vdwg.mxu0
        %v2281 = vadd.f32 %v2202, %v1425
        %v2282 = vadd.f32 %v2204, %v1425
        %v2283 = vadd.f32 %v2207, %v1425
        %v2284 = vadd.f32 %v2209, %v1425
        %v2285 = vadd.f32 %v2212, %v1425
        %v2286 = vadd.f32 %v2214, %v1425
        %v2287 = vadd.f32 %v2217, %v1425
        %v2288 = vadd.f32 %v2219, %v1425
        %v2289 = vadd.f32 %v2222, %v1425
        %v2290 = vadd.f32 %v2224, %v1425
        %v2291 = vadd.f32 %v2227, %v1425
        %v2292 = vadd.f32 %v2229, %v1425
        %v2293 = vadd.f32 %v2232, %v1425
        %v2294 = vadd.f32 %v2234, %v1425
        %v2295 = vadd.f32 %v2237, %v1425
        %v2296 = vadd.f32 %v2239, %v1425
        %v2297 = vadd.f32 %v2242, %v1425
        %v2298 = vadd.f32 %v2244, %v1425
        %v2299 = vadd.f32 %v2247, %v1425
        %v2300 = vadd.f32 %v2249, %v1425
        %v2301 = vadd.f32 %v2252, %v1425
        %v2302 = vadd.f32 %v2254, %v1425
        %v2303 = vadd.f32 %v2257, %v1425
        %v2304 = vadd.f32 %v2259, %v1425
        %v2305 = vadd.f32 %v2262, %v1425
        %v2306 = vadd.f32 %v2264, %v1425
        %v2307 = vadd.f32 %v2267, %v1425
        %v2308 = vadd.f32 %v2269, %v1425
        %v2309 = vadd.f32 %v2272, %v1425
        %v2310 = vadd.f32 %v2274, %v1425
        %v2311 = vadd.f32 %v2277, %v1425
        %v2312 = vadd.f32 %v2279, %v1425
        %v2313 = vmul.f32 %v2281, %v2281
        %v2314 = vmul.f32 %v2282, %v2282
        %v2315 = vmul.f32 %v2283, %v2283
        %v2316 = vmul.f32 %v2284, %v2284
        %v2317 = vmul.f32 %v2285, %v2285
        %v2318 = vmul.f32 %v2286, %v2286
        %v2319 = vmul.f32 %v2287, %v2287
        %v2320 = vmul.f32 %v2288, %v2288
        %v2321 = vmul.f32 %v2289, %v2289
        %v2322 = vmul.f32 %v2290, %v2290
        %v2323 = vmul.f32 %v2291, %v2291
        %v2324 = vmul.f32 %v2292, %v2292
        %v2325 = vmul.f32 %v2293, %v2293
        %v2326 = vmul.f32 %v2294, %v2294
        %v2327 = vmul.f32 %v2295, %v2295
        %v2328 = vmul.f32 %v2296, %v2296
        %v2329 = vmul.f32 %v2297, %v2297
        %v2330 = vmul.f32 %v2298, %v2298
        %v2331 = vmul.f32 %v2299, %v2299
        %v2332 = vmul.f32 %v2300, %v2300
        %v2333 = vmul.f32 %v2301, %v2301
        %v2334 = vmul.f32 %v2302, %v2302
        %v2335 = vmul.f32 %v2303, %v2303
        %v2336 = vmul.f32 %v2304, %v2304
        %v2337 = vmul.f32 %v2305, %v2305
        %v2338 = vmul.f32 %v2306, %v2306
        %v2339 = vmul.f32 %v2307, %v2307
        %v2340 = vmul.f32 %v2308, %v2308
        %v2341 = vmul.f32 %v2309, %v2309
        %v2342 = vmul.f32 %v2310, %v2310
        %v2343 = vmul.f32 %v2311, %v2311
        %v2344 = vmul.f32 %v2312, %v2312
        %v2345 = vpack.c.bf16 %v2314, %v2313
        %v2346 = vpack.c.bf16 %v2316, %v2315
        %v2347 = vpack.c.bf16 %v2318, %v2317
        %v2348 = vpack.c.bf16 %v2320, %v2319
        %v2349 = vpack.c.bf16 %v2322, %v2321
        %v2350 = vpack.c.bf16 %v2324, %v2323
        %v2351 = vpack.c.bf16 %v2326, %v2325
        %v2352 = vpack.c.bf16 %v2328, %v2327
        %v2353 = vpack.c.bf16 %v2330, %v2329
        %v2354 = vpack.c.bf16 %v2332, %v2331
        %v2355 = vpack.c.bf16 %v2334, %v2333
        %v2356 = vpack.c.bf16 %v2336, %v2335
        %v2357 = vpack.c.bf16 %v2338, %v2337
        %v2358 = vpack.c.bf16 %v2340, %v2339
        %v2359 = vpack.c.bf16 %v2342, %v2341
        %v2360 = vpack.c.bf16 %v2344, %v2343
        %v2362 = vsel %vm1002, %v2345, 0
        %v2365 = vsel %vm1002, %v2346, 0
        %v2368 = vsel %vm1002, %v2347, 0
        %v2371 = vsel %vm1002, %v2348, 0
        %v2374 = vsel %vm1002, %v2349, 0
        %v2377 = vsel %vm1002, %v2350, 0
        %v2380 = vsel %vm1002, %v2351, 0
        %v2383 = vsel %vm1002, %v2352, 0
        %v2386 = vsel %vm1002, %v2353, 0
        %v2389 = vsel %vm1002, %v2354, 0
        %v2392 = vsel %vm1002, %v2355, 0
        %v2395 = vsel %vm1002, %v2356, 0
        %v2398 = vsel %vm1002, %v2357, 0
        %v2401 = vsel %vm1002, %v2358, 0
        %v2404 = vsel %vm1002, %v2359, 0
        %v2407 = vsel %vm1002, %v2360, 0
        %2409 = vmatpush.bf16.msra.mxu0 0
        %2410 = vmatpush.bf16.msra.mxu0 0
        %2411 = vmatpush.bf16.msra.mxu0 0
        %2412 = vmatpush.bf16.msra.mxu0 0
        %2413 = vmatpush.bf16.msra.mxu0 0
        %2414 = vmatpush.bf16.msra.mxu0 0
        %2415 = vmatpush.bf16.msra.mxu0 0
        %2416 = vmatpush.bf16.msra.mxu0 %v1517
        %2417 = vmatmul.bf16.gmra.mxu0 %v2362
        %v2418 = vpop.f32.mrf.mxu0
        %v2419 = vadd.f32 %v1511, %v2418
        %v2420 = vpop.f32.mrf.mxu0
        %v2421 = vadd.f32 %v1511, %v2420
        %2422 = vmatmul.bf16.gmra.mxu0 %v2365
        %v2423 = vpop.f32.mrf.mxu0
        %v2424 = vadd.f32 %v1511, %v2423
        %v2425 = vpop.f32.mrf.mxu0
        %v2426 = vadd.f32 %v1511, %v2425
        %2427 = vmatmul.bf16.gmra.mxu0 %v2368
        %v2428 = vpop.f32.mrf.mxu0
        %v2429 = vadd.f32 %v1511, %v2428
        %v2430 = vpop.f32.mrf.mxu0
        %v2431 = vadd.f32 %v1511, %v2430
        %2432 = vmatmul.bf16.gmra.mxu0 %v2371
        %v2433 = vpop.f32.mrf.mxu0
        %v2434 = vadd.f32 %v1511, %v2433
        %v2435 = vpop.f32.mrf.mxu0
        %v2436 = vadd.f32 %v1511, %v2435
        %2437 = vmatmul.bf16.gmra.mxu0 %v2374
        %v2438 = vpop.f32.mrf.mxu0
        %v2439 = vadd.f32 %v1511, %v2438
        %v2440 = vpop.f32.mrf.mxu0
        %v2441 = vadd.f32 %v1511, %v2440
        %2442 = vmatmul.bf16.gmra.mxu0 %v2377
        %v2443 = vpop.f32.mrf.mxu0
        %v2444 = vadd.f32 %v1511, %v2443
        %v2445 = vpop.f32.mrf.mxu0
        %v2446 = vadd.f32 %v1511, %v2445
        %2447 = vmatmul.bf16.gmra.mxu0 %v2380
        %v2448 = vpop.f32.mrf.mxu0
        %v2449 = vadd.f32 %v1511, %v2448
        %v2450 = vpop.f32.mrf.mxu0
        %v2451 = vadd.f32 %v1511, %v2450
        %2452 = vmatmul.bf16.gmra.mxu0 %v2383
        %v2453 = vpop.f32.mrf.mxu0
        %v2454 = vadd.f32 %v1511, %v2453
        %v2455 = vpop.f32.mrf.mxu0
        %v2456 = vadd.f32 %v1511, %v2455
        %2457 = vmatmul.bf16.gmra.mxu0 %v2386
        %v2458 = vpop.f32.mrf.mxu0
        %v2459 = vadd.f32 %v1511, %v2458
        %v2460 = vpop.f32.mrf.mxu0
        %v2461 = vadd.f32 %v1511, %v2460
        %2462 = vmatmul.bf16.gmra.mxu0 %v2389
        %v2463 = vpop.f32.mrf.mxu0
        %v2464 = vadd.f32 %v1511, %v2463
        %v2465 = vpop.f32.mrf.mxu0
        %v2466 = vadd.f32 %v1511, %v2465
        %2467 = vmatmul.bf16.gmra.mxu0 %v2392
        %v2468 = vpop.f32.mrf.mxu0
        %v2469 = vadd.f32 %v1511, %v2468
        %v2470 = vpop.f32.mrf.mxu0
        %v2471 = vadd.f32 %v1511, %v2470
        %2472 = vmatmul.bf16.gmra.mxu0 %v2395
        %v2473 = vpop.f32.mrf.mxu0
        %v2474 = vadd.f32 %v1511, %v2473
        %v2475 = vpop.f32.mrf.mxu0
        %v2476 = vadd.f32 %v1511, %v2475
        %2477 = vmatmul.bf16.gmra.mxu0 %v2398
        %v2478 = vpop.f32.mrf.mxu0
        %v2479 = vadd.f32 %v1511, %v2478
        %v2480 = vpop.f32.mrf.mxu0
        %v2481 = vadd.f32 %v1511, %v2480
        %2482 = vmatmul.bf16.gmra.mxu0 %v2401
        %v2483 = vpop.f32.mrf.mxu0
        %v2484 = vadd.f32 %v1511, %v2483
        %v2485 = vpop.f32.mrf.mxu0
        %v2486 = vadd.f32 %v1511, %v2485
        %2487 = vmatmul.bf16.gmra.mxu0 %v2404
        %v2488 = vpop.f32.mrf.mxu0
        %v2489 = vadd.f32 %v1511, %v2488
        %v2490 = vpop.f32.mrf.mxu0
        %v2491 = vadd.f32 %v1511, %v2490
        %2492 = vmatmul.bf16.gmra.mxu0 %v2407
        %v2493 = vpop.f32.mrf.mxu0
        %v2494 = vadd.f32 %v1511, %v2493
        %v2495 = vpop.f32.mrf.mxu0
        %v2496 = vadd.f32 %v1511, %v2495
        %2497 = vdwg.mxu0
        %v2498 = vrsqrt.pop %v2419
        %v2499 = vmul.f32 %v2498, %v2419
        %v2500 = vmul.f32 %v2499, %v2498
        %v2501 = vmul.f32 0.5, %v2500
        %v2502 = vsub.f32 1.5, %v2501
        %v2503 = vmul.f32 %v2498, %v2502
        %v2504 = vmul.f32 %v2419, %v2503
        %vm2505 = vcmp.eq.f32.partialorder %v2419, inf
        %v2506 = vsel %vm2505, %v2419, %v2504
        %vm2507 = vcmp.eq.f32.partialorder %v2419, 0.0
        %v2508 = vand.u32 %v2419, 2147483648
        %v2509 = vsel %vm2507, %v2508, %v2506
        %v2510 = vrsqrt.pop %v2421
        %v2511 = vmul.f32 %v2510, %v2421
        %v2512 = vmul.f32 %v2511, %v2510
        %v2513 = vmul.f32 0.5, %v2512
        %v2514 = vsub.f32 1.5, %v2513
        %v2515 = vmul.f32 %v2510, %v2514
        %v2516 = vmul.f32 %v2421, %v2515
        %vm2517 = vcmp.eq.f32.partialorder %v2421, inf
        %v2518 = vsel %vm2517, %v2421, %v2516
        %vm2519 = vcmp.eq.f32.partialorder %v2421, 0.0
        %v2520 = vand.u32 %v2421, 2147483648
        %v2521 = vsel %vm2519, %v2520, %v2518
        %v2522 = vrsqrt.pop %v2424
        %v2523 = vmul.f32 %v2522, %v2424
        %v2524 = vmul.f32 %v2523, %v2522
        %v2525 = vmul.f32 0.5, %v2524
        %v2526 = vsub.f32 1.5, %v2525
        %v2527 = vmul.f32 %v2522, %v2526
        %v2528 = vmul.f32 %v2424, %v2527
        %vm2529 = vcmp.eq.f32.partialorder %v2424, inf
        %v2530 = vsel %vm2529, %v2424, %v2528
        %vm2531 = vcmp.eq.f32.partialorder %v2424, 0.0
        %v2532 = vand.u32 %v2424, 2147483648
        %v2533 = vsel %vm2531, %v2532, %v2530
        %v2534 = vrsqrt.pop %v2426
        %v2535 = vmul.f32 %v2534, %v2426
        %v2536 = vmul.f32 %v2535, %v2534
        %v2537 = vmul.f32 0.5, %v2536
        %v2538 = vsub.f32 1.5, %v2537
        %v2539 = vmul.f32 %v2534, %v2538
        %v2540 = vmul.f32 %v2426, %v2539
        %vm2541 = vcmp.eq.f32.partialorder %v2426, inf
        %v2542 = vsel %vm2541, %v2426, %v2540
        %vm2543 = vcmp.eq.f32.partialorder %v2426, 0.0
        %v2544 = vand.u32 %v2426, 2147483648
        %v2545 = vsel %vm2543, %v2544, %v2542
        %v2546 = vrsqrt.pop %v2429
        %v2547 = vmul.f32 %v2546, %v2429
        %v2548 = vmul.f32 %v2547, %v2546
        %v2549 = vmul.f32 0.5, %v2548
        %v2550 = vsub.f32 1.5, %v2549
        %v2551 = vmul.f32 %v2546, %v2550
        %v2552 = vmul.f32 %v2429, %v2551
        %vm2553 = vcmp.eq.f32.partialorder %v2429, inf
        %v2554 = vsel %vm2553, %v2429, %v2552
        %vm2555 = vcmp.eq.f32.partialorder %v2429, 0.0
        %v2556 = vand.u32 %v2429, 2147483648
        %v2557 = vsel %vm2555, %v2556, %v2554
        %v2558 = vrsqrt.pop %v2431
        %v2559 = vmul.f32 %v2558, %v2431
        %v2560 = vmul.f32 %v2559, %v2558
        %v2561 = vmul.f32 0.5, %v2560
        %v2562 = vsub.f32 1.5, %v2561
        %v2563 = vmul.f32 %v2558, %v2562
        %v2564 = vmul.f32 %v2431, %v2563
        %vm2565 = vcmp.eq.f32.partialorder %v2431, inf
        %v2566 = vsel %vm2565, %v2431, %v2564
        %vm2567 = vcmp.eq.f32.partialorder %v2431, 0.0
        %v2568 = vand.u32 %v2431, 2147483648
        %v2569 = vsel %vm2567, %v2568, %v2566
        %v2570 = vrsqrt.pop %v2434
        %v2571 = vmul.f32 %v2570, %v2434
        %v2572 = vmul.f32 %v2571, %v2570
        %v2573 = vmul.f32 0.5, %v2572
        %v2574 = vsub.f32 1.5, %v2573
        %v2575 = vmul.f32 %v2570, %v2574
        %v2576 = vmul.f32 %v2434, %v2575
        %vm2577 = vcmp.eq.f32.partialorder %v2434, inf
        %v2578 = vsel %vm2577, %v2434, %v2576
        %vm2579 = vcmp.eq.f32.partialorder %v2434, 0.0
        %v2580 = vand.u32 %v2434, 2147483648
        %v2581 = vsel %vm2579, %v2580, %v2578
        %v2582 = vrsqrt.pop %v2436
        %v2583 = vmul.f32 %v2582, %v2436
        %v2584 = vmul.f32 %v2583, %v2582
        %v2585 = vmul.f32 0.5, %v2584
        %v2586 = vsub.f32 1.5, %v2585
        %v2587 = vmul.f32 %v2582, %v2586
        %v2588 = vmul.f32 %v2436, %v2587
        %vm2589 = vcmp.eq.f32.partialorder %v2436, inf
        %v2590 = vsel %vm2589, %v2436, %v2588
        %vm2591 = vcmp.eq.f32.partialorder %v2436, 0.0
        %v2592 = vand.u32 %v2436, 2147483648
        %v2593 = vsel %vm2591, %v2592, %v2590
        %v2594 = vrsqrt.pop %v2439
        %v2595 = vmul.f32 %v2594, %v2439
        %v2596 = vmul.f32 %v2595, %v2594
        %v2597 = vmul.f32 0.5, %v2596
        %v2598 = vsub.f32 1.5, %v2597
        %v2599 = vmul.f32 %v2594, %v2598
        %v2600 = vmul.f32 %v2439, %v2599
        %vm2601 = vcmp.eq.f32.partialorder %v2439, inf
        %v2602 = vsel %vm2601, %v2439, %v2600
        %vm2603 = vcmp.eq.f32.partialorder %v2439, 0.0
        %v2604 = vand.u32 %v2439, 2147483648
        %v2605 = vsel %vm2603, %v2604, %v2602
        %v2606 = vrsqrt.pop %v2441
        %v2607 = vmul.f32 %v2606, %v2441
        %v2608 = vmul.f32 %v2607, %v2606
        %v2609 = vmul.f32 0.5, %v2608
        %v2610 = vsub.f32 1.5, %v2609
        %v2611 = vmul.f32 %v2606, %v2610
        %v2612 = vmul.f32 %v2441, %v2611
        %vm2613 = vcmp.eq.f32.partialorder %v2441, inf
        %v2614 = vsel %vm2613, %v2441, %v2612
        %vm2615 = vcmp.eq.f32.partialorder %v2441, 0.0
        %v2616 = vand.u32 %v2441, 2147483648
        %v2617 = vsel %vm2615, %v2616, %v2614
        %v2618 = vrsqrt.pop %v2444
        %v2619 = vmul.f32 %v2618, %v2444
        %v2620 = vmul.f32 %v2619, %v2618
        %v2621 = vmul.f32 0.5, %v2620
        %v2622 = vsub.f32 1.5, %v2621
        %v2623 = vmul.f32 %v2618, %v2622
        %v2624 = vmul.f32 %v2444, %v2623
        %vm2625 = vcmp.eq.f32.partialorder %v2444, inf
        %v2626 = vsel %vm2625, %v2444, %v2624
        %vm2627 = vcmp.eq.f32.partialorder %v2444, 0.0
        %v2628 = vand.u32 %v2444, 2147483648
        %v2629 = vsel %vm2627, %v2628, %v2626
        %v2630 = vrsqrt.pop %v2446
        %v2631 = vmul.f32 %v2630, %v2446
        %v2632 = vmul.f32 %v2631, %v2630
        %v2633 = vmul.f32 0.5, %v2632
        %v2634 = vsub.f32 1.5, %v2633
        %v2635 = vmul.f32 %v2630, %v2634
        %v2636 = vmul.f32 %v2446, %v2635
        %vm2637 = vcmp.eq.f32.partialorder %v2446, inf
        %v2638 = vsel %vm2637, %v2446, %v2636
        %vm2639 = vcmp.eq.f32.partialorder %v2446, 0.0
        %v2640 = vand.u32 %v2446, 2147483648
        %v2641 = vsel %vm2639, %v2640, %v2638
        %v2642 = vrsqrt.pop %v2449
        %v2643 = vmul.f32 %v2642, %v2449
        %v2644 = vmul.f32 %v2643, %v2642
        %v2645 = vmul.f32 0.5, %v2644
        %v2646 = vsub.f32 1.5, %v2645
        %v2647 = vmul.f32 %v2642, %v2646
        %v2648 = vmul.f32 %v2449, %v2647
        %vm2649 = vcmp.eq.f32.partialorder %v2449, inf
        %v2650 = vsel %vm2649, %v2449, %v2648
        %vm2651 = vcmp.eq.f32.partialorder %v2449, 0.0
        %v2652 = vand.u32 %v2449, 2147483648
        %v2653 = vsel %vm2651, %v2652, %v2650
        %v2654 = vrsqrt.pop %v2451
        %v2655 = vmul.f32 %v2654, %v2451
        %v2656 = vmul.f32 %v2655, %v2654
        %v2657 = vmul.f32 0.5, %v2656
        %v2658 = vsub.f32 1.5, %v2657
        %v2659 = vmul.f32 %v2654, %v2658
        %v2660 = vmul.f32 %v2451, %v2659
        %vm2661 = vcmp.eq.f32.partialorder %v2451, inf
        %v2662 = vsel %vm2661, %v2451, %v2660
        %vm2663 = vcmp.eq.f32.partialorder %v2451, 0.0
        %v2664 = vand.u32 %v2451, 2147483648
        %v2665 = vsel %vm2663, %v2664, %v2662
        %v2666 = vrsqrt.pop %v2454
        %v2667 = vmul.f32 %v2666, %v2454
        %v2668 = vmul.f32 %v2667, %v2666
        %v2669 = vmul.f32 0.5, %v2668
        %v2670 = vsub.f32 1.5, %v2669
        %v2671 = vmul.f32 %v2666, %v2670
        %v2672 = vmul.f32 %v2454, %v2671
        %vm2673 = vcmp.eq.f32.partialorder %v2454, inf
        %v2674 = vsel %vm2673, %v2454, %v2672
        %vm2675 = vcmp.eq.f32.partialorder %v2454, 0.0
        %v2676 = vand.u32 %v2454, 2147483648
        %v2677 = vsel %vm2675, %v2676, %v2674
        %v2678 = vrsqrt.pop %v2456
        %v2679 = vmul.f32 %v2678, %v2456
        %v2680 = vmul.f32 %v2679, %v2678
        %v2681 = vmul.f32 0.5, %v2680
        %v2682 = vsub.f32 1.5, %v2681
        %v2683 = vmul.f32 %v2678, %v2682
        %v2684 = vmul.f32 %v2456, %v2683
        %vm2685 = vcmp.eq.f32.partialorder %v2456, inf
        %v2686 = vsel %vm2685, %v2456, %v2684
        %vm2687 = vcmp.eq.f32.partialorder %v2456, 0.0
        %v2688 = vand.u32 %v2456, 2147483648
        %v2689 = vsel %vm2687, %v2688, %v2686
        %v2690 = vrsqrt.pop %v2459
        %v2691 = vmul.f32 %v2690, %v2459
        %v2692 = vmul.f32 %v2691, %v2690
        %v2693 = vmul.f32 0.5, %v2692
        %v2694 = vsub.f32 1.5, %v2693
        %v2695 = vmul.f32 %v2690, %v2694
        %v2696 = vmul.f32 %v2459, %v2695
        %vm2697 = vcmp.eq.f32.partialorder %v2459, inf
        %v2698 = vsel %vm2697, %v2459, %v2696
        %vm2699 = vcmp.eq.f32.partialorder %v2459, 0.0
        %v2700 = vand.u32 %v2459, 2147483648
        %v2701 = vsel %vm2699, %v2700, %v2698
        %v2702 = vrsqrt.pop %v2461
        %v2703 = vmul.f32 %v2702, %v2461
        %v2704 = vmul.f32 %v2703, %v2702
        %v2705 = vmul.f32 0.5, %v2704
        %v2706 = vsub.f32 1.5, %v2705
        %v2707 = vmul.f32 %v2702, %v2706
        %v2708 = vmul.f32 %v2461, %v2707
        %vm2709 = vcmp.eq.f32.partialorder %v2461, inf
        %v2710 = vsel %vm2709, %v2461, %v2708
        %vm2711 = vcmp.eq.f32.partialorder %v2461, 0.0
        %v2712 = vand.u32 %v2461, 2147483648
        %v2713 = vsel %vm2711, %v2712, %v2710
        %v2714 = vrsqrt.pop %v2464
        %v2715 = vmul.f32 %v2714, %v2464
        %v2716 = vmul.f32 %v2715, %v2714
        %v2717 = vmul.f32 0.5, %v2716
        %v2718 = vsub.f32 1.5, %v2717
        %v2719 = vmul.f32 %v2714, %v2718
        %v2720 = vmul.f32 %v2464, %v2719
        %vm2721 = vcmp.eq.f32.partialorder %v2464, inf
        %v2722 = vsel %vm2721, %v2464, %v2720
        %vm2723 = vcmp.eq.f32.partialorder %v2464, 0.0
        %v2724 = vand.u32 %v2464, 2147483648
        %v2725 = vsel %vm2723, %v2724, %v2722
        %v2726 = vrsqrt.pop %v2466
        %v2727 = vmul.f32 %v2726, %v2466
        %v2728 = vmul.f32 %v2727, %v2726
        %v2729 = vmul.f32 0.5, %v2728
        %v2730 = vsub.f32 1.5, %v2729
        %v2731 = vmul.f32 %v2726, %v2730
        %v2732 = vmul.f32 %v2466, %v2731
        %vm2733 = vcmp.eq.f32.partialorder %v2466, inf
        %v2734 = vsel %vm2733, %v2466, %v2732
        %vm2735 = vcmp.eq.f32.partialorder %v2466, 0.0
        %v2736 = vand.u32 %v2466, 2147483648
        %v2737 = vsel %vm2735, %v2736, %v2734
        %v2738 = vrsqrt.pop %v2469
        %v2739 = vmul.f32 %v2738, %v2469
        %v2740 = vmul.f32 %v2739, %v2738
        %v2741 = vmul.f32 0.5, %v2740
        %v2742 = vsub.f32 1.5, %v2741
        %v2743 = vmul.f32 %v2738, %v2742
        %v2744 = vmul.f32 %v2469, %v2743
        %vm2745 = vcmp.eq.f32.partialorder %v2469, inf
        %v2746 = vsel %vm2745, %v2469, %v2744
        %vm2747 = vcmp.eq.f32.partialorder %v2469, 0.0
        %v2748 = vand.u32 %v2469, 2147483648
        %v2749 = vsel %vm2747, %v2748, %v2746
        %v2750 = vrsqrt.pop %v2471
        %v2751 = vmul.f32 %v2750, %v2471
        %v2752 = vmul.f32 %v2751, %v2750
        %v2753 = vmul.f32 0.5, %v2752
        %v2754 = vsub.f32 1.5, %v2753
        %v2755 = vmul.f32 %v2750, %v2754
        %v2756 = vmul.f32 %v2471, %v2755
        %vm2757 = vcmp.eq.f32.partialorder %v2471, inf
        %v2758 = vsel %vm2757, %v2471, %v2756
        %vm2759 = vcmp.eq.f32.partialorder %v2471, 0.0
        %v2760 = vand.u32 %v2471, 2147483648
        %v2761 = vsel %vm2759, %v2760, %v2758
        %v2762 = vrsqrt.pop %v2474
        %v2763 = vmul.f32 %v2762, %v2474
        %v2764 = vmul.f32 %v2763, %v2762
        %v2765 = vmul.f32 0.5, %v2764
        %v2766 = vsub.f32 1.5, %v2765
        %v2767 = vmul.f32 %v2762, %v2766
        %v2768 = vmul.f32 %v2474, %v2767
        %vm2769 = vcmp.eq.f32.partialorder %v2474, inf
        %v2770 = vsel %vm2769, %v2474, %v2768
        %vm2771 = vcmp.eq.f32.partialorder %v2474, 0.0
        %v2772 = vand.u32 %v2474, 2147483648
        %v2773 = vsel %vm2771, %v2772, %v2770
        %v2774 = vrsqrt.pop %v2476
        %v2775 = vmul.f32 %v2774, %v2476
        %v2776 = vmul.f32 %v2775, %v2774
        %v2777 = vmul.f32 0.5, %v2776
        %v2778 = vsub.f32 1.5, %v2777
        %v2779 = vmul.f32 %v2774, %v2778
        %v2780 = vmul.f32 %v2476, %v2779
        %vm2781 = vcmp.eq.f32.partialorder %v2476, inf
        %v2782 = vsel %vm2781, %v2476, %v2780
        %vm2783 = vcmp.eq.f32.partialorder %v2476, 0.0
        %v2784 = vand.u32 %v2476, 2147483648
        %v2785 = vsel %vm2783, %v2784, %v2782
        %v2786 = vrsqrt.pop %v2479
        %v2787 = vmul.f32 %v2786, %v2479
        %v2788 = vmul.f32 %v2787, %v2786
        %v2789 = vmul.f32 0.5, %v2788
        %v2790 = vsub.f32 1.5, %v2789
        %v2791 = vmul.f32 %v2786, %v2790
        %v2792 = vmul.f32 %v2479, %v2791
        %vm2793 = vcmp.eq.f32.partialorder %v2479, inf
        %v2794 = vsel %vm2793, %v2479, %v2792
        %vm2795 = vcmp.eq.f32.partialorder %v2479, 0.0
        %v2796 = vand.u32 %v2479, 2147483648
        %v2797 = vsel %vm2795, %v2796, %v2794
        %v2798 = vrsqrt.pop %v2481
        %v2799 = vmul.f32 %v2798, %v2481
        %v2800 = vmul.f32 %v2799, %v2798
        %v2801 = vmul.f32 0.5, %v2800
        %v2802 = vsub.f32 1.5, %v2801
        %v2803 = vmul.f32 %v2798, %v2802
        %v2804 = vmul.f32 %v2481, %v2803
        %vm2805 = vcmp.eq.f32.partialorder %v2481, inf
        %v2806 = vsel %vm2805, %v2481, %v2804
        %vm2807 = vcmp.eq.f32.partialorder %v2481, 0.0
        %v2808 = vand.u32 %v2481, 2147483648
        %v2809 = vsel %vm2807, %v2808, %v2806
        %v2810 = vrsqrt.pop %v2484
        %v2811 = vmul.f32 %v2810, %v2484
        %v2812 = vmul.f32 %v2811, %v2810
        %v2813 = vmul.f32 0.5, %v2812
        %v2814 = vsub.f32 1.5, %v2813
        %v2815 = vmul.f32 %v2810, %v2814
        %v2816 = vmul.f32 %v2484, %v2815
        %vm2817 = vcmp.eq.f32.partialorder %v2484, inf
        %v2818 = vsel %vm2817, %v2484, %v2816
        %vm2819 = vcmp.eq.f32.partialorder %v2484, 0.0
        %v2820 = vand.u32 %v2484, 2147483648
        %v2821 = vsel %vm2819, %v2820, %v2818
        %v2822 = vrsqrt.pop %v2486
        %v2823 = vmul.f32 %v2822, %v2486
        %v2824 = vmul.f32 %v2823, %v2822
        %v2825 = vmul.f32 0.5, %v2824
        %v2826 = vsub.f32 1.5, %v2825
        %v2827 = vmul.f32 %v2822, %v2826
        %v2828 = vmul.f32 %v2486, %v2827
        %vm2829 = vcmp.eq.f32.partialorder %v2486, inf
        %v2830 = vsel %vm2829, %v2486, %v2828
        %vm2831 = vcmp.eq.f32.partialorder %v2486, 0.0
        %v2832 = vand.u32 %v2486, 2147483648
        %v2833 = vsel %vm2831, %v2832, %v2830
        %v2834 = vrsqrt.pop %v2489
        %v2835 = vmul.f32 %v2834, %v2489
        %v2836 = vmul.f32 %v2835, %v2834
        %v2837 = vmul.f32 0.5, %v2836
        %v2838 = vsub.f32 1.5, %v2837
        %v2839 = vmul.f32 %v2834, %v2838
        %v2840 = vmul.f32 %v2489, %v2839
        %vm2841 = vcmp.eq.f32.partialorder %v2489, inf
        %v2842 = vsel %vm2841, %v2489, %v2840
        %vm2843 = vcmp.eq.f32.partialorder %v2489, 0.0
        %v2844 = vand.u32 %v2489, 2147483648
        %v2845 = vsel %vm2843, %v2844, %v2842
        %v2846 = vrsqrt.pop %v2491
        %v2847 = vmul.f32 %v2846, %v2491
        %v2848 = vmul.f32 %v2847, %v2846
        %v2849 = vmul.f32 0.5, %v2848
        %v2850 = vsub.f32 1.5, %v2849
        %v2851 = vmul.f32 %v2846, %v2850
        %v2852 = vmul.f32 %v2491, %v2851
        %vm2853 = vcmp.eq.f32.partialorder %v2491, inf
        %v2854 = vsel %vm2853, %v2491, %v2852
        %vm2855 = vcmp.eq.f32.partialorder %v2491, 0.0
        %v2856 = vand.u32 %v2491, 2147483648
        %v2857 = vsel %vm2855, %v2856, %v2854
        %v2858 = vrsqrt.pop %v2494
        %v2859 = vmul.f32 %v2858, %v2494
        %v2860 = vmul.f32 %v2859, %v2858
        %v2861 = vmul.f32 0.5, %v2860
        %v2862 = vsub.f32 1.5, %v2861
        %v2863 = vmul.f32 %v2858, %v2862
        %v2864 = vmul.f32 %v2494, %v2863
        %vm2865 = vcmp.eq.f32.partialorder %v2494, inf
        %v2866 = vsel %vm2865, %v2494, %v2864
        %vm2867 = vcmp.eq.f32.partialorder %v2494, 0.0
        %v2868 = vand.u32 %v2494, 2147483648
        %v2869 = vsel %vm2867, %v2868, %v2866
        %v2870 = vrsqrt.pop %v2496
        %v2871 = vmul.f32 %v2870, %v2496
        %v2872 = vmul.f32 %v2871, %v2870
        %v2873 = vmul.f32 0.5, %v2872
        %v2874 = vsub.f32 1.5, %v2873
        %v2875 = vmul.f32 %v2870, %v2874
        %v2876 = vmul.f32 %v2496, %v2875
        %vm2877 = vcmp.eq.f32.partialorder %v2496, inf
        %v2878 = vsel %vm2877, %v2496, %v2876
        %vm2879 = vcmp.eq.f32.partialorder %v2496, 0.0
        %v2880 = vand.u32 %v2496, 2147483648
        %v2881 = vsel %vm2879, %v2880, %v2878
        %v2882 = vmul.f32 %v2281, %v2509
        %v2883 = vmul.f32 %v2282, %v2521
        %v2884 = vmul.f32 %v2283, %v2533
        %v2885 = vmul.f32 %v2284, %v2545
        %v2886 = vmul.f32 %v2285, %v2557
        %v2887 = vmul.f32 %v2286, %v2569
        %v2888 = vmul.f32 %v2287, %v2581
        %v2889 = vmul.f32 %v2288, %v2593
        %v2890 = vmul.f32 %v2289, %v2605
        %v2891 = vmul.f32 %v2290, %v2617
        %v2892 = vmul.f32 %v2291, %v2629
        %v2893 = vmul.f32 %v2292, %v2641
        %v2894 = vmul.f32 %v2293, %v2653
        %v2895 = vmul.f32 %v2294, %v2665
        %v2896 = vmul.f32 %v2295, %v2677
        %v2897 = vmul.f32 %v2296, %v2689
        %v2898 = vmul.f32 %v2297, %v2701
        %v2899 = vmul.f32 %v2298, %v2713
        %v2900 = vmul.f32 %v2299, %v2725
        %v2901 = vmul.f32 %v2300, %v2737
        %v2902 = vmul.f32 %v2301, %v2749
        %v2903 = vmul.f32 %v2302, %v2761
        %v2904 = vmul.f32 %v2303, %v2773
        %v2905 = vmul.f32 %v2304, %v2785
        %v2906 = vmul.f32 %v2305, %v2797
        %v2907 = vmul.f32 %v2306, %v2809
        %v2908 = vmul.f32 %v2307, %v2821
        %v2909 = vmul.f32 %v2308, %v2833
        %v2910 = vmul.f32 %v2309, %v2845
        %v2911 = vmul.f32 %v2310, %v2857
        %v2912 = vmul.f32 %v2311, %v2869
        %v2913 = vmul.f32 %v2312, %v2881
        %v2914 = vpack.c.bf16 %v2040, %v2040
        %v2915 = vpack.c.bf16 %v2041, %v2041
        %v2916 = vpack.c.bf16 %v2882, %v2882
        %v2917 = vpack.c.bf16 %v2883, %v2883
        %v2918 = vpack.c.bf16 %v2042, %v2042
        %v2919 = vpack.c.bf16 %v2043, %v2043
        %v2920 = vpack.c.bf16 %v2884, %v2884
        %v2921 = vpack.c.bf16 %v2885, %v2885
        %v2922 = vpack.c.bf16 %v2044, %v2044
        %v2923 = vpack.c.bf16 %v2045, %v2045
        %v2924 = vpack.c.bf16 %v2886, %v2886
        %v2925 = vpack.c.bf16 %v2887, %v2887
        %v2926 = vpack.c.bf16 %v2046, %v2046
        %v2927 = vpack.c.bf16 %v2047, %v2047
        %v2928 = vpack.c.bf16 %v2888, %v2888
        %v2929 = vpack.c.bf16 %v2889, %v2889
        %v2930 = vpack.c.bf16 %v2048, %v2048
        %v2931 = vpack.c.bf16 %v2049, %v2049
        %v2932 = vpack.c.bf16 %v2890, %v2890
        %v2933 = vpack.c.bf16 %v2891, %v2891
        %v2934 = vpack.c.bf16 %v2050, %v2050
        %v2935 = vpack.c.bf16 %v2051, %v2051
        %v2936 = vpack.c.bf16 %v2892, %v2892
        %v2937 = vpack.c.bf16 %v2893, %v2893
        %v2938 = vpack.c.bf16 %v2052, %v2052
        %v2939 = vpack.c.bf16 %v2053, %v2053
        %v2940 = vpack.c.bf16 %v2894, %v2894
        %v2941 = vpack.c.bf16 %v2895, %v2895
        %v2942 = vpack.c.bf16 %v2054, %v2054
        %v2943 = vpack.c.bf16 %v2055, %v2055
        %v2944 = vpack.c.bf16 %v2896, %v2896
        %v2945 = vpack.c.bf16 %v2897, %v2897
        %v2946 = vpack.c.bf16 %v2056, %v2056
        %v2947 = vpack.c.bf16 %v2057, %v2057
        %v2948 = vpack.c.bf16 %v2898, %v2898
        %v2949 = vpack.c.bf16 %v2899, %v2899
        %v2950 = vpack.c.bf16 %v2058, %v2058
        %v2951 = vpack.c.bf16 %v2059, %v2059
        %v2952 = vpack.c.bf16 %v2900, %v2900
        %v2953 = vpack.c.bf16 %v2901, %v2901
        %v2954 = vpack.c.bf16 %v2060, %v2060
        %v2955 = vpack.c.bf16 %v2061, %v2061
        %v2956 = vpack.c.bf16 %v2902, %v2902
        %v2957 = vpack.c.bf16 %v2903, %v2903
        %v2958 = vpack.c.bf16 %v2062, %v2062
        %v2959 = vpack.c.bf16 %v2063, %v2063
        %v2960 = vpack.c.bf16 %v2904, %v2904
        %v2961 = vpack.c.bf16 %v2905, %v2905
        %v2962 = vpack.c.bf16 %v2064, %v2064
        %v2963 = vpack.c.bf16 %v2065, %v2065
        %v2964 = vpack.c.bf16 %v2906, %v2906
        %v2965 = vpack.c.bf16 %v2907, %v2907
        %v2966 = vpack.c.bf16 %v2066, %v2066
        %v2967 = vpack.c.bf16 %v2067, %v2067
        %v2968 = vpack.c.bf16 %v2908, %v2908
        %v2969 = vpack.c.bf16 %v2909, %v2909
        %v2970 = vpack.c.bf16 %v2068, %v2068
        %v2971 = vpack.c.bf16 %v2069, %v2069
        %v2972 = vpack.c.bf16 %v2910, %v2910
        %v2973 = vpack.c.bf16 %v2911, %v2911
        %v2974 = vpack.c.bf16 %v2070, %v2070
        %v2975 = vpack.c.bf16 %v2071, %v2071
        %v2976 = vpack.c.bf16 %v2912, %v2912
        %v2977 = vpack.c.bf16 %v2913, %v2913
        %vm2978 = vcmask 125952
        %2979 = vst.msk [vmem:[%s420] sm:$0xf] %vm2978, %v2914
        %2980 = vst.msk [vmem:[%s420 + $0x4] sm:$0xf] %vm2978, %v2915
        %2981 = vst.msk [vmem:[%s420 + $0x8] sm:$0xf] %vm2978, %v2916
        %2982 = vst.msk [vmem:[%s420 + $0xc] sm:$0xf] %vm2978, %v2917
        %2983 = vst.msk [vmem:[%s420 + $0x10] sm:$0xf] %vm2978, %v2918
        %2984 = vst.msk [vmem:[%s420 + $0x14] sm:$0xf] %vm2978, %v2919
        %2985 = vst.msk [vmem:[%s420 + $0x18] sm:$0xf] %vm2978, %v2920
        %2986 = vst.msk [vmem:[%s420 + $0x1c] sm:$0xf] %vm2978, %v2921
        %2987 = vst.msk [vmem:[%s420 + $0x20] sm:$0xf] %vm2978, %v2922
        %2988 = vst.msk [vmem:[%s420 + $0x24] sm:$0xf] %vm2978, %v2923
        %2989 = vst.msk [vmem:[%s420 + $0x28] sm:$0xf] %vm2978, %v2924
        %2990 = vst.msk [vmem:[%s420 + $0x2c] sm:$0xf] %vm2978, %v2925
        %2991 = vst.msk [vmem:[%s420 + $0x30] sm:$0xf] %vm2978, %v2926
        %2992 = vst.msk [vmem:[%s420 + $0x34] sm:$0xf] %vm2978, %v2927
        %2993 = vst.msk [vmem:[%s420 + $0x38] sm:$0xf] %vm2978, %v2928
        %2994 = vst.msk [vmem:[%s420 + $0x3c] sm:$0xf] %vm2978, %v2929
        %2995 = vst.msk [vmem:[%s420 + $0x40] sm:$0xf] %vm2978, %v2930
        %2996 = vst.msk [vmem:[%s420 + $0x44] sm:$0xf] %vm2978, %v2931
        %2997 = vst.msk [vmem:[%s420 + $0x48] sm:$0xf] %vm2978, %v2932
        %2998 = vst.msk [vmem:[%s420 + $0x4c] sm:$0xf] %vm2978, %v2933
        %2999 = vst.msk [vmem:[%s420 + $0x50] sm:$0xf] %vm2978, %v2934
        %3000 = vst.msk [vmem:[%s420 + $0x54] sm:$0xf] %vm2978, %v2935
        %3001 = vst.msk [vmem:[%s420 + $0x58] sm:$0xf] %vm2978, %v2936
        %3002 = vst.msk [vmem:[%s420 + $0x5c] sm:$0xf] %vm2978, %v2937
        %3003 = vst.msk [vmem:[%s420 + $0x60] sm:$0xf] %vm2978, %v2938
        %3004 = vst.msk [vmem:[%s420 + $0x64] sm:$0xf] %vm2978, %v2939
        %3005 = vst.msk [vmem:[%s420 + $0x68] sm:$0xf] %vm2978, %v2940
        %3006 = vst.msk [vmem:[%s420 + $0x6c] sm:$0xf] %vm2978, %v2941
        %3007 = vst.msk [vmem:[%s420 + $0x70] sm:$0xf] %vm2978, %v2942
        %3008 = vst.msk [vmem:[%s420 + $0x74] sm:$0xf] %vm2978, %v2943
        %3009 = vst.msk [vmem:[%s420 + $0x78] sm:$0xf] %vm2978, %v2944
        %3010 = vst.msk [vmem:[%s420 + $0x7c] sm:$0xf] %vm2978, %v2945
        %3011 = vst.msk [vmem:[%s420 + $0x80] sm:$0xf] %vm2978, %v2946
        %3012 = vst.msk [vmem:[%s420 + $0x84] sm:$0xf] %vm2978, %v2947
        %3013 = vst.msk [vmem:[%s420 + $0x88] sm:$0xf] %vm2978, %v2948
        %3014 = vst.msk [vmem:[%s420 + $0x8c] sm:$0xf] %vm2978, %v2949
        %3015 = vst.msk [vmem:[%s420 + $0x90] sm:$0xf] %vm2978, %v2950
        %3016 = vst.msk [vmem:[%s420 + $0x94] sm:$0xf] %vm2978, %v2951
        %3017 = vst.msk [vmem:[%s420 + $0x98] sm:$0xf] %vm2978, %v2952
        %3018 = vst.msk [vmem:[%s420 + $0x9c] sm:$0xf] %vm2978, %v2953
        %3019 = vst.msk [vmem:[%s420 + $0xa0] sm:$0xf] %vm2978, %v2954
        %3020 = vst.msk [vmem:[%s420 + $0xa4] sm:$0xf] %vm2978, %v2955
        %3021 = vst.msk [vmem:[%s420 + $0xa8] sm:$0xf] %vm2978, %v2956
        %3022 = vst.msk [vmem:[%s420 + $0xac] sm:$0xf] %vm2978, %v2957
        %3023 = vst.msk [vmem:[%s420 + $0xb0] sm:$0xf] %vm2978, %v2958
        %3024 = vst.msk [vmem:[%s420 + $0xb4] sm:$0xf] %vm2978, %v2959
        %3025 = vst.msk [vmem:[%s420 + $0xb8] sm:$0xf] %vm2978, %v2960
        %3026 = vst.msk [vmem:[%s420 + $0xbc] sm:$0xf] %vm2978, %v2961
        %3027 = vst.msk [vmem:[%s420 + $0xc0] sm:$0xf] %vm2978, %v2962
        %3028 = vst.msk [vmem:[%s420 + $0xc4] sm:$0xf] %vm2978, %v2963
        %3029 = vst.msk [vmem:[%s420 + $0xc8] sm:$0xf] %vm2978, %v2964
        %3030 = vst.msk [vmem:[%s420 + $0xcc] sm:$0xf] %vm2978, %v2965
        %3031 = vst.msk [vmem:[%s420 + $0xd0] sm:$0xf] %vm2978, %v2966
        %3032 = vst.msk [vmem:[%s420 + $0xd4] sm:$0xf] %vm2978, %v2967
        %3033 = vst.msk [vmem:[%s420 + $0xd8] sm:$0xf] %vm2978, %v2968
        %3034 = vst.msk [vmem:[%s420 + $0xdc] sm:$0xf] %vm2978, %v2969
        %3035 = vst.msk [vmem:[%s420 + $0xe0] sm:$0xf] %vm2978, %v2970
        %3036 = vst.msk [vmem:[%s420 + $0xe4] sm:$0xf] %vm2978, %v2971
        %3037 = vst.msk [vmem:[%s420 + $0xe8] sm:$0xf] %vm2978, %v2972
        %3038 = vst.msk [vmem:[%s420 + $0xec] sm:$0xf] %vm2978, %v2973
        %3039 = vst.msk [vmem:[%s420 + $0xf0] sm:$0xf] %vm2978, %v2974
        %3040 = vst.msk [vmem:[%s420 + $0xf4] sm:$0xf] %vm2978, %v2975
        %3041 = vst.msk [vmem:[%s420 + $0xf8] sm:$0xf] %vm2978, %v2976
        %3042 = vst.msk [vmem:[%s420 + $0xfc] sm:$0xf] %vm2978, %v2977
        %s3043 = smul.u32 32, %s25
        %p3044 = scmp.lt.s32.totalorder %s24, 1
        %s3045 = scalar_select %p3044, %s24, 1
        %p3046 = scmp.lt.s32.totalorder %s3043, 31
        %s3047 = scalar_select %p3046, %s3043, 31
        %s3048 = smul.addr %s3047, 2
        %s3049 = smul.addr %s3045, 64
        %s3050 = sadd.s32 %s3048, %s3049
        %s3051 = smul.addr %s3050, 4
        %s3052 = scalar_lea.vmem %s7, %s3051
        // Predicated region
        $region61: #{synthesis_net_forward.6} parent=47 // pred_check
          %p3053 = pneg %p217
        $region62: #{synthesis_net_forward.6} parent=47 // pred_check_branch
          %3055 = sbr.rel (%p3053) target = $region64
        $region63: #{synthesis_net_forward.6} parent=47 // pred_region
          %s3056 = smul.u32 32, %s25
        $region64: #{synthesis_net_forward.6} parent=47 // pred_fallthru
          _
      $region48: #{synthesis_net_forward.6} parent=5 // pred_fallthru
        _
      %p3057 = scmp.le.s32.totalorder 2, %s15
      // Predicated region
      $region65: #{synthesis_net_forward.6} parent=5 // pred_check
        %p3058 = pneg %p3057
      $region66: #{synthesis_net_forward.6} parent=5 // pred_check_branch
        %3060 = sbr.rel (%p3058) target = $region68
      $region67: #{synthesis_net_forward.6} parent=5 // pred_region
        %s3061 = ssub.s32 %s15, 2
        // Predicated region
        $region69: #{synthesis_net_forward.6} parent=67 // pred_check
          %p3062 = pneg %p223
        $region70: #{synthesis_net_forward.6} parent=67 // pred_check_branch
          %3064 = sbr.rel (%p3062) target = $region72
        $region71: #{synthesis_net_forward.6} parent=67 // pred_region
          %s3065 = smul.u32 32, %s27
          %p3066 = scmp.lt.s32.totalorder %s26, 1
          %s3067 = scalar_select %p3066, %s26, 1
          %p3068 = scmp.lt.s32.totalorder %s3065, 31
          %s3069 = scalar_select %p3068, %s3065, 31
          %s3070 = smul.addr %s3069, 2
          %s3071 = smul.addr %s3067, 64
          %s3072 = sadd.s32 %s3070, %s3071
          %s3073 = smul.addr %s3072, 4
          %s3074 = scalar_lea.vmem %s7, %s3073
        $region72: #{synthesis_net_forward.6} parent=67 // pred_fallthru
          _
      $region68: #{synthesis_net_forward.6} parent=5 // pred_fallthru
        _
    $region6: #{synthesis_net_forward.6} parent=1 // loop_footer
      %s19 = sadd.s32 1, %s15
    $region7: #{synthesis_net_forward.6} parent=1 // loop_footer_branch
      %14 = sbr.rel target = $region3
    $region8: #{synthesis_net_forward.6} parent=1 // loop_exit
      _
    %3075 = vsyncpa [#allocation3], 1
    %s3076 = scalar_lea.sflag [#allocation3], 1
    %3077 = vsyncpa %s3076, 1
    %3078 = vsyncpa [#allocation5], 1

// kernel: synthesis_net_forward.7
$region0: #{synthesis_net_forward.7}
  #allocation0 [shape = 'u32[]', space=smem, size = 0x4, offset = 0x4, fixed_abs, tag = 'smem constant byte address 0x4 - core index']
  #allocation1 [shape = 'u32[72,128]{1,0:T(1,128)}', space=vmem, size = 0x9000, scoped, tag = 'internal scratch']
  %s0 = inlined_call_operand.vmem [shape: bf16[2,64,34,8], index: 0, kind: input, shape index: {}, may-alias: {0,1}]
  %s1 = inlined_call_operand.vmem [shape: bf16[2,64,34,8], index: 1, kind: input, shape index: {}, may-alias: {0,1}]
  %s2 = inlined_call_operand.vmem [shape: bf16[3,24,6], index: 2, kind: input, shape index: {}]
  %s3 = inlined_call_operand.vmem [shape: bf16[2,24,6], index: 3, kind: input, shape index: {}]
  %s4 = inlined_call_operand.vmem [shape: f32[1,6], index: 4, kind: input, shape index: {}]
  %s5 = inlined_call_operand.vmem [shape: f32[2,64,32,6], index: 5, kind: output, shape index: {}]
  %s6 = sld [smem:[#allocation0]]
  $region53: #{synthesis_net_forward.7} parent=0
    _
  %s8 = ssub.s32 1, %s6
  %s9 = scalar_select 0, %s8, %s6
  loop: start=0, step=1, limit=4
  $region2: #{synthesis_net_forward.7} parent=0 // loop_pre_header
    _
  $region3: #{synthesis_net_forward.7} parent=0 // loop_header
    %s11 = sphi 0, %s15
    %p12 = scmp.ge.s32.totalorder %s11, 4
    %s18 = sphi 0, %s30
    %s19 = sphi 0, %s26
    %s20 = sphi 0, %s18
    %s21 = sphi 0, %s19
    %s22 = sphi 0, %s20
    %s23 = sphi 0, %s21
    %s35 = sphi 0, %s37
    %s38 = sphi 0, %s35
    %s39 = sphi 0, %s38
    %s55 = sphi 0, %s39
    %s67 = sphi 0, %s69
    %s70 = sphi 0, %s67
    %s71 = sphi 0, %s70
    %s87 = sphi 0, %s71
    %s91 = sphi 0, %s91
    %s93 = sphi 0, %s91
    %s94 = sphi 0, %s93
    %s108 = sphi 0, %s94
    %s112 = sphi 0, %s112
    %s114 = sphi 0, %s112
    %s115 = sphi 0, %s114
    %s129 = sphi 0, %s115
    %s133 = sphi 0, %s133
    %s135 = sphi 0, %s133
    %s136 = sphi 0, %s135
    %s150 = sphi 0, %s136
    %s158 = sphi 0, %s160
    %s161 = sphi 0, %s158
    %s162 = sphi 0, %s161
    %s178 = sphi 0, %s162
  $region4: #{synthesis_net_forward.7} parent=0 // loop_header_branch
    %14 = sbr.rel (%p12) target = $region8
  $region5: #{synthesis_net_forward.7} parent=0 // loop_body
    %s16 = ssub.s32 %s11, 1
    %s17 = ssub.s32 %s11, 2
    %s24 = sadd.s32 1, %s19
    %p25 = scmp.ge.s32.totalorder %s24, 1
    %s26 = scalar_select %p25, 0, %s24
    %s27 = sadd.s32 1, %s18
    %s28 = scalar_select %p25, %s27, %s18
    %p29 = scmp.ge.s32.totalorder %s28, 2
    %s30 = scalar_select %p29, 0, %s28
    %s31 = ssub.s32 %s18, %s30
    %s32 = ssub.s32 %s19, %s26
    %s33 = sor.u32 %s31, %s32
    %p34 = scmp.eq.s32.totalorder %s33, 0
    %s36 = sadd.s32 %s35, 1
    %s37 = scalar_select %p34, %s35, %s36
    %p40 = pneg %p34
    %p41 = scmp.eq.s32.totalorder %s11, 1
    %p42 = por %p40, %p41
    %p43 = scmp.ne.s32.totalorder %s35, %s38
    %p44 = scmp.eq.s32.totalorder %s11, 0
    %p45 = por %p43, %p44
    %p46 = scmp.ne.s32.totalorder %s35, %s38
    %p47 = scmp.eq.s32.totalorder %s16, 1
    %p48 = por %p46, %p47
    %p49 = scmp.ne.s32.totalorder %s38, %s39
    %p50 = scmp.eq.s32.totalorder %s16, 0
    %p51 = por %p49, %p50
    %p52 = scmp.ne.s32.totalorder %s38, %s39
    %p53 = scmp.eq.s32.totalorder %s17, 1
    %p54 = por %p52, %p53
    %p56 = scmp.ne.s32.totalorder %s39, %s55
    %p57 = scmp.eq.s32.totalorder %s17, 0
    %p58 = por %p56, %p57
    %s59 = sadd.s32 %s19, 1
    %s60 = smul.u32 %s59, 16
    %s61 = sadd.s32 %s26, 1
    %s62 = smul.u32 %s61, 16
    %s63 = ssub.s32 %s18, %s30
    %s64 = ssub.s32 %s60, %s62
    %s65 = sor.u32 %s63, %s64
    %p66 = scmp.eq.s32.totalorder %s65, 0
    %s68 = sadd.s32 %s67, 1
    %s69 = scalar_select %p66, %s67, %s68
    %p72 = pneg %p66
    %p73 = scmp.eq.s32.totalorder %s11, 1
    %p74 = por %p72, %p73
    %p75 = scmp.ne.s32.totalorder %s67, %s70
    %p76 = scmp.eq.s32.totalorder %s11, 0
    %p77 = por %p75, %p76
    %p78 = scmp.ne.s32.totalorder %s67, %s70
    %p79 = scmp.eq.s32.totalorder %s16, 1
    %p80 = por %p78, %p79
    %p81 = scmp.ne.s32.totalorder %s70, %s71
    %p82 = scmp.eq.s32.totalorder %s16, 0
    %p83 = por %p81, %p82
    %p84 = scmp.ne.s32.totalorder %s70, %s71
    %p85 = scmp.eq.s32.totalorder %s17, 1
    %p86 = por %p84, %p85
    %p88 = scmp.ne.s32.totalorder %s71, %s87
    %p89 = scmp.eq.s32.totalorder %s17, 0
    %p90 = por %p88, %p89
    %s92 = sadd.s32 %s91, 1
    %p95 = scmp.eq.s32.totalorder %s11, 1
    %p96 = scmp.ne.s32.totalorder %s91, %s93
    %p97 = scmp.eq.s32.totalorder %s11, 0
    %p98 = por %p96, %p97
    %p99 = scmp.ne.s32.totalorder %s91, %s93
    %p100 = scmp.eq.s32.totalorder %s16, 1
    %p101 = por %p99, %p100
    %p102 = scmp.ne.s32.totalorder %s93, %s94
    %p103 = scmp.eq.s32.totalorder %s16, 0
    %p104 = por %p102, %p103
    %p105 = scmp.ne.s32.totalorder %s93, %s94
    %p106 = scmp.eq.s32.totalorder %s17, 1
    %p107 = por %p105, %p106
    %p109 = scmp.ne.s32.totalorder %s94, %s108
    %p110 = scmp.eq.s32.totalorder %s17, 0
    %p111 = por %p109, %p110
    %s113 = sadd.s32 %s112, 1
    %p116 = scmp.eq.s32.totalorder %s11, 1
    %p117 = scmp.ne.s32.totalorder %s112, %s114
    %p118 = scmp.eq.s32.totalorder %s11, 0
    %p119 = por %p117, %p118
    %p120 = scmp.ne.s32.totalorder %s112, %s114
    %p121 = scmp.eq.s32.totalorder %s16, 1
    %p122 = por %p120, %p121
    %p123 = scmp.ne.s32.totalorder %s114, %s115
    %p124 = scmp.eq.s32.totalorder %s16, 0
    %p125 = por %p123, %p124
    %p126 = scmp.ne.s32.totalorder %s114, %s115
    %p127 = scmp.eq.s32.totalorder %s17, 1
    %p128 = por %p126, %p127
    %p130 = scmp.ne.s32.totalorder %s115, %s129
    %p131 = scmp.eq.s32.totalorder %s17, 0
    %p132 = por %p130, %p131
    %s134 = sadd.s32 %s133, 1
    %p137 = scmp.eq.s32.totalorder %s11, 1
    %p138 = scmp.ne.s32.totalorder %s133, %s135
    %p139 = scmp.eq.s32.totalorder %s11, 0
    %p140 = por %p138, %p139
    %p141 = scmp.ne.s32.totalorder %s133, %s135
    %p142 = scmp.eq.s32.totalorder %s16, 1
    %p143 = por %p141, %p142
    %p144 = scmp.ne.s32.totalorder %s135, %s136
    %p145 = scmp.eq.s32.totalorder %s16, 0
    %p146 = por %p144, %p145
    %p147 = scmp.ne.s32.totalorder %s135, %s136
    %p148 = scmp.eq.s32.totalorder %s17, 1
    %p149 = por %p147, %p148
    %p151 = scmp.ne.s32.totalorder %s136, %s150
    %p152 = scmp.eq.s32.totalorder %s17, 0
    %p153 = por %p151, %p152
    %s154 = ssub.s32 %s18, %s30
    %s155 = ssub.s32 %s19, %s26
    %s156 = sor.u32 %s154, %s155
    %p157 = scmp.eq.s32.totalorder %s156, 0
    %s159 = sadd.s32 %s158, 1
    %s160 = scalar_select %p157, %s158, %s159
    %p163 = pneg %p157
    %p164 = scmp.eq.s32.totalorder %s11, 1
    %p165 = por %p163, %p164
    %p166 = scmp.ne.s32.totalorder %s158, %s161
    %p167 = scmp.eq.s32.totalorder %s11, 0
    %p168 = por %p166, %p167
    %p169 = scmp.ne.s32.totalorder %s158, %s161
    %p170 = scmp.eq.s32.totalorder %s16, 1
    %p171 = por %p169, %p170
    %p172 = scmp.ne.s32.totalorder %s161, %s162
    %p173 = scmp.eq.s32.totalorder %s16, 0
    %p174 = por %p172, %p173
    %p175 = scmp.ne.s32.totalorder %s161, %s162
    %p176 = scmp.eq.s32.totalorder %s17, 1
    %p177 = por %p175, %p176
    %p179 = scmp.ne.s32.totalorder %s162, %s178
    %p180 = scmp.eq.s32.totalorder %s17, 0
    %p181 = por %p179, %p180
    %p182 = scmp.le.s32.totalorder 1, %s11
    %p183 = scmp.lt.s32.totalorder %s11, 3
    %p184 = pnand %p182, %p183
    %p185 = pneg %p184
    // Predicated region
    $region9: #{synthesis_net_forward.7} parent=5 // pred_check
      _
    $region10: #{synthesis_net_forward.7} parent=5 // pred_check_branch
      %187 = sbr.rel (%p184) target = $region12
    $region11: #{synthesis_net_forward.7} parent=5 // pred_region
      %s188 = ssub.s32 %s11, 1
      // Predicated region
      $region13: #{synthesis_net_forward.7} parent=11 // pred_check
        %p189 = pneg %p104
      $region14: #{synthesis_net_forward.7} parent=11 // pred_check_branch
        %191 = sbr.rel (%p189) target = $region16
      $region15: #{synthesis_net_forward.7} parent=11 // pred_region
        _
      $region16: #{synthesis_net_forward.7} parent=11 // pred_fallthru
        _
      // Predicated region
      $region17: #{synthesis_net_forward.7} parent=11 // pred_check
        %p192 = pneg %p125
      $region18: #{synthesis_net_forward.7} parent=11 // pred_check_branch
        %194 = sbr.rel (%p192) target = $region20
      $region19: #{synthesis_net_forward.7} parent=11 // pred_region
        _
      $region20: #{synthesis_net_forward.7} parent=11 // pred_fallthru
        _
      // Predicated region
      $region21: #{synthesis_net_forward.7} parent=11 // pred_check
        %p195 = pneg %p146
      $region22: #{synthesis_net_forward.7} parent=11 // pred_check_branch
        %197 = sbr.rel (%p195) target = $region24
      $region23: #{synthesis_net_forward.7} parent=11 // pred_region
        _
      $region24: #{synthesis_net_forward.7} parent=11 // pred_fallthru
        _
    $region12: #{synthesis_net_forward.7} parent=5 // pred_fallthru
      _
    %p198 = scmp.lt.s32.totalorder %s11, 2
    // Predicated region
    $region25: #{synthesis_net_forward.7} parent=5 // pred_check
      %p199 = pneg %p198
    $region26: #{synthesis_net_forward.7} parent=5 // pred_check_branch
      %201 = sbr.rel (%p199) target = $region28
    $region27: #{synthesis_net_forward.7} parent=5 // pred_region
      // Predicated region
      $region29: #{synthesis_net_forward.7} parent=27 // pred_check
        %p202 = pneg %p45
      $region30: #{synthesis_net_forward.7} parent=27 // pred_check_branch
        %204 = sbr.rel (%p202) target = $region32
      $region31: #{synthesis_net_forward.7} parent=27 // pred_region
        %s205 = smul.u32 32, %s19
        %p206 = scmp.lt.s32.totalorder %s18, 1
        %s207 = scalar_select %p206, %s18, 1
        %p208 = scmp.lt.s32.totalorder %s205, 63
        %s209 = scalar_select %p208, %s205, 63
        %s210 = smul.addr %s209, 5
        %s211 = smul.addr %s207, 320
        %s212 = sadd.s32 %s210, %s211
        %s213 = smul.addr %s212, 4
        %s214 = scalar_lea.vmem %s0, %s213
        %s215 = smul.u32 32, %s19
      $region32: #{synthesis_net_forward.7} parent=27 // pred_fallthru
        _
      // Predicated region
      $region33: #{synthesis_net_forward.7} parent=27 // pred_check
        %p216 = pneg %p77
      $region34: #{synthesis_net_forward.7} parent=27 // pred_check_branch
        %218 = sbr.rel (%p216) target = $region36
      $region35: #{synthesis_net_forward.7} parent=27 // pred_region
        %s219 = sadd.s32 %s19, 1
        %s220 = smul.u32 %s219, 16
        %s221 = smul.u32 2, %s220
        %p222 = scmp.lt.s32.totalorder %s18, 1
        %s223 = scalar_select %p222, %s18, 1
        %p224 = scmp.lt.s32.totalorder %s221, 63
        %s225 = scalar_select %p224, %s221, 63
        %s226 = smul.addr %s225, 5
        %s227 = smul.addr %s223, 320
        %s228 = sadd.s32 %s226, %s227
        %s229 = smul.addr %s228, 4
        %s230 = scalar_lea.vmem %s1, %s229
        %s231 = sadd.s32 %s19, 1
        %s232 = smul.u32 %s231, 16
        %s233 = smul.u32 2, %s232
      $region36: #{synthesis_net_forward.7} parent=27 // pred_fallthru
        _
    $region28: #{synthesis_net_forward.7} parent=5 // pred_fallthru
      _
    %p234 = scmp.le.s32.totalorder 1, %s11
    %p235 = scmp.lt.s32.totalorder %s11, 3
    %p236 = pnand %p234, %p235
    %p237 = pneg %p236
    // Predicated region
    $region37: #{synthesis_net_forward.7} parent=5 // pred_check
      _
    $region38: #{synthesis_net_forward.7} parent=5 // pred_check_branch
      %239 = sbr.rel (%p236) target = $region40
    $region39: #{synthesis_net_forward.7} parent=5 // pred_region
      %s240 = ssub.s32 %s11, 1
      %s241 = smul.u32 32, %s21
      %p242 = scmp.lt.s32.totalorder %s20, 1
      %s243 = scalar_select %p242, %s20, 1
      %p244 = scmp.lt.s32.totalorder %s241, 63
      %s245 = scalar_select %p244, %s241, 63
      %s246 = smul.addr %s245, 5
      %s247 = smul.addr %s243, 320
      %s248 = sadd.s32 %s246, %s247
      %s249 = smul.addr %s248, 4
      %s250 = scalar_lea.vmem %s0, %s249
      %p251 = pneg %p51
      %p252 = pneg %p48
      %s253 = sadd.s32 %s21, 1
      %s254 = smul.u32 %s253, 16
      %s255 = smul.u32 2, %s254
      %p256 = scmp.lt.s32.totalorder %s20, 1
      %s257 = scalar_select %p256, %s20, 1
      %p258 = scmp.lt.s32.totalorder %s255, 63
      %s259 = scalar_select %p258, %s255, 63
      %s260 = smul.addr %s259, 5
      %s261 = smul.addr %s257, 320
      %s262 = sadd.s32 %s260, %s261
      %s263 = smul.addr %s262, 4
      %s264 = scalar_lea.vmem %s1, %s263
      %p265 = pneg %p83
      %p266 = pneg %p80
      %p267 = pneg %p104
      %p268 = pneg %p101
      %p269 = pneg %p125
      %p270 = pneg %p122
      %p271 = pneg %p146
      %p272 = pneg %p143
      %p273 = pneg %p174
      %p274 = pneg %p171
      %s275 = smul.u32 64, %s21
      %p276 = scmp.lt.s32.totalorder %s20, 1
      %s277 = scalar_select %p276, %s20, 1
      %p278 = scmp.lt.s32.totalorder %s275, 63
      %s279 = scalar_select %p278, %s275, 63
      %s280 = smul.addr %s279, 4
      %s281 = smul.addr %s277, 256
      %s282 = sadd.s32 %s280, %s281
      %s283 = smul.addr %s282, 8
      %s284 = scalar_lea.vmem %s5, %s283
      %s285 = smul.u32 32, %s21
      %p286 = scmp.lt.s32.totalorder %s20, 1
      %s287 = scalar_select %p286, %s20, 1
      %p288 = scmp.lt.s32.totalorder %s285, 63
      %s289 = scalar_select %p288, %s285, 63
      %s290 = smul.addr %s289, 5
      %s291 = smul.addr %s287, 320
      %s292 = sadd.s32 %s290, %s291
      %s293 = smul.addr %s292, 4
      %s294 = scalar_lea.vmem %s0, %s293
      %s295 = smul.u32 32, %s21
      %s296 = sadd.s32 %s21, 1
      %s297 = smul.u32 %s296, 16
      %s298 = smul.u32 2, %s297
      %p299 = scmp.lt.s32.totalorder %s20, 1
      %s300 = scalar_select %p299, %s20, 1
      %p301 = scmp.lt.s32.totalorder %s298, 63
      %s302 = scalar_select %p301, %s298, 63
      %s303 = smul.addr %s302, 5
      %s304 = smul.addr %s300, 320
      %s305 = sadd.s32 %s303, %s304
      %s306 = smul.addr %s305, 4
      %s307 = scalar_lea.vmem %s1, %s306
      %s308 = sadd.s32 %s21, 1
      %s309 = smul.u32 %s308, 16
      %s310 = smul.u32 2, %s309
      %s311 = smul.u32 64, %s21
      %p312 = scmp.lt.s32.totalorder %s20, 1
      %s313 = scalar_select %p312, %s20, 1
      %p314 = scmp.lt.s32.totalorder %s311, 63
      %s315 = scalar_select %p314, %s311, 63
      %s316 = smul.addr %s315, 4
      %s317 = smul.addr %s313, 256
      %s318 = sadd.s32 %s316, %s317
      %s319 = smul.addr %s318, 8
      %s320 = scalar_lea.vmem %s5, %s319
      %s321 = smul.u32 64, %s21
      %v323 = vld [vmem:[%s294] sm:$0xf]
      %v324 = vld [vmem:[%s294 + $0x4] sm:$0xf]
      %v325 = vld [vmem:[%s294 + $0x8] sm:$0xf]
      %v326 = vld [vmem:[%s294 + $0xc] sm:$0xf]
      %v327 = vld [vmem:[%s294 + $0x10] sm:$0x1]
      %v328 = vld [vmem:[%s294 + $0x14] sm:$0xf]
      %v329 = vld [vmem:[%s294 + $0x18] sm:$0xf]
      %v330 = vld [vmem:[%s294 + $0x1c] sm:$0xf]
      %v331 = vld [vmem:[%s294 + $0x20] sm:$0xf]
      %v332 = vld [vmem:[%s294 + $0x24] sm:$0x1]
      %v333 = vld [vmem:[%s294 + $0x28] sm:$0xf]
      %v334 = vld [vmem:[%s294 + $0x2c] sm:$0xf]
      %v335 = vld [vmem:[%s294 + $0x30] sm:$0xf]
      %v336 = vld [vmem:[%s294 + $0x34] sm:$0xf]
      %v337 = vld [vmem:[%s294 + $0x38] sm:$0x1]
      %v338 = vld [vmem:[%s294 + $0x3c] sm:$0xf]
      %v339 = vld [vmem:[%s294 + $0x40] sm:$0xf]
      %v340 = vld [vmem:[%s294 + $0x44] sm:$0xf]
      %v341 = vld [vmem:[%s294 + $0x48] sm:$0xf]
      %v342 = vld [vmem:[%s294 + $0x4c] sm:$0x1]
      %v343 = vld [vmem:[%s294 + $0x50] sm:$0xf]
      %v344 = vld [vmem:[%s294 + $0x54] sm:$0xf]
      %v345 = vld [vmem:[%s294 + $0x58] sm:$0xf]
      %v346 = vld [vmem:[%s294 + $0x5c] sm:$0xf]
      %v347 = vld [vmem:[%s294 + $0x60] sm:$0x1]
      %v348 = vld [vmem:[%s294 + $0x64] sm:$0xf]
      %v349 = vld [vmem:[%s294 + $0x68] sm:$0xf]
      %v350 = vld [vmem:[%s294 + $0x6c] sm:$0xf]
      %v351 = vld [vmem:[%s294 + $0x70] sm:$0xf]
      %v352 = vld [vmem:[%s294 + $0x74] sm:$0x1]
      %v353 = vld [vmem:[%s294 + $0x78] sm:$0xf]
      %v354 = vld [vmem:[%s294 + $0x7c] sm:$0xf]
      %v355 = vld [vmem:[%s294 + $0x80] sm:$0xf]
      %v356 = vld [vmem:[%s294 + $0x84] sm:$0xf]
      %v357 = vld [vmem:[%s294 + $0x88] sm:$0x1]
      %v358 = vld [vmem:[%s294 + $0x8c] sm:$0xf]
      %v359 = vld [vmem:[%s294 + $0x90] sm:$0xf]
      %v360 = vld [vmem:[%s294 + $0x94] sm:$0xf]
      %v361 = vld [vmem:[%s294 + $0x98] sm:$0xf]
      %v362 = vld [vmem:[%s294 + $0x9c] sm:$0x1]
      %v363 = vld [vmem:[%s294 + $0xa0] sm:$0xf]
      %v364 = vld [vmem:[%s294 + $0xa4] sm:$0xf]
      %v365 = vld [vmem:[%s294 + $0xa8] sm:$0xf]
      %v366 = vld [vmem:[%s294 + $0xac] sm:$0xf]
      %v367 = vld [vmem:[%s294 + $0xb0] sm:$0x1]
      %v368 = vld [vmem:[%s294 + $0xb4] sm:$0xf]
      %v369 = vld [vmem:[%s294 + $0xb8] sm:$0xf]
      %v370 = vld [vmem:[%s294 + $0xbc] sm:$0xf]
      %v371 = vld [vmem:[%s294 + $0xc0] sm:$0xf]
      %v372 = vld [vmem:[%s294 + $0xc4] sm:$0x1]
      %v373 = vld [vmem:[%s294 + $0xc8] sm:$0xf]
      %v374 = vld [vmem:[%s294 + $0xcc] sm:$0xf]
      %v375 = vld [vmem:[%s294 + $0xd0] sm:$0xf]
      %v376 = vld [vmem:[%s294 + $0xd4] sm:$0xf]
      %v377 = vld [vmem:[%s294 + $0xd8] sm:$0x1]
      %v378 = vld [vmem:[%s294 + $0xdc] sm:$0xf]
      %v379 = vld [vmem:[%s294 + $0xe0] sm:$0xf]
      %v380 = vld [vmem:[%s294 + $0xe4] sm:$0xf]
      %v381 = vld [vmem:[%s294 + $0xe8] sm:$0xf]
      %v382 = vld [vmem:[%s294 + $0xec] sm:$0x1]
      %v383 = vld [vmem:[%s294 + $0xf0] sm:$0xf]
      %v384 = vld [vmem:[%s294 + $0xf4] sm:$0xf]
      %v385 = vld [vmem:[%s294 + $0xf8] sm:$0xf]
      %v386 = vld [vmem:[%s294 + $0xfc] sm:$0xf]
      %v387 = vld [vmem:[%s294 + $0x100] sm:$0x1]
      %v388 = vld [vmem:[%s294 + $0x104] sm:$0xf]
      %v389 = vld [vmem:[%s294 + $0x108] sm:$0xf]
      %v390 = vld [vmem:[%s294 + $0x10c] sm:$0xf]
      %v391 = vld [vmem:[%s294 + $0x110] sm:$0xf]
      %v392 = vld [vmem:[%s294 + $0x114] sm:$0x1]
      %v393 = vld [vmem:[%s294 + $0x118] sm:$0xf]
      %v394 = vld [vmem:[%s294 + $0x11c] sm:$0xf]
      %v395 = vld [vmem:[%s294 + $0x120] sm:$0xf]
      %v396 = vld [vmem:[%s294 + $0x124] sm:$0xf]
      %v397 = vld [vmem:[%s294 + $0x128] sm:$0x1]
      %v398 = vld [vmem:[%s294 + $0x12c] sm:$0xf]
      %v399 = vld [vmem:[%s294 + $0x130] sm:$0xf]
      %v400 = vld [vmem:[%s294 + $0x134] sm:$0xf]
      %v401 = vld [vmem:[%s294 + $0x138] sm:$0xf]
      %v402 = vld [vmem:[%s294 + $0x13c] sm:$0x1]
      %v403 = vld [vmem:[%s294 + $0x140] sm:$0xf]
      %v404 = vld [vmem:[%s294 + $0x144] sm:$0xf]
      %v405 = vld [vmem:[%s294 + $0x148] sm:$0xf]
      %v406 = vld [vmem:[%s294 + $0x14c] sm:$0xf]
      %v407 = vld [vmem:[%s294 + $0x150] sm:$0x1]
      %v408 = vld [vmem:[%s294 + $0x154] sm:$0xf]
      %v409 = vld [vmem:[%s294 + $0x158] sm:$0xf]
      %v410 = vld [vmem:[%s294 + $0x15c] sm:$0xf]
      %v411 = vld [vmem:[%s294 + $0x160] sm:$0xf]
      %v412 = vld [vmem:[%s294 + $0x164] sm:$0x1]
      %v413 = vld [vmem:[%s294 + $0x168] sm:$0xf]
      %v414 = vld [vmem:[%s294 + $0x16c] sm:$0xf]
      %v415 = vld [vmem:[%s294 + $0x170] sm:$0xf]
      %v416 = vld [vmem:[%s294 + $0x174] sm:$0xf]
      %v417 = vld [vmem:[%s294 + $0x178] sm:$0x1]
      %v418 = vld [vmem:[%s294 + $0x17c] sm:$0xf]
      %v419 = vld [vmem:[%s294 + $0x180] sm:$0xf]
      %v420 = vld [vmem:[%s294 + $0x184] sm:$0xf]
      %v421 = vld [vmem:[%s294 + $0x188] sm:$0xf]
      %v422 = vld [vmem:[%s294 + $0x18c] sm:$0x1]
      %v423 = vld [vmem:[%s294 + $0x190] sm:$0xf]
      %v424 = vld [vmem:[%s294 + $0x194] sm:$0xf]
      %v425 = vld [vmem:[%s294 + $0x198] sm:$0xf]
      %v426 = vld [vmem:[%s294 + $0x19c] sm:$0xf]
      %v427 = vld [vmem:[%s294 + $0x1a0] sm:$0x1]
      %v428 = vld [vmem:[%s294 + $0x1a4] sm:$0xf]
      %v429 = vld [vmem:[%s294 + $0x1a8] sm:$0xf]
      %v430 = vld [vmem:[%s294 + $0x1ac] sm:$0xf]
      %v431 = vld [vmem:[%s294 + $0x1b0] sm:$0xf]
      %v432 = vld [vmem:[%s294 + $0x1b4] sm:$0x1]
      %v433 = vld [vmem:[%s294 + $0x1b8] sm:$0xf]
      %v434 = vld [vmem:[%s294 + $0x1bc] sm:$0xf]
      %v435 = vld [vmem:[%s294 + $0x1c0] sm:$0xf]
      %v436 = vld [vmem:[%s294 + $0x1c4] sm:$0xf]
      %v437 = vld [vmem:[%s294 + $0x1c8] sm:$0x1]
      %v438 = vld [vmem:[%s294 + $0x1cc] sm:$0xf]
      %v439 = vld [vmem:[%s294 + $0x1d0] sm:$0xf]
      %v440 = vld [vmem:[%s294 + $0x1d4] sm:$0xf]
      %v441 = vld [vmem:[%s294 + $0x1d8] sm:$0xf]
      %v442 = vld [vmem:[%s294 + $0x1dc] sm:$0x1]
      %v443 = vld [vmem:[%s294 + $0x1e0] sm:$0xf]
      %v444 = vld [vmem:[%s294 + $0x1e4] sm:$0xf]
      %v445 = vld [vmem:[%s294 + $0x1e8] sm:$0xf]
      %v446 = vld [vmem:[%s294 + $0x1ec] sm:$0xf]
      %v447 = vld [vmem:[%s294 + $0x1f0] sm:$0x1]
      %v448 = vld [vmem:[%s294 + $0x1f4] sm:$0xf]
      %v449 = vld [vmem:[%s294 + $0x1f8] sm:$0xf]
      %v450 = vld [vmem:[%s294 + $0x1fc] sm:$0xf]
      %v451 = vld [vmem:[%s294 + $0x200] sm:$0xf]
      %v452 = vld [vmem:[%s294 + $0x204] sm:$0x1]
      %v453 = vld [vmem:[%s294 + $0x208] sm:$0xf]
      %v454 = vld [vmem:[%s294 + $0x20c] sm:$0xf]
      %v455 = vld [vmem:[%s294 + $0x210] sm:$0xf]
      %v456 = vld [vmem:[%s294 + $0x214] sm:$0xf]
      %v457 = vld [vmem:[%s294 + $0x218] sm:$0x1]
      %v458 = vld [vmem:[%s294 + $0x21c] sm:$0xf]
      %v459 = vld [vmem:[%s294 + $0x220] sm:$0xf]
      %v460 = vld [vmem:[%s294 + $0x224] sm:$0xf]
      %v461 = vld [vmem:[%s294 + $0x228] sm:$0xf]
      %v462 = vld [vmem:[%s294 + $0x22c] sm:$0x1]
      %v463 = vld [vmem:[%s294 + $0x230] sm:$0xf]
      %v464 = vld [vmem:[%s294 + $0x234] sm:$0xf]
      %v465 = vld [vmem:[%s294 + $0x238] sm:$0xf]
      %v466 = vld [vmem:[%s294 + $0x23c] sm:$0xf]
      %v467 = vld [vmem:[%s294 + $0x240] sm:$0x1]
      %v468 = vld [vmem:[%s294 + $0x244] sm:$0xf]
      %v469 = vld [vmem:[%s294 + $0x248] sm:$0xf]
      %v470 = vld [vmem:[%s294 + $0x24c] sm:$0xf]
      %v471 = vld [vmem:[%s294 + $0x250] sm:$0xf]
      %v472 = vld [vmem:[%s294 + $0x254] sm:$0x1]
      %v473 = vld [vmem:[%s294 + $0x258] sm:$0xf]
      %v474 = vld [vmem:[%s294 + $0x25c] sm:$0xf]
      %v475 = vld [vmem:[%s294 + $0x260] sm:$0xf]
      %v476 = vld [vmem:[%s294 + $0x264] sm:$0xf]
      %v477 = vld [vmem:[%s294 + $0x268] sm:$0x1]
      %v478 = vld [vmem:[%s294 + $0x26c] sm:$0xf]
      %v479 = vld [vmem:[%s294 + $0x270] sm:$0xf]
      %v480 = vld [vmem:[%s294 + $0x274] sm:$0xf]
      %v481 = vld [vmem:[%s294 + $0x278] sm:$0xf]
      %v482 = vld [vmem:[%s294 + $0x27c] sm:$0x1]
      %v483 = vld [vmem:[%s307] sm:$0xf]
      %v484 = vld [vmem:[%s307 + $0x4] sm:$0xf]
      %v485 = vld [vmem:[%s307 + $0x8] sm:$0xf]
      %v486 = vld [vmem:[%s307 + $0xc] sm:$0xf]
      %v487 = vld [vmem:[%s307 + $0x10] sm:$0x1]
      %v488 = vld [vmem:[%s307 + $0x14] sm:$0xf]
      %v489 = vld [vmem:[%s307 + $0x18] sm:$0xf]
      %v490 = vld [vmem:[%s307 + $0x1c] sm:$0xf]
      %v491 = vld [vmem:[%s307 + $0x20] sm:$0xf]
      %v492 = vld [vmem:[%s307 + $0x24] sm:$0x1]
      %v629 = vunpack.c.l.b16 %v323
      %v630 = vunpack.c.l.b16 %v324
      %v631 = vunpack.c.l.b16 %v325
      %v632 = vunpack.c.l.b16 %v326
      %v633 = vunpack.c.l.b16 %v328
      %v634 = vunpack.c.l.b16 %v329
      %v635 = vunpack.c.l.b16 %v330
      %v636 = vunpack.c.l.b16 %v331
      %v637 = vunpack.c.l.b16 %v333
      %v638 = vunpack.c.l.b16 %v334
      %v639 = vunpack.c.l.b16 %v335
      %v640 = vunpack.c.l.b16 %v336
      %v641 = vunpack.c.l.b16 %v338
      %v642 = vunpack.c.l.b16 %v339
      %v643 = vunpack.c.l.b16 %v340
      %v644 = vunpack.c.l.b16 %v341
      %v645 = vunpack.c.l.b16 %v343
      %v646 = vunpack.c.l.b16 %v344
      %v647 = vunpack.c.l.b16 %v345
      %v648 = vunpack.c.l.b16 %v346
      %v649 = vunpack.c.l.b16 %v348
      %v650 = vunpack.c.l.b16 %v349
      %v651 = vunpack.c.l.b16 %v350
      %v652 = vunpack.c.l.b16 %v351
      %v653 = vunpack.c.l.b16 %v353
      %v654 = vunpack.c.l.b16 %v354
      %v655 = vunpack.c.l.b16 %v355
      %v656 = vunpack.c.l.b16 %v356
      %v657 = vunpack.c.l.b16 %v358
      %v658 = vunpack.c.l.b16 %v359
      %v659 = vunpack.c.l.b16 %v360
      %v660 = vunpack.c.l.b16 %v361
      %v661 = vunpack.c.l.b16 %v363
      %v662 = vunpack.c.l.b16 %v364
      %v663 = vunpack.c.l.b16 %v365
      %v664 = vunpack.c.l.b16 %v366
      %v665 = vunpack.c.l.b16 %v368
      %v666 = vunpack.c.l.b16 %v369
      %v667 = vunpack.c.l.b16 %v370
      %v668 = vunpack.c.l.b16 %v371
      %v669 = vunpack.c.l.b16 %v373
      %v670 = vunpack.c.l.b16 %v374
      %v671 = vunpack.c.l.b16 %v375
      %v672 = vunpack.c.l.b16 %v376
      %v673 = vunpack.c.l.b16 %v378
      %v674 = vunpack.c.l.b16 %v379
      %v675 = vunpack.c.l.b16 %v380
      %v676 = vunpack.c.l.b16 %v381
      %v677 = vunpack.c.l.b16 %v383
      %v678 = vunpack.c.l.b16 %v384
      %v679 = vunpack.c.l.b16 %v385
      %v680 = vunpack.c.l.b16 %v386
      %v681 = vunpack.c.l.b16 %v388
      %v682 = vunpack.c.l.b16 %v389
      %v683 = vunpack.c.l.b16 %v390
      %v684 = vunpack.c.l.b16 %v391
      %v685 = vunpack.c.l.b16 %v393
      %v686 = vunpack.c.l.b16 %v394
      %v687 = vunpack.c.l.b16 %v395
      %v688 = vunpack.c.l.b16 %v396
      %v689 = vunpack.c.l.b16 %v398
      %v690 = vunpack.c.l.b16 %v399
      %v691 = vunpack.c.l.b16 %v400
      %v692 = vunpack.c.l.b16 %v401
      %v693 = vunpack.c.l.b16 %v403
      %v694 = vunpack.c.l.b16 %v404
      %v695 = vunpack.c.l.b16 %v405
      %v696 = vunpack.c.l.b16 %v406
      %v697 = vunpack.c.l.b16 %v408
      %v698 = vunpack.c.l.b16 %v409
      %v699 = vunpack.c.l.b16 %v410
      %v700 = vunpack.c.l.b16 %v411
      %v701 = vunpack.c.l.b16 %v413
      %v702 = vunpack.c.l.b16 %v414
      %v703 = vunpack.c.l.b16 %v415
      %v704 = vunpack.c.l.b16 %v416
      %v705 = vunpack.c.l.b16 %v418
      %v706 = vunpack.c.l.b16 %v419
      %v707 = vunpack.c.l.b16 %v420
      %v708 = vunpack.c.l.b16 %v421
      %v709 = vunpack.c.l.b16 %v423
      %v710 = vunpack.c.l.b16 %v424
      %v711 = vunpack.c.l.b16 %v425
      %v712 = vunpack.c.l.b16 %v426
      %v713 = vunpack.c.l.b16 %v428
      %v714 = vunpack.c.l.b16 %v429
      %v715 = vunpack.c.l.b16 %v430
      %v716 = vunpack.c.l.b16 %v431
      %v717 = vunpack.c.l.b16 %v433
      %v718 = vunpack.c.l.b16 %v434
      %v719 = vunpack.c.l.b16 %v435
      %v720 = vunpack.c.l.b16 %v436
      %v721 = vunpack.c.l.b16 %v438
      %v722 = vunpack.c.l.b16 %v439
      %v723 = vunpack.c.l.b16 %v440
      %v724 = vunpack.c.l.b16 %v441
      %v725 = vunpack.c.l.b16 %v443
      %v726 = vunpack.c.l.b16 %v444
      %v727 = vunpack.c.l.b16 %v445
      %v728 = vunpack.c.l.b16 %v446
      %v729 = vunpack.c.l.b16 %v448
      %v730 = vunpack.c.l.b16 %v449
      %v731 = vunpack.c.l.b16 %v450
      %v732 = vunpack.c.l.b16 %v451
      %v733 = vunpack.c.l.b16 %v453
      %v734 = vunpack.c.l.b16 %v454
      %v735 = vunpack.c.l.b16 %v455
      %v736 = vunpack.c.l.b16 %v456
      %v737 = vunpack.c.l.b16 %v458
      %v738 = vunpack.c.l.b16 %v459
      %v739 = vunpack.c.l.b16 %v460
      %v740 = vunpack.c.l.b16 %v461
      %v741 = vunpack.c.l.b16 %v463
      %v742 = vunpack.c.l.b16 %v464
      %v743 = vunpack.c.l.b16 %v465
      %v744 = vunpack.c.l.b16 %v466
      %v745 = vunpack.c.l.b16 %v468
      %v746 = vunpack.c.l.b16 %v469
      %v747 = vunpack.c.l.b16 %v470
      %v748 = vunpack.c.l.b16 %v471
      %v749 = vunpack.c.l.b16 %v473
      %v750 = vunpack.c.l.b16 %v474
      %v751 = vunpack.c.l.b16 %v475
      %v752 = vunpack.c.l.b16 %v476
      %v753 = vunpack.c.l.b16 %v478
      %v754 = vunpack.c.l.b16 %v479
      %v755 = vunpack.c.l.b16 %v480
      %v756 = vunpack.c.l.b16 %v481
      %v757 = vunpack.c.l.b16 %v483
      %v758 = vunpack.c.l.b16 %v484
      %v759 = vunpack.c.l.b16 %v485
      %v760 = vunpack.c.l.b16 %v486
      %v761 = vunpack.c.l.b16 %v488
      %v762 = vunpack.c.l.b16 %v489
      %v763 = vunpack.c.l.b16 %v490
      %v764 = vunpack.c.l.b16 %v491
      %v765 = vpack.c.b16 %v630, %v629
      %v766 = vpack.c.b16 %v632, %v631
      %v767 = vpack.c.b16 %v634, %v633
      %v768 = vpack.c.b16 %v636, %v635
      %v769 = vpack.c.b16 %v638, %v637
      %v770 = vpack.c.b16 %v640, %v639
      %v771 = vpack.c.b16 %v642, %v641
      %v772 = vpack.c.b16 %v644, %v643
      %v773 = vpack.c.b16 %v646, %v645
      %v774 = vpack.c.b16 %v648, %v647
      %v775 = vpack.c.b16 %v650, %v649
      %v776 = vpack.c.b16 %v652, %v651
      %v777 = vpack.c.b16 %v654, %v653
      %v778 = vpack.c.b16 %v656, %v655
      %v779 = vpack.c.b16 %v658, %v657
      %v780 = vpack.c.b16 %v660, %v659
      %v781 = vpack.c.b16 %v662, %v661
      %v782 = vpack.c.b16 %v664, %v663
      %v783 = vpack.c.b16 %v666, %v665
      %v784 = vpack.c.b16 %v668, %v667
      %v785 = vpack.c.b16 %v670, %v669
      %v786 = vpack.c.b16 %v672, %v671
      %v787 = vpack.c.b16 %v674, %v673
      %v788 = vpack.c.b16 %v676, %v675
      %v789 = vpack.c.b16 %v678, %v677
      %v790 = vpack.c.b16 %v680, %v679
      %v791 = vpack.c.b16 %v682, %v681
      %v792 = vpack.c.b16 %v684, %v683
      %v793 = vpack.c.b16 %v686, %v685
      %v794 = vpack.c.b16 %v688, %v687
      %v795 = vpack.c.b16 %v690, %v689
      %v796 = vpack.c.b16 %v692, %v691
      %v797 = vpack.c.b16 %v694, %v693
      %v798 = vpack.c.b16 %v696, %v695
      %v799 = vpack.c.b16 %v698, %v697
      %v800 = vpack.c.b16 %v700, %v699
      %v801 = vpack.c.b16 %v702, %v701
      %v802 = vpack.c.b16 %v704, %v703
      %v803 = vpack.c.b16 %v706, %v705
      %v804 = vpack.c.b16 %v708, %v707
      %v805 = vpack.c.b16 %v710, %v709
      %v806 = vpack.c.b16 %v712, %v711
      %v807 = vpack.c.b16 %v714, %v713
      %v808 = vpack.c.b16 %v716, %v715
      %v809 = vpack.c.b16 %v718, %v717
      %v810 = vpack.c.b16 %v720, %v719
      %v811 = vpack.c.b16 %v722, %v721
      %v812 = vpack.c.b16 %v724, %v723
      %v813 = vpack.c.b16 %v726, %v725
      %v814 = vpack.c.b16 %v728, %v727
      %v815 = vpack.c.b16 %v730, %v729
      %v816 = vpack.c.b16 %v732, %v731
      %v817 = vpack.c.b16 %v734, %v733
      %v818 = vpack.c.b16 %v736, %v735
      %v819 = vpack.c.b16 %v738, %v737
      %v820 = vpack.c.b16 %v740, %v739
      %v821 = vpack.c.b16 %v742, %v741
      %v822 = vpack.c.b16 %v744, %v743
      %v823 = vpack.c.b16 %v746, %v745
      %v824 = vpack.c.b16 %v748, %v747
      %v825 = vpack.c.b16 %v750, %v749
      %v826 = vpack.c.b16 %v752, %v751
      %v827 = vpack.c.b16 %v754, %v753
      %v828 = vpack.c.b16 %v756, %v755
      %v829 = vpack.c.b16 %v758, %v757
      %v830 = vpack.c.b16 %v760, %v759
      %v831 = vpack.c.b16 %v762, %v761
      %v832 = vpack.c.b16 %v764, %v763
      %v867 = vunpack.c.l.b16 %v327
      %v868 = vunpack.c.l.b16 %v332
      %v869 = vunpack.c.l.b16 %v337
      %v870 = vunpack.c.l.b16 %v342
      %v871 = vunpack.c.l.b16 %v347
      %v872 = vunpack.c.l.b16 %v352
      %v873 = vunpack.c.l.b16 %v357
      %v874 = vunpack.c.l.b16 %v362
      %v875 = vunpack.c.l.b16 %v367
      %v876 = vunpack.c.l.b16 %v372
      %v877 = vunpack.c.l.b16 %v377
      %v878 = vunpack.c.l.b16 %v382
      %v879 = vunpack.c.l.b16 %v387
      %v880 = vunpack.c.l.b16 %v392
      %v881 = vunpack.c.l.b16 %v397
      %v882 = vunpack.c.l.b16 %v402
      %v883 = vunpack.c.l.b16 %v407
      %v884 = vunpack.c.l.b16 %v412
      %v885 = vunpack.c.l.b16 %v417
      %v886 = vunpack.c.l.b16 %v422
      %v887 = vunpack.c.l.b16 %v427
      %v888 = vunpack.c.l.b16 %v432
      %v889 = vunpack.c.l.b16 %v437
      %v890 = vunpack.c.l.b16 %v442
      %v891 = vunpack.c.l.b16 %v447
      %v892 = vunpack.c.l.b16 %v452
      %v893 = vunpack.c.l.b16 %v457
      %v894 = vunpack.c.l.b16 %v462
      %v895 = vunpack.c.l.b16 %v467
      %v896 = vunpack.c.l.b16 %v472
      %v897 = vunpack.c.l.b16 %v477
      %v898 = vunpack.c.l.b16 %v482
      %v899 = vunpack.c.l.b16 %v487
      %v900 = vunpack.c.l.b16 %v492
      %v901 = vpack.c.b16 %v867, %v867
      %v902 = vpack.c.b16 %v868, %v868
      %v903 = vpack.c.b16 %v869, %v869
      %v904 = vpack.c.b16 %v870, %v870
      %v905 = vpack.c.b16 %v871, %v871
      %v906 = vpack.c.b16 %v872, %v872
      %v907 = vpack.c.b16 %v873, %v873
      %v908 = vpack.c.b16 %v874, %v874
      %v909 = vpack.c.b16 %v875, %v875
      %v910 = vpack.c.b16 %v876, %v876
      %v911 = vpack.c.b16 %v877, %v877
      %v912 = vpack.c.b16 %v878, %v878
      %v913 = vpack.c.b16 %v879, %v879
      %v914 = vpack.c.b16 %v880, %v880
      %v915 = vpack.c.b16 %v881, %v881
      %v916 = vpack.c.b16 %v882, %v882
      %v917 = vpack.c.b16 %v883, %v883
      %v918 = vpack.c.b16 %v884, %v884
      %v919 = vpack.c.b16 %v885, %v885
      %v920 = vpack.c.b16 %v886, %v886
      %v921 = vpack.c.b16 %v887, %v887
      %v922 = vpack.c.b16 %v888, %v888
      %v923 = vpack.c.b16 %v889, %v889
      %v924 = vpack.c.b16 %v890, %v890
      %v925 = vpack.c.b16 %v891, %v891
      %v926 = vpack.c.b16 %v892, %v892
      %v927 = vpack.c.b16 %v893, %v893
      %v928 = vpack.c.b16 %v894, %v894
      %v929 = vpack.c.b16 %v895, %v895
      %v930 = vpack.c.b16 %v896, %v896
      %v931 = vpack.c.b16 %v897, %v897
      %v932 = vpack.c.b16 %v898, %v898
      %v933 = vpack.c.b16 %v899, %v899
      %v934 = vpack.c.b16 %v900, %v900
      %vm935 = vsmask.f32 7424
      %v937 = vshrl.u32 %v765, 16
      %v939 = vshll.u32 %v765, 16
      %v941 = vrot.slane %v939, 1
      %v942 = vor.u32 %v937, %v941
      %v944 = vshll.u32 %v766, 16
      %v946 = vrot.slane %v944, 1
      %v947 = vsel %vm935, %v942, %v946
      %v948 = vshrl.u32 %v766, 16
      %v950 = vor.u32 %v948, %v946
      %v952 = vshll.u32 %v901, 16
      %v954 = vrot.slane %v952, 1
      %v955 = vsel %vm935, %v950, %v954
      %v957 = vshrl.u32 %v767, 16
      %v959 = vshll.u32 %v767, 16
      %v961 = vrot.slane %v959, 1
      %v962 = vor.u32 %v957, %v961
      %v964 = vshll.u32 %v768, 16
      %v966 = vrot.slane %v964, 1
      %v967 = vsel %vm935, %v962, %v966
      %v968 = vshrl.u32 %v768, 16
      %v970 = vor.u32 %v968, %v966
      %v972 = vshll.u32 %v902, 16
      %v974 = vrot.slane %v972, 1
      %v975 = vsel %vm935, %v970, %v974
      %v977 = vshrl.u32 %v769, 16
      %v979 = vshll.u32 %v769, 16
      %v981 = vrot.slane %v979, 1
      %v982 = vor.u32 %v977, %v981
      %v984 = vshll.u32 %v770, 16
      %v986 = vrot.slane %v984, 1
      %v987 = vsel %vm935, %v982, %v986
      %v988 = vshrl.u32 %v770, 16
      %v990 = vor.u32 %v988, %v986
      %v992 = vshll.u32 %v903, 16
      %v994 = vrot.slane %v992, 1
      %v995 = vsel %vm935, %v990, %v994
      %v997 = vshrl.u32 %v771, 16
      %v999 = vshll.u32 %v771, 16
      %v1001 = vrot.slane %v999, 1
      %v1002 = vor.u32 %v997, %v1001
      %v1004 = vshll.u32 %v772, 16
      %v1006 = vrot.slane %v1004, 1
      %v1007 = vsel %vm935, %v1002, %v1006
      %v1008 = vshrl.u32 %v772, 16
      %v1010 = vor.u32 %v1008, %v1006
      %v1012 = vshll.u32 %v904, 16
      %v1014 = vrot.slane %v1012, 1
      %v1015 = vsel %vm935, %v1010, %v1014
      %v1017 = vshrl.u32 %v773, 16
      %v1019 = vshll.u32 %v773, 16
      %v1021 = vrot.slane %v1019, 1
      %v1022 = vor.u32 %v1017, %v1021
      %v1024 = vshll.u32 %v774, 16
      %v1026 = vrot.slane %v1024, 1
      %v1027 = vsel %vm935, %v1022, %v1026
      %v1028 = vshrl.u32 %v774, 16
      %v1030 = vor.u32 %v1028, %v1026
      %v1032 = vshll.u32 %v905, 16
      %v1034 = vrot.slane %v1032, 1
      %v1035 = vsel %vm935, %v1030, %v1034
      %v1037 = vshrl.u32 %v775, 16
      %v1039 = vshll.u32 %v775, 16
      %v1041 = vrot.slane %v1039, 1
      %v1042 = vor.u32 %v1037, %v1041
      %v1044 = vshll.u32 %v776, 16
      %v1046 = vrot.slane %v1044, 1
      %v1047 = vsel %vm935, %v1042, %v1046
      %v1048 = vshrl.u32 %v776, 16
      %v1050 = vor.u32 %v1048, %v1046
      %v1052 = vshll.u32 %v906, 16
      %v1054 = vrot.slane %v1052, 1
      %v1055 = vsel %vm935, %v1050, %v1054
      %v1057 = vshrl.u32 %v777, 16
      %v1059 = vshll.u32 %v777, 16
      %v1061 = vrot.slane %v1059, 1
      %v1062 = vor.u32 %v1057, %v1061
      %v1064 = vshll.u32 %v778, 16
      %v1066 = vrot.slane %v1064, 1
      %v1067 = vsel %vm935, %v1062, %v1066
      %v1068 = vshrl.u32 %v778, 16
      %v1070 = vor.u32 %v1068, %v1066
      %v1072 = vshll.u32 %v907, 16
      %v1074 = vrot.slane %v1072, 1
      %v1075 = vsel %vm935, %v1070, %v1074
      %v1077 = vshrl.u32 %v779, 16
      %v1079 = vshll.u32 %v779, 16
      %v1081 = vrot.slane %v1079, 1
      %v1082 = vor.u32 %v1077, %v1081
      %v1084 = vshll.u32 %v780, 16
      %v1086 = vrot.slane %v1084, 1
      %v1087 = vsel %vm935, %v1082, %v1086
      %v1088 = vshrl.u32 %v780, 16
      %v1090 = vor.u32 %v1088, %v1086
      %v1092 = vshll.u32 %v908, 16
      %v1094 = vrot.slane %v1092, 1
      %v1095 = vsel %vm935, %v1090, %v1094
      %v1097 = vshrl.u32 %v781, 16
      %v1099 = vshll.u32 %v781, 16
      %v1101 = vrot.slane %v1099, 1
      %v1102 = vor.u32 %v1097, %v1101
      %v1104 = vshll.u32 %v782, 16
      %v1106 = vrot.slane %v1104, 1
      %v1107 = vsel %vm935, %v1102, %v1106
      %v1108 = vshrl.u32 %v782, 16
      %v1110 = vor.u32 %v1108, %v1106
      %v1112 = vshll.u32 %v909, 16
      %v1114 = vrot.slane %v1112, 1
      %v1115 = vsel %vm935, %v1110, %v1114
      %v1117 = vshrl.u32 %v783, 16
      %v1119 = vshll.u32 %v783, 16
      %v1121 = vrot.slane %v1119, 1
      %v1122 = vor.u32 %v1117, %v1121
      %v1124 = vshll.u32 %v784, 16
      %v1126 = vrot.slane %v1124, 1
      %v1127 = vsel %vm935, %v1122, %v1126
      %v1128 = vshrl.u32 %v784, 16
      %v1130 = vor.u32 %v1128, %v1126
      %v1132 = vshll.u32 %v910, 16
      %v1134 = vrot.slane %v1132, 1
      %v1135 = vsel %vm935, %v1130, %v1134
      %v1137 = vshrl.u32 %v785, 16
      %v1139 = vshll.u32 %v785, 16
      %v1141 = vrot.slane %v1139, 1
      %v1142 = vor.u32 %v1137, %v1141
      %v1144 = vshll.u32 %v786, 16
      %v1146 = vrot.slane %v1144, 1
      %v1147 = vsel %vm935, %v1142, %v1146
      %v1148 = vshrl.u32 %v786, 16
      %v1150 = vor.u32 %v1148, %v1146
      %v1152 = vshll.u32 %v911, 16
      %v1154 = vrot.slane %v1152, 1
      %v1155 = vsel %vm935, %v1150, %v1154
      %v1157 = vshrl.u32 %v787, 16
      %v1159 = vshll.u32 %v787, 16
      %v1161 = vrot.slane %v1159, 1
      %v1162 = vor.u32 %v1157, %v1161
      %v1164 = vshll.u32 %v788, 16
      %v1166 = vrot.slane %v1164, 1
      %v1167 = vsel %vm935, %v1162, %v1166
      %v1168 = vshrl.u32 %v788, 16
      %v1170 = vor.u32 %v1168, %v1166
      %v1172 = vshll.u32 %v912, 16
      %v1174 = vrot.slane %v1172, 1
      %v1175 = vsel %vm935, %v1170, %v1174
      %v1177 = vshrl.u32 %v789, 16
      %v1179 = vshll.u32 %v789, 16
      %v1181 = vrot.slane %v1179, 1
      %v1182 = vor.u32 %v1177, %v1181
      %v1184 = vshll.u32 %v790, 16
      %v1186 = vrot.slane %v1184, 1
      %v1187 = vsel %vm935, %v1182, %v1186
      %v1188 = vshrl.u32 %v790, 16
      %v1190 = vor.u32 %v1188, %v1186
      %v1192 = vshll.u32 %v913, 16
      %v1194 = vrot.slane %v1192, 1
      %v1195 = vsel %vm935, %v1190, %v1194
      %v1197 = vshrl.u32 %v791, 16
      %v1199 = vshll.u32 %v791, 16
      %v1201 = vrot.slane %v1199, 1
      %v1202 = vor.u32 %v1197, %v1201
      %v1204 = vshll.u32 %v792, 16
      %v1206 = vrot.slane %v1204, 1
      %v1207 = vsel %vm935, %v1202, %v1206
      %v1208 = vshrl.u32 %v792, 16
      %v1210 = vor.u32 %v1208, %v1206
      %v1212 = vshll.u32 %v914, 16
      %v1214 = vrot.slane %v1212, 1
      %v1215 = vsel %vm935, %v1210, %v1214
      %v1217 = vshrl.u32 %v793, 16
      %v1219 = vshll.u32 %v793, 16
      %v1221 = vrot.slane %v1219, 1
      %v1222 = vor.u32 %v1217, %v1221
      %v1224 = vshll.u32 %v794, 16
      %v1226 = vrot.slane %v1224, 1
      %v1227 = vsel %vm935, %v1222, %v1226
      %v1228 = vshrl.u32 %v794, 16
      %v1230 = vor.u32 %v1228, %v1226
      %v1232 = vshll.u32 %v915, 16
      %v1234 = vrot.slane %v1232, 1
      %v1235 = vsel %vm935, %v1230, %v1234
      %v1237 = vshrl.u32 %v795, 16
      %v1239 = vshll.u32 %v795, 16
      %v1241 = vrot.slane %v1239, 1
      %v1242 = vor.u32 %v1237, %v1241
      %v1244 = vshll.u32 %v796, 16
      %v1246 = vrot.slane %v1244, 1
      %v1247 = vsel %vm935, %v1242, %v1246
      %v1248 = vshrl.u32 %v796, 16
      %v1250 = vor.u32 %v1248, %v1246
      %v1252 = vshll.u32 %v916, 16
      %v1254 = vrot.slane %v1252, 1
      %v1255 = vsel %vm935, %v1250, %v1254
      %v1257 = vshrl.u32 %v797, 16
      %v1259 = vshll.u32 %v797, 16
      %v1261 = vrot.slane %v1259, 1
      %v1262 = vor.u32 %v1257, %v1261
      %v1264 = vshll.u32 %v798, 16
      %v1266 = vrot.slane %v1264, 1
      %v1267 = vsel %vm935, %v1262, %v1266
      %v1268 = vshrl.u32 %v798, 16
      %v1270 = vor.u32 %v1268, %v1266
      %v1272 = vshll.u32 %v917, 16
      %v1274 = vrot.slane %v1272, 1
      %v1275 = vsel %vm935, %v1270, %v1274
      %v1277 = vshrl.u32 %v799, 16
      %v1279 = vshll.u32 %v799, 16
      %v1281 = vrot.slane %v1279, 1
      %v1282 = vor.u32 %v1277, %v1281
      %v1284 = vshll.u32 %v800, 16
      %v1286 = vrot.slane %v1284, 1
      %v1287 = vsel %vm935, %v1282, %v1286
      %v1288 = vshrl.u32 %v800, 16
      %v1290 = vor.u32 %v1288, %v1286
      %v1292 = vshll.u32 %v918, 16
      %v1294 = vrot.slane %v1292, 1
      %v1295 = vsel %vm935, %v1290, %v1294
      %v1297 = vshrl.u32 %v801, 16
      %v1299 = vshll.u32 %v801, 16
      %v1301 = vrot.slane %v1299, 1
      %v1302 = vor.u32 %v1297, %v1301
      %v1304 = vshll.u32 %v802, 16
      %v1306 = vrot.slane %v1304, 1
      %v1307 = vsel %vm935, %v1302, %v1306
      %v1308 = vshrl.u32 %v802, 16
      %v1310 = vor.u32 %v1308, %v1306
      %v1312 = vshll.u32 %v919, 16
      %v1314 = vrot.slane %v1312, 1
      %v1315 = vsel %vm935, %v1310, %v1314
      %v1317 = vshrl.u32 %v803, 16
      %v1319 = vshll.u32 %v803, 16
      %v1321 = vrot.slane %v1319, 1
      %v1322 = vor.u32 %v1317, %v1321
      %v1324 = vshll.u32 %v804, 16
      %v1326 = vrot.slane %v1324, 1
      %v1327 = vsel %vm935, %v1322, %v1326
      %v1328 = vshrl.u32 %v804, 16
      %v1330 = vor.u32 %v1328, %v1326
      %v1332 = vshll.u32 %v920, 16
      %v1334 = vrot.slane %v1332, 1
      %v1335 = vsel %vm935, %v1330, %v1334
      %v1337 = vshrl.u32 %v805, 16
      %v1339 = vshll.u32 %v805, 16
      %v1341 = vrot.slane %v1339, 1
      %v1342 = vor.u32 %v1337, %v1341
      %v1344 = vshll.u32 %v806, 16
      %v1346 = vrot.slane %v1344, 1
      %v1347 = vsel %vm935, %v1342, %v1346
      %v1348 = vshrl.u32 %v806, 16
      %v1350 = vor.u32 %v1348, %v1346
      %v1352 = vshll.u32 %v921, 16
      %v1354 = vrot.slane %v1352, 1
      %v1355 = vsel %vm935, %v1350, %v1354
      %v1357 = vshrl.u32 %v807, 16
      %v1359 = vshll.u32 %v807, 16
      %v1361 = vrot.slane %v1359, 1
      %v1362 = vor.u32 %v1357, %v1361
      %v1364 = vshll.u32 %v808, 16
      %v1366 = vrot.slane %v1364, 1
      %v1367 = vsel %vm935, %v1362, %v1366
      %v1368 = vshrl.u32 %v808, 16
      %v1370 = vor.u32 %v1368, %v1366
      %v1372 = vshll.u32 %v922, 16
      %v1374 = vrot.slane %v1372, 1
      %v1375 = vsel %vm935, %v1370, %v1374
      %v1377 = vshrl.u32 %v809, 16
      %v1379 = vshll.u32 %v809, 16
      %v1381 = vrot.slane %v1379, 1
      %v1382 = vor.u32 %v1377, %v1381
      %v1384 = vshll.u32 %v810, 16
      %v1386 = vrot.slane %v1384, 1
      %v1387 = vsel %vm935, %v1382, %v1386
      %v1388 = vshrl.u32 %v810, 16
      %v1390 = vor.u32 %v1388, %v1386
      %v1392 = vshll.u32 %v923, 16
      %v1394 = vrot.slane %v1392, 1
      %v1395 = vsel %vm935, %v1390, %v1394
      %v1397 = vshrl.u32 %v811, 16
      %v1399 = vshll.u32 %v811, 16
      %v1401 = vrot.slane %v1399, 1
      %v1402 = vor.u32 %v1397, %v1401
      %v1404 = vshll.u32 %v812, 16
      %v1406 = vrot.slane %v1404, 1
      %v1407 = vsel %vm935, %v1402, %v1406
      %v1408 = vshrl.u32 %v812, 16
      %v1410 = vor.u32 %v1408, %v1406
      %v1412 = vshll.u32 %v924, 16
      %v1414 = vrot.slane %v1412, 1
      %v1415 = vsel %vm935, %v1410, %v1414
      %v1417 = vshrl.u32 %v813, 16
      %v1419 = vshll.u32 %v813, 16
      %v1421 = vrot.slane %v1419, 1
      %v1422 = vor.u32 %v1417, %v1421
      %v1424 = vshll.u32 %v814, 16
      %v1426 = vrot.slane %v1424, 1
      %v1427 = vsel %vm935, %v1422, %v1426
      %v1428 = vshrl.u32 %v814, 16
      %v1430 = vor.u32 %v1428, %v1426
      %v1432 = vshll.u32 %v925, 16
      %v1434 = vrot.slane %v1432, 1
      %v1435 = vsel %vm935, %v1430, %v1434
      %v1437 = vshrl.u32 %v815, 16
      %v1439 = vshll.u32 %v815, 16
      %v1441 = vrot.slane %v1439, 1
      %v1442 = vor.u32 %v1437, %v1441
      %v1444 = vshll.u32 %v816, 16
      %v1446 = vrot.slane %v1444, 1
      %v1447 = vsel %vm935, %v1442, %v1446
      %v1448 = vshrl.u32 %v816, 16
      %v1450 = vor.u32 %v1448, %v1446
      %v1452 = vshll.u32 %v926, 16
      %v1454 = vrot.slane %v1452, 1
      %v1455 = vsel %vm935, %v1450, %v1454
      %v1457 = vshrl.u32 %v817, 16
      %v1459 = vshll.u32 %v817, 16
      %v1461 = vrot.slane %v1459, 1
      %v1462 = vor.u32 %v1457, %v1461
      %v1464 = vshll.u32 %v818, 16
      %v1466 = vrot.slane %v1464, 1
      %v1467 = vsel %vm935, %v1462, %v1466
      %v1468 = vshrl.u32 %v818, 16
      %v1470 = vor.u32 %v1468, %v1466
      %v1472 = vshll.u32 %v927, 16
      %v1474 = vrot.slane %v1472, 1
      %v1475 = vsel %vm935, %v1470, %v1474
      %v1477 = vshrl.u32 %v819, 16
      %v1479 = vshll.u32 %v819, 16
      %v1481 = vrot.slane %v1479, 1
      %v1482 = vor.u32 %v1477, %v1481
      %v1484 = vshll.u32 %v820, 16
      %v1486 = vrot.slane %v1484, 1
      %v1487 = vsel %vm935, %v1482, %v1486
      %v1488 = vshrl.u32 %v820, 16
      %v1490 = vor.u32 %v1488, %v1486
      %v1492 = vshll.u32 %v928, 16
      %v1494 = vrot.slane %v1492, 1
      %v1495 = vsel %vm935, %v1490, %v1494
      %v1497 = vshrl.u32 %v821, 16
      %v1499 = vshll.u32 %v821, 16
      %v1501 = vrot.slane %v1499, 1
      %v1502 = vor.u32 %v1497, %v1501
      %v1504 = vshll.u32 %v822, 16
      %v1506 = vrot.slane %v1504, 1
      %v1507 = vsel %vm935, %v1502, %v1506
      %v1508 = vshrl.u32 %v822, 16
      %v1510 = vor.u32 %v1508, %v1506
      %v1512 = vshll.u32 %v929, 16
      %v1514 = vrot.slane %v1512, 1
      %v1515 = vsel %vm935, %v1510, %v1514
      %v1517 = vshrl.u32 %v823, 16
      %v1519 = vshll.u32 %v823, 16
      %v1521 = vrot.slane %v1519, 1
      %v1522 = vor.u32 %v1517, %v1521
      %v1524 = vshll.u32 %v824, 16
      %v1526 = vrot.slane %v1524, 1
      %v1527 = vsel %vm935, %v1522, %v1526
      %v1528 = vshrl.u32 %v824, 16
      %v1530 = vor.u32 %v1528, %v1526
      %v1532 = vshll.u32 %v930, 16
      %v1534 = vrot.slane %v1532, 1
      %v1535 = vsel %vm935, %v1530, %v1534
      %v1537 = vshrl.u32 %v825, 16
      %v1539 = vshll.u32 %v825, 16
      %v1541 = vrot.slane %v1539, 1
      %v1542 = vor.u32 %v1537, %v1541
      %v1544 = vshll.u32 %v826, 16
      %v1546 = vrot.slane %v1544, 1
      %v1547 = vsel %vm935, %v1542, %v1546
      %v1548 = vshrl.u32 %v826, 16
      %v1550 = vor.u32 %v1548, %v1546
      %v1552 = vshll.u32 %v931, 16
      %v1554 = vrot.slane %v1552, 1
      %v1555 = vsel %vm935, %v1550, %v1554
      %v1557 = vshrl.u32 %v827, 16
      %v1559 = vshll.u32 %v827, 16
      %v1561 = vrot.slane %v1559, 1
      %v1562 = vor.u32 %v1557, %v1561
      %v1564 = vshll.u32 %v828, 16
      %v1566 = vrot.slane %v1564, 1
      %v1567 = vsel %vm935, %v1562, %v1566
      %v1568 = vshrl.u32 %v828, 16
      %v1570 = vor.u32 %v1568, %v1566
      %v1572 = vshll.u32 %v932, 16
      %v1574 = vrot.slane %v1572, 1
      %v1575 = vsel %vm935, %v1570, %v1574
      %v1577 = vshrl.u32 %v829, 16
      %v1579 = vshll.u32 %v829, 16
      %v1581 = vrot.slane %v1579, 1
      %v1582 = vor.u32 %v1577, %v1581
      %v1584 = vshll.u32 %v830, 16
      %v1586 = vrot.slane %v1584, 1
      %v1587 = vsel %vm935, %v1582, %v1586
      %v1588 = vshrl.u32 %v830, 16
      %v1590 = vor.u32 %v1588, %v1586
      %v1592 = vshll.u32 %v933, 16
      %v1594 = vrot.slane %v1592, 1
      %v1595 = vsel %vm935, %v1590, %v1594
      %v1597 = vshrl.u32 %v831, 16
      %v1599 = vshll.u32 %v831, 16
      %v1601 = vrot.slane %v1599, 1
      %v1602 = vor.u32 %v1597, %v1601
      %v1604 = vshll.u32 %v832, 16
      %v1606 = vrot.slane %v1604, 1
      %v1607 = vsel %vm935, %v1602, %v1606
      %v1608 = vshrl.u32 %v832, 16
      %v1610 = vor.u32 %v1608, %v1606
      %v1612 = vshll.u32 %v934, 16
      %v1614 = vrot.slane %v1612, 1
      %v1615 = vsel %vm935, %v1610, %v1614
      %1616 = vrot.lane.b32.xlu0 %v947, 8
      %v1617 = vpop.permute.xlu0 %1616
      %1618 = vrot.lane.b32.xlu0 %v955, 8
      %v1619 = vpop.permute.xlu0 %1618
      %1620 = vrot.lane.b32.xlu0 %v967, 8
      %v1621 = vpop.permute.xlu0 %1620
      %1622 = vrot.lane.b32.xlu0 %v975, 8
      %v1623 = vpop.permute.xlu0 %1622
      %1624 = vrot.lane.b32.xlu0 %v987, 8
      %v1625 = vpop.permute.xlu0 %1624
      %1626 = vrot.lane.b32.xlu0 %v995, 8
      %v1627 = vpop.permute.xlu0 %1626
      %1628 = vrot.lane.b32.xlu0 %v1007, 8
      %v1629 = vpop.permute.xlu0 %1628
      %1630 = vrot.lane.b32.xlu0 %v1015, 8
      %v1631 = vpop.permute.xlu0 %1630
      %1632 = vrot.lane.b32.xlu0 %v1027, 8
      %v1633 = vpop.permute.xlu0 %1632
      %1634 = vrot.lane.b32.xlu0 %v1035, 8
      %v1635 = vpop.permute.xlu0 %1634
      %1636 = vrot.lane.b32.xlu0 %v1047, 8
      %v1637 = vpop.permute.xlu0 %1636
      %1638 = vrot.lane.b32.xlu0 %v1055, 8
      %v1639 = vpop.permute.xlu0 %1638
      %1640 = vrot.lane.b32.xlu0 %v1067, 8
      %v1641 = vpop.permute.xlu0 %1640
      %1642 = vrot.lane.b32.xlu0 %v1075, 8
      %v1643 = vpop.permute.xlu0 %1642
      %1644 = vrot.lane.b32.xlu0 %v1087, 8
      %v1645 = vpop.permute.xlu0 %1644
      %1646 = vrot.lane.b32.xlu0 %v1095, 8
      %v1647 = vpop.permute.xlu0 %1646
      %1648 = vrot.lane.b32.xlu0 %v1107, 8
      %v1649 = vpop.permute.xlu0 %1648
      %1650 = vrot.lane.b32.xlu0 %v1115, 8
      %v1651 = vpop.permute.xlu0 %1650
      %1652 = vrot.lane.b32.xlu0 %v1127, 8
      %v1653 = vpop.permute.xlu0 %1652
      %1654 = vrot.lane.b32.xlu0 %v1135, 8
      %v1655 = vpop.permute.xlu0 %1654
      %1656 = vrot.lane.b32.xlu0 %v1147, 8
      %v1657 = vpop.permute.xlu0 %1656
      %1658 = vrot.lane.b32.xlu0 %v1155, 8
      %v1659 = vpop.permute.xlu0 %1658
      %1660 = vrot.lane.b32.xlu0 %v1167, 8
      %v1661 = vpop.permute.xlu0 %1660
      %1662 = vrot.lane.b32.xlu0 %v1175, 8
      %v1663 = vpop.permute.xlu0 %1662
      %1664 = vrot.lane.b32.xlu0 %v1187, 8
      %v1665 = vpop.permute.xlu0 %1664
      %1666 = vrot.lane.b32.xlu0 %v1195, 8
      %v1667 = vpop.permute.xlu0 %1666
      %1668 = vrot.lane.b32.xlu0 %v1207, 8
      %v1669 = vpop.permute.xlu0 %1668
      %1670 = vrot.lane.b32.xlu0 %v1215, 8
      %v1671 = vpop.permute.xlu0 %1670
      %1672 = vrot.lane.b32.xlu0 %v1227, 8
      %v1673 = vpop.permute.xlu0 %1672
      %1674 = vrot.lane.b32.xlu0 %v1235, 8
      %v1675 = vpop.permute.xlu0 %1674
      %1676 = vrot.lane.b32.xlu0 %v1247, 8
      %v1677 = vpop.permute.xlu0 %1676
      %1678 = vrot.lane.b32.xlu0 %v1255, 8
      %v1679 = vpop.permute.xlu0 %1678
      %1680 = vrot.lane.b32.xlu0 %v1267, 8
      %v1681 = vpop.permute.xlu0 %1680
      %1682 = vrot.lane.b32.xlu0 %v1275, 8
      %v1683 = vpop.permute.xlu0 %1682
      %1684 = vrot.lane.b32.xlu0 %v1287, 8
      %v1685 = vpop.permute.xlu0 %1684
      %1686 = vrot.lane.b32.xlu0 %v1295, 8
      %v1687 = vpop.permute.xlu0 %1686
      %1688 = vrot.lane.b32.xlu0 %v1307, 8
      %v1689 = vpop.permute.xlu0 %1688
      %1690 = vrot.lane.b32.xlu0 %v1315, 8
      %v1691 = vpop.permute.xlu0 %1690
      %1692 = vrot.lane.b32.xlu0 %v1327, 8
      %v1693 = vpop.permute.xlu0 %1692
      %1694 = vrot.lane.b32.xlu0 %v1335, 8
      %v1695 = vpop.permute.xlu0 %1694
      %1696 = vrot.lane.b32.xlu0 %v1347, 8
      %v1697 = vpop.permute.xlu0 %1696
      %1698 = vrot.lane.b32.xlu0 %v1355, 8
      %v1699 = vpop.permute.xlu0 %1698
      %1700 = vrot.lane.b32.xlu0 %v1367, 8
      %v1701 = vpop.permute.xlu0 %1700
      %1702 = vrot.lane.b32.xlu0 %v1375, 8
      %v1703 = vpop.permute.xlu0 %1702
      %1704 = vrot.lane.b32.xlu0 %v1387, 8
      %v1705 = vpop.permute.xlu0 %1704
      %1706 = vrot.lane.b32.xlu0 %v1395, 8
      %v1707 = vpop.permute.xlu0 %1706
      %1708 = vrot.lane.b32.xlu0 %v1407, 8
      %v1709 = vpop.permute.xlu0 %1708
      %1710 = vrot.lane.b32.xlu0 %v1415, 8
      %v1711 = vpop.permute.xlu0 %1710
      %1712 = vrot.lane.b32.xlu0 %v1427, 8
      %v1713 = vpop.permute.xlu0 %1712
      %1714 = vrot.lane.b32.xlu0 %v1435, 8
      %v1715 = vpop.permute.xlu0 %1714
      %1716 = vrot.lane.b32.xlu0 %v1447, 8
      %v1717 = vpop.permute.xlu0 %1716
      %1718 = vrot.lane.b32.xlu0 %v1455, 8
      %v1719 = vpop.permute.xlu0 %1718
      %1720 = vrot.lane.b32.xlu0 %v1467, 8
      %v1721 = vpop.permute.xlu0 %1720
      %1722 = vrot.lane.b32.xlu0 %v1475, 8
      %v1723 = vpop.permute.xlu0 %1722
      %1724 = vrot.lane.b32.xlu0 %v1487, 8
      %v1725 = vpop.permute.xlu0 %1724
      %1726 = vrot.lane.b32.xlu0 %v1495, 8
      %v1727 = vpop.permute.xlu0 %1726
      %1728 = vrot.lane.b32.xlu0 %v1507, 8
      %v1729 = vpop.permute.xlu0 %1728
      %1730 = vrot.lane.b32.xlu0 %v1515, 8
      %v1731 = vpop.permute.xlu0 %1730
      %1732 = vrot.lane.b32.xlu0 %v1527, 8
      %v1733 = vpop.permute.xlu0 %1732
      %1734 = vrot.lane.b32.xlu0 %v1535, 8
      %v1735 = vpop.permute.xlu0 %1734
      %1736 = vrot.lane.b32.xlu0 %v1547, 8
      %v1737 = vpop.permute.xlu0 %1736
      %1738 = vrot.lane.b32.xlu0 %v1555, 8
      %v1739 = vpop.permute.xlu0 %1738
      %1740 = vrot.lane.b32.xlu0 %v1567, 8
      %v1741 = vpop.permute.xlu0 %1740
      %1742 = vrot.lane.b32.xlu0 %v1575, 8
      %v1743 = vpop.permute.xlu0 %1742
      %1744 = vrot.lane.b32.xlu0 %v1587, 8
      %v1745 = vpop.permute.xlu0 %1744
      %1746 = vrot.lane.b32.xlu0 %v1595, 8
      %v1747 = vpop.permute.xlu0 %1746
      %1748 = vrot.lane.b32.xlu0 %v1607, 8
      %v1749 = vpop.permute.xlu0 %1748
      %1750 = vrot.lane.b32.xlu0 %v1615, 8
      %v1751 = vpop.permute.xlu0 %1750
      %vm1752 = vcmask 1046528
      %v1753 = vrot.slane %v765, 1
      %v1754 = vrot.slane %v766, 1
      %v1755 = vsel %vm1752, %v1753, %v1754
      %v1756 = vrot.slane %v901, 1
      %v1757 = vsel %vm1752, %v1754, %v1756
      %v1758 = vrot.slane %v767, 1
      %v1759 = vrot.slane %v768, 1
      %v1760 = vsel %vm1752, %v1758, %v1759
      %v1761 = vrot.slane %v902, 1
      %v1762 = vsel %vm1752, %v1759, %v1761
      %v1763 = vrot.slane %v769, 1
      %v1764 = vrot.slane %v770, 1
      %v1765 = vsel %vm1752, %v1763, %v1764
      %v1766 = vrot.slane %v903, 1
      %v1767 = vsel %vm1752, %v1764, %v1766
      %v1768 = vrot.slane %v771, 1
      %v1769 = vrot.slane %v772, 1
      %v1770 = vsel %vm1752, %v1768, %v1769
      %v1771 = vrot.slane %v904, 1
      %v1772 = vsel %vm1752, %v1769, %v1771
      %v1773 = vrot.slane %v773, 1
      %v1774 = vrot.slane %v774, 1
      %v1775 = vsel %vm1752, %v1773, %v1774
      %v1776 = vrot.slane %v905, 1
      %v1777 = vsel %vm1752, %v1774, %v1776
      %v1778 = vrot.slane %v775, 1
      %v1779 = vrot.slane %v776, 1
      %v1780 = vsel %vm1752, %v1778, %v1779
      %v1781 = vrot.slane %v906, 1
      %v1782 = vsel %vm1752, %v1779, %v1781
      %v1783 = vrot.slane %v777, 1
      %v1784 = vrot.slane %v778, 1
      %v1785 = vsel %vm1752, %v1783, %v1784
      %v1786 = vrot.slane %v907, 1
      %v1787 = vsel %vm1752, %v1784, %v1786
      %v1788 = vrot.slane %v779, 1
      %v1789 = vrot.slane %v780, 1
      %v1790 = vsel %vm1752, %v1788, %v1789
      %v1791 = vrot.slane %v908, 1
      %v1792 = vsel %vm1752, %v1789, %v1791
      %v1793 = vrot.slane %v781, 1
      %v1794 = vrot.slane %v782, 1
      %v1795 = vsel %vm1752, %v1793, %v1794
      %v1796 = vrot.slane %v909, 1
      %v1797 = vsel %vm1752, %v1794, %v1796
      %v1798 = vrot.slane %v783, 1
      %v1799 = vrot.slane %v784, 1
      %v1800 = vsel %vm1752, %v1798, %v1799
      %v1801 = vrot.slane %v910, 1
      %v1802 = vsel %vm1752, %v1799, %v1801
      %v1803 = vrot.slane %v785, 1
      %v1804 = vrot.slane %v786, 1
      %v1805 = vsel %vm1752, %v1803, %v1804
      %v1806 = vrot.slane %v911, 1
      %v1807 = vsel %vm1752, %v1804, %v1806
      %v1808 = vrot.slane %v787, 1
      %v1809 = vrot.slane %v788, 1
      %v1810 = vsel %vm1752, %v1808, %v1809
      %v1811 = vrot.slane %v912, 1
      %v1812 = vsel %vm1752, %v1809, %v1811
      %v1813 = vrot.slane %v789, 1
      %v1814 = vrot.slane %v790, 1
      %v1815 = vsel %vm1752, %v1813, %v1814
      %v1816 = vrot.slane %v913, 1
      %v1817 = vsel %vm1752, %v1814, %v1816
      %v1818 = vrot.slane %v791, 1
      %v1819 = vrot.slane %v792, 1
      %v1820 = vsel %vm1752, %v1818, %v1819
      %v1821 = vrot.slane %v914, 1
      %v1822 = vsel %vm1752, %v1819, %v1821
      %v1823 = vrot.slane %v793, 1
      %v1824 = vrot.slane %v794, 1
      %v1825 = vsel %vm1752, %v1823, %v1824
      %v1826 = vrot.slane %v915, 1
      %v1827 = vsel %vm1752, %v1824, %v1826
      %v1828 = vrot.slane %v795, 1
      %v1829 = vrot.slane %v796, 1
      %v1830 = vsel %vm1752, %v1828, %v1829
      %v1831 = vrot.slane %v916, 1
      %v1832 = vsel %vm1752, %v1829, %v1831
      %v1833 = vrot.slane %v797, 1
      %v1834 = vrot.slane %v798, 1
      %v1835 = vsel %vm1752, %v1833, %v1834
      %v1836 = vrot.slane %v917, 1
      %v1837 = vsel %vm1752, %v1834, %v1836
      %v1838 = vrot.slane %v799, 1
      %v1839 = vrot.slane %v800, 1
      %v1840 = vsel %vm1752, %v1838, %v1839
      %v1841 = vrot.slane %v918, 1
      %v1842 = vsel %vm1752, %v1839, %v1841
      %v1843 = vrot.slane %v801, 1
      %v1844 = vrot.slane %v802, 1
      %v1845 = vsel %vm1752, %v1843, %v1844
      %v1846 = vrot.slane %v919, 1
      %v1847 = vsel %vm1752, %v1844, %v1846
      %v1848 = vrot.slane %v803, 1
      %v1849 = vrot.slane %v804, 1
      %v1850 = vsel %vm1752, %v1848, %v1849
      %v1851 = vrot.slane %v920, 1
      %v1852 = vsel %vm1752, %v1849, %v1851
      %v1853 = vrot.slane %v805, 1
      %v1854 = vrot.slane %v806, 1
      %v1855 = vsel %vm1752, %v1853, %v1854
      %v1856 = vrot.slane %v921, 1
      %v1857 = vsel %vm1752, %v1854, %v1856
      %v1858 = vrot.slane %v807, 1
      %v1859 = vrot.slane %v808, 1
      %v1860 = vsel %vm1752, %v1858, %v1859
      %v1861 = vrot.slane %v922, 1
      %v1862 = vsel %vm1752, %v1859, %v1861
      %v1863 = vrot.slane %v809, 1
      %v1864 = vrot.slane %v810, 1
      %v1865 = vsel %vm1752, %v1863, %v1864
      %v1866 = vrot.slane %v923, 1
      %v1867 = vsel %vm1752, %v1864, %v1866
      %v1868 = vrot.slane %v811, 1
      %v1869 = vrot.slane %v812, 1
      %v1870 = vsel %vm1752, %v1868, %v1869
      %v1871 = vrot.slane %v924, 1
      %v1872 = vsel %vm1752, %v1869, %v1871
      %v1873 = vrot.slane %v813, 1
      %v1874 = vrot.slane %v814, 1
      %v1875 = vsel %vm1752, %v1873, %v1874
      %v1876 = vrot.slane %v925, 1
      %v1877 = vsel %vm1752, %v1874, %v1876
      %v1878 = vrot.slane %v815, 1
      %v1879 = vrot.slane %v816, 1
      %v1880 = vsel %vm1752, %v1878, %v1879
      %v1881 = vrot.slane %v926, 1
      %v1882 = vsel %vm1752, %v1879, %v1881
      %v1883 = vrot.slane %v817, 1
      %v1884 = vrot.slane %v818, 1
      %v1885 = vsel %vm1752, %v1883, %v1884
      %v1886 = vrot.slane %v927, 1
      %v1887 = vsel %vm1752, %v1884, %v1886
      %v1888 = vrot.slane %v819, 1
      %v1889 = vrot.slane %v820, 1
      %v1890 = vsel %vm1752, %v1888, %v1889
      %v1891 = vrot.slane %v928, 1
      %v1892 = vsel %vm1752, %v1889, %v1891
      %v1893 = vrot.slane %v821, 1
      %v1894 = vrot.slane %v822, 1
      %v1895 = vsel %vm1752, %v1893, %v1894
      %v1896 = vrot.slane %v929, 1
      %v1897 = vsel %vm1752, %v1894, %v1896
      %v1898 = vrot.slane %v823, 1
      %v1899 = vrot.slane %v824, 1
      %v1900 = vsel %vm1752, %v1898, %v1899
      %v1901 = vrot.slane %v930, 1
      %v1902 = vsel %vm1752, %v1899, %v1901
      %v1903 = vrot.slane %v825, 1
      %v1904 = vrot.slane %v826, 1
      %v1905 = vsel %vm1752, %v1903, %v1904
      %v1906 = vrot.slane %v931, 1
      %v1907 = vsel %vm1752, %v1904, %v1906
      %v1908 = vrot.slane %v827, 1
      %v1909 = vrot.slane %v828, 1
      %v1910 = vsel %vm1752, %v1908, %v1909
      %v1911 = vrot.slane %v932, 1
      %v1912 = vsel %vm1752, %v1909, %v1911
      %v1913 = vrot.slane %v829, 1
      %v1914 = vrot.slane %v830, 1
      %v1915 = vsel %vm1752, %v1913, %v1914
      %v1916 = vrot.slane %v933, 1
      %v1917 = vsel %vm1752, %v1914, %v1916
      %v1918 = vrot.slane %v831, 1
      %v1919 = vrot.slane %v832, 1
      %v1920 = vsel %vm1752, %v1918, %v1919
      %v1921 = vrot.slane %v934, 1
      %v1922 = vsel %vm1752, %v1919, %v1921
      %1923 = vrot.lane.b32.xlu0 %v1755, 16
      %v1924 = vpop.permute.xlu0 %1923
      %1925 = vrot.lane.b32.xlu0 %v1757, 16
      %v1926 = vpop.permute.xlu0 %1925
      %1927 = vrot.lane.b32.xlu0 %v1760, 16
      %v1928 = vpop.permute.xlu0 %1927
      %1929 = vrot.lane.b32.xlu0 %v1762, 16
      %v1930 = vpop.permute.xlu0 %1929
      %1931 = vrot.lane.b32.xlu0 %v1765, 16
      %v1932 = vpop.permute.xlu0 %1931
      %1933 = vrot.lane.b32.xlu0 %v1767, 16
      %v1934 = vpop.permute.xlu0 %1933
      %1935 = vrot.lane.b32.xlu0 %v1770, 16
      %v1936 = vpop.permute.xlu0 %1935
      %1937 = vrot.lane.b32.xlu0 %v1772, 16
      %v1938 = vpop.permute.xlu0 %1937
      %1939 = vrot.lane.b32.xlu0 %v1775, 16
      %v1940 = vpop.permute.xlu0 %1939
      %1941 = vrot.lane.b32.xlu0 %v1777, 16
      %v1942 = vpop.permute.xlu0 %1941
      %1943 = vrot.lane.b32.xlu0 %v1780, 16
      %v1944 = vpop.permute.xlu0 %1943
      %1945 = vrot.lane.b32.xlu0 %v1782, 16
      %v1946 = vpop.permute.xlu0 %1945
      %1947 = vrot.lane.b32.xlu0 %v1785, 16
      %v1948 = vpop.permute.xlu0 %1947
      %1949 = vrot.lane.b32.xlu0 %v1787, 16
      %v1950 = vpop.permute.xlu0 %1949
      %1951 = vrot.lane.b32.xlu0 %v1790, 16
      %v1952 = vpop.permute.xlu0 %1951
      %1953 = vrot.lane.b32.xlu0 %v1792, 16
      %v1954 = vpop.permute.xlu0 %1953
      %1955 = vrot.lane.b32.xlu0 %v1795, 16
      %v1956 = vpop.permute.xlu0 %1955
      %1957 = vrot.lane.b32.xlu0 %v1797, 16
      %v1958 = vpop.permute.xlu0 %1957
      %1959 = vrot.lane.b32.xlu0 %v1800, 16
      %v1960 = vpop.permute.xlu0 %1959
      %1961 = vrot.lane.b32.xlu0 %v1802, 16
      %v1962 = vpop.permute.xlu0 %1961
      %1963 = vrot.lane.b32.xlu0 %v1805, 16
      %v1964 = vpop.permute.xlu0 %1963
      %1965 = vrot.lane.b32.xlu0 %v1807, 16
      %v1966 = vpop.permute.xlu0 %1965
      %1967 = vrot.lane.b32.xlu0 %v1810, 16
      %v1968 = vpop.permute.xlu0 %1967
      %1969 = vrot.lane.b32.xlu0 %v1812, 16
      %v1970 = vpop.permute.xlu0 %1969
      %1971 = vrot.lane.b32.xlu0 %v1815, 16
      %v1972 = vpop.permute.xlu0 %1971
      %1973 = vrot.lane.b32.xlu0 %v1817, 16
      %v1974 = vpop.permute.xlu0 %1973
      %1975 = vrot.lane.b32.xlu0 %v1820, 16
      %v1976 = vpop.permute.xlu0 %1975
      %1977 = vrot.lane.b32.xlu0 %v1822, 16
      %v1978 = vpop.permute.xlu0 %1977
      %1979 = vrot.lane.b32.xlu0 %v1825, 16
      %v1980 = vpop.permute.xlu0 %1979
      %1981 = vrot.lane.b32.xlu0 %v1827, 16
      %v1982 = vpop.permute.xlu0 %1981
      %1983 = vrot.lane.b32.xlu0 %v1830, 16
      %v1984 = vpop.permute.xlu0 %1983
      %1985 = vrot.lane.b32.xlu0 %v1832, 16
      %v1986 = vpop.permute.xlu0 %1985
      %1987 = vrot.lane.b32.xlu0 %v1835, 16
      %v1988 = vpop.permute.xlu0 %1987
      %1989 = vrot.lane.b32.xlu0 %v1837, 16
      %v1990 = vpop.permute.xlu0 %1989
      %1991 = vrot.lane.b32.xlu0 %v1840, 16
      %v1992 = vpop.permute.xlu0 %1991
      %1993 = vrot.lane.b32.xlu0 %v1842, 16
      %v1994 = vpop.permute.xlu0 %1993
      %1995 = vrot.lane.b32.xlu0 %v1845, 16
      %v1996 = vpop.permute.xlu0 %1995
      %1997 = vrot.lane.b32.xlu0 %v1847, 16
      %v1998 = vpop.permute.xlu0 %1997
      %1999 = vrot.lane.b32.xlu0 %v1850, 16
      %v2000 = vpop.permute.xlu0 %1999
      %2001 = vrot.lane.b32.xlu0 %v1852, 16
      %v2002 = vpop.permute.xlu0 %2001
      %2003 = vrot.lane.b32.xlu0 %v1855, 16
      %v2004 = vpop.permute.xlu0 %2003
      %2005 = vrot.lane.b32.xlu0 %v1857, 16
      %v2006 = vpop.permute.xlu0 %2005
      %2007 = vrot.lane.b32.xlu0 %v1860, 16
      %v2008 = vpop.permute.xlu0 %2007
      %2009 = vrot.lane.b32.xlu0 %v1862, 16
      %v2010 = vpop.permute.xlu0 %2009
      %2011 = vrot.lane.b32.xlu0 %v1865, 16
      %v2012 = vpop.permute.xlu0 %2011
      %2013 = vrot.lane.b32.xlu0 %v1867, 16
      %v2014 = vpop.permute.xlu0 %2013
      %2015 = vrot.lane.b32.xlu0 %v1870, 16
      %v2016 = vpop.permute.xlu0 %2015
      %2017 = vrot.lane.b32.xlu0 %v1872, 16
      %v2018 = vpop.permute.xlu0 %2017
      %2019 = vrot.lane.b32.xlu0 %v1875, 16
      %v2020 = vpop.permute.xlu0 %2019
      %2021 = vrot.lane.b32.xlu0 %v1877, 16
      %v2022 = vpop.permute.xlu0 %2021
      %2023 = vrot.lane.b32.xlu0 %v1880, 16
      %v2024 = vpop.permute.xlu0 %2023
      %2025 = vrot.lane.b32.xlu0 %v1882, 16
      %v2026 = vpop.permute.xlu0 %2025
      %2027 = vrot.lane.b32.xlu0 %v1885, 16
      %v2028 = vpop.permute.xlu0 %2027
      %2029 = vrot.lane.b32.xlu0 %v1887, 16
      %v2030 = vpop.permute.xlu0 %2029
      %2031 = vrot.lane.b32.xlu0 %v1890, 16
      %v2032 = vpop.permute.xlu0 %2031
      %2033 = vrot.lane.b32.xlu0 %v1892, 16
      %v2034 = vpop.permute.xlu0 %2033
      %2035 = vrot.lane.b32.xlu0 %v1895, 16
      %v2036 = vpop.permute.xlu0 %2035
      %2037 = vrot.lane.b32.xlu0 %v1897, 16
      %v2038 = vpop.permute.xlu0 %2037
      %2039 = vrot.lane.b32.xlu0 %v1900, 16
      %v2040 = vpop.permute.xlu0 %2039
      %2041 = vrot.lane.b32.xlu0 %v1902, 16
      %v2042 = vpop.permute.xlu0 %2041
      %2043 = vrot.lane.b32.xlu0 %v1905, 16
      %v2044 = vpop.permute.xlu0 %2043
      %2045 = vrot.lane.b32.xlu0 %v1907, 16
      %v2046 = vpop.permute.xlu0 %2045
      %2047 = vrot.lane.b32.xlu0 %v1910, 16
      %v2048 = vpop.permute.xlu0 %2047
      %2049 = vrot.lane.b32.xlu0 %v1912, 16
      %v2050 = vpop.permute.xlu0 %2049
      %2051 = vrot.lane.b32.xlu0 %v1915, 16
      %v2052 = vpop.permute.xlu0 %2051
      %2053 = vrot.lane.b32.xlu0 %v1917, 16
      %v2054 = vpop.permute.xlu0 %2053
      %2055 = vrot.lane.b32.xlu0 %v1920, 16
      %v2056 = vpop.permute.xlu0 %2055
      %2057 = vrot.lane.b32.xlu0 %v1922, 16
      %v2058 = vpop.permute.xlu0 %2057
      %vm2059 = vcmask 64512
      %v2061 = vsel %vm2059, %v765, %v1617
      %v2063 = vsel %vm2059, %v766, %v1619
      %v2065 = vsel %vm2059, %v767, %v1621
      %v2067 = vsel %vm2059, %v768, %v1623
      %v2069 = vsel %vm2059, %v769, %v1625
      %v2071 = vsel %vm2059, %v770, %v1627
      %v2073 = vsel %vm2059, %v771, %v1629
      %v2075 = vsel %vm2059, %v772, %v1631
      %v2077 = vsel %vm2059, %v773, %v1633
      %v2079 = vsel %vm2059, %v774, %v1635
      %v2081 = vsel %vm2059, %v775, %v1637
      %v2083 = vsel %vm2059, %v776, %v1639
      %v2085 = vsel %vm2059, %v777, %v1641
      %v2087 = vsel %vm2059, %v778, %v1643
      %v2089 = vsel %vm2059, %v779, %v1645
      %v2091 = vsel %vm2059, %v780, %v1647
      %v2093 = vsel %vm2059, %v781, %v1649
      %v2095 = vsel %vm2059, %v782, %v1651
      %v2097 = vsel %vm2059, %v783, %v1653
      %v2099 = vsel %vm2059, %v784, %v1655
      %v2101 = vsel %vm2059, %v785, %v1657
      %v2103 = vsel %vm2059, %v786, %v1659
      %v2105 = vsel %vm2059, %v787, %v1661
      %v2107 = vsel %vm2059, %v788, %v1663
      %v2109 = vsel %vm2059, %v789, %v1665
      %v2111 = vsel %vm2059, %v790, %v1667
      %v2113 = vsel %vm2059, %v791, %v1669
      %v2115 = vsel %vm2059, %v792, %v1671
      %v2117 = vsel %vm2059, %v793, %v1673
      %v2119 = vsel %vm2059, %v794, %v1675
      %v2121 = vsel %vm2059, %v795, %v1677
      %v2123 = vsel %vm2059, %v796, %v1679
      %v2125 = vsel %vm2059, %v797, %v1681
      %v2127 = vsel %vm2059, %v798, %v1683
      %v2129 = vsel %vm2059, %v799, %v1685
      %v2131 = vsel %vm2059, %v800, %v1687
      %v2133 = vsel %vm2059, %v801, %v1689
      %v2135 = vsel %vm2059, %v802, %v1691
      %v2137 = vsel %vm2059, %v803, %v1693
      %v2139 = vsel %vm2059, %v804, %v1695
      %v2141 = vsel %vm2059, %v805, %v1697
      %v2143 = vsel %vm2059, %v806, %v1699
      %v2145 = vsel %vm2059, %v807, %v1701
      %v2147 = vsel %vm2059, %v808, %v1703
      %v2149 = vsel %vm2059, %v809, %v1705
      %v2151 = vsel %vm2059, %v810, %v1707
      %v2153 = vsel %vm2059, %v811, %v1709
      %v2155 = vsel %vm2059, %v812, %v1711
      %v2157 = vsel %vm2059, %v813, %v1713
      %v2159 = vsel %vm2059, %v814, %v1715
      %v2161 = vsel %vm2059, %v815, %v1717
      %v2163 = vsel %vm2059, %v816, %v1719
      %v2165 = vsel %vm2059, %v817, %v1721
      %v2167 = vsel %vm2059, %v818, %v1723
      %v2169 = vsel %vm2059, %v819, %v1725
      %v2171 = vsel %vm2059, %v820, %v1727
      %v2173 = vsel %vm2059, %v821, %v1729
      %v2175 = vsel %vm2059, %v822, %v1731
      %v2177 = vsel %vm2059, %v823, %v1733
      %v2179 = vsel %vm2059, %v824, %v1735
      %v2181 = vsel %vm2059, %v825, %v1737
      %v2183 = vsel %vm2059, %v826, %v1739
      %v2185 = vsel %vm2059, %v827, %v1741
      %v2187 = vsel %vm2059, %v828, %v1743
      %v2189 = vsel %vm2059, %v829, %v1745
      %v2191 = vsel %vm2059, %v830, %v1747
      %v2193 = vsel %vm2059, %v831, %v1749
      %v2195 = vsel %vm2059, %v832, %v1751
      %vm2196 = vcmask 130048
      %v2198 = vsel %vm2196, %v2061, %v1924
      %v2200 = vsel %vm2196, %v2063, %v1926
      %v2202 = vsel %vm2196, %v2065, %v1928
      %v2204 = vsel %vm2196, %v2067, %v1930
      %v2206 = vsel %vm2196, %v2069, %v1932
      %v2208 = vsel %vm2196, %v2071, %v1934
      %v2210 = vsel %vm2196, %v2073, %v1936
      %v2212 = vsel %vm2196, %v2075, %v1938
      %v2214 = vsel %vm2196, %v2077, %v1940
      %v2216 = vsel %vm2196, %v2079, %v1942
      %v2218 = vsel %vm2196, %v2081, %v1944
      %v2220 = vsel %vm2196, %v2083, %v1946
      %v2222 = vsel %vm2196, %v2085, %v1948
      %v2224 = vsel %vm2196, %v2087, %v1950
      %v2226 = vsel %vm2196, %v2089, %v1952
      %v2228 = vsel %vm2196, %v2091, %v1954
      %v2230 = vsel %vm2196, %v2093, %v1956
      %v2232 = vsel %vm2196, %v2095, %v1958
      %v2234 = vsel %vm2196, %v2097, %v1960
      %v2236 = vsel %vm2196, %v2099, %v1962
      %v2238 = vsel %vm2196, %v2101, %v1964
      %v2240 = vsel %vm2196, %v2103, %v1966
      %v2242 = vsel %vm2196, %v2105, %v1968
      %v2244 = vsel %vm2196, %v2107, %v1970
      %v2246 = vsel %vm2196, %v2109, %v1972
      %v2248 = vsel %vm2196, %v2111, %v1974
      %v2250 = vsel %vm2196, %v2113, %v1976
      %v2252 = vsel %vm2196, %v2115, %v1978
      %v2254 = vsel %vm2196, %v2117, %v1980
      %v2256 = vsel %vm2196, %v2119, %v1982
      %v2258 = vsel %vm2196, %v2121, %v1984
      %v2260 = vsel %vm2196, %v2123, %v1986
      %v2262 = vsel %vm2196, %v2125, %v1988
      %v2264 = vsel %vm2196, %v2127, %v1990
      %v2266 = vsel %vm2196, %v2129, %v1992
      %v2268 = vsel %vm2196, %v2131, %v1994
      %v2270 = vsel %vm2196, %v2133, %v1996
      %v2272 = vsel %vm2196, %v2135, %v1998
      %v2274 = vsel %vm2196, %v2137, %v2000
      %v2276 = vsel %vm2196, %v2139, %v2002
      %v2278 = vsel %vm2196, %v2141, %v2004
      %v2280 = vsel %vm2196, %v2143, %v2006
      %v2282 = vsel %vm2196, %v2145, %v2008
      %v2284 = vsel %vm2196, %v2147, %v2010
      %v2286 = vsel %vm2196, %v2149, %v2012
      %v2288 = vsel %vm2196, %v2151, %v2014
      %v2290 = vsel %vm2196, %v2153, %v2016
      %v2292 = vsel %vm2196, %v2155, %v2018
      %v2294 = vsel %vm2196, %v2157, %v2020
      %v2296 = vsel %vm2196, %v2159, %v2022
      %v2298 = vsel %vm2196, %v2161, %v2024
      %v2300 = vsel %vm2196, %v2163, %v2026
      %v2302 = vsel %vm2196, %v2165, %v2028
      %v2304 = vsel %vm2196, %v2167, %v2030
      %v2306 = vsel %vm2196, %v2169, %v2032
      %v2308 = vsel %vm2196, %v2171, %v2034
      %v2310 = vsel %vm2196, %v2173, %v2036
      %v2312 = vsel %vm2196, %v2175, %v2038
      %v2314 = vsel %vm2196, %v2177, %v2040
      %v2316 = vsel %vm2196, %v2179, %v2042
      %v2318 = vsel %vm2196, %v2181, %v2044
      %v2320 = vsel %vm2196, %v2183, %v2046
      %v2322 = vsel %vm2196, %v2185, %v2048
      %v2324 = vsel %vm2196, %v2187, %v2050
      %v2326 = vsel %vm2196, %v2189, %v2052
      %v2328 = vsel %vm2196, %v2191, %v2054
      %v2330 = vsel %vm2196, %v2193, %v2056
      %v2332 = vsel %vm2196, %v2195, %v2058
      %v2333 = vld [vmem:[%s2] sm:$0xf]
      %v2334 = vld [vmem:[%s2 + $0x4] sm:$0xf]
      %v2335 = vld [vmem:[%s2 + $0x8] sm:$0xf]
      %s2336 = scalar_lea.vmem %s2, 12
      %v2337 = vld [vmem:[%s2336] sm:$0xf]
      %v2338 = vld [vmem:[%s2336 + $0x4] sm:$0xf]
      %v2339 = vld [vmem:[%s2336 + $0x8] sm:$0xf]
      %v2343 = vunpack.c.l.b16 %v2337
      %v2344 = vunpack.c.l.b16 %v2338
      %v2345 = vunpack.c.l.b16 %v2339
      %v2346 = vpack.c.b16 %v2344, %v2343
      %v2347 = vpack.c.b16 %v2345, %v2345
      %vm2349 = vcmask 195584
      %v2350 = vsel %vm2349, %v2202, 0
      %v2352 = vsel %vm2349, %v2204, 0
      %v2354 = vsel %vm2349, %v2206, 0
      %v2356 = vsel %vm2349, %v2208, 0
      %v2358 = vsel %vm2349, %v2210, 0
      %v2360 = vsel %vm2349, %v2212, 0
      %v2362 = vsel %vm2349, %v2214, 0
      %v2364 = vsel %vm2349, %v2216, 0
      %v2366 = vsel %vm2349, %v2218, 0
      %v2368 = vsel %vm2349, %v2220, 0
      %v2370 = vsel %vm2349, %v2222, 0
      %v2372 = vsel %vm2349, %v2224, 0
      %v2374 = vsel %vm2349, %v2226, 0
      %v2376 = vsel %vm2349, %v2228, 0
      %v2378 = vsel %vm2349, %v2230, 0
      %v2380 = vsel %vm2349, %v2232, 0
      %v2382 = vsel %vm2349, %v2234, 0
      %v2384 = vsel %vm2349, %v2236, 0
      %v2386 = vsel %vm2349, %v2238, 0
      %v2388 = vsel %vm2349, %v2240, 0
      %v2390 = vsel %vm2349, %v2242, 0
      %v2392 = vsel %vm2349, %v2244, 0
      %v2394 = vsel %vm2349, %v2246, 0
      %v2396 = vsel %vm2349, %v2248, 0
      %v2398 = vsel %vm2349, %v2250, 0
      %v2400 = vsel %vm2349, %v2252, 0
      %v2402 = vsel %vm2349, %v2254, 0
      %v2404 = vsel %vm2349, %v2256, 0
      %v2406 = vsel %vm2349, %v2258, 0
      %v2408 = vsel %vm2349, %v2260, 0
      %v2410 = vsel %vm2349, %v2262, 0
      %v2412 = vsel %vm2349, %v2264, 0
      %v2414 = vsel %vm2349, %v2266, 0
      %v2416 = vsel %vm2349, %v2268, 0
      %v2418 = vsel %vm2349, %v2270, 0
      %v2420 = vsel %vm2349, %v2272, 0
      %v2422 = vsel %vm2349, %v2274, 0
      %v2424 = vsel %vm2349, %v2276, 0
      %v2426 = vsel %vm2349, %v2278, 0
      %v2428 = vsel %vm2349, %v2280, 0
      %v2430 = vsel %vm2349, %v2282, 0
      %v2432 = vsel %vm2349, %v2284, 0
      %v2434 = vsel %vm2349, %v2286, 0
      %v2436 = vsel %vm2349, %v2288, 0
      %v2438 = vsel %vm2349, %v2290, 0
      %v2440 = vsel %vm2349, %v2292, 0
      %v2442 = vsel %vm2349, %v2294, 0
      %v2444 = vsel %vm2349, %v2296, 0
      %v2446 = vsel %vm2349, %v2298, 0
      %v2448 = vsel %vm2349, %v2300, 0
      %v2450 = vsel %vm2349, %v2302, 0
      %v2452 = vsel %vm2349, %v2304, 0
      %v2454 = vsel %vm2349, %v2306, 0
      %v2456 = vsel %vm2349, %v2308, 0
      %v2458 = vsel %vm2349, %v2310, 0
      %v2460 = vsel %vm2349, %v2312, 0
      %v2462 = vsel %vm2349, %v2314, 0
      %v2464 = vsel %vm2349, %v2316, 0
      %v2466 = vsel %vm2349, %v2318, 0
      %v2468 = vsel %vm2349, %v2320, 0
      %v2470 = vsel %vm2349, %v2322, 0
      %v2472 = vsel %vm2349, %v2324, 0
      %v2474 = vsel %vm2349, %v2326, 0
      %v2476 = vsel %vm2349, %v2328, 0
      %vm2478 = vcmask 1043456
      %v2480 = vsel %vm2478, %v2347, 0
      %2482 = vmatpush.bf16.msra.mxu0 0
      %2483 = vmatpush.bf16.msra.mxu0 0
      %2484 = vmatpush.bf16.msra.mxu0 0
      %2485 = vmatpush.bf16.msra.mxu0 0
      %2486 = vmatpush.bf16.msra.mxu0 0
      %2487 = vmatpush.bf16.msra.mxu0 0
      %2488 = vmatpush.bf16.msra.mxu0 %v2480
      %2489 = vmatpush.bf16.msra.mxu0 %v2346
      %2490 = vmatmul.bf16.gmra.mxu0 %v2350
      %v2491 = vpop.f32.mrf.mxu0
      %v2492 = vadd.f32 0.0, %v2491
      %v2493 = vpop.f32.mrf.mxu0
      %v2494 = vadd.f32 0.0, %v2493
      %2495 = vmatmul.bf16.gmra.mxu0 %v2352
      %v2496 = vpop.f32.mrf.mxu0
      %v2497 = vadd.f32 0.0, %v2496
      %v2498 = vpop.f32.mrf.mxu0
      %v2499 = vadd.f32 0.0, %v2498
      %2500 = vmatmul.bf16.gmra.mxu0 %v2354
      %v2501 = vpop.f32.mrf.mxu0
      %v2502 = vadd.f32 0.0, %v2501
      %v2503 = vpop.f32.mrf.mxu0
      %v2504 = vadd.f32 0.0, %v2503
      %2505 = vmatmul.bf16.gmra.mxu0 %v2356
      %v2506 = vpop.f32.mrf.mxu0
      %v2507 = vadd.f32 0.0, %v2506
      %v2508 = vpop.f32.mrf.mxu0
      %v2509 = vadd.f32 0.0, %v2508
      %2510 = vmatmul.bf16.gmra.mxu0 %v2358
      %v2511 = vpop.f32.mrf.mxu0
      %v2512 = vadd.f32 0.0, %v2511
      %v2513 = vpop.f32.mrf.mxu0
      %v2514 = vadd.f32 0.0, %v2513
      %2515 = vmatmul.bf16.gmra.mxu0 %v2360
      %v2516 = vpop.f32.mrf.mxu0
      %v2517 = vadd.f32 0.0, %v2516
      %v2518 = vpop.f32.mrf.mxu0
      %v2519 = vadd.f32 0.0, %v2518
      %2520 = vmatmul.bf16.gmra.mxu0 %v2362
      %v2521 = vpop.f32.mrf.mxu0
      %v2522 = vadd.f32 0.0, %v2521
      %v2523 = vpop.f32.mrf.mxu0
      %v2524 = vadd.f32 0.0, %v2523
      %2525 = vmatmul.bf16.gmra.mxu0 %v2364
      %v2526 = vpop.f32.mrf.mxu0
      %v2527 = vadd.f32 0.0, %v2526
      %v2528 = vpop.f32.mrf.mxu0
      %v2529 = vadd.f32 0.0, %v2528
      %2530 = vmatmul.bf16.gmra.mxu0 %v2366
      %v2531 = vpop.f32.mrf.mxu0
      %v2532 = vadd.f32 0.0, %v2531
      %v2533 = vpop.f32.mrf.mxu0
      %v2534 = vadd.f32 0.0, %v2533
      %2535 = vmatmul.bf16.gmra.mxu0 %v2368
      %v2536 = vpop.f32.mrf.mxu0
      %v2537 = vadd.f32 0.0, %v2536
      %v2538 = vpop.f32.mrf.mxu0
      %v2539 = vadd.f32 0.0, %v2538
      %2540 = vmatmul.bf16.gmra.mxu0 %v2370
      %v2541 = vpop.f32.mrf.mxu0
      %v2542 = vadd.f32 0.0, %v2541
      %v2543 = vpop.f32.mrf.mxu0
      %v2544 = vadd.f32 0.0, %v2543
      %2545 = vmatmul.bf16.gmra.mxu0 %v2372
      %v2546 = vpop.f32.mrf.mxu0
      %v2547 = vadd.f32 0.0, %v2546
      %v2548 = vpop.f32.mrf.mxu0
      %v2549 = vadd.f32 0.0, %v2548
      %2550 = vmatmul.bf16.gmra.mxu0 %v2374
      %v2551 = vpop.f32.mrf.mxu0
      %v2552 = vadd.f32 0.0, %v2551
      %v2553 = vpop.f32.mrf.mxu0
      %v2554 = vadd.f32 0.0, %v2553
      %2555 = vmatmul.bf16.gmra.mxu0 %v2376
      %v2556 = vpop.f32.mrf.mxu0
      %v2557 = vadd.f32 0.0, %v2556
      %v2558 = vpop.f32.mrf.mxu0
      %v2559 = vadd.f32 0.0, %v2558
      %2560 = vmatmul.bf16.gmra.mxu0 %v2378
      %v2561 = vpop.f32.mrf.mxu0
      %v2562 = vadd.f32 0.0, %v2561
      %v2563 = vpop.f32.mrf.mxu0
      %v2564 = vadd.f32 0.0, %v2563
      %2565 = vmatmul.bf16.gmra.mxu0 %v2380
      %v2566 = vpop.f32.mrf.mxu0
      %v2567 = vadd.f32 0.0, %v2566
      %v2568 = vpop.f32.mrf.mxu0
      %v2569 = vadd.f32 0.0, %v2568
      %2570 = vmatmul.bf16.gmra.mxu0 %v2382
      %v2571 = vpop.f32.mrf.mxu0
      %v2572 = vadd.f32 0.0, %v2571
      %v2573 = vpop.f32.mrf.mxu0
      %v2574 = vadd.f32 0.0, %v2573
      %2575 = vmatmul.bf16.gmra.mxu0 %v2384
      %v2576 = vpop.f32.mrf.mxu0
      %v2577 = vadd.f32 0.0, %v2576
      %v2578 = vpop.f32.mrf.mxu0
      %v2579 = vadd.f32 0.0, %v2578
      %2580 = vmatmul.bf16.gmra.mxu0 %v2386
      %v2581 = vpop.f32.mrf.mxu0
      %v2582 = vadd.f32 0.0, %v2581
      %v2583 = vpop.f32.mrf.mxu0
      %v2584 = vadd.f32 0.0, %v2583
      %2585 = vmatmul.bf16.gmra.mxu0 %v2388
      %v2586 = vpop.f32.mrf.mxu0
      %v2587 = vadd.f32 0.0, %v2586
      %v2588 = vpop.f32.mrf.mxu0
      %v2589 = vadd.f32 0.0, %v2588
      %2590 = vmatmul.bf16.gmra.mxu0 %v2390
      %v2591 = vpop.f32.mrf.mxu0
      %v2592 = vadd.f32 0.0, %v2591
      %v2593 = vpop.f32.mrf.mxu0
      %v2594 = vadd.f32 0.0, %v2593
      %2595 = vmatmul.bf16.gmra.mxu0 %v2392
      %v2596 = vpop.f32.mrf.mxu0
      %v2597 = vadd.f32 0.0, %v2596
      %v2598 = vpop.f32.mrf.mxu0
      %v2599 = vadd.f32 0.0, %v2598
      %2600 = vmatmul.bf16.gmra.mxu0 %v2394
      %v2601 = vpop.f32.mrf.mxu0
      %v2602 = vadd.f32 0.0, %v2601
      %v2603 = vpop.f32.mrf.mxu0
      %v2604 = vadd.f32 0.0, %v2603
      %2605 = vmatmul.bf16.gmra.mxu0 %v2396
      %v2606 = vpop.f32.mrf.mxu0
      %v2607 = vadd.f32 0.0, %v2606
      %v2608 = vpop.f32.mrf.mxu0
      %v2609 = vadd.f32 0.0, %v2608
      %2610 = vmatmul.bf16.gmra.mxu0 %v2398
      %v2611 = vpop.f32.mrf.mxu0
      %v2612 = vadd.f32 0.0, %v2611
      %v2613 = vpop.f32.mrf.mxu0
      %v2614 = vadd.f32 0.0, %v2613
      %2615 = vmatmul.bf16.gmra.mxu0 %v2400
      %v2616 = vpop.f32.mrf.mxu0
      %v2617 = vadd.f32 0.0, %v2616
      %v2618 = vpop.f32.mrf.mxu0
      %v2619 = vadd.f32 0.0, %v2618
      %2620 = vmatmul.bf16.gmra.mxu0 %v2402
      %v2621 = vpop.f32.mrf.mxu0
      %v2622 = vadd.f32 0.0, %v2621
      %v2623 = vpop.f32.mrf.mxu0
      %v2624 = vadd.f32 0.0, %v2623
      %2625 = vmatmul.bf16.gmra.mxu0 %v2404
      %v2626 = vpop.f32.mrf.mxu0
      %v2627 = vadd.f32 0.0, %v2626
      %v2628 = vpop.f32.mrf.mxu0
      %v2629 = vadd.f32 0.0, %v2628
      %2630 = vmatmul.bf16.gmra.mxu0 %v2406
      %v2631 = vpop.f32.mrf.mxu0
      %v2632 = vadd.f32 0.0, %v2631
      %v2633 = vpop.f32.mrf.mxu0
      %v2634 = vadd.f32 0.0, %v2633
      %2635 = vmatmul.bf16.gmra.mxu0 %v2408
      %v2636 = vpop.f32.mrf.mxu0
      %v2637 = vadd.f32 0.0, %v2636
      %v2638 = vpop.f32.mrf.mxu0
      %v2639 = vadd.f32 0.0, %v2638
      %2640 = vmatmul.bf16.gmra.mxu0 %v2410
      %v2641 = vpop.f32.mrf.mxu0
      %v2642 = vadd.f32 0.0, %v2641
      %v2643 = vpop.f32.mrf.mxu0
      %v2644 = vadd.f32 0.0, %v2643
      %2645 = vmatmul.bf16.gmra.mxu0 %v2412
      %v2646 = vpop.f32.mrf.mxu0
      %v2647 = vadd.f32 0.0, %v2646
      %v2648 = vpop.f32.mrf.mxu0
      %v2649 = vadd.f32 0.0, %v2648
      %2650 = vmatmul.bf16.gmra.mxu0 %v2414
      %v2651 = vpop.f32.mrf.mxu0
      %v2652 = vadd.f32 0.0, %v2651
      %v2653 = vpop.f32.mrf.mxu0
      %v2654 = vadd.f32 0.0, %v2653
      %2655 = vmatmul.bf16.gmra.mxu0 %v2416
      %v2656 = vpop.f32.mrf.mxu0
      %v2657 = vadd.f32 0.0, %v2656
      %v2658 = vpop.f32.mrf.mxu0
      %v2659 = vadd.f32 0.0, %v2658
      %2660 = vmatmul.bf16.gmra.mxu0 %v2418
      %v2661 = vpop.f32.mrf.mxu0
      %v2662 = vadd.f32 0.0, %v2661
      %v2663 = vpop.f32.mrf.mxu0
      %v2664 = vadd.f32 0.0, %v2663
      %2665 = vmatmul.bf16.gmra.mxu0 %v2420
      %v2666 = vpop.f32.mrf.mxu0
      %v2667 = vadd.f32 0.0, %v2666
      %v2668 = vpop.f32.mrf.mxu0
      %v2669 = vadd.f32 0.0, %v2668
      %2670 = vmatmul.bf16.gmra.mxu0 %v2422
      %v2671 = vpop.f32.mrf.mxu0
      %v2672 = vadd.f32 0.0, %v2671
      %v2673 = vpop.f32.mrf.mxu0
      %v2674 = vadd.f32 0.0, %v2673
      %2675 = vmatmul.bf16.gmra.mxu0 %v2424
      %v2676 = vpop.f32.mrf.mxu0
      %v2677 = vadd.f32 0.0, %v2676
      %v2678 = vpop.f32.mrf.mxu0
      %v2679 = vadd.f32 0.0, %v2678
      %2680 = vmatmul.bf16.gmra.mxu0 %v2426
      %v2681 = vpop.f32.mrf.mxu0
      %v2682 = vadd.f32 0.0, %v2681
      %v2683 = vpop.f32.mrf.mxu0
      %v2684 = vadd.f32 0.0, %v2683
      %2685 = vmatmul.bf16.gmra.mxu0 %v2428
      %v2686 = vpop.f32.mrf.mxu0
      %v2687 = vadd.f32 0.0, %v2686
      %v2688 = vpop.f32.mrf.mxu0
      %v2689 = vadd.f32 0.0, %v2688
      %2690 = vmatmul.bf16.gmra.mxu0 %v2430
      %v2691 = vpop.f32.mrf.mxu0
      %v2692 = vadd.f32 0.0, %v2691
      %v2693 = vpop.f32.mrf.mxu0
      %v2694 = vadd.f32 0.0, %v2693
      %2695 = vmatmul.bf16.gmra.mxu0 %v2432
      %v2696 = vpop.f32.mrf.mxu0
      %v2697 = vadd.f32 0.0, %v2696
      %v2698 = vpop.f32.mrf.mxu0
      %v2699 = vadd.f32 0.0, %v2698
      %2700 = vmatmul.bf16.gmra.mxu0 %v2434
      %v2701 = vpop.f32.mrf.mxu0
      %v2702 = vadd.f32 0.0, %v2701
      %v2703 = vpop.f32.mrf.mxu0
      %v2704 = vadd.f32 0.0, %v2703
      %2705 = vmatmul.bf16.gmra.mxu0 %v2436
      %v2706 = vpop.f32.mrf.mxu0
      %v2707 = vadd.f32 0.0, %v2706
      %v2708 = vpop.f32.mrf.mxu0
      %v2709 = vadd.f32 0.0, %v2708
      %2710 = vmatmul.bf16.gmra.mxu0 %v2438
      %v2711 = vpop.f32.mrf.mxu0
      %v2712 = vadd.f32 0.0, %v2711
      %v2713 = vpop.f32.mrf.mxu0
      %v2714 = vadd.f32 0.0, %v2713
      %2715 = vmatmul.bf16.gmra.mxu0 %v2440
      %v2716 = vpop.f32.mrf.mxu0
      %v2717 = vadd.f32 0.0, %v2716
      %v2718 = vpop.f32.mrf.mxu0
      %v2719 = vadd.f32 0.0, %v2718
      %2720 = vmatmul.bf16.gmra.mxu0 %v2442
      %v2721 = vpop.f32.mrf.mxu0
      %v2722 = vadd.f32 0.0, %v2721
      %v2723 = vpop.f32.mrf.mxu0
      %v2724 = vadd.f32 0.0, %v2723
      %2725 = vmatmul.bf16.gmra.mxu0 %v2444
      %v2726 = vpop.f32.mrf.mxu0
      %v2727 = vadd.f32 0.0, %v2726
      %v2728 = vpop.f32.mrf.mxu0
      %v2729 = vadd.f32 0.0, %v2728
      %2730 = vmatmul.bf16.gmra.mxu0 %v2446
      %v2731 = vpop.f32.mrf.mxu0
      %v2732 = vadd.f32 0.0, %v2731
      %v2733 = vpop.f32.mrf.mxu0
      %v2734 = vadd.f32 0.0, %v2733
      %2735 = vmatmul.bf16.gmra.mxu0 %v2448
      %v2736 = vpop.f32.mrf.mxu0
      %v2737 = vadd.f32 0.0, %v2736
      %v2738 = vpop.f32.mrf.mxu0
      %v2739 = vadd.f32 0.0, %v2738
      %2740 = vmatmul.bf16.gmra.mxu0 %v2450
      %v2741 = vpop.f32.mrf.mxu0
      %v2742 = vadd.f32 0.0, %v2741
      %v2743 = vpop.f32.mrf.mxu0
      %v2744 = vadd.f32 0.0, %v2743
      %2745 = vmatmul.bf16.gmra.mxu0 %v2452
      %v2746 = vpop.f32.mrf.mxu0
      %v2747 = vadd.f32 0.0, %v2746
      %v2748 = vpop.f32.mrf.mxu0
      %v2749 = vadd.f32 0.0, %v2748
      %2750 = vmatmul.bf16.gmra.mxu0 %v2454
      %v2751 = vpop.f32.mrf.mxu0
      %v2752 = vadd.f32 0.0, %v2751
      %v2753 = vpop.f32.mrf.mxu0
      %v2754 = vadd.f32 0.0, %v2753
      %2755 = vmatmul.bf16.gmra.mxu0 %v2456
      %v2756 = vpop.f32.mrf.mxu0
      %v2757 = vadd.f32 0.0, %v2756
      %v2758 = vpop.f32.mrf.mxu0
      %v2759 = vadd.f32 0.0, %v2758
      %2760 = vmatmul.bf16.gmra.mxu0 %v2458
      %v2761 = vpop.f32.mrf.mxu0
      %v2762 = vadd.f32 0.0, %v2761
      %v2763 = vpop.f32.mrf.mxu0
      %v2764 = vadd.f32 0.0, %v2763
      %2765 = vmatmul.bf16.gmra.mxu0 %v2460
      %v2766 = vpop.f32.mrf.mxu0
      %v2767 = vadd.f32 0.0, %v2766
      %v2768 = vpop.f32.mrf.mxu0
      %v2769 = vadd.f32 0.0, %v2768
      %2770 = vmatmul.bf16.gmra.mxu0 %v2462
      %v2771 = vpop.f32.mrf.mxu0
      %v2772 = vadd.f32 0.0, %v2771
      %v2773 = vpop.f32.mrf.mxu0
      %v2774 = vadd.f32 0.0, %v2773
      %2775 = vmatmul.bf16.gmra.mxu0 %v2464
      %v2776 = vpop.f32.mrf.mxu0
      %v2777 = vadd.f32 0.0, %v2776
      %v2778 = vpop.f32.mrf.mxu0
      %v2779 = vadd.f32 0.0, %v2778
      %2780 = vmatmul.bf16.gmra.mxu0 %v2466
      %v2781 = vpop.f32.mrf.mxu0
      %v2782 = vadd.f32 0.0, %v2781
      %v2783 = vpop.f32.mrf.mxu0
      %v2784 = vadd.f32 0.0, %v2783
      %2785 = vmatmul.bf16.gmra.mxu0 %v2468
      %v2786 = vpop.f32.mrf.mxu0
      %v2787 = vadd.f32 0.0, %v2786
      %v2788 = vpop.f32.mrf.mxu0
      %v2789 = vadd.f32 0.0, %v2788
      %2790 = vmatmul.bf16.gmra.mxu0 %v2470
      %v2791 = vpop.f32.mrf.mxu0
      %v2792 = vadd.f32 0.0, %v2791
      %v2793 = vpop.f32.mrf.mxu0
      %v2794 = vadd.f32 0.0, %v2793
      %2795 = vmatmul.bf16.gmra.mxu0 %v2472
      %v2796 = vpop.f32.mrf.mxu0
      %v2797 = vadd.f32 0.0, %v2796
      %v2798 = vpop.f32.mrf.mxu0
      %v2799 = vadd.f32 0.0, %v2798
      %2800 = vmatmul.bf16.gmra.mxu0 %v2474
      %v2801 = vpop.f32.mrf.mxu0
      %v2802 = vadd.f32 0.0, %v2801
      %v2803 = vpop.f32.mrf.mxu0
      %v2804 = vadd.f32 0.0, %v2803
      %2805 = vmatmul.bf16.gmra.mxu0 %v2476
      %v2806 = vpop.f32.mrf.mxu0
      %v2807 = vadd.f32 0.0, %v2806
      %v2808 = vpop.f32.mrf.mxu0
      %v2809 = vadd.f32 0.0, %v2808
      %2810 = vdwg.mxu0
      %v2814 = vunpack.c.l.b16 %v2333
      %v2815 = vunpack.c.l.b16 %v2334
      %v2816 = vunpack.c.l.b16 %v2335
      %v2817 = vpack.c.b16 %v2815, %v2814
      %v2818 = vpack.c.b16 %v2816, %v2816
      %v2820 = vsel %vm2349, %v2198, 0
      %v2822 = vsel %vm2349, %v2200, 0
      %v2825 = vsel %vm2478, %v2818, 0
      %2827 = vmatpush.bf16.msra.mxu0 0
      %2828 = vmatpush.bf16.msra.mxu0 0
      %2829 = vmatpush.bf16.msra.mxu0 0
      %2830 = vmatpush.bf16.msra.mxu0 0
      %2831 = vmatpush.bf16.msra.mxu0 0
      %2832 = vmatpush.bf16.msra.mxu0 0
      %2833 = vmatpush.bf16.msra.mxu0 %v2825
      %2834 = vmatpush.bf16.msra.mxu0 %v2817
      %2835 = vmatmul.bf16.gmra.mxu0 %v2820
      %v2836 = vpop.f32.mrf.mxu0
      %v2837 = vadd.f32 %v2492, %v2836
      %v2838 = vpop.f32.mrf.mxu0
      %v2839 = vadd.f32 %v2494, %v2838
      %2840 = vmatmul.bf16.gmra.mxu0 %v2822
      %v2841 = vpop.f32.mrf.mxu0
      %v2842 = vadd.f32 %v2497, %v2841
      %v2843 = vpop.f32.mrf.mxu0
      %v2844 = vadd.f32 %v2499, %v2843
      %2845 = vmatmul.bf16.gmra.mxu0 %v2350
      %v2846 = vpop.f32.mrf.mxu0
      %v2847 = vadd.f32 %v2502, %v2846
      %v2848 = vpop.f32.mrf.mxu0
      %v2849 = vadd.f32 %v2504, %v2848
      %2850 = vmatmul.bf16.gmra.mxu0 %v2352
      %v2851 = vpop.f32.mrf.mxu0
      %v2852 = vadd.f32 %v2507, %v2851
      %v2853 = vpop.f32.mrf.mxu0
      %v2854 = vadd.f32 %v2509, %v2853
      %2855 = vmatmul.bf16.gmra.mxu0 %v2354
      %v2856 = vpop.f32.mrf.mxu0
      %v2857 = vadd.f32 %v2512, %v2856
      %v2858 = vpop.f32.mrf.mxu0
      %v2859 = vadd.f32 %v2514, %v2858
      %2860 = vmatmul.bf16.gmra.mxu0 %v2356
      %v2861 = vpop.f32.mrf.mxu0
      %v2862 = vadd.f32 %v2517, %v2861
      %v2863 = vpop.f32.mrf.mxu0
      %v2864 = vadd.f32 %v2519, %v2863
      %2865 = vmatmul.bf16.gmra.mxu0 %v2358
      %v2866 = vpop.f32.mrf.mxu0
      %v2867 = vadd.f32 %v2522, %v2866
      %v2868 = vpop.f32.mrf.mxu0
      %v2869 = vadd.f32 %v2524, %v2868
      %2870 = vmatmul.bf16.gmra.mxu0 %v2360
      %v2871 = vpop.f32.mrf.mxu0
      %v2872 = vadd.f32 %v2527, %v2871
      %v2873 = vpop.f32.mrf.mxu0
      %v2874 = vadd.f32 %v2529, %v2873
      %2875 = vmatmul.bf16.gmra.mxu0 %v2362
      %v2876 = vpop.f32.mrf.mxu0
      %v2877 = vadd.f32 %v2532, %v2876
      %v2878 = vpop.f32.mrf.mxu0
      %v2879 = vadd.f32 %v2534, %v2878
      %2880 = vmatmul.bf16.gmra.mxu0 %v2364
      %v2881 = vpop.f32.mrf.mxu0
      %v2882 = vadd.f32 %v2537, %v2881
      %v2883 = vpop.f32.mrf.mxu0
      %v2884 = vadd.f32 %v2539, %v2883
      %2885 = vmatmul.bf16.gmra.mxu0 %v2366
      %v2886 = vpop.f32.mrf.mxu0
      %v2887 = vadd.f32 %v2542, %v2886
      %v2888 = vpop.f32.mrf.mxu0
      %v2889 = vadd.f32 %v2544, %v2888
      %2890 = vmatmul.bf16.gmra.mxu0 %v2368
      %v2891 = vpop.f32.mrf.mxu0
      %v2892 = vadd.f32 %v2547, %v2891
      %v2893 = vpop.f32.mrf.mxu0
      %v2894 = vadd.f32 %v2549, %v2893
      %2895 = vmatmul.bf16.gmra.mxu0 %v2370
      %v2896 = vpop.f32.mrf.mxu0
      %v2897 = vadd.f32 %v2552, %v2896
      %v2898 = vpop.f32.mrf.mxu0
      %v2899 = vadd.f32 %v2554, %v2898
      %2900 = vmatmul.bf16.gmra.mxu0 %v2372
      %v2901 = vpop.f32.mrf.mxu0
      %v2902 = vadd.f32 %v2557, %v2901
      %v2903 = vpop.f32.mrf.mxu0
      %v2904 = vadd.f32 %v2559, %v2903
      %2905 = vmatmul.bf16.gmra.mxu0 %v2374
      %v2906 = vpop.f32.mrf.mxu0
      %v2907 = vadd.f32 %v2562, %v2906
      %v2908 = vpop.f32.mrf.mxu0
      %v2909 = vadd.f32 %v2564, %v2908
      %2910 = vmatmul.bf16.gmra.mxu0 %v2376
      %v2911 = vpop.f32.mrf.mxu0
      %v2912 = vadd.f32 %v2567, %v2911
      %v2913 = vpop.f32.mrf.mxu0
      %v2914 = vadd.f32 %v2569, %v2913
      %2915 = vmatmul.bf16.gmra.mxu0 %v2378
      %v2916 = vpop.f32.mrf.mxu0
      %v2917 = vadd.f32 %v2572, %v2916
      %v2918 = vpop.f32.mrf.mxu0
      %v2919 = vadd.f32 %v2574, %v2918
      %2920 = vmatmul.bf16.gmra.mxu0 %v2380
      %v2921 = vpop.f32.mrf.mxu0
      %v2922 = vadd.f32 %v2577, %v2921
      %v2923 = vpop.f32.mrf.mxu0
      %v2924 = vadd.f32 %v2579, %v2923
      %2925 = vmatmul.bf16.gmra.mxu0 %v2382
      %v2926 = vpop.f32.mrf.mxu0
      %v2927 = vadd.f32 %v2582, %v2926
      %v2928 = vpop.f32.mrf.mxu0
      %v2929 = vadd.f32 %v2584, %v2928
      %2930 = vmatmul.bf16.gmra.mxu0 %v2384
      %v2931 = vpop.f32.mrf.mxu0
      %v2932 = vadd.f32 %v2587, %v2931
      %v2933 = vpop.f32.mrf.mxu0
      %v2934 = vadd.f32 %v2589, %v2933
      %2935 = vmatmul.bf16.gmra.mxu0 %v2386
      %v2936 = vpop.f32.mrf.mxu0
      %v2937 = vadd.f32 %v2592, %v2936
      %v2938 = vpop.f32.mrf.mxu0
      %v2939 = vadd.f32 %v2594, %v2938
      %2940 = vmatmul.bf16.gmra.mxu0 %v2388
      %v2941 = vpop.f32.mrf.mxu0
      %v2942 = vadd.f32 %v2597, %v2941
      %v2943 = vpop.f32.mrf.mxu0
      %v2944 = vadd.f32 %v2599, %v2943
      %2945 = vmatmul.bf16.gmra.mxu0 %v2390
      %v2946 = vpop.f32.mrf.mxu0
      %v2947 = vadd.f32 %v2602, %v2946
      %v2948 = vpop.f32.mrf.mxu0
      %v2949 = vadd.f32 %v2604, %v2948
      %2950 = vmatmul.bf16.gmra.mxu0 %v2392
      %v2951 = vpop.f32.mrf.mxu0
      %v2952 = vadd.f32 %v2607, %v2951
      %v2953 = vpop.f32.mrf.mxu0
      %v2954 = vadd.f32 %v2609, %v2953
      %2955 = vmatmul.bf16.gmra.mxu0 %v2394
      %v2956 = vpop.f32.mrf.mxu0
      %v2957 = vadd.f32 %v2612, %v2956
      %v2958 = vpop.f32.mrf.mxu0
      %v2959 = vadd.f32 %v2614, %v2958
      %2960 = vmatmul.bf16.gmra.mxu0 %v2396
      %v2961 = vpop.f32.mrf.mxu0
      %v2962 = vadd.f32 %v2617, %v2961
      %v2963 = vpop.f32.mrf.mxu0
      %v2964 = vadd.f32 %v2619, %v2963
      %2965 = vmatmul.bf16.gmra.mxu0 %v2398
      %v2966 = vpop.f32.mrf.mxu0
      %v2967 = vadd.f32 %v2622, %v2966
      %v2968 = vpop.f32.mrf.mxu0
      %v2969 = vadd.f32 %v2624, %v2968
      %2970 = vmatmul.bf16.gmra.mxu0 %v2400
      %v2971 = vpop.f32.mrf.mxu0
      %v2972 = vadd.f32 %v2627, %v2971
      %v2973 = vpop.f32.mrf.mxu0
      %v2974 = vadd.f32 %v2629, %v2973
      %2975 = vmatmul.bf16.gmra.mxu0 %v2402
      %v2976 = vpop.f32.mrf.mxu0
      %v2977 = vadd.f32 %v2632, %v2976
      %v2978 = vpop.f32.mrf.mxu0
      %v2979 = vadd.f32 %v2634, %v2978
      %2980 = vmatmul.bf16.gmra.mxu0 %v2404
      %v2981 = vpop.f32.mrf.mxu0
      %v2982 = vadd.f32 %v2637, %v2981
      %v2983 = vpop.f32.mrf.mxu0
      %v2984 = vadd.f32 %v2639, %v2983
      %2985 = vmatmul.bf16.gmra.mxu0 %v2406
      %v2986 = vpop.f32.mrf.mxu0
      %v2987 = vadd.f32 %v2642, %v2986
      %v2988 = vpop.f32.mrf.mxu0
      %v2989 = vadd.f32 %v2644, %v2988
      %2990 = vmatmul.bf16.gmra.mxu0 %v2408
      %v2991 = vpop.f32.mrf.mxu0
      %v2992 = vadd.f32 %v2647, %v2991
      %v2993 = vpop.f32.mrf.mxu0
      %v2994 = vadd.f32 %v2649, %v2993
      %2995 = vmatmul.bf16.gmra.mxu0 %v2410
      %v2996 = vpop.f32.mrf.mxu0
      %v2997 = vadd.f32 %v2652, %v2996
      %v2998 = vpop.f32.mrf.mxu0
      %v2999 = vadd.f32 %v2654, %v2998
      %3000 = vmatmul.bf16.gmra.mxu0 %v2412
      %v3001 = vpop.f32.mrf.mxu0
      %v3002 = vadd.f32 %v2657, %v3001
      %v3003 = vpop.f32.mrf.mxu0
      %v3004 = vadd.f32 %v2659, %v3003
      %3005 = vmatmul.bf16.gmra.mxu0 %v2414
      %v3006 = vpop.f32.mrf.mxu0
      %v3007 = vadd.f32 %v2662, %v3006
      %v3008 = vpop.f32.mrf.mxu0
      %v3009 = vadd.f32 %v2664, %v3008
      %3010 = vmatmul.bf16.gmra.mxu0 %v2416
      %v3011 = vpop.f32.mrf.mxu0
      %v3012 = vadd.f32 %v2667, %v3011
      %v3013 = vpop.f32.mrf.mxu0
      %v3014 = vadd.f32 %v2669, %v3013
      %3015 = vmatmul.bf16.gmra.mxu0 %v2418
      %v3016 = vpop.f32.mrf.mxu0
      %v3017 = vadd.f32 %v2672, %v3016
      %v3018 = vpop.f32.mrf.mxu0
      %v3019 = vadd.f32 %v2674, %v3018
      %3020 = vmatmul.bf16.gmra.mxu0 %v2420
      %v3021 = vpop.f32.mrf.mxu0
      %v3022 = vadd.f32 %v2677, %v3021
      %v3023 = vpop.f32.mrf.mxu0
      %v3024 = vadd.f32 %v2679, %v3023
      %3025 = vmatmul.bf16.gmra.mxu0 %v2422
      %v3026 = vpop.f32.mrf.mxu0
      %v3027 = vadd.f32 %v2682, %v3026
      %v3028 = vpop.f32.mrf.mxu0
      %v3029 = vadd.f32 %v2684, %v3028
      %3030 = vmatmul.bf16.gmra.mxu0 %v2424
      %v3031 = vpop.f32.mrf.mxu0
      %v3032 = vadd.f32 %v2687, %v3031
      %v3033 = vpop.f32.mrf.mxu0
      %v3034 = vadd.f32 %v2689, %v3033
      %3035 = vmatmul.bf16.gmra.mxu0 %v2426
      %v3036 = vpop.f32.mrf.mxu0
      %v3037 = vadd.f32 %v2692, %v3036
      %v3038 = vpop.f32.mrf.mxu0
      %v3039 = vadd.f32 %v2694, %v3038
      %3040 = vmatmul.bf16.gmra.mxu0 %v2428
      %v3041 = vpop.f32.mrf.mxu0
      %v3042 = vadd.f32 %v2697, %v3041
      %v3043 = vpop.f32.mrf.mxu0
      %v3044 = vadd.f32 %v2699, %v3043
      %3045 = vmatmul.bf16.gmra.mxu0 %v2430
      %v3046 = vpop.f32.mrf.mxu0
      %v3047 = vadd.f32 %v2702, %v3046
      %v3048 = vpop.f32.mrf.mxu0
      %v3049 = vadd.f32 %v2704, %v3048
      %3050 = vmatmul.bf16.gmra.mxu0 %v2432
      %v3051 = vpop.f32.mrf.mxu0
      %v3052 = vadd.f32 %v2707, %v3051
      %v3053 = vpop.f32.mrf.mxu0
      %v3054 = vadd.f32 %v2709, %v3053
      %3055 = vmatmul.bf16.gmra.mxu0 %v2434
      %v3056 = vpop.f32.mrf.mxu0
      %v3057 = vadd.f32 %v2712, %v3056
      %v3058 = vpop.f32.mrf.mxu0
      %v3059 = vadd.f32 %v2714, %v3058
      %3060 = vmatmul.bf16.gmra.mxu0 %v2436
      %v3061 = vpop.f32.mrf.mxu0
      %v3062 = vadd.f32 %v2717, %v3061
      %v3063 = vpop.f32.mrf.mxu0
      %v3064 = vadd.f32 %v2719, %v3063
      %3065 = vmatmul.bf16.gmra.mxu0 %v2438
      %v3066 = vpop.f32.mrf.mxu0
      %v3067 = vadd.f32 %v2722, %v3066
      %v3068 = vpop.f32.mrf.mxu0
      %v3069 = vadd.f32 %v2724, %v3068
      %3070 = vmatmul.bf16.gmra.mxu0 %v2440
      %v3071 = vpop.f32.mrf.mxu0
      %v3072 = vadd.f32 %v2727, %v3071
      %v3073 = vpop.f32.mrf.mxu0
      %v3074 = vadd.f32 %v2729, %v3073
      %3075 = vmatmul.bf16.gmra.mxu0 %v2442
      %v3076 = vpop.f32.mrf.mxu0
      %v3077 = vadd.f32 %v2732, %v3076
      %v3078 = vpop.f32.mrf.mxu0
      %v3079 = vadd.f32 %v2734, %v3078
      %3080 = vmatmul.bf16.gmra.mxu0 %v2444
      %v3081 = vpop.f32.mrf.mxu0
      %v3082 = vadd.f32 %v2737, %v3081
      %v3083 = vpop.f32.mrf.mxu0
      %v3084 = vadd.f32 %v2739, %v3083
      %3085 = vmatmul.bf16.gmra.mxu0 %v2446
      %v3086 = vpop.f32.mrf.mxu0
      %v3087 = vadd.f32 %v2742, %v3086
      %v3088 = vpop.f32.mrf.mxu0
      %v3089 = vadd.f32 %v2744, %v3088
      %3090 = vmatmul.bf16.gmra.mxu0 %v2448
      %v3091 = vpop.f32.mrf.mxu0
      %v3092 = vadd.f32 %v2747, %v3091
      %v3093 = vpop.f32.mrf.mxu0
      %v3094 = vadd.f32 %v2749, %v3093
      %3095 = vmatmul.bf16.gmra.mxu0 %v2450
      %v3096 = vpop.f32.mrf.mxu0
      %v3097 = vadd.f32 %v2752, %v3096
      %v3098 = vpop.f32.mrf.mxu0
      %v3099 = vadd.f32 %v2754, %v3098
      %3100 = vmatmul.bf16.gmra.mxu0 %v2452
      %v3101 = vpop.f32.mrf.mxu0
      %v3102 = vadd.f32 %v2757, %v3101
      %v3103 = vpop.f32.mrf.mxu0
      %v3104 = vadd.f32 %v2759, %v3103
      %3105 = vmatmul.bf16.gmra.mxu0 %v2454
      %v3106 = vpop.f32.mrf.mxu0
      %v3107 = vadd.f32 %v2762, %v3106
      %v3108 = vpop.f32.mrf.mxu0
      %v3109 = vadd.f32 %v2764, %v3108
      %3110 = vmatmul.bf16.gmra.mxu0 %v2456
      %v3111 = vpop.f32.mrf.mxu0
      %v3112 = vadd.f32 %v2767, %v3111
      %v3113 = vpop.f32.mrf.mxu0
      %v3114 = vadd.f32 %v2769, %v3113
      %3115 = vmatmul.bf16.gmra.mxu0 %v2458
      %v3116 = vpop.f32.mrf.mxu0
      %v3117 = vadd.f32 %v2772, %v3116
      %v3118 = vpop.f32.mrf.mxu0
      %v3119 = vadd.f32 %v2774, %v3118
      %3120 = vmatmul.bf16.gmra.mxu0 %v2460
      %v3121 = vpop.f32.mrf.mxu0
      %v3122 = vadd.f32 %v2777, %v3121
      %v3123 = vpop.f32.mrf.mxu0
      %v3124 = vadd.f32 %v2779, %v3123
      %3125 = vmatmul.bf16.gmra.mxu0 %v2462
      %v3126 = vpop.f32.mrf.mxu0
      %v3127 = vadd.f32 %v2782, %v3126
      %v3128 = vpop.f32.mrf.mxu0
      %v3129 = vadd.f32 %v2784, %v3128
      %3130 = vmatmul.bf16.gmra.mxu0 %v2464
      %v3131 = vpop.f32.mrf.mxu0
      %v3132 = vadd.f32 %v2787, %v3131
      %v3133 = vpop.f32.mrf.mxu0
      %v3134 = vadd.f32 %v2789, %v3133
      %3135 = vmatmul.bf16.gmra.mxu0 %v2466
      %v3136 = vpop.f32.mrf.mxu0
      %v3137 = vadd.f32 %v2792, %v3136
      %v3138 = vpop.f32.mrf.mxu0
      %v3139 = vadd.f32 %v2794, %v3138
      %3140 = vmatmul.bf16.gmra.mxu0 %v2468
      %v3141 = vpop.f32.mrf.mxu0
      %v3142 = vadd.f32 %v2797, %v3141
      %v3143 = vpop.f32.mrf.mxu0
      %v3144 = vadd.f32 %v2799, %v3143
      %3145 = vmatmul.bf16.gmra.mxu0 %v2470
      %v3146 = vpop.f32.mrf.mxu0
      %v3147 = vadd.f32 %v2802, %v3146
      %v3148 = vpop.f32.mrf.mxu0
      %v3149 = vadd.f32 %v2804, %v3148
      %3150 = vmatmul.bf16.gmra.mxu0 %v2472
      %v3151 = vpop.f32.mrf.mxu0
      %v3152 = vadd.f32 %v2807, %v3151
      %v3153 = vpop.f32.mrf.mxu0
      %v3154 = vadd.f32 %v2809, %v3153
      %3155 = vdwg.mxu0
      %s3156 = scalar_lea.vmem %s2, 24
      %v3157 = vld [vmem:[%s3156] sm:$0xf]
      %v3158 = vld [vmem:[%s3156 + $0x4] sm:$0xf]
      %v3159 = vld [vmem:[%s3156 + $0x8] sm:$0xf]
      %v3163 = vunpack.c.l.b16 %v3157
      %v3164 = vunpack.c.l.b16 %v3158
      %v3165 = vunpack.c.l.b16 %v3159
      %v3166 = vpack.c.b16 %v3164, %v3163
      %v3167 = vpack.c.b16 %v3165, %v3165
      %v3169 = vsel %vm2349, %v2330, 0
      %v3171 = vsel %vm2349, %v2332, 0
      %v3174 = vsel %vm2478, %v3167, 0
      %3176 = vmatpush.bf16.msra.mxu0 0
      %3177 = vmatpush.bf16.msra.mxu0 0
      %3178 = vmatpush.bf16.msra.mxu0 0
      %3179 = vmatpush.bf16.msra.mxu0 0
      %3180 = vmatpush.bf16.msra.mxu0 0
      %3181 = vmatpush.bf16.msra.mxu0 0
      %3182 = vmatpush.bf16.msra.mxu0 %v3174
      %3183 = vmatpush.bf16.msra.mxu0 %v3166
      %3184 = vmatmul.bf16.gmra.mxu0 %v2354
      %v3185 = vpop.f32.mrf.mxu0
      %v3186 = vadd.f32 0.0, %v3185
      %v3187 = vpop.f32.mrf.mxu0
      %v3188 = vadd.f32 0.0, %v3187
      %3189 = vmatmul.bf16.gmra.mxu0 %v2356
      %v3190 = vpop.f32.mrf.mxu0
      %v3191 = vadd.f32 0.0, %v3190
      %v3192 = vpop.f32.mrf.mxu0
      %v3193 = vadd.f32 0.0, %v3192
      %3194 = vmatmul.bf16.gmra.mxu0 %v2358
      %v3195 = vpop.f32.mrf.mxu0
      %v3196 = vadd.f32 0.0, %v3195
      %v3197 = vpop.f32.mrf.mxu0
      %v3198 = vadd.f32 0.0, %v3197
      %3199 = vmatmul.bf16.gmra.mxu0 %v2360
      %v3200 = vpop.f32.mrf.mxu0
      %v3201 = vadd.f32 0.0, %v3200
      %v3202 = vpop.f32.mrf.mxu0
      %v3203 = vadd.f32 0.0, %v3202
      %3204 = vmatmul.bf16.gmra.mxu0 %v2362
      %v3205 = vpop.f32.mrf.mxu0
      %v3206 = vadd.f32 0.0, %v3205
      %v3207 = vpop.f32.mrf.mxu0
      %v3208 = vadd.f32 0.0, %v3207
      %3209 = vmatmul.bf16.gmra.mxu0 %v2364
      %v3210 = vpop.f32.mrf.mxu0
      %v3211 = vadd.f32 0.0, %v3210
      %v3212 = vpop.f32.mrf.mxu0
      %v3213 = vadd.f32 0.0, %v3212
      %3214 = vmatmul.bf16.gmra.mxu0 %v2366
      %v3215 = vpop.f32.mrf.mxu0
      %v3216 = vadd.f32 0.0, %v3215
      %v3217 = vpop.f32.mrf.mxu0
      %v3218 = vadd.f32 0.0, %v3217
      %3219 = vmatmul.bf16.gmra.mxu0 %v2368
      %v3220 = vpop.f32.mrf.mxu0
      %v3221 = vadd.f32 0.0, %v3220
      %v3222 = vpop.f32.mrf.mxu0
      %v3223 = vadd.f32 0.0, %v3222
      %3224 = vmatmul.bf16.gmra.mxu0 %v2370
      %v3225 = vpop.f32.mrf.mxu0
      %v3226 = vadd.f32 0.0, %v3225
      %v3227 = vpop.f32.mrf.mxu0
      %v3228 = vadd.f32 0.0, %v3227
      %3229 = vmatmul.bf16.gmra.mxu0 %v2372
      %v3230 = vpop.f32.mrf.mxu0
      %v3231 = vadd.f32 0.0, %v3230
      %v3232 = vpop.f32.mrf.mxu0
      %v3233 = vadd.f32 0.0, %v3232
      %3234 = vmatmul.bf16.gmra.mxu0 %v2374
      %v3235 = vpop.f32.mrf.mxu0
      %v3236 = vadd.f32 0.0, %v3235
      %v3237 = vpop.f32.mrf.mxu0
      %v3238 = vadd.f32 0.0, %v3237
      %3239 = vmatmul.bf16.gmra.mxu0 %v2376
      %v3240 = vpop.f32.mrf.mxu0
      %v3241 = vadd.f32 0.0, %v3240
      %v3242 = vpop.f32.mrf.mxu0
      %v3243 = vadd.f32 0.0, %v3242
      %3244 = vmatmul.bf16.gmra.mxu0 %v2378
      %v3245 = vpop.f32.mrf.mxu0
      %v3246 = vadd.f32 0.0, %v3245
      %v3247 = vpop.f32.mrf.mxu0
      %v3248 = vadd.f32 0.0, %v3247
      %3249 = vmatmul.bf16.gmra.mxu0 %v2380
      %v3250 = vpop.f32.mrf.mxu0
      %v3251 = vadd.f32 0.0, %v3250
      %v3252 = vpop.f32.mrf.mxu0
      %v3253 = vadd.f32 0.0, %v3252
      %3254 = vmatmul.bf16.gmra.mxu0 %v2382
      %v3255 = vpop.f32.mrf.mxu0
      %v3256 = vadd.f32 0.0, %v3255
      %v3257 = vpop.f32.mrf.mxu0
      %v3258 = vadd.f32 0.0, %v3257
      %3259 = vmatmul.bf16.gmra.mxu0 %v2384
      %v3260 = vpop.f32.mrf.mxu0
      %v3261 = vadd.f32 0.0, %v3260
      %v3262 = vpop.f32.mrf.mxu0
      %v3263 = vadd.f32 0.0, %v3262
      %3264 = vmatmul.bf16.gmra.mxu0 %v2386
      %v3265 = vpop.f32.mrf.mxu0
      %v3266 = vadd.f32 0.0, %v3265
      %v3267 = vpop.f32.mrf.mxu0
      %v3268 = vadd.f32 0.0, %v3267
      %3269 = vmatmul.bf16.gmra.mxu0 %v2388
      %v3270 = vpop.f32.mrf.mxu0
      %v3271 = vadd.f32 0.0, %v3270
      %v3272 = vpop.f32.mrf.mxu0
      %v3273 = vadd.f32 0.0, %v3272
      %3274 = vmatmul.bf16.gmra.mxu0 %v2390
      %v3275 = vpop.f32.mrf.mxu0
      %v3276 = vadd.f32 0.0, %v3275
      %v3277 = vpop.f32.mrf.mxu0
      %v3278 = vadd.f32 0.0, %v3277
      %3279 = vmatmul.bf16.gmra.mxu0 %v2392
      %v3280 = vpop.f32.mrf.mxu0
      %v3281 = vadd.f32 0.0, %v3280
      %v3282 = vpop.f32.mrf.mxu0
      %v3283 = vadd.f32 0.0, %v3282
      %3284 = vmatmul.bf16.gmra.mxu0 %v2394
      %v3285 = vpop.f32.mrf.mxu0
      %v3286 = vadd.f32 0.0, %v3285
      %v3287 = vpop.f32.mrf.mxu0
      %v3288 = vadd.f32 0.0, %v3287
      %3289 = vmatmul.bf16.gmra.mxu0 %v2396
      %v3290 = vpop.f32.mrf.mxu0
      %v3291 = vadd.f32 0.0, %v3290
      %v3292 = vpop.f32.mrf.mxu0
      %v3293 = vadd.f32 0.0, %v3292
      %3294 = vmatmul.bf16.gmra.mxu0 %v2398
      %v3295 = vpop.f32.mrf.mxu0
      %v3296 = vadd.f32 0.0, %v3295
      %v3297 = vpop.f32.mrf.mxu0
      %v3298 = vadd.f32 0.0, %v3297
      %3299 = vmatmul.bf16.gmra.mxu0 %v2400
      %v3300 = vpop.f32.mrf.mxu0
      %v3301 = vadd.f32 0.0, %v3300
      %v3302 = vpop.f32.mrf.mxu0
      %v3303 = vadd.f32 0.0, %v3302
      %3304 = vmatmul.bf16.gmra.mxu0 %v2402
      %v3305 = vpop.f32.mrf.mxu0
      %v3306 = vadd.f32 0.0, %v3305
      %v3307 = vpop.f32.mrf.mxu0
      %v3308 = vadd.f32 0.0, %v3307
      %3309 = vmatmul.bf16.gmra.mxu0 %v2404
      %v3310 = vpop.f32.mrf.mxu0
      %v3311 = vadd.f32 0.0, %v3310
      %v3312 = vpop.f32.mrf.mxu0
      %v3313 = vadd.f32 0.0, %v3312
      %3314 = vmatmul.bf16.gmra.mxu0 %v2406
      %v3315 = vpop.f32.mrf.mxu0
      %v3316 = vadd.f32 0.0, %v3315
      %v3317 = vpop.f32.mrf.mxu0
      %v3318 = vadd.f32 0.0, %v3317
      %3319 = vmatmul.bf16.gmra.mxu0 %v2408
      %v3320 = vpop.f32.mrf.mxu0
      %v3321 = vadd.f32 0.0, %v3320
      %v3322 = vpop.f32.mrf.mxu0
      %v3323 = vadd.f32 0.0, %v3322
      %3324 = vmatmul.bf16.gmra.mxu0 %v2410
      %v3325 = vpop.f32.mrf.mxu0
      %v3326 = vadd.f32 0.0, %v3325
      %v3327 = vpop.f32.mrf.mxu0
      %v3328 = vadd.f32 0.0, %v3327
      %3329 = vmatmul.bf16.gmra.mxu0 %v2412
      %v3330 = vpop.f32.mrf.mxu0
      %v3331 = vadd.f32 0.0, %v3330
      %v3332 = vpop.f32.mrf.mxu0
      %v3333 = vadd.f32 0.0, %v3332
      %3334 = vmatmul.bf16.gmra.mxu0 %v2414
      %v3335 = vpop.f32.mrf.mxu0
      %v3336 = vadd.f32 0.0, %v3335
      %v3337 = vpop.f32.mrf.mxu0
      %v3338 = vadd.f32 0.0, %v3337
      %3339 = vmatmul.bf16.gmra.mxu0 %v2416
      %v3340 = vpop.f32.mrf.mxu0
      %v3341 = vadd.f32 0.0, %v3340
      %v3342 = vpop.f32.mrf.mxu0
      %v3343 = vadd.f32 0.0, %v3342
      %3344 = vmatmul.bf16.gmra.mxu0 %v2418
      %v3345 = vpop.f32.mrf.mxu0
      %v3346 = vadd.f32 0.0, %v3345
      %v3347 = vpop.f32.mrf.mxu0
      %v3348 = vadd.f32 0.0, %v3347
      %3349 = vmatmul.bf16.gmra.mxu0 %v2420
      %v3350 = vpop.f32.mrf.mxu0
      %v3351 = vadd.f32 0.0, %v3350
      %v3352 = vpop.f32.mrf.mxu0
      %v3353 = vadd.f32 0.0, %v3352
      %3354 = vmatmul.bf16.gmra.mxu0 %v2422
      %v3355 = vpop.f32.mrf.mxu0
      %v3356 = vadd.f32 0.0, %v3355
      %v3357 = vpop.f32.mrf.mxu0
      %v3358 = vadd.f32 0.0, %v3357
      %3359 = vmatmul.bf16.gmra.mxu0 %v2424
      %v3360 = vpop.f32.mrf.mxu0
      %v3361 = vadd.f32 0.0, %v3360
      %v3362 = vpop.f32.mrf.mxu0
      %v3363 = vadd.f32 0.0, %v3362
      %3364 = vmatmul.bf16.gmra.mxu0 %v2426
      %v3365 = vpop.f32.mrf.mxu0
      %v3366 = vadd.f32 0.0, %v3365
      %v3367 = vpop.f32.mrf.mxu0
      %v3368 = vadd.f32 0.0, %v3367
      %3369 = vmatmul.bf16.gmra.mxu0 %v2428
      %v3370 = vpop.f32.mrf.mxu0
      %v3371 = vadd.f32 0.0, %v3370
      %v3372 = vpop.f32.mrf.mxu0
      %v3373 = vadd.f32 0.0, %v3372
      %3374 = vmatmul.bf16.gmra.mxu0 %v2430
      %v3375 = vpop.f32.mrf.mxu0
      %v3376 = vadd.f32 0.0, %v3375
      %v3377 = vpop.f32.mrf.mxu0
      %v3378 = vadd.f32 0.0, %v3377
      %3379 = vmatmul.bf16.gmra.mxu0 %v2432
      %v3380 = vpop.f32.mrf.mxu0
      %v3381 = vadd.f32 0.0, %v3380
      %v3382 = vpop.f32.mrf.mxu0
      %v3383 = vadd.f32 0.0, %v3382
      %3384 = vmatmul.bf16.gmra.mxu0 %v2434
      %v3385 = vpop.f32.mrf.mxu0
      %v3386 = vadd.f32 0.0, %v3385
      %v3387 = vpop.f32.mrf.mxu0
      %v3388 = vadd.f32 0.0, %v3387
      %3389 = vmatmul.bf16.gmra.mxu0 %v2436
      %v3390 = vpop.f32.mrf.mxu0
      %v3391 = vadd.f32 0.0, %v3390
      %v3392 = vpop.f32.mrf.mxu0
      %v3393 = vadd.f32 0.0, %v3392
      %3394 = vmatmul.bf16.gmra.mxu0 %v2438
      %v3395 = vpop.f32.mrf.mxu0
      %v3396 = vadd.f32 0.0, %v3395
      %v3397 = vpop.f32.mrf.mxu0
      %v3398 = vadd.f32 0.0, %v3397
      %3399 = vmatmul.bf16.gmra.mxu0 %v2440
      %v3400 = vpop.f32.mrf.mxu0
      %v3401 = vadd.f32 0.0, %v3400
      %v3402 = vpop.f32.mrf.mxu0
      %v3403 = vadd.f32 0.0, %v3402
      %3404 = vmatmul.bf16.gmra.mxu0 %v2442
      %v3405 = vpop.f32.mrf.mxu0
      %v3406 = vadd.f32 0.0, %v3405
      %v3407 = vpop.f32.mrf.mxu0
      %v3408 = vadd.f32 0.0, %v3407
      %3409 = vmatmul.bf16.gmra.mxu0 %v2444
      %v3410 = vpop.f32.mrf.mxu0
      %v3411 = vadd.f32 0.0, %v3410
      %v3412 = vpop.f32.mrf.mxu0
      %v3413 = vadd.f32 0.0, %v3412
      %3414 = vmatmul.bf16.gmra.mxu0 %v2446
      %v3415 = vpop.f32.mrf.mxu0
      %v3416 = vadd.f32 0.0, %v3415
      %v3417 = vpop.f32.mrf.mxu0
      %v3418 = vadd.f32 0.0, %v3417
      %3419 = vmatmul.bf16.gmra.mxu0 %v2448
      %v3420 = vpop.f32.mrf.mxu0
      %v3421 = vadd.f32 0.0, %v3420
      %v3422 = vpop.f32.mrf.mxu0
      %v3423 = vadd.f32 0.0, %v3422
      %3424 = vmatmul.bf16.gmra.mxu0 %v2450
      %v3425 = vpop.f32.mrf.mxu0
      %v3426 = vadd.f32 0.0, %v3425
      %v3427 = vpop.f32.mrf.mxu0
      %v3428 = vadd.f32 0.0, %v3427
      %3429 = vmatmul.bf16.gmra.mxu0 %v2452
      %v3430 = vpop.f32.mrf.mxu0
      %v3431 = vadd.f32 0.0, %v3430
      %v3432 = vpop.f32.mrf.mxu0
      %v3433 = vadd.f32 0.0, %v3432
      %3434 = vmatmul.bf16.gmra.mxu0 %v2454
      %v3435 = vpop.f32.mrf.mxu0
      %v3436 = vadd.f32 0.0, %v3435
      %v3437 = vpop.f32.mrf.mxu0
      %v3438 = vadd.f32 0.0, %v3437
      %3439 = vmatmul.bf16.gmra.mxu0 %v2456
      %v3440 = vpop.f32.mrf.mxu0
      %v3441 = vadd.f32 0.0, %v3440
      %v3442 = vpop.f32.mrf.mxu0
      %v3443 = vadd.f32 0.0, %v3442
      %3444 = vmatmul.bf16.gmra.mxu0 %v2458
      %v3445 = vpop.f32.mrf.mxu0
      %v3446 = vadd.f32 0.0, %v3445
      %v3447 = vpop.f32.mrf.mxu0
      %v3448 = vadd.f32 0.0, %v3447
      %3449 = vmatmul.bf16.gmra.mxu0 %v2460
      %v3450 = vpop.f32.mrf.mxu0
      %v3451 = vadd.f32 0.0, %v3450
      %v3452 = vpop.f32.mrf.mxu0
      %v3453 = vadd.f32 0.0, %v3452
      %3454 = vmatmul.bf16.gmra.mxu0 %v2462
      %v3455 = vpop.f32.mrf.mxu0
      %v3456 = vadd.f32 0.0, %v3455
      %v3457 = vpop.f32.mrf.mxu0
      %v3458 = vadd.f32 0.0, %v3457
      %3459 = vmatmul.bf16.gmra.mxu0 %v2464
      %v3460 = vpop.f32.mrf.mxu0
      %v3461 = vadd.f32 0.0, %v3460
      %v3462 = vpop.f32.mrf.mxu0
      %v3463 = vadd.f32 0.0, %v3462
      %3464 = vmatmul.bf16.gmra.mxu0 %v2466
      %v3465 = vpop.f32.mrf.mxu0
      %v3466 = vadd.f32 0.0, %v3465
      %v3467 = vpop.f32.mrf.mxu0
      %v3468 = vadd.f32 0.0, %v3467
      %3469 = vmatmul.bf16.gmra.mxu0 %v2468
      %v3470 = vpop.f32.mrf.mxu0
      %v3471 = vadd.f32 0.0, %v3470
      %v3472 = vpop.f32.mrf.mxu0
      %v3473 = vadd.f32 0.0, %v3472
      %3474 = vmatmul.bf16.gmra.mxu0 %v2470
      %v3475 = vpop.f32.mrf.mxu0
      %v3476 = vadd.f32 0.0, %v3475
      %v3477 = vpop.f32.mrf.mxu0
      %v3478 = vadd.f32 0.0, %v3477
      %3479 = vmatmul.bf16.gmra.mxu0 %v2472
      %v3480 = vpop.f32.mrf.mxu0
      %v3481 = vadd.f32 0.0, %v3480
      %v3482 = vpop.f32.mrf.mxu0
      %v3483 = vadd.f32 0.0, %v3482
      %3484 = vmatmul.bf16.gmra.mxu0 %v2474
      %v3485 = vpop.f32.mrf.mxu0
      %v3486 = vadd.f32 0.0, %v3485
      %v3487 = vpop.f32.mrf.mxu0
      %v3488 = vadd.f32 0.0, %v3487
      %3489 = vmatmul.bf16.gmra.mxu0 %v2476
      %v3490 = vpop.f32.mrf.mxu0
      %v3491 = vadd.f32 0.0, %v3490
      %v3492 = vpop.f32.mrf.mxu0
      %v3493 = vadd.f32 0.0, %v3492
      %3494 = vmatmul.bf16.gmra.mxu0 %v3169
      %v3495 = vpop.f32.mrf.mxu0
      %v3496 = vadd.f32 0.0, %v3495
      %v3497 = vpop.f32.mrf.mxu0
      %v3498 = vadd.f32 0.0, %v3497
      %3499 = vmatmul.bf16.gmra.mxu0 %v3171
      %v3500 = vpop.f32.mrf.mxu0
      %v3501 = vadd.f32 0.0, %v3500
      %v3502 = vpop.f32.mrf.mxu0
      %v3503 = vadd.f32 0.0, %v3502
      %3504 = vdwg.mxu0
      %v3505 = vadd.f32 %v2837, %v3186
      %v3506 = vadd.f32 %v2839, %v3188
      %v3507 = vadd.f32 %v2842, %v3191
      %v3508 = vadd.f32 %v2844, %v3193
      %v3509 = vadd.f32 %v2847, %v3196
      %v3510 = vadd.f32 %v2849, %v3198
      %v3511 = vadd.f32 %v2852, %v3201
      %v3512 = vadd.f32 %v2854, %v3203
      %v3513 = vadd.f32 %v2857, %v3206
      %v3514 = vadd.f32 %v2859, %v3208
      %v3515 = vadd.f32 %v2862, %v3211
      %v3516 = vadd.f32 %v2864, %v3213
      %v3517 = vadd.f32 %v2867, %v3216
      %v3518 = vadd.f32 %v2869, %v3218
      %v3519 = vadd.f32 %v2872, %v3221
      %v3520 = vadd.f32 %v2874, %v3223
      %v3521 = vadd.f32 %v2877, %v3226
      %v3522 = vadd.f32 %v2879, %v3228
      %v3523 = vadd.f32 %v2882, %v3231
      %v3524 = vadd.f32 %v2884, %v3233
      %v3525 = vadd.f32 %v2887, %v3236
      %v3526 = vadd.f32 %v2889, %v3238
      %v3527 = vadd.f32 %v2892, %v3241
      %v3528 = vadd.f32 %v2894, %v3243
      %v3529 = vadd.f32 %v2897, %v3246
      %v3530 = vadd.f32 %v2899, %v3248
      %v3531 = vadd.f32 %v2902, %v3251
      %v3532 = vadd.f32 %v2904, %v3253
      %v3533 = vadd.f32 %v2907, %v3256
      %v3534 = vadd.f32 %v2909, %v3258
      %v3535 = vadd.f32 %v2912, %v3261
      %v3536 = vadd.f32 %v2914, %v3263
      %v3537 = vadd.f32 %v2917, %v3266
      %v3538 = vadd.f32 %v2919, %v3268
      %v3539 = vadd.f32 %v2922, %v3271
      %v3540 = vadd.f32 %v2924, %v3273
      %v3541 = vadd.f32 %v2927, %v3276
      %v3542 = vadd.f32 %v2929, %v3278
      %v3543 = vadd.f32 %v2932, %v3281
      %v3544 = vadd.f32 %v2934, %v3283
      %v3545 = vadd.f32 %v2937, %v3286
      %v3546 = vadd.f32 %v2939, %v3288
      %v3547 = vadd.f32 %v2942, %v3291
      %v3548 = vadd.f32 %v2944, %v3293
      %v3549 = vadd.f32 %v2947, %v3296
      %v3550 = vadd.f32 %v2949, %v3298
      %v3551 = vadd.f32 %v2952, %v3301
      %v3552 = vadd.f32 %v2954, %v3303
      %v3553 = vadd.f32 %v2957, %v3306
      %v3554 = vadd.f32 %v2959, %v3308
      %v3555 = vadd.f32 %v2962, %v3311
      %v3556 = vadd.f32 %v2964, %v3313
      %v3557 = vadd.f32 %v2967, %v3316
      %v3558 = vadd.f32 %v2969, %v3318
      %v3559 = vadd.f32 %v2972, %v3321
      %v3560 = vadd.f32 %v2974, %v3323
      %v3561 = vadd.f32 %v2977, %v3326
      %v3562 = vadd.f32 %v2979, %v3328
      %v3563 = vadd.f32 %v2982, %v3331
      %v3564 = vadd.f32 %v2984, %v3333
      %v3565 = vadd.f32 %v2987, %v3336
      %v3566 = vadd.f32 %v2989, %v3338
      %v3567 = vadd.f32 %v2992, %v3341
      %v3568 = vadd.f32 %v2994, %v3343
      %v3569 = vadd.f32 %v2997, %v3346
      %v3570 = vadd.f32 %v2999, %v3348
      %v3571 = vadd.f32 %v3002, %v3351
      %v3572 = vadd.f32 %v3004, %v3353
      %v3573 = vadd.f32 %v3007, %v3356
      %v3574 = vadd.f32 %v3009, %v3358
      %v3575 = vadd.f32 %v3012, %v3361
      %v3576 = vadd.f32 %v3014, %v3363
      %v3577 = vadd.f32 %v3017, %v3366
      %v3578 = vadd.f32 %v3019, %v3368
      %v3579 = vadd.f32 %v3022, %v3371
      %v3580 = vadd.f32 %v3024, %v3373
      %v3581 = vadd.f32 %v3027, %v3376
      %v3582 = vadd.f32 %v3029, %v3378
      %v3583 = vadd.f32 %v3032, %v3381
      %v3584 = vadd.f32 %v3034, %v3383
      %v3585 = vadd.f32 %v3037, %v3386
      %v3586 = vadd.f32 %v3039, %v3388
      %v3587 = vadd.f32 %v3042, %v3391
      %v3588 = vadd.f32 %v3044, %v3393
      %v3589 = vadd.f32 %v3047, %v3396
      %v3590 = vadd.f32 %v3049, %v3398
      %v3591 = vadd.f32 %v3052, %v3401
      %v3592 = vadd.f32 %v3054, %v3403
      %v3593 = vadd.f32 %v3057, %v3406
      %v3594 = vadd.f32 %v3059, %v3408
      %v3595 = vadd.f32 %v3062, %v3411
      %v3596 = vadd.f32 %v3064, %v3413
      %v3597 = vadd.f32 %v3067, %v3416
      %v3598 = vadd.f32 %v3069, %v3418
      %v3599 = vadd.f32 %v3072, %v3421
      %v3600 = vadd.f32 %v3074, %v3423
      %v3601 = vadd.f32 %v3077, %v3426
      %v3602 = vadd.f32 %v3079, %v3428
      %v3603 = vadd.f32 %v3082, %v3431
      %v3604 = vadd.f32 %v3084, %v3433
      %v3605 = vadd.f32 %v3087, %v3436
      %v3606 = vadd.f32 %v3089, %v3438
      %v3607 = vadd.f32 %v3092, %v3441
      %v3608 = vadd.f32 %v3094, %v3443
      %v3609 = vadd.f32 %v3097, %v3446
      %v3610 = vadd.f32 %v3099, %v3448
      %v3611 = vadd.f32 %v3102, %v3451
      %v3612 = vadd.f32 %v3104, %v3453
      %v3613 = vadd.f32 %v3107, %v3456
      %v3614 = vadd.f32 %v3109, %v3458
      %v3615 = vadd.f32 %v3112, %v3461
      %v3616 = vadd.f32 %v3114, %v3463
      %v3617 = vadd.f32 %v3117, %v3466
      %v3618 = vadd.f32 %v3119, %v3468
      %v3619 = vadd.f32 %v3122, %v3471
      %v3620 = vadd.f32 %v3124, %v3473
      %v3621 = vadd.f32 %v3127, %v3476
      %v3622 = vadd.f32 %v3129, %v3478
      %v3623 = vadd.f32 %v3132, %v3481
      %v3624 = vadd.f32 %v3134, %v3483
      %v3625 = vadd.f32 %v3137, %v3486
      %v3626 = vadd.f32 %v3139, %v3488
      %v3627 = vadd.f32 %v3142, %v3491
      %v3628 = vadd.f32 %v3144, %v3493
      %v3629 = vadd.f32 %v3147, %v3496
      %v3630 = vadd.f32 %v3149, %v3498
      %v3631 = vadd.f32 %v3152, %v3501
      %v3632 = vadd.f32 %v3154, %v3503
      %v3633 = vld [vmem:[%s4] sm:$0x1]
      %v3635 = vperm.slane %v3633, 0
      %v3637 = vadd.f32 %v3505, %v3635
      %v3638 = vadd.f32 %v3506, %v3635
      %v3639 = vadd.f32 %v3507, %v3635
      %v3640 = vadd.f32 %v3508, %v3635
      %v3641 = vadd.f32 %v3509, %v3635
      %v3642 = vadd.f32 %v3510, %v3635
      %v3643 = vadd.f32 %v3511, %v3635
      %v3644 = vadd.f32 %v3512, %v3635
      %v3645 = vadd.f32 %v3513, %v3635
      %v3646 = vadd.f32 %v3514, %v3635
      %v3647 = vadd.f32 %v3515, %v3635
      %v3648 = vadd.f32 %v3516, %v3635
      %v3649 = vadd.f32 %v3517, %v3635
      %v3650 = vadd.f32 %v3518, %v3635
      %v3651 = vadd.f32 %v3519, %v3635
      %v3652 = vadd.f32 %v3520, %v3635
      %v3653 = vadd.f32 %v3521, %v3635
      %v3654 = vadd.f32 %v3522, %v3635
      %v3655 = vadd.f32 %v3523, %v3635
      %v3656 = vadd.f32 %v3524, %v3635
      %v3657 = vadd.f32 %v3525, %v3635
      %v3658 = vadd.f32 %v3526, %v3635
      %v3659 = vadd.f32 %v3527, %v3635
      %v3660 = vadd.f32 %v3528, %v3635
      %v3661 = vadd.f32 %v3529, %v3635
      %v3662 = vadd.f32 %v3530, %v3635
      %v3663 = vadd.f32 %v3531, %v3635
      %v3664 = vadd.f32 %v3532, %v3635
      %v3665 = vadd.f32 %v3533, %v3635
      %v3666 = vadd.f32 %v3534, %v3635
      %v3667 = vadd.f32 %v3535, %v3635
      %v3668 = vadd.f32 %v3536, %v3635
      %v3669 = vadd.f32 %v3537, %v3635
      %v3670 = vadd.f32 %v3538, %v3635
      %v3671 = vadd.f32 %v3539, %v3635
      %v3672 = vadd.f32 %v3540, %v3635
      %v3673 = vadd.f32 %v3541, %v3635
      %v3674 = vadd.f32 %v3542, %v3635
      %v3675 = vadd.f32 %v3543, %v3635
      %v3676 = vadd.f32 %v3544, %v3635
      %v3677 = vadd.f32 %v3545, %v3635
      %v3678 = vadd.f32 %v3546, %v3635
      %v3679 = vadd.f32 %v3547, %v3635
      %v3680 = vadd.f32 %v3548, %v3635
      %v3681 = vadd.f32 %v3549, %v3635
      %v3682 = vadd.f32 %v3550, %v3635
      %v3683 = vadd.f32 %v3551, %v3635
      %v3684 = vadd.f32 %v3552, %v3635
      %v3685 = vadd.f32 %v3553, %v3635
      %v3686 = vadd.f32 %v3554, %v3635
      %v3687 = vadd.f32 %v3555, %v3635
      %v3688 = vadd.f32 %v3556, %v3635
      %v3689 = vadd.f32 %v3557, %v3635
      %v3690 = vadd.f32 %v3558, %v3635
      %v3691 = vadd.f32 %v3559, %v3635
      %v3692 = vadd.f32 %v3560, %v3635
      %v3693 = vadd.f32 %v3561, %v3635
      %v3694 = vadd.f32 %v3562, %v3635
      %v3695 = vadd.f32 %v3563, %v3635
      %v3696 = vadd.f32 %v3564, %v3635
      %v3697 = vadd.f32 %v3565, %v3635
      %v3698 = vadd.f32 %v3566, %v3635
      %v3699 = vadd.f32 %v3567, %v3635
      %v3700 = vadd.f32 %v3568, %v3635
      %v3701 = vadd.f32 %v3569, %v3635
      %v3702 = vadd.f32 %v3570, %v3635
      %v3703 = vadd.f32 %v3571, %v3635
      %v3704 = vadd.f32 %v3572, %v3635
      %v3705 = vadd.f32 %v3573, %v3635
      %v3706 = vadd.f32 %v3574, %v3635
      %v3707 = vadd.f32 %v3575, %v3635
      %v3708 = vadd.f32 %v3576, %v3635
      %v3709 = vadd.f32 %v3577, %v3635
      %v3710 = vadd.f32 %v3578, %v3635
      %v3711 = vadd.f32 %v3579, %v3635
      %v3712 = vadd.f32 %v3580, %v3635
      %v3713 = vadd.f32 %v3581, %v3635
      %v3714 = vadd.f32 %v3582, %v3635
      %v3715 = vadd.f32 %v3583, %v3635
      %v3716 = vadd.f32 %v3584, %v3635
      %v3717 = vadd.f32 %v3585, %v3635
      %v3718 = vadd.f32 %v3586, %v3635
      %v3719 = vadd.f32 %v3587, %v3635
      %v3720 = vadd.f32 %v3588, %v3635
      %v3721 = vadd.f32 %v3589, %v3635
      %v3722 = vadd.f32 %v3590, %v3635
      %v3723 = vadd.f32 %v3591, %v3635
      %v3724 = vadd.f32 %v3592, %v3635
      %v3725 = vadd.f32 %v3593, %v3635
      %v3726 = vadd.f32 %v3594, %v3635
      %v3727 = vadd.f32 %v3595, %v3635
      %v3728 = vadd.f32 %v3596, %v3635
      %v3729 = vadd.f32 %v3597, %v3635
      %v3730 = vadd.f32 %v3598, %v3635
      %v3731 = vadd.f32 %v3599, %v3635
      %v3732 = vadd.f32 %v3600, %v3635
      %v3733 = vadd.f32 %v3601, %v3635
      %v3734 = vadd.f32 %v3602, %v3635
      %v3735 = vadd.f32 %v3603, %v3635
      %v3736 = vadd.f32 %v3604, %v3635
      %v3737 = vadd.f32 %v3605, %v3635
      %v3738 = vadd.f32 %v3606, %v3635
      %v3739 = vadd.f32 %v3607, %v3635
      %v3740 = vadd.f32 %v3608, %v3635
      %v3741 = vadd.f32 %v3609, %v3635
      %v3742 = vadd.f32 %v3610, %v3635
      %v3743 = vadd.f32 %v3611, %v3635
      %v3744 = vadd.f32 %v3612, %v3635
      %v3745 = vadd.f32 %v3613, %v3635
      %v3746 = vadd.f32 %v3614, %v3635
      %v3747 = vadd.f32 %v3615, %v3635
      %v3748 = vadd.f32 %v3616, %v3635
      %v3749 = vadd.f32 %v3617, %v3635
      %v3750 = vadd.f32 %v3618, %v3635
      %v3751 = vadd.f32 %v3619, %v3635
      %v3752 = vadd.f32 %v3620, %v3635
      %v3753 = vadd.f32 %v3621, %v3635
      %v3754 = vadd.f32 %v3622, %v3635
      %v3755 = vadd.f32 %v3623, %v3635
      %v3756 = vadd.f32 %v3624, %v3635
      %v3757 = vadd.f32 %v3625, %v3635
      %v3758 = vadd.f32 %v3626, %v3635
      %v3759 = vadd.f32 %v3627, %v3635
      %v3760 = vadd.f32 %v3628, %v3635
      %v3761 = vadd.f32 %v3629, %v3635
      %v3762 = vadd.f32 %v3630, %v3635
      %v3763 = vadd.f32 %v3631, %v3635
      %v3764 = vadd.f32 %v3632, %v3635
      %v3765 = vld [vmem:[%s3] sm:$0xf]
      %v3766 = vld [vmem:[%s3 + $0x4] sm:$0xf]
      %v3767 = vld [vmem:[%s3 + $0x8] sm:$0xf]
      %s3768 = scalar_lea.vmem %s3, 12
      %v3769 = vld [vmem:[%s3768] sm:$0xf]
      %v3770 = vld [vmem:[%s3768 + $0x4] sm:$0xf]
      %v3771 = vld [vmem:[%s3768 + $0x8] sm:$0xf]
      %v3775 = vunpack.c.l.b16 %v3769
      %v3776 = vunpack.c.l.b16 %v3770
      %v3777 = vunpack.c.l.b16 %v3771
      %v3778 = vpack.c.b16 %v3776, %v3775
      %v3779 = vpack.c.b16 %v3777, %v3777
      %v3782 = vsel %vm2478, %v3779, 0
      %3784 = vmatpush.bf16.msra.mxu0 0
      %3785 = vmatpush.bf16.msra.mxu0 0
      %3786 = vmatpush.bf16.msra.mxu0 0
      %3787 = vmatpush.bf16.msra.mxu0 0
      %3788 = vmatpush.bf16.msra.mxu0 0
      %3789 = vmatpush.bf16.msra.mxu0 0
      %3790 = vmatpush.bf16.msra.mxu0 %v3782
      %3791 = vmatpush.bf16.msra.mxu0 %v3778
      %3792 = vmatmul.bf16.gmra.mxu0 %v2354
      %v3793 = vpop.f32.mrf.mxu0
      %v3794 = vadd.f32 0.0, %v3793
      %v3795 = vpop.f32.mrf.mxu0
      %v3796 = vadd.f32 0.0, %v3795
      %3797 = vmatmul.bf16.gmra.mxu0 %v2356
      %v3798 = vpop.f32.mrf.mxu0
      %v3799 = vadd.f32 0.0, %v3798
      %v3800 = vpop.f32.mrf.mxu0
      %v3801 = vadd.f32 0.0, %v3800
      %3802 = vmatmul.bf16.gmra.mxu0 %v2358
      %v3803 = vpop.f32.mrf.mxu0
      %v3804 = vadd.f32 0.0, %v3803
      %v3805 = vpop.f32.mrf.mxu0
      %v3806 = vadd.f32 0.0, %v3805
      %3807 = vmatmul.bf16.gmra.mxu0 %v2360
      %v3808 = vpop.f32.mrf.mxu0
      %v3809 = vadd.f32 0.0, %v3808
      %v3810 = vpop.f32.mrf.mxu0
      %v3811 = vadd.f32 0.0, %v3810
      %3812 = vmatmul.bf16.gmra.mxu0 %v2362
      %v3813 = vpop.f32.mrf.mxu0
      %v3814 = vadd.f32 0.0, %v3813
      %v3815 = vpop.f32.mrf.mxu0
      %v3816 = vadd.f32 0.0, %v3815
      %3817 = vmatmul.bf16.gmra.mxu0 %v2364
      %v3818 = vpop.f32.mrf.mxu0
      %v3819 = vadd.f32 0.0, %v3818
      %v3820 = vpop.f32.mrf.mxu0
      %v3821 = vadd.f32 0.0, %v3820
      %3822 = vmatmul.bf16.gmra.mxu0 %v2366
      %v3823 = vpop.f32.mrf.mxu0
      %v3824 = vadd.f32 0.0, %v3823
      %v3825 = vpop.f32.mrf.mxu0
      %v3826 = vadd.f32 0.0, %v3825
      %3827 = vmatmul.bf16.gmra.mxu0 %v2368
      %v3828 = vpop.f32.mrf.mxu0
      %v3829 = vadd.f32 0.0, %v3828
      %v3830 = vpop.f32.mrf.mxu0
      %v3831 = vadd.f32 0.0, %v3830
      %3832 = vmatmul.bf16.gmra.mxu0 %v2370
      %v3833 = vpop.f32.mrf.mxu0
      %v3834 = vadd.f32 0.0, %v3833
      %v3835 = vpop.f32.mrf.mxu0
      %v3836 = vadd.f32 0.0, %v3835
      %3837 = vmatmul.bf16.gmra.mxu0 %v2372
      %v3838 = vpop.f32.mrf.mxu0
      %v3839 = vadd.f32 0.0, %v3838
      %v3840 = vpop.f32.mrf.mxu0
      %v3841 = vadd.f32 0.0, %v3840
      %3842 = vmatmul.bf16.gmra.mxu0 %v2374
      %v3843 = vpop.f32.mrf.mxu0
      %v3844 = vadd.f32 0.0, %v3843
      %v3845 = vpop.f32.mrf.mxu0
      %v3846 = vadd.f32 0.0, %v3845
      %3847 = vmatmul.bf16.gmra.mxu0 %v2376
      %v3848 = vpop.f32.mrf.mxu0
      %v3849 = vadd.f32 0.0, %v3848
      %v3850 = vpop.f32.mrf.mxu0
      %v3851 = vadd.f32 0.0, %v3850
      %3852 = vmatmul.bf16.gmra.mxu0 %v2378
      %v3853 = vpop.f32.mrf.mxu0
      %v3854 = vadd.f32 0.0, %v3853
      %v3855 = vpop.f32.mrf.mxu0
      %v3856 = vadd.f32 0.0, %v3855
      %3857 = vmatmul.bf16.gmra.mxu0 %v2380
      %v3858 = vpop.f32.mrf.mxu0
      %v3859 = vadd.f32 0.0, %v3858
      %v3860 = vpop.f32.mrf.mxu0
      %v3861 = vadd.f32 0.0, %v3860
      %3862 = vmatmul.bf16.gmra.mxu0 %v2382
      %v3863 = vpop.f32.mrf.mxu0
      %v3864 = vadd.f32 0.0, %v3863
      %v3865 = vpop.f32.mrf.mxu0
      %v3866 = vadd.f32 0.0, %v3865
      %3867 = vmatmul.bf16.gmra.mxu0 %v2384
      %v3868 = vpop.f32.mrf.mxu0
      %v3869 = vadd.f32 0.0, %v3868
      %v3870 = vpop.f32.mrf.mxu0
      %v3871 = vadd.f32 0.0, %v3870
      %3872 = vmatmul.bf16.gmra.mxu0 %v2386
      %v3873 = vpop.f32.mrf.mxu0
      %v3874 = vadd.f32 0.0, %v3873
      %v3875 = vpop.f32.mrf.mxu0
      %v3876 = vadd.f32 0.0, %v3875
      %3877 = vmatmul.bf16.gmra.mxu0 %v2388
      %v3878 = vpop.f32.mrf.mxu0
      %v3879 = vadd.f32 0.0, %v3878
      %v3880 = vpop.f32.mrf.mxu0
      %v3881 = vadd.f32 0.0, %v3880
      %3882 = vmatmul.bf16.gmra.mxu0 %v2390
      %v3883 = vpop.f32.mrf.mxu0
      %v3884 = vadd.f32 0.0, %v3883
      %v3885 = vpop.f32.mrf.mxu0
      %v3886 = vadd.f32 0.0, %v3885
      %3887 = vmatmul.bf16.gmra.mxu0 %v2392
      %v3888 = vpop.f32.mrf.mxu0
      %v3889 = vadd.f32 0.0, %v3888
      %v3890 = vpop.f32.mrf.mxu0
      %v3891 = vadd.f32 0.0, %v3890
      %3892 = vmatmul.bf16.gmra.mxu0 %v2394
      %v3893 = vpop.f32.mrf.mxu0
      %v3894 = vadd.f32 0.0, %v3893
      %v3895 = vpop.f32.mrf.mxu0
      %v3896 = vadd.f32 0.0, %v3895
      %3897 = vmatmul.bf16.gmra.mxu0 %v2396
      %v3898 = vpop.f32.mrf.mxu0
      %v3899 = vadd.f32 0.0, %v3898
      %v3900 = vpop.f32.mrf.mxu0
      %v3901 = vadd.f32 0.0, %v3900
      %3902 = vmatmul.bf16.gmra.mxu0 %v2398
      %v3903 = vpop.f32.mrf.mxu0
      %v3904 = vadd.f32 0.0, %v3903
      %v3905 = vpop.f32.mrf.mxu0
      %v3906 = vadd.f32 0.0, %v3905
      %3907 = vmatmul.bf16.gmra.mxu0 %v2400
      %v3908 = vpop.f32.mrf.mxu0
      %v3909 = vadd.f32 0.0, %v3908
      %v3910 = vpop.f32.mrf.mxu0
      %v3911 = vadd.f32 0.0, %v3910
      %3912 = vmatmul.bf16.gmra.mxu0 %v2402
      %v3913 = vpop.f32.mrf.mxu0
      %v3914 = vadd.f32 0.0, %v3913
      %v3915 = vpop.f32.mrf.mxu0
      %v3916 = vadd.f32 0.0, %v3915
      %3917 = vmatmul.bf16.gmra.mxu0 %v2404
      %v3918 = vpop.f32.mrf.mxu0
      %v3919 = vadd.f32 0.0, %v3918
      %v3920 = vpop.f32.mrf.mxu0
      %v3921 = vadd.f32 0.0, %v3920
      %3922 = vmatmul.bf16.gmra.mxu0 %v2406
      %v3923 = vpop.f32.mrf.mxu0
      %v3924 = vadd.f32 0.0, %v3923
      %v3925 = vpop.f32.mrf.mxu0
      %v3926 = vadd.f32 0.0, %v3925
      %3927 = vmatmul.bf16.gmra.mxu0 %v2408
      %v3928 = vpop.f32.mrf.mxu0
      %v3929 = vadd.f32 0.0, %v3928
      %v3930 = vpop.f32.mrf.mxu0
      %v3931 = vadd.f32 0.0, %v3930
      %3932 = vmatmul.bf16.gmra.mxu0 %v2410
      %v3933 = vpop.f32.mrf.mxu0
      %v3934 = vadd.f32 0.0, %v3933
      %v3935 = vpop.f32.mrf.mxu0
      %v3936 = vadd.f32 0.0, %v3935
      %3937 = vmatmul.bf16.gmra.mxu0 %v2412
      %v3938 = vpop.f32.mrf.mxu0
      %v3939 = vadd.f32 0.0, %v3938
      %v3940 = vpop.f32.mrf.mxu0
      %v3941 = vadd.f32 0.0, %v3940
      %3942 = vmatmul.bf16.gmra.mxu0 %v2414
      %v3943 = vpop.f32.mrf.mxu0
      %v3944 = vadd.f32 0.0, %v3943
      %v3945 = vpop.f32.mrf.mxu0
      %v3946 = vadd.f32 0.0, %v3945
      %3947 = vmatmul.bf16.gmra.mxu0 %v2416
      %v3948 = vpop.f32.mrf.mxu0
      %v3949 = vadd.f32 0.0, %v3948
      %v3950 = vpop.f32.mrf.mxu0
      %v3951 = vadd.f32 0.0, %v3950
      %3952 = vmatmul.bf16.gmra.mxu0 %v2418
      %v3953 = vpop.f32.mrf.mxu0
      %v3954 = vadd.f32 0.0, %v3953
      %v3955 = vpop.f32.mrf.mxu0
      %v3956 = vadd.f32 0.0, %v3955
      %3957 = vmatmul.bf16.gmra.mxu0 %v2420
      %v3958 = vpop.f32.mrf.mxu0
      %v3959 = vadd.f32 0.0, %v3958
      %v3960 = vpop.f32.mrf.mxu0
      %v3961 = vadd.f32 0.0, %v3960
      %3962 = vmatmul.bf16.gmra.mxu0 %v2422
      %v3963 = vpop.f32.mrf.mxu0
      %v3964 = vadd.f32 0.0, %v3963
      %v3965 = vpop.f32.mrf.mxu0
      %v3966 = vadd.f32 0.0, %v3965
      %3967 = vmatmul.bf16.gmra.mxu0 %v2424
      %v3968 = vpop.f32.mrf.mxu0
      %v3969 = vadd.f32 0.0, %v3968
      %v3970 = vpop.f32.mrf.mxu0
      %v3971 = vadd.f32 0.0, %v3970
      %3972 = vmatmul.bf16.gmra.mxu0 %v2426
      %v3973 = vpop.f32.mrf.mxu0
      %v3974 = vadd.f32 0.0, %v3973
      %v3975 = vpop.f32.mrf.mxu0
      %v3976 = vadd.f32 0.0, %v3975
      %3977 = vmatmul.bf16.gmra.mxu0 %v2428
      %v3978 = vpop.f32.mrf.mxu0
      %v3979 = vadd.f32 0.0, %v3978
      %v3980 = vpop.f32.mrf.mxu0
      %v3981 = vadd.f32 0.0, %v3980
      %3982 = vmatmul.bf16.gmra.mxu0 %v2430
      %v3983 = vpop.f32.mrf.mxu0
      %v3984 = vadd.f32 0.0, %v3983
      %v3985 = vpop.f32.mrf.mxu0
      %v3986 = vadd.f32 0.0, %v3985
      %3987 = vmatmul.bf16.gmra.mxu0 %v2432
      %v3988 = vpop.f32.mrf.mxu0
      %v3989 = vadd.f32 0.0, %v3988
      %v3990 = vpop.f32.mrf.mxu0
      %v3991 = vadd.f32 0.0, %v3990
      %3992 = vmatmul.bf16.gmra.mxu0 %v2434
      %v3993 = vpop.f32.mrf.mxu0
      %v3994 = vadd.f32 0.0, %v3993
      %v3995 = vpop.f32.mrf.mxu0
      %v3996 = vadd.f32 0.0, %v3995
      %3997 = vmatmul.bf16.gmra.mxu0 %v2436
      %v3998 = vpop.f32.mrf.mxu0
      %v3999 = vadd.f32 0.0, %v3998
      %v4000 = vpop.f32.mrf.mxu0
      %v4001 = vadd.f32 0.0, %v4000
      %4002 = vmatmul.bf16.gmra.mxu0 %v2438
      %v4003 = vpop.f32.mrf.mxu0
      %v4004 = vadd.f32 0.0, %v4003
      %v4005 = vpop.f32.mrf.mxu0
      %v4006 = vadd.f32 0.0, %v4005
      %4007 = vmatmul.bf16.gmra.mxu0 %v2440
      %v4008 = vpop.f32.mrf.mxu0
      %v4009 = vadd.f32 0.0, %v4008
      %v4010 = vpop.f32.mrf.mxu0
      %v4011 = vadd.f32 0.0, %v4010
      %4012 = vmatmul.bf16.gmra.mxu0 %v2442
      %v4013 = vpop.f32.mrf.mxu0
      %v4014 = vadd.f32 0.0, %v4013
      %v4015 = vpop.f32.mrf.mxu0
      %v4016 = vadd.f32 0.0, %v4015
      %4017 = vmatmul.bf16.gmra.mxu0 %v2444
      %v4018 = vpop.f32.mrf.mxu0
      %v4019 = vadd.f32 0.0, %v4018
      %v4020 = vpop.f32.mrf.mxu0
      %v4021 = vadd.f32 0.0, %v4020
      %4022 = vmatmul.bf16.gmra.mxu0 %v2446
      %v4023 = vpop.f32.mrf.mxu0
      %v4024 = vadd.f32 0.0, %v4023
      %v4025 = vpop.f32.mrf.mxu0
      %v4026 = vadd.f32 0.0, %v4025
      %4027 = vmatmul.bf16.gmra.mxu0 %v2448
      %v4028 = vpop.f32.mrf.mxu0
      %v4029 = vadd.f32 0.0, %v4028
      %v4030 = vpop.f32.mrf.mxu0
      %v4031 = vadd.f32 0.0, %v4030
      %4032 = vmatmul.bf16.gmra.mxu0 %v2450
      %v4033 = vpop.f32.mrf.mxu0
      %v4034 = vadd.f32 0.0, %v4033
      %v4035 = vpop.f32.mrf.mxu0
      %v4036 = vadd.f32 0.0, %v4035
      %4037 = vmatmul.bf16.gmra.mxu0 %v2452
      %v4038 = vpop.f32.mrf.mxu0
      %v4039 = vadd.f32 0.0, %v4038
      %v4040 = vpop.f32.mrf.mxu0
      %v4041 = vadd.f32 0.0, %v4040
      %4042 = vmatmul.bf16.gmra.mxu0 %v2454
      %v4043 = vpop.f32.mrf.mxu0
      %v4044 = vadd.f32 0.0, %v4043
      %v4045 = vpop.f32.mrf.mxu0
      %v4046 = vadd.f32 0.0, %v4045
      %4047 = vmatmul.bf16.gmra.mxu0 %v2456
      %v4048 = vpop.f32.mrf.mxu0
      %v4049 = vadd.f32 0.0, %v4048
      %v4050 = vpop.f32.mrf.mxu0
      %v4051 = vadd.f32 0.0, %v4050
      %4052 = vmatmul.bf16.gmra.mxu0 %v2458
      %v4053 = vpop.f32.mrf.mxu0
      %v4054 = vadd.f32 0.0, %v4053
      %v4055 = vpop.f32.mrf.mxu0
      %v4056 = vadd.f32 0.0, %v4055
      %4057 = vmatmul.bf16.gmra.mxu0 %v2460
      %v4058 = vpop.f32.mrf.mxu0
      %v4059 = vadd.f32 0.0, %v4058
      %v4060 = vpop.f32.mrf.mxu0
      %v4061 = vadd.f32 0.0, %v4060
      %4062 = vmatmul.bf16.gmra.mxu0 %v2462
      %v4063 = vpop.f32.mrf.mxu0
      %v4064 = vadd.f32 0.0, %v4063
      %v4065 = vpop.f32.mrf.mxu0
      %v4066 = vadd.f32 0.0, %v4065
      %4067 = vmatmul.bf16.gmra.mxu0 %v2464
      %v4068 = vpop.f32.mrf.mxu0
      %v4069 = vadd.f32 0.0, %v4068
      %v4070 = vpop.f32.mrf.mxu0
      %v4071 = vadd.f32 0.0, %v4070
      %4072 = vmatmul.bf16.gmra.mxu0 %v2466
      %v4073 = vpop.f32.mrf.mxu0
      %v4074 = vadd.f32 0.0, %v4073
      %v4075 = vpop.f32.mrf.mxu0
      %v4076 = vadd.f32 0.0, %v4075
      %4077 = vmatmul.bf16.gmra.mxu0 %v2468
      %v4078 = vpop.f32.mrf.mxu0
      %v4079 = vadd.f32 0.0, %v4078
      %v4080 = vpop.f32.mrf.mxu0
      %v4081 = vadd.f32 0.0, %v4080
      %4082 = vmatmul.bf16.gmra.mxu0 %v2470
      %v4083 = vpop.f32.mrf.mxu0
      %v4084 = vadd.f32 0.0, %v4083
      %v4085 = vpop.f32.mrf.mxu0
      %v4086 = vadd.f32 0.0, %v4085
      %4087 = vmatmul.bf16.gmra.mxu0 %v2472
      %v4088 = vpop.f32.mrf.mxu0
      %v4089 = vadd.f32 0.0, %v4088
      %v4090 = vpop.f32.mrf.mxu0
      %v4091 = vadd.f32 0.0, %v4090
      %4092 = vmatmul.bf16.gmra.mxu0 %v2474
      %v4093 = vpop.f32.mrf.mxu0
      %v4094 = vadd.f32 0.0, %v4093
      %v4095 = vpop.f32.mrf.mxu0
      %v4096 = vadd.f32 0.0, %v4095
      %4097 = vmatmul.bf16.gmra.mxu0 %v2476
      %v4098 = vpop.f32.mrf.mxu0
      %v4099 = vadd.f32 0.0, %v4098
      %v4100 = vpop.f32.mrf.mxu0
      %v4101 = vadd.f32 0.0, %v4100
      %4102 = vmatmul.bf16.gmra.mxu0 %v3169
      %v4103 = vpop.f32.mrf.mxu0
      %v4104 = vadd.f32 0.0, %v4103
      %v4105 = vpop.f32.mrf.mxu0
      %v4106 = vadd.f32 0.0, %v4105
      %4107 = vmatmul.bf16.gmra.mxu0 %v3171
      %v4108 = vpop.f32.mrf.mxu0
      %v4109 = vadd.f32 0.0, %v4108
      %v4110 = vpop.f32.mrf.mxu0
      %v4111 = vadd.f32 0.0, %v4110
      %4112 = vdwg.mxu0
      %v4116 = vunpack.c.l.b16 %v3765
      %v4117 = vunpack.c.l.b16 %v3766
      %v4118 = vunpack.c.l.b16 %v3767
      %v4119 = vpack.c.b16 %v4117, %v4116
      %v4120 = vpack.c.b16 %v4118, %v4118
      %v4123 = vsel %vm2478, %v4120, 0
      %4125 = vmatpush.bf16.msra.mxu0 0
      %4126 = vmatpush.bf16.msra.mxu0 0
      %4127 = vmatpush.bf16.msra.mxu0 0
      %4128 = vmatpush.bf16.msra.mxu0 0
      %4129 = vmatpush.bf16.msra.mxu0 0
      %4130 = vmatpush.bf16.msra.mxu0 0
      %4131 = vmatpush.bf16.msra.mxu0 %v4123
      %4132 = vmatpush.bf16.msra.mxu0 %v4119
      %4133 = vmatmul.bf16.gmra.mxu0 %v2350
      %v4134 = vpop.f32.mrf.mxu0
      %v4135 = vadd.f32 %v3794, %v4134
      %v4136 = vpop.f32.mrf.mxu0
      %v4137 = vadd.f32 %v3796, %v4136
      %4138 = vmatmul.bf16.gmra.mxu0 %v2352
      %v4139 = vpop.f32.mrf.mxu0
      %v4140 = vadd.f32 %v3799, %v4139
      %v4141 = vpop.f32.mrf.mxu0
      %v4142 = vadd.f32 %v3801, %v4141
      %4143 = vmatmul.bf16.gmra.mxu0 %v2354
      %v4144 = vpop.f32.mrf.mxu0
      %v4145 = vadd.f32 %v3804, %v4144
      %v4146 = vpop.f32.mrf.mxu0
      %v4147 = vadd.f32 %v3806, %v4146
      %4148 = vmatmul.bf16.gmra.mxu0 %v2356
      %v4149 = vpop.f32.mrf.mxu0
      %v4150 = vadd.f32 %v3809, %v4149
      %v4151 = vpop.f32.mrf.mxu0
      %v4152 = vadd.f32 %v3811, %v4151
      %4153 = vmatmul.bf16.gmra.mxu0 %v2358
      %v4154 = vpop.f32.mrf.mxu0
      %v4155 = vadd.f32 %v3814, %v4154
      %v4156 = vpop.f32.mrf.mxu0
      %v4157 = vadd.f32 %v3816, %v4156
      %4158 = vmatmul.bf16.gmra.mxu0 %v2360
      %v4159 = vpop.f32.mrf.mxu0
      %v4160 = vadd.f32 %v3819, %v4159
      %v4161 = vpop.f32.mrf.mxu0
      %v4162 = vadd.f32 %v3821, %v4161
      %4163 = vmatmul.bf16.gmra.mxu0 %v2362
      %v4164 = vpop.f32.mrf.mxu0
      %v4165 = vadd.f32 %v3824, %v4164
      %v4166 = vpop.f32.mrf.mxu0
      %v4167 = vadd.f32 %v3826, %v4166
      %4168 = vmatmul.bf16.gmra.mxu0 %v2364
      %v4169 = vpop.f32.mrf.mxu0
      %v4170 = vadd.f32 %v3829, %v4169
      %v4171 = vpop.f32.mrf.mxu0
      %v4172 = vadd.f32 %v3831, %v4171
      %4173 = vmatmul.bf16.gmra.mxu0 %v2366
      %v4174 = vpop.f32.mrf.mxu0
      %v4175 = vadd.f32 %v3834, %v4174
      %v4176 = vpop.f32.mrf.mxu0
      %v4177 = vadd.f32 %v3836, %v4176
      %4178 = vmatmul.bf16.gmra.mxu0 %v2368
      %v4179 = vpop.f32.mrf.mxu0
      %v4180 = vadd.f32 %v3839, %v4179
      %v4181 = vpop.f32.mrf.mxu0
      %v4182 = vadd.f32 %v3841, %v4181
      %4183 = vmatmul.bf16.gmra.mxu0 %v2370
      %v4184 = vpop.f32.mrf.mxu0
      %v4185 = vadd.f32 %v3844, %v4184
      %v4186 = vpop.f32.mrf.mxu0
      %v4187 = vadd.f32 %v3846, %v4186
      %4188 = vmatmul.bf16.gmra.mxu0 %v2372
      %v4189 = vpop.f32.mrf.mxu0
      %v4190 = vadd.f32 %v3849, %v4189
      %v4191 = vpop.f32.mrf.mxu0
      %v4192 = vadd.f32 %v3851, %v4191
      %4193 = vmatmul.bf16.gmra.mxu0 %v2374
      %v4194 = vpop.f32.mrf.mxu0
      %v4195 = vadd.f32 %v3854, %v4194
      %v4196 = vpop.f32.mrf.mxu0
      %v4197 = vadd.f32 %v3856, %v4196
      %4198 = vmatmul.bf16.gmra.mxu0 %v2376
      %v4199 = vpop.f32.mrf.mxu0
      %v4200 = vadd.f32 %v3859, %v4199
      %v4201 = vpop.f32.mrf.mxu0
      %v4202 = vadd.f32 %v3861, %v4201
      %4203 = vmatmul.bf16.gmra.mxu0 %v2378
      %v4204 = vpop.f32.mrf.mxu0
      %v4205 = vadd.f32 %v3864, %v4204
      %v4206 = vpop.f32.mrf.mxu0
      %v4207 = vadd.f32 %v3866, %v4206
      %4208 = vmatmul.bf16.gmra.mxu0 %v2380
      %v4209 = vpop.f32.mrf.mxu0
      %v4210 = vadd.f32 %v3869, %v4209
      %v4211 = vpop.f32.mrf.mxu0
      %v4212 = vadd.f32 %v3871, %v4211
      %4213 = vmatmul.bf16.gmra.mxu0 %v2382
      %v4214 = vpop.f32.mrf.mxu0
      %v4215 = vadd.f32 %v3874, %v4214
      %v4216 = vpop.f32.mrf.mxu0
      %v4217 = vadd.f32 %v3876, %v4216
      %4218 = vmatmul.bf16.gmra.mxu0 %v2384
      %v4219 = vpop.f32.mrf.mxu0
      %v4220 = vadd.f32 %v3879, %v4219
      %v4221 = vpop.f32.mrf.mxu0
      %v4222 = vadd.f32 %v3881, %v4221
      %4223 = vmatmul.bf16.gmra.mxu0 %v2386
      %v4224 = vpop.f32.mrf.mxu0
      %v4225 = vadd.f32 %v3884, %v4224
      %v4226 = vpop.f32.mrf.mxu0
      %v4227 = vadd.f32 %v3886, %v4226
      %4228 = vmatmul.bf16.gmra.mxu0 %v2388
      %v4229 = vpop.f32.mrf.mxu0
      %v4230 = vadd.f32 %v3889, %v4229
      %v4231 = vpop.f32.mrf.mxu0
      %v4232 = vadd.f32 %v3891, %v4231
      %4233 = vmatmul.bf16.gmra.mxu0 %v2390
      %v4234 = vpop.f32.mrf.mxu0
      %v4235 = vadd.f32 %v3894, %v4234
      %v4236 = vpop.f32.mrf.mxu0
      %v4237 = vadd.f32 %v3896, %v4236
      %4238 = vmatmul.bf16.gmra.mxu0 %v2392
      %v4239 = vpop.f32.mrf.mxu0
      %v4240 = vadd.f32 %v3899, %v4239
      %v4241 = vpop.f32.mrf.mxu0
      %v4242 = vadd.f32 %v3901, %v4241
      %4243 = vmatmul.bf16.gmra.mxu0 %v2394
      %v4244 = vpop.f32.mrf.mxu0
      %v4245 = vadd.f32 %v3904, %v4244
      %v4246 = vpop.f32.mrf.mxu0
      %v4247 = vadd.f32 %v3906, %v4246
      %4248 = vmatmul.bf16.gmra.mxu0 %v2396
      %v4249 = vpop.f32.mrf.mxu0
      %v4250 = vadd.f32 %v3909, %v4249
      %v4251 = vpop.f32.mrf.mxu0
      %v4252 = vadd.f32 %v3911, %v4251
      %4253 = vmatmul.bf16.gmra.mxu0 %v2398
      %v4254 = vpop.f32.mrf.mxu0
      %v4255 = vadd.f32 %v3914, %v4254
      %v4256 = vpop.f32.mrf.mxu0
      %v4257 = vadd.f32 %v3916, %v4256
      %4258 = vmatmul.bf16.gmra.mxu0 %v2400
      %v4259 = vpop.f32.mrf.mxu0
      %v4260 = vadd.f32 %v3919, %v4259
      %v4261 = vpop.f32.mrf.mxu0
      %v4262 = vadd.f32 %v3921, %v4261
      %4263 = vmatmul.bf16.gmra.mxu0 %v2402
      %v4264 = vpop.f32.mrf.mxu0
      %v4265 = vadd.f32 %v3924, %v4264
      %v4266 = vpop.f32.mrf.mxu0
      %v4267 = vadd.f32 %v3926, %v4266
      %4268 = vmatmul.bf16.gmra.mxu0 %v2404
      %v4269 = vpop.f32.mrf.mxu0
      %v4270 = vadd.f32 %v3929, %v4269
      %v4271 = vpop.f32.mrf.mxu0
      %v4272 = vadd.f32 %v3931, %v4271
      %4273 = vmatmul.bf16.gmra.mxu0 %v2406
      %v4274 = vpop.f32.mrf.mxu0
      %v4275 = vadd.f32 %v3934, %v4274
      %v4276 = vpop.f32.mrf.mxu0
      %v4277 = vadd.f32 %v3936, %v4276
      %4278 = vmatmul.bf16.gmra.mxu0 %v2408
      %v4279 = vpop.f32.mrf.mxu0
      %v4280 = vadd.f32 %v3939, %v4279
      %v4281 = vpop.f32.mrf.mxu0
      %v4282 = vadd.f32 %v3941, %v4281
      %4283 = vmatmul.bf16.gmra.mxu0 %v2410
      %v4284 = vpop.f32.mrf.mxu0
      %v4285 = vadd.f32 %v3944, %v4284
      %v4286 = vpop.f32.mrf.mxu0
      %v4287 = vadd.f32 %v3946, %v4286
      %4288 = vmatmul.bf16.gmra.mxu0 %v2412
      %v4289 = vpop.f32.mrf.mxu0
      %v4290 = vadd.f32 %v3949, %v4289
      %v4291 = vpop.f32.mrf.mxu0
      %v4292 = vadd.f32 %v3951, %v4291
      %4293 = vmatmul.bf16.gmra.mxu0 %v2414
      %v4294 = vpop.f32.mrf.mxu0
      %v4295 = vadd.f32 %v3954, %v4294
      %v4296 = vpop.f32.mrf.mxu0
      %v4297 = vadd.f32 %v3956, %v4296
      %4298 = vmatmul.bf16.gmra.mxu0 %v2416
      %v4299 = vpop.f32.mrf.mxu0
      %v4300 = vadd.f32 %v3959, %v4299
      %v4301 = vpop.f32.mrf.mxu0
      %v4302 = vadd.f32 %v3961, %v4301
      %4303 = vmatmul.bf16.gmra.mxu0 %v2418
      %v4304 = vpop.f32.mrf.mxu0
      %v4305 = vadd.f32 %v3964, %v4304
      %v4306 = vpop.f32.mrf.mxu0
      %v4307 = vadd.f32 %v3966, %v4306
      %4308 = vmatmul.bf16.gmra.mxu0 %v2420
      %v4309 = vpop.f32.mrf.mxu0
      %v4310 = vadd.f32 %v3969, %v4309
      %v4311 = vpop.f32.mrf.mxu0
      %v4312 = vadd.f32 %v3971, %v4311
      %4313 = vmatmul.bf16.gmra.mxu0 %v2422
      %v4314 = vpop.f32.mrf.mxu0
      %v4315 = vadd.f32 %v3974, %v4314
      %v4316 = vpop.f32.mrf.mxu0
      %v4317 = vadd.f32 %v3976, %v4316
      %4318 = vmatmul.bf16.gmra.mxu0 %v2424
      %v4319 = vpop.f32.mrf.mxu0
      %v4320 = vadd.f32 %v3979, %v4319
      %v4321 = vpop.f32.mrf.mxu0
      %v4322 = vadd.f32 %v3981, %v4321
      %4323 = vmatmul.bf16.gmra.mxu0 %v2426
      %v4324 = vpop.f32.mrf.mxu0
      %v4325 = vadd.f32 %v3984, %v4324
      %v4326 = vpop.f32.mrf.mxu0
      %v4327 = vadd.f32 %v3986, %v4326
      %4328 = vmatmul.bf16.gmra.mxu0 %v2428
      %v4329 = vpop.f32.mrf.mxu0
      %v4330 = vadd.f32 %v3989, %v4329
      %v4331 = vpop.f32.mrf.mxu0
      %v4332 = vadd.f32 %v3991, %v4331
      %4333 = vmatmul.bf16.gmra.mxu0 %v2430
      %v4334 = vpop.f32.mrf.mxu0
      %v4335 = vadd.f32 %v3994, %v4334
      %v4336 = vpop.f32.mrf.mxu0
      %v4337 = vadd.f32 %v3996, %v4336
      %4338 = vmatmul.bf16.gmra.mxu0 %v2432
      %v4339 = vpop.f32.mrf.mxu0
      %v4340 = vadd.f32 %v3999, %v4339
      %v4341 = vpop.f32.mrf.mxu0
      %v4342 = vadd.f32 %v4001, %v4341
      %4343 = vmatmul.bf16.gmra.mxu0 %v2434
      %v4344 = vpop.f32.mrf.mxu0
      %v4345 = vadd.f32 %v4004, %v4344
      %v4346 = vpop.f32.mrf.mxu0
      %v4347 = vadd.f32 %v4006, %v4346
      %4348 = vmatmul.bf16.gmra.mxu0 %v2436
      %v4349 = vpop.f32.mrf.mxu0
      %v4350 = vadd.f32 %v4009, %v4349
      %v4351 = vpop.f32.mrf.mxu0
      %v4352 = vadd.f32 %v4011, %v4351
      %4353 = vmatmul.bf16.gmra.mxu0 %v2438
      %v4354 = vpop.f32.mrf.mxu0
      %v4355 = vadd.f32 %v4014, %v4354
      %v4356 = vpop.f32.mrf.mxu0
      %v4357 = vadd.f32 %v4016, %v4356
      %4358 = vmatmul.bf16.gmra.mxu0 %v2440
      %v4359 = vpop.f32.mrf.mxu0
      %v4360 = vadd.f32 %v4019, %v4359
      %v4361 = vpop.f32.mrf.mxu0
      %v4362 = vadd.f32 %v4021, %v4361
      %4363 = vmatmul.bf16.gmra.mxu0 %v2442
      %v4364 = vpop.f32.mrf.mxu0
      %v4365 = vadd.f32 %v4024, %v4364
      %v4366 = vpop.f32.mrf.mxu0
      %v4367 = vadd.f32 %v4026, %v4366
      %4368 = vmatmul.bf16.gmra.mxu0 %v2444
      %v4369 = vpop.f32.mrf.mxu0
      %v4370 = vadd.f32 %v4029, %v4369
      %v4371 = vpop.f32.mrf.mxu0
      %v4372 = vadd.f32 %v4031, %v4371
      %4373 = vmatmul.bf16.gmra.mxu0 %v2446
      %v4374 = vpop.f32.mrf.mxu0
      %v4375 = vadd.f32 %v4034, %v4374
      %v4376 = vpop.f32.mrf.mxu0
      %v4377 = vadd.f32 %v4036, %v4376
      %4378 = vmatmul.bf16.gmra.mxu0 %v2448
      %v4379 = vpop.f32.mrf.mxu0
      %v4380 = vadd.f32 %v4039, %v4379
      %v4381 = vpop.f32.mrf.mxu0
      %v4382 = vadd.f32 %v4041, %v4381
      %4383 = vmatmul.bf16.gmra.mxu0 %v2450
      %v4384 = vpop.f32.mrf.mxu0
      %v4385 = vadd.f32 %v4044, %v4384
      %v4386 = vpop.f32.mrf.mxu0
      %v4387 = vadd.f32 %v4046, %v4386
      %4388 = vmatmul.bf16.gmra.mxu0 %v2452
      %v4389 = vpop.f32.mrf.mxu0
      %v4390 = vadd.f32 %v4049, %v4389
      %v4391 = vpop.f32.mrf.mxu0
      %v4392 = vadd.f32 %v4051, %v4391
      %4393 = vmatmul.bf16.gmra.mxu0 %v2454
      %v4394 = vpop.f32.mrf.mxu0
      %v4395 = vadd.f32 %v4054, %v4394
      %v4396 = vpop.f32.mrf.mxu0
      %v4397 = vadd.f32 %v4056, %v4396
      %4398 = vmatmul.bf16.gmra.mxu0 %v2456
      %v4399 = vpop.f32.mrf.mxu0
      %v4400 = vadd.f32 %v4059, %v4399
      %v4401 = vpop.f32.mrf.mxu0
      %v4402 = vadd.f32 %v4061, %v4401
      %4403 = vmatmul.bf16.gmra.mxu0 %v2458
      %v4404 = vpop.f32.mrf.mxu0
      %v4405 = vadd.f32 %v4064, %v4404
      %v4406 = vpop.f32.mrf.mxu0
      %v4407 = vadd.f32 %v4066, %v4406
      %4408 = vmatmul.bf16.gmra.mxu0 %v2460
      %v4409 = vpop.f32.mrf.mxu0
      %v4410 = vadd.f32 %v4069, %v4409
      %v4411 = vpop.f32.mrf.mxu0
      %v4412 = vadd.f32 %v4071, %v4411
      %4413 = vmatmul.bf16.gmra.mxu0 %v2462
      %v4414 = vpop.f32.mrf.mxu0
      %v4415 = vadd.f32 %v4074, %v4414
      %v4416 = vpop.f32.mrf.mxu0
      %v4417 = vadd.f32 %v4076, %v4416
      %4418 = vmatmul.bf16.gmra.mxu0 %v2464
      %v4419 = vpop.f32.mrf.mxu0
      %v4420 = vadd.f32 %v4079, %v4419
      %v4421 = vpop.f32.mrf.mxu0
      %v4422 = vadd.f32 %v4081, %v4421
      %4423 = vmatmul.bf16.gmra.mxu0 %v2466
      %v4424 = vpop.f32.mrf.mxu0
      %v4425 = vadd.f32 %v4084, %v4424
      %v4426 = vpop.f32.mrf.mxu0
      %v4427 = vadd.f32 %v4086, %v4426
      %4428 = vmatmul.bf16.gmra.mxu0 %v2468
      %v4429 = vpop.f32.mrf.mxu0
      %v4430 = vadd.f32 %v4089, %v4429
      %v4431 = vpop.f32.mrf.mxu0
      %v4432 = vadd.f32 %v4091, %v4431
      %4433 = vmatmul.bf16.gmra.mxu0 %v2470
      %v4434 = vpop.f32.mrf.mxu0
      %v4435 = vadd.f32 %v4094, %v4434
      %v4436 = vpop.f32.mrf.mxu0
      %v4437 = vadd.f32 %v4096, %v4436
      %4438 = vmatmul.bf16.gmra.mxu0 %v2472
      %v4439 = vpop.f32.mrf.mxu0
      %v4440 = vadd.f32 %v4099, %v4439
      %v4441 = vpop.f32.mrf.mxu0
      %v4442 = vadd.f32 %v4101, %v4441
      %4443 = vmatmul.bf16.gmra.mxu0 %v2474
      %v4444 = vpop.f32.mrf.mxu0
      %v4445 = vadd.f32 %v4104, %v4444
      %v4446 = vpop.f32.mrf.mxu0
      %v4447 = vadd.f32 %v4106, %v4446
      %4448 = vmatmul.bf16.gmra.mxu0 %v2476
      %v4449 = vpop.f32.mrf.mxu0
      %v4450 = vadd.f32 %v4109, %v4449
      %v4451 = vpop.f32.mrf.mxu0
      %v4452 = vadd.f32 %v4111, %v4451
      %4453 = vdwg.mxu0
      %v4454 = vadd.f32 %v4135, %v3635
      %v4455 = vadd.f32 %v4137, %v3635
      %v4456 = vadd.f32 %v4140, %v3635
      %v4457 = vadd.f32 %v4142, %v3635
      %v4458 = vadd.f32 %v4145, %v3635
      %v4459 = vadd.f32 %v4147, %v3635
      %v4460 = vadd.f32 %v4150, %v3635
      %v4461 = vadd.f32 %v4152, %v3635
      %v4462 = vadd.f32 %v4155, %v3635
      %v4463 = vadd.f32 %v4157, %v3635
      %v4464 = vadd.f32 %v4160, %v3635
      %v4465 = vadd.f32 %v4162, %v3635
      %v4466 = vadd.f32 %v4165, %v3635
      %v4467 = vadd.f32 %v4167, %v3635
      %v4468 = vadd.f32 %v4170, %v3635
      %v4469 = vadd.f32 %v4172, %v3635
      %v4470 = vadd.f32 %v4175, %v3635
      %v4471 = vadd.f32 %v4177, %v3635
      %v4472 = vadd.f32 %v4180, %v3635
      %v4473 = vadd.f32 %v4182, %v3635
      %v4474 = vadd.f32 %v4185, %v3635
      %v4475 = vadd.f32 %v4187, %v3635
      %v4476 = vadd.f32 %v4190, %v3635
      %v4477 = vadd.f32 %v4192, %v3635
      %v4478 = vadd.f32 %v4195, %v3635
      %v4479 = vadd.f32 %v4197, %v3635
      %v4480 = vadd.f32 %v4200, %v3635
      %v4481 = vadd.f32 %v4202, %v3635
      %v4482 = vadd.f32 %v4205, %v3635
      %v4483 = vadd.f32 %v4207, %v3635
      %v4484 = vadd.f32 %v4210, %v3635
      %v4485 = vadd.f32 %v4212, %v3635
      %v4486 = vadd.f32 %v4215, %v3635
      %v4487 = vadd.f32 %v4217, %v3635
      %v4488 = vadd.f32 %v4220, %v3635
      %v4489 = vadd.f32 %v4222, %v3635
      %v4490 = vadd.f32 %v4225, %v3635
      %v4491 = vadd.f32 %v4227, %v3635
      %v4492 = vadd.f32 %v4230, %v3635
      %v4493 = vadd.f32 %v4232, %v3635
      %v4494 = vadd.f32 %v4235, %v3635
      %v4495 = vadd.f32 %v4237, %v3635
      %v4496 = vadd.f32 %v4240, %v3635
      %v4497 = vadd.f32 %v4242, %v3635
      %v4498 = vadd.f32 %v4245, %v3635
      %v4499 = vadd.f32 %v4247, %v3635
      %v4500 = vadd.f32 %v4250, %v3635
      %v4501 = vadd.f32 %v4252, %v3635
      %v4502 = vadd.f32 %v4255, %v3635
      %v4503 = vadd.f32 %v4257, %v3635
      %v4504 = vadd.f32 %v4260, %v3635
      %v4505 = vadd.f32 %v4262, %v3635
      %v4506 = vadd.f32 %v4265, %v3635
      %v4507 = vadd.f32 %v4267, %v3635
      %v4508 = vadd.f32 %v4270, %v3635
      %v4509 = vadd.f32 %v4272, %v3635
      %v4510 = vadd.f32 %v4275, %v3635
      %v4511 = vadd.f32 %v4277, %v3635
      %v4512 = vadd.f32 %v4280, %v3635
      %v4513 = vadd.f32 %v4282, %v3635
      %v4514 = vadd.f32 %v4285, %v3635
      %v4515 = vadd.f32 %v4287, %v3635
      %v4516 = vadd.f32 %v4290, %v3635
      %v4517 = vadd.f32 %v4292, %v3635
      %v4518 = vadd.f32 %v4295, %v3635
      %v4519 = vadd.f32 %v4297, %v3635
      %v4520 = vadd.f32 %v4300, %v3635
      %v4521 = vadd.f32 %v4302, %v3635
      %v4522 = vadd.f32 %v4305, %v3635
      %v4523 = vadd.f32 %v4307, %v3635
      %v4524 = vadd.f32 %v4310, %v3635
      %v4525 = vadd.f32 %v4312, %v3635
      %v4526 = vadd.f32 %v4315, %v3635
      %v4527 = vadd.f32 %v4317, %v3635
      %v4528 = vadd.f32 %v4320, %v3635
      %v4529 = vadd.f32 %v4322, %v3635
      %v4530 = vadd.f32 %v4325, %v3635
      %v4531 = vadd.f32 %v4327, %v3635
      %v4532 = vadd.f32 %v4330, %v3635
      %v4533 = vadd.f32 %v4332, %v3635
      %v4534 = vadd.f32 %v4335, %v3635
      %v4535 = vadd.f32 %v4337, %v3635
      %v4536 = vadd.f32 %v4340, %v3635
      %v4537 = vadd.f32 %v4342, %v3635
      %v4538 = vadd.f32 %v4345, %v3635
      %v4539 = vadd.f32 %v4347, %v3635
      %v4540 = vadd.f32 %v4350, %v3635
      %v4541 = vadd.f32 %v4352, %v3635
      %v4542 = vadd.f32 %v4355, %v3635
      %v4543 = vadd.f32 %v4357, %v3635
      %v4544 = vadd.f32 %v4360, %v3635
      %v4545 = vadd.f32 %v4362, %v3635
      %v4546 = vadd.f32 %v4365, %v3635
      %v4547 = vadd.f32 %v4367, %v3635
      %v4548 = vadd.f32 %v4370, %v3635
      %v4549 = vadd.f32 %v4372, %v3635
      %v4550 = vadd.f32 %v4375, %v3635
      %v4551 = vadd.f32 %v4377, %v3635
      %v4552 = vadd.f32 %v4380, %v3635
      %v4553 = vadd.f32 %v4382, %v3635
      %v4554 = vadd.f32 %v4385, %v3635
      %v4555 = vadd.f32 %v4387, %v3635
      %v4556 = vadd.f32 %v4390, %v3635
      %v4557 = vadd.f32 %v4392, %v3635
      %v4558 = vadd.f32 %v4395, %v3635
      %v4559 = vadd.f32 %v4397, %v3635
      %v4560 = vadd.f32 %v4400, %v3635
      %v4561 = vadd.f32 %v4402, %v3635
      %v4562 = vadd.f32 %v4405, %v3635
      %v4563 = vadd.f32 %v4407, %v3635
      %v4564 = vadd.f32 %v4410, %v3635
      %v4565 = vadd.f32 %v4412, %v3635
      %v4566 = vadd.f32 %v4415, %v3635
      %v4567 = vadd.f32 %v4417, %v3635
      %v4568 = vadd.f32 %v4420, %v3635
      %v4569 = vadd.f32 %v4422, %v3635
      %v4570 = vadd.f32 %v4425, %v3635
      %v4571 = vadd.f32 %v4427, %v3635
      %v4572 = vadd.f32 %v4430, %v3635
      %v4573 = vadd.f32 %v4432, %v3635
      %v4574 = vadd.f32 %v4435, %v3635
      %v4575 = vadd.f32 %v4437, %v3635
      %v4576 = vadd.f32 %v4440, %v3635
      %v4577 = vadd.f32 %v4442, %v3635
      %v4578 = vadd.f32 %v4445, %v3635
      %v4579 = vadd.f32 %v4447, %v3635
      %v4580 = vadd.f32 %v4450, %v3635
      %v4581 = vadd.f32 %v4452, %v3635
      %vm4582 = vcmask 48128
      %4583 = vst.msk [vmem:[%s320] sm:$0xff] %vm4582, %v3637
      %4584 = vst.msk [vmem:[%s320 + $0x8] sm:$0xff] %vm4582, %v3638
      %4585 = vst.msk [vmem:[%s320 + $0x10] sm:$0xff] %vm4582, %v3639
      %4586 = vst.msk [vmem:[%s320 + $0x18] sm:$0xff] %vm4582, %v3640
      %4587 = vst.msk [vmem:[%s320 + $0x20] sm:$0xff] %vm4582, %v4454
      %4588 = vst.msk [vmem:[%s320 + $0x28] sm:$0xff] %vm4582, %v4455
      %4589 = vst.msk [vmem:[%s320 + $0x30] sm:$0xff] %vm4582, %v4456
      %4590 = vst.msk [vmem:[%s320 + $0x38] sm:$0xff] %vm4582, %v4457
      %4591 = vst.msk [vmem:[%s320 + $0x40] sm:$0xff] %vm4582, %v3641
      %4592 = vst.msk [vmem:[%s320 + $0x48] sm:$0xff] %vm4582, %v3642
      %4593 = vst.msk [vmem:[%s320 + $0x50] sm:$0xff] %vm4582, %v3643
      %4594 = vst.msk [vmem:[%s320 + $0x58] sm:$0xff] %vm4582, %v3644
      %4595 = vst.msk [vmem:[%s320 + $0x60] sm:$0xff] %vm4582, %v4458
      %4596 = vst.msk [vmem:[%s320 + $0x68] sm:$0xff] %vm4582, %v4459
      %4597 = vst.msk [vmem:[%s320 + $0x70] sm:$0xff] %vm4582, %v4460
      %4598 = vst.msk [vmem:[%s320 + $0x78] sm:$0xff] %vm4582, %v4461
      %4599 = vst.msk [vmem:[%s320 + $0x80] sm:$0xff] %vm4582, %v3645
      %4600 = vst.msk [vmem:[%s320 + $0x88] sm:$0xff] %vm4582, %v3646
      %4601 = vst.msk [vmem:[%s320 + $0x90] sm:$0xff] %vm4582, %v3647
      %4602 = vst.msk [vmem:[%s320 + $0x98] sm:$0xff] %vm4582, %v3648
      %4603 = vst.msk [vmem:[%s320 + $0xa0] sm:$0xff] %vm4582, %v4462
      %4604 = vst.msk [vmem:[%s320 + $0xa8] sm:$0xff] %vm4582, %v4463
      %4605 = vst.msk [vmem:[%s320 + $0xb0] sm:$0xff] %vm4582, %v4464
      %4606 = vst.msk [vmem:[%s320 + $0xb8] sm:$0xff] %vm4582, %v4465
      %4607 = vst.msk [vmem:[%s320 + $0xc0] sm:$0xff] %vm4582, %v3649
      %4608 = vst.msk [vmem:[%s320 + $0xc8] sm:$0xff] %vm4582, %v3650
      %4609 = vst.msk [vmem:[%s320 + $0xd0] sm:$0xff] %vm4582, %v3651
      %4610 = vst.msk [vmem:[%s320 + $0xd8] sm:$0xff] %vm4582, %v3652
      %4611 = vst.msk [vmem:[%s320 + $0xe0] sm:$0xff] %vm4582, %v4466
      %4612 = vst.msk [vmem:[%s320 + $0xe8] sm:$0xff] %vm4582, %v4467
      %4613 = vst.msk [vmem:[%s320 + $0xf0] sm:$0xff] %vm4582, %v4468
      %4614 = vst.msk [vmem:[%s320 + $0xf8] sm:$0xff] %vm4582, %v4469
      %4615 = vst.msk [vmem:[%s320 + $0x100] sm:$0xff] %vm4582, %v3653
      %4616 = vst.msk [vmem:[%s320 + $0x108] sm:$0xff] %vm4582, %v3654
      %4617 = vst.msk [vmem:[%s320 + $0x110] sm:$0xff] %vm4582, %v3655
      %4618 = vst.msk [vmem:[%s320 + $0x118] sm:$0xff] %vm4582, %v3656
      %4619 = vst.msk [vmem:[%s320 + $0x120] sm:$0xff] %vm4582, %v4470
      %4620 = vst.msk [vmem:[%s320 + $0x128] sm:$0xff] %vm4582, %v4471
      %4621 = vst.msk [vmem:[%s320 + $0x130] sm:$0xff] %vm4582, %v4472
      %4622 = vst.msk [vmem:[%s320 + $0x138] sm:$0xff] %vm4582, %v4473
      %4623 = vst.msk [vmem:[%s320 + $0x140] sm:$0xff] %vm4582, %v3657
      %4624 = vst.msk [vmem:[%s320 + $0x148] sm:$0xff] %vm4582, %v3658
      %4625 = vst.msk [vmem:[%s320 + $0x150] sm:$0xff] %vm4582, %v3659
      %4626 = vst.msk [vmem:[%s320 + $0x158] sm:$0xff] %vm4582, %v3660
      %4627 = vst.msk [vmem:[%s320 + $0x160] sm:$0xff] %vm4582, %v4474
      %4628 = vst.msk [vmem:[%s320 + $0x168] sm:$0xff] %vm4582, %v4475
      %4629 = vst.msk [vmem:[%s320 + $0x170] sm:$0xff] %vm4582, %v4476
      %4630 = vst.msk [vmem:[%s320 + $0x178] sm:$0xff] %vm4582, %v4477
      %4631 = vst.msk [vmem:[%s320 + $0x180] sm:$0xff] %vm4582, %v3661
      %4632 = vst.msk [vmem:[%s320 + $0x188] sm:$0xff] %vm4582, %v3662
      %4633 = vst.msk [vmem:[%s320 + $0x190] sm:$0xff] %vm4582, %v3663
      %4634 = vst.msk [vmem:[%s320 + $0x198] sm:$0xff] %vm4582, %v3664
      %4635 = vst.msk [vmem:[%s320 + $0x1a0] sm:$0xff] %vm4582, %v4478
      %4636 = vst.msk [vmem:[%s320 + $0x1a8] sm:$0xff] %vm4582, %v4479
      %4637 = vst.msk [vmem:[%s320 + $0x1b0] sm:$0xff] %vm4582, %v4480
      %4638 = vst.msk [vmem:[%s320 + $0x1b8] sm:$0xff] %vm4582, %v4481
      %4639 = vst.msk [vmem:[%s320 + $0x1c0] sm:$0xff] %vm4582, %v3665
      %4640 = vst.msk [vmem:[%s320 + $0x1c8] sm:$0xff] %vm4582, %v3666
      %4641 = vst.msk [vmem:[%s320 + $0x1d0] sm:$0xff] %vm4582, %v3667
      %4642 = vst.msk [vmem:[%s320 + $0x1d8] sm:$0xff] %vm4582, %v3668
      %4643 = vst.msk [vmem:[%s320 + $0x1e0] sm:$0xff] %vm4582, %v4482
      %4644 = vst.msk [vmem:[%s320 + $0x1e8] sm:$0xff] %vm4582, %v4483
      %4645 = vst.msk [vmem:[%s320 + $0x1f0] sm:$0xff] %vm4582, %v4484
      %4646 = vst.msk [vmem:[%s320 + $0x1f8] sm:$0xff] %vm4582, %v4485
      %4647 = vst.msk [vmem:[%s320 + $0x200] sm:$0xff] %vm4582, %v3669
      %4648 = vst.msk [vmem:[%s320 + $0x208] sm:$0xff] %vm4582, %v3670
      %4649 = vst.msk [vmem:[%s320 + $0x210] sm:$0xff] %vm4582, %v3671
      %4650 = vst.msk [vmem:[%s320 + $0x218] sm:$0xff] %vm4582, %v3672
      %4651 = vst.msk [vmem:[%s320 + $0x220] sm:$0xff] %vm4582, %v4486
      %4652 = vst.msk [vmem:[%s320 + $0x228] sm:$0xff] %vm4582, %v4487
      %4653 = vst.msk [vmem:[%s320 + $0x230] sm:$0xff] %vm4582, %v4488
      %4654 = vst.msk [vmem:[%s320 + $0x238] sm:$0xff] %vm4582, %v4489
      %4655 = vst.msk [vmem:[%s320 + $0x240] sm:$0xff] %vm4582, %v3673
      %4656 = vst.msk [vmem:[%s320 + $0x248] sm:$0xff] %vm4582, %v3674
      %4657 = vst.msk [vmem:[%s320 + $0x250] sm:$0xff] %vm4582, %v3675
      %4658 = vst.msk [vmem:[%s320 + $0x258] sm:$0xff] %vm4582, %v3676
      %4659 = vst.msk [vmem:[%s320 + $0x260] sm:$0xff] %vm4582, %v4490
      %4660 = vst.msk [vmem:[%s320 + $0x268] sm:$0xff] %vm4582, %v4491
      %4661 = vst.msk [vmem:[%s320 + $0x270] sm:$0xff] %vm4582, %v4492
      %4662 = vst.msk [vmem:[%s320 + $0x278] sm:$0xff] %vm4582, %v4493
      %4663 = vst.msk [vmem:[%s320 + $0x280] sm:$0xff] %vm4582, %v3677
      %4664 = vst.msk [vmem:[%s320 + $0x288] sm:$0xff] %vm4582, %v3678
      %4665 = vst.msk [vmem:[%s320 + $0x290] sm:$0xff] %vm4582, %v3679
      %4666 = vst.msk [vmem:[%s320 + $0x298] sm:$0xff] %vm4582, %v3680
      %4667 = vst.msk [vmem:[%s320 + $0x2a0] sm:$0xff] %vm4582, %v4494
      %4668 = vst.msk [vmem:[%s320 + $0x2a8] sm:$0xff] %vm4582, %v4495
      %4669 = vst.msk [vmem:[%s320 + $0x2b0] sm:$0xff] %vm4582, %v4496
      %4670 = vst.msk [vmem:[%s320 + $0x2b8] sm:$0xff] %vm4582, %v4497
      %4671 = vst.msk [vmem:[%s320 + $0x2c0] sm:$0xff] %vm4582, %v3681
      %4672 = vst.msk [vmem:[%s320 + $0x2c8] sm:$0xff] %vm4582, %v3682
      %4673 = vst.msk [vmem:[%s320 + $0x2d0] sm:$0xff] %vm4582, %v3683
      %4674 = vst.msk [vmem:[%s320 + $0x2d8] sm:$0xff] %vm4582, %v3684
      %4675 = vst.msk [vmem:[%s320 + $0x2e0] sm:$0xff] %vm4582, %v4498
      %4676 = vst.msk [vmem:[%s320 + $0x2e8] sm:$0xff] %vm4582, %v4499
      %4677 = vst.msk [vmem:[%s320 + $0x2f0] sm:$0xff] %vm4582, %v4500
      %4678 = vst.msk [vmem:[%s320 + $0x2f8] sm:$0xff] %vm4582, %v4501
      %4679 = vst.msk [vmem:[%s320 + $0x300] sm:$0xff] %vm4582, %v3685
      %4680 = vst.msk [vmem:[%s320 + $0x308] sm:$0xff] %vm4582, %v3686
      %4681 = vst.msk [vmem:[%s320 + $0x310] sm:$0xff] %vm4582, %v3687
      %4682 = vst.msk [vmem:[%s320 + $0x318] sm:$0xff] %vm4582, %v3688
      %4683 = vst.msk [vmem:[%s320 + $0x320] sm:$0xff] %vm4582, %v4502
      %4684 = vst.msk [vmem:[%s320 + $0x328] sm:$0xff] %vm4582, %v4503
      %4685 = vst.msk [vmem:[%s320 + $0x330] sm:$0xff] %vm4582, %v4504
      %4686 = vst.msk [vmem:[%s320 + $0x338] sm:$0xff] %vm4582, %v4505
      %4687 = vst.msk [vmem:[%s320 + $0x340] sm:$0xff] %vm4582, %v3689
      %4688 = vst.msk [vmem:[%s320 + $0x348] sm:$0xff] %vm4582, %v3690
      %4689 = vst.msk [vmem:[%s320 + $0x350] sm:$0xff] %vm4582, %v3691
      %4690 = vst.msk [vmem:[%s320 + $0x358] sm:$0xff] %vm4582, %v3692
      %4691 = vst.msk [vmem:[%s320 + $0x360] sm:$0xff] %vm4582, %v4506
      %4692 = vst.msk [vmem:[%s320 + $0x368] sm:$0xff] %vm4582, %v4507
      %4693 = vst.msk [vmem:[%s320 + $0x370] sm:$0xff] %vm4582, %v4508
      %4694 = vst.msk [vmem:[%s320 + $0x378] sm:$0xff] %vm4582, %v4509
      %4695 = vst.msk [vmem:[%s320 + $0x380] sm:$0xff] %vm4582, %v3693
      %4696 = vst.msk [vmem:[%s320 + $0x388] sm:$0xff] %vm4582, %v3694
      %4697 = vst.msk [vmem:[%s320 + $0x390] sm:$0xff] %vm4582, %v3695
      %4698 = vst.msk [vmem:[%s320 + $0x398] sm:$0xff] %vm4582, %v3696
      %4699 = vst.msk [vmem:[%s320 + $0x3a0] sm:$0xff] %vm4582, %v4510
      %4700 = vst.msk [vmem:[%s320 + $0x3a8] sm:$0xff] %vm4582, %v4511
      %4701 = vst.msk [vmem:[%s320 + $0x3b0] sm:$0xff] %vm4582, %v4512
      %4702 = vst.msk [vmem:[%s320 + $0x3b8] sm:$0xff] %vm4582, %v4513
      %4703 = vst.msk [vmem:[%s320 + $0x3c0] sm:$0xff] %vm4582, %v3697
      %4704 = vst.msk [vmem:[%s320 + $0x3c8] sm:$0xff] %vm4582, %v3698
      %4705 = vst.msk [vmem:[%s320 + $0x3d0] sm:$0xff] %vm4582, %v3699
      %4706 = vst.msk [vmem:[%s320 + $0x3d8] sm:$0xff] %vm4582, %v3700
      %4707 = vst.msk [vmem:[%s320 + $0x3e0] sm:$0xff] %vm4582, %v4514
      %4708 = vst.msk [vmem:[%s320 + $0x3e8] sm:$0xff] %vm4582, %v4515
      %4709 = vst.msk [vmem:[%s320 + $0x3f0] sm:$0xff] %vm4582, %v4516
      %4710 = vst.msk [vmem:[%s320 + $0x3f8] sm:$0xff] %vm4582, %v4517
      %4711 = vst.msk [vmem:[%s320 + $0x400] sm:$0xff] %vm4582, %v3701
      %4712 = vst.msk [vmem:[%s320 + $0x408] sm:$0xff] %vm4582, %v3702
      %4713 = vst.msk [vmem:[%s320 + $0x410] sm:$0xff] %vm4582, %v3703
      %4714 = vst.msk [vmem:[%s320 + $0x418] sm:$0xff] %vm4582, %v3704
      %4715 = vst.msk [vmem:[%s320 + $0x420] sm:$0xff] %vm4582, %v4518
      %4716 = vst.msk [vmem:[%s320 + $0x428] sm:$0xff] %vm4582, %v4519
      %4717 = vst.msk [vmem:[%s320 + $0x430] sm:$0xff] %vm4582, %v4520
      %4718 = vst.msk [vmem:[%s320 + $0x438] sm:$0xff] %vm4582, %v4521
      %4719 = vst.msk [vmem:[%s320 + $0x440] sm:$0xff] %vm4582, %v3705
      %4720 = vst.msk [vmem:[%s320 + $0x448] sm:$0xff] %vm4582, %v3706
      %4721 = vst.msk [vmem:[%s320 + $0x450] sm:$0xff] %vm4582, %v3707
      %4722 = vst.msk [vmem:[%s320 + $0x458] sm:$0xff] %vm4582, %v3708
      %4723 = vst.msk [vmem:[%s320 + $0x460] sm:$0xff] %vm4582, %v4522
      %4724 = vst.msk [vmem:[%s320 + $0x468] sm:$0xff] %vm4582, %v4523
      %4725 = vst.msk [vmem:[%s320 + $0x470] sm:$0xff] %vm4582, %v4524
      %4726 = vst.msk [vmem:[%s320 + $0x478] sm:$0xff] %vm4582, %v4525
      %4727 = vst.msk [vmem:[%s320 + $0x480] sm:$0xff] %vm4582, %v3709
      %4728 = vst.msk [vmem:[%s320 + $0x488] sm:$0xff] %vm4582, %v3710
      %4729 = vst.msk [vmem:[%s320 + $0x490] sm:$0xff] %vm4582, %v3711
      %4730 = vst.msk [vmem:[%s320 + $0x498] sm:$0xff] %vm4582, %v3712
      %4731 = vst.msk [vmem:[%s320 + $0x4a0] sm:$0xff] %vm4582, %v4526
      %4732 = vst.msk [vmem:[%s320 + $0x4a8] sm:$0xff] %vm4582, %v4527
      %4733 = vst.msk [vmem:[%s320 + $0x4b0] sm:$0xff] %vm4582, %v4528
      %4734 = vst.msk [vmem:[%s320 + $0x4b8] sm:$0xff] %vm4582, %v4529
      %4735 = vst.msk [vmem:[%s320 + $0x4c0] sm:$0xff] %vm4582, %v3713
      %4736 = vst.msk [vmem:[%s320 + $0x4c8] sm:$0xff] %vm4582, %v3714
      %4737 = vst.msk [vmem:[%s320 + $0x4d0] sm:$0xff] %vm4582, %v3715
      %4738 = vst.msk [vmem:[%s320 + $0x4d8] sm:$0xff] %vm4582, %v3716
      %4739 = vst.msk [vmem:[%s320 + $0x4e0] sm:$0xff] %vm4582, %v4530
      %4740 = vst.msk [vmem:[%s320 + $0x4e8] sm:$0xff] %vm4582, %v4531
      %4741 = vst.msk [vmem:[%s320 + $0x4f0] sm:$0xff] %vm4582, %v4532
      %4742 = vst.msk [vmem:[%s320 + $0x4f8] sm:$0xff] %vm4582, %v4533
      %4743 = vst.msk [vmem:[%s320 + $0x500] sm:$0xff] %vm4582, %v3717
      %4744 = vst.msk [vmem:[%s320 + $0x508] sm:$0xff] %vm4582, %v3718
      %4745 = vst.msk [vmem:[%s320 + $0x510] sm:$0xff] %vm4582, %v3719
      %4746 = vst.msk [vmem:[%s320 + $0x518] sm:$0xff] %vm4582, %v3720
      %4747 = vst.msk [vmem:[%s320 + $0x520] sm:$0xff] %vm4582, %v4534
      %4748 = vst.msk [vmem:[%s320 + $0x528] sm:$0xff] %vm4582, %v4535
      %4749 = vst.msk [vmem:[%s320 + $0x530] sm:$0xff] %vm4582, %v4536
      %4750 = vst.msk [vmem:[%s320 + $0x538] sm:$0xff] %vm4582, %v4537
      %4751 = vst.msk [vmem:[%s320 + $0x540] sm:$0xff] %vm4582, %v3721
      %4752 = vst.msk [vmem:[%s320 + $0x548] sm:$0xff] %vm4582, %v3722
      %4753 = vst.msk [vmem:[%s320 + $0x550] sm:$0xff] %vm4582, %v3723
      %4754 = vst.msk [vmem:[%s320 + $0x558] sm:$0xff] %vm4582, %v3724
      %4755 = vst.msk [vmem:[%s320 + $0x560] sm:$0xff] %vm4582, %v4538
      %4756 = vst.msk [vmem:[%s320 + $0x568] sm:$0xff] %vm4582, %v4539
      %4757 = vst.msk [vmem:[%s320 + $0x570] sm:$0xff] %vm4582, %v4540
      %4758 = vst.msk [vmem:[%s320 + $0x578] sm:$0xff] %vm4582, %v4541
      %4759 = vst.msk [vmem:[%s320 + $0x580] sm:$0xff] %vm4582, %v3725
      %4760 = vst.msk [vmem:[%s320 + $0x588] sm:$0xff] %vm4582, %v3726
      %4761 = vst.msk [vmem:[%s320 + $0x590] sm:$0xff] %vm4582, %v3727
      %4762 = vst.msk [vmem:[%s320 + $0x598] sm:$0xff] %vm4582, %v3728
      %4763 = vst.msk [vmem:[%s320 + $0x5a0] sm:$0xff] %vm4582, %v4542
      %4764 = vst.msk [vmem:[%s320 + $0x5a8] sm:$0xff] %vm4582, %v4543
      %4765 = vst.msk [vmem:[%s320 + $0x5b0] sm:$0xff] %vm4582, %v4544
      %4766 = vst.msk [vmem:[%s320 + $0x5b8] sm:$0xff] %vm4582, %v4545
      %4767 = vst.msk [vmem:[%s320 + $0x5c0] sm:$0xff] %vm4582, %v3729
      %4768 = vst.msk [vmem:[%s320 + $0x5c8] sm:$0xff] %vm4582, %v3730
      %4769 = vst.msk [vmem:[%s320 + $0x5d0] sm:$0xff] %vm4582, %v3731
      %4770 = vst.msk [vmem:[%s320 + $0x5d8] sm:$0xff] %vm4582, %v3732
      %4771 = vst.msk [vmem:[%s320 + $0x5e0] sm:$0xff] %vm4582, %v4546
      %4772 = vst.msk [vmem:[%s320 + $0x5e8] sm:$0xff] %vm4582, %v4547
      %4773 = vst.msk [vmem:[%s320 + $0x5f0] sm:$0xff] %vm4582, %v4548
      %4774 = vst.msk [vmem:[%s320 + $0x5f8] sm:$0xff] %vm4582, %v4549
      %4775 = vst.msk [vmem:[%s320 + $0x600] sm:$0xff] %vm4582, %v3733
      %4776 = vst.msk [vmem:[%s320 + $0x608] sm:$0xff] %vm4582, %v3734
      %4777 = vst.msk [vmem:[%s320 + $0x610] sm:$0xff] %vm4582, %v3735
      %4778 = vst.msk [vmem:[%s320 + $0x618] sm:$0xff] %vm4582, %v3736
      %4779 = vst.msk [vmem:[%s320 + $0x620] sm:$0xff] %vm4582, %v4550
      %4780 = vst.msk [vmem:[%s320 + $0x628] sm:$0xff] %vm4582, %v4551
      %4781 = vst.msk [vmem:[%s320 + $0x630] sm:$0xff] %vm4582, %v4552
      %4782 = vst.msk [vmem:[%s320 + $0x638] sm:$0xff] %vm4582, %v4553
      %4783 = vst.msk [vmem:[%s320 + $0x640] sm:$0xff] %vm4582, %v3737
      %4784 = vst.msk [vmem:[%s320 + $0x648] sm:$0xff] %vm4582, %v3738
      %4785 = vst.msk [vmem:[%s320 + $0x650] sm:$0xff] %vm4582, %v3739
      %4786 = vst.msk [vmem:[%s320 + $0x658] sm:$0xff] %vm4582, %v3740
      %4787 = vst.msk [vmem:[%s320 + $0x660] sm:$0xff] %vm4582, %v4554
      %4788 = vst.msk [vmem:[%s320 + $0x668] sm:$0xff] %vm4582, %v4555
      %4789 = vst.msk [vmem:[%s320 + $0x670] sm:$0xff] %vm4582, %v4556
      %4790 = vst.msk [vmem:[%s320 + $0x678] sm:$0xff] %vm4582, %v4557
      %4791 = vst.msk [vmem:[%s320 + $0x680] sm:$0xff] %vm4582, %v3741
      %4792 = vst.msk [vmem:[%s320 + $0x688] sm:$0xff] %vm4582, %v3742
      %4793 = vst.msk [vmem:[%s320 + $0x690] sm:$0xff] %vm4582, %v3743
      %4794 = vst.msk [vmem:[%s320 + $0x698] sm:$0xff] %vm4582, %v3744
      %4795 = vst.msk [vmem:[%s320 + $0x6a0] sm:$0xff] %vm4582, %v4558
      %4796 = vst.msk [vmem:[%s320 + $0x6a8] sm:$0xff] %vm4582, %v4559
      %4797 = vst.msk [vmem:[%s320 + $0x6b0] sm:$0xff] %vm4582, %v4560
      %4798 = vst.msk [vmem:[%s320 + $0x6b8] sm:$0xff] %vm4582, %v4561
      %4799 = vst.msk [vmem:[%s320 + $0x6c0] sm:$0xff] %vm4582, %v3745
      %4800 = vst.msk [vmem:[%s320 + $0x6c8] sm:$0xff] %vm4582, %v3746
      %4801 = vst.msk [vmem:[%s320 + $0x6d0] sm:$0xff] %vm4582, %v3747
      %4802 = vst.msk [vmem:[%s320 + $0x6d8] sm:$0xff] %vm4582, %v3748
      %4803 = vst.msk [vmem:[%s320 + $0x6e0] sm:$0xff] %vm4582, %v4562
      %4804 = vst.msk [vmem:[%s320 + $0x6e8] sm:$0xff] %vm4582, %v4563
      %4805 = vst.msk [vmem:[%s320 + $0x6f0] sm:$0xff] %vm4582, %v4564
      %4806 = vst.msk [vmem:[%s320 + $0x6f8] sm:$0xff] %vm4582, %v4565
      %4807 = vst.msk [vmem:[%s320 + $0x700] sm:$0xff] %vm4582, %v3749
      %4808 = vst.msk [vmem:[%s320 + $0x708] sm:$0xff] %vm4582, %v3750
      %4809 = vst.msk [vmem:[%s320 + $0x710] sm:$0xff] %vm4582, %v3751
      %4810 = vst.msk [vmem:[%s320 + $0x718] sm:$0xff] %vm4582, %v3752
      %4811 = vst.msk [vmem:[%s320 + $0x720] sm:$0xff] %vm4582, %v4566
      %4812 = vst.msk [vmem:[%s320 + $0x728] sm:$0xff] %vm4582, %v4567
      %4813 = vst.msk [vmem:[%s320 + $0x730] sm:$0xff] %vm4582, %v4568
      %4814 = vst.msk [vmem:[%s320 + $0x738] sm:$0xff] %vm4582, %v4569
      %4815 = vst.msk [vmem:[%s320 + $0x740] sm:$0xff] %vm4582, %v3753
      %4816 = vst.msk [vmem:[%s320 + $0x748] sm:$0xff] %vm4582, %v3754
      %4817 = vst.msk [vmem:[%s320 + $0x750] sm:$0xff] %vm4582, %v3755
      %4818 = vst.msk [vmem:[%s320 + $0x758] sm:$0xff] %vm4582, %v3756
      %4819 = vst.msk [vmem:[%s320 + $0x760] sm:$0xff] %vm4582, %v4570
      %4820 = vst.msk [vmem:[%s320 + $0x768] sm:$0xff] %vm4582, %v4571
      %4821 = vst.msk [vmem:[%s320 + $0x770] sm:$0xff] %vm4582, %v4572
      %4822 = vst.msk [vmem:[%s320 + $0x778] sm:$0xff] %vm4582, %v4573
      %4823 = vst.msk [vmem:[%s320 + $0x780] sm:$0xff] %vm4582, %v3757
      %4824 = vst.msk [vmem:[%s320 + $0x788] sm:$0xff] %vm4582, %v3758
      %4825 = vst.msk [vmem:[%s320 + $0x790] sm:$0xff] %vm4582, %v3759
      %4826 = vst.msk [vmem:[%s320 + $0x798] sm:$0xff] %vm4582, %v3760
      %4827 = vst.msk [vmem:[%s320 + $0x7a0] sm:$0xff] %vm4582, %v4574
      %4828 = vst.msk [vmem:[%s320 + $0x7a8] sm:$0xff] %vm4582, %v4575
      %4829 = vst.msk [vmem:[%s320 + $0x7b0] sm:$0xff] %vm4582, %v4576
      %4830 = vst.msk [vmem:[%s320 + $0x7b8] sm:$0xff] %vm4582, %v4577
      %4831 = vst.msk [vmem:[%s320 + $0x7c0] sm:$0xff] %vm4582, %v3761
      %4832 = vst.msk [vmem:[%s320 + $0x7c8] sm:$0xff] %vm4582, %v3762
      %4833 = vst.msk [vmem:[%s320 + $0x7d0] sm:$0xff] %vm4582, %v3763
      %4834 = vst.msk [vmem:[%s320 + $0x7d8] sm:$0xff] %vm4582, %v3764
      %4835 = vst.msk [vmem:[%s320 + $0x7e0] sm:$0xff] %vm4582, %v4578
      %4836 = vst.msk [vmem:[%s320 + $0x7e8] sm:$0xff] %vm4582, %v4579
      %4837 = vst.msk [vmem:[%s320 + $0x7f0] sm:$0xff] %vm4582, %v4580
      %4838 = vst.msk [vmem:[%s320 + $0x7f8] sm:$0xff] %vm4582, %v4581
      %s4839 = smul.u32 64, %s21
      %p4840 = scmp.lt.s32.totalorder %s20, 1
      %s4841 = scalar_select %p4840, %s20, 1
      %p4842 = scmp.lt.s32.totalorder %s4839, 63
      %s4843 = scalar_select %p4842, %s4839, 63
      %s4844 = smul.addr %s4843, 4
      %s4845 = smul.addr %s4841, 256
      %s4846 = sadd.s32 %s4844, %s4845
      %s4847 = smul.addr %s4846, 8
      %s4848 = scalar_lea.vmem %s5, %s4847
      // Predicated region
      $region41: #{synthesis_net_forward.7} parent=39 // pred_check
        %p4849 = pneg %p171
      $region42: #{synthesis_net_forward.7} parent=39 // pred_check_branch
        %4851 = sbr.rel (%p4849) target = $region44
      $region43: #{synthesis_net_forward.7} parent=39 // pred_region
        %s4852 = smul.u32 64, %s21
      $region44: #{synthesis_net_forward.7} parent=39 // pred_fallthru
        _
    $region40: #{synthesis_net_forward.7} parent=5 // pred_fallthru
      _
    %p4853 = scmp.le.s32.totalorder 2, %s11
    // Predicated region
    $region45: #{synthesis_net_forward.7} parent=5 // pred_check
      %p4854 = pneg %p4853
    $region46: #{synthesis_net_forward.7} parent=5 // pred_check_branch
      %4856 = sbr.rel (%p4854) target = $region48
    $region47: #{synthesis_net_forward.7} parent=5 // pred_region
      %s4857 = ssub.s32 %s11, 2
      // Predicated region
      $region49: #{synthesis_net_forward.7} parent=47 // pred_check
        %p4858 = pneg %p177
      $region50: #{synthesis_net_forward.7} parent=47 // pred_check_branch
        %4860 = sbr.rel (%p4858) target = $region52
      $region51: #{synthesis_net_forward.7} parent=47 // pred_region
        %s4861 = smul.u32 64, %s23
        %p4862 = scmp.lt.s32.totalorder %s22, 1
        %s4863 = scalar_select %p4862, %s22, 1
        %p4864 = scmp.lt.s32.totalorder %s4861, 63
        %s4865 = scalar_select %p4864, %s4861, 63
        %s4866 = smul.addr %s4865, 4
        %s4867 = smul.addr %s4863, 256
        %s4868 = sadd.s32 %s4866, %s4867
        %s4869 = smul.addr %s4868, 8
        %s4870 = scalar_lea.vmem %s5, %s4869
      $region52: #{synthesis_net_forward.7} parent=47 // pred_fallthru
        _
    $region48: #{synthesis_net_forward.7} parent=5 // pred_fallthru
      _
  $region6: #{synthesis_net_forward.7} parent=0 // loop_footer
    %s15 = sadd.s32 1, %s11
  $region7: #{synthesis_net_forward.7} parent=0 // loop_footer_branch
    %10 = sbr.rel target = $region3
  $region8: #{synthesis_net_forward.7} parent=0 // loop_exit
    _

</llo_original>
